<compile_context>
chip_gen: v7x
topology: tpu7x:2x2x1
jax: 0.10.0
libtpu: 0.0.40
codegen_flags: <defaults>
</compile_context>

<pallas_src>
import math
import functools

import jax
import jax.numpy as jnp
from jax.experimental import pallas as pl
from jax.experimental.pallas import tpu as pltpu


def _round_up(x, m):
    return (x + m - 1) // m * m


def _cparams(n_grid):
    return pltpu.CompilerParams(
        dimension_semantics=("parallel",) * n_grid,
        vmem_limit_bytes=32 * 1024 * 1024)


# ----------------------- fused (multi-head) MLP kernel -----------------------

def _mlp_heads_kernel(*refs, layer_counts, final_acts):
    n_heads = len(layer_counts)
    n_w = 2 * sum(layer_counts)
    x = refs[0][...]
    w_refs = refs[1:1 + n_w]
    out_refs = refs[1 + n_w:1 + n_w + n_heads]
    ptr = 0
    for hd in range(n_heads):
        h = x
        nl = layer_counts[hd]
        for i in range(nl):
            w_ref = w_refs[ptr]
            b_ref = w_refs[ptr + 1]
            ptr += 2
            # bf16 MXU operands, f32 accumulator; activations stay VMEM-resident.
            h = jnp.dot(h.astype(jnp.bfloat16), w_ref[...],
                        preferred_element_type=jnp.float32) + b_ref[...]
            if i < nl - 1:
                h = jnp.maximum(h, 0.0)          # hidden ReLU
            elif final_acts[hd] == "tanh":
                h = jnp.tanh(h)                  # fused final tanh (offset head)
        out_refs[hd][...] = h


def fused_mlp_heads(x, heads, *, tm=256):
    """One pallas_call running 1+ whole MLPs on a shared input.

    heads: list of (layers, final_act) with layers = [(W bf16 (K,N), b f32 (1,N)),...].
    Returns a list of row-padded f32 outputs (Mp, N_last_i); caller slices rows/cols.
    """
    M, K0 = x.shape
    tm = min(tm, _round_up(M, 8))
    Mp = _round_up(M, tm)
    xp = jnp.pad(x, ((0, Mp - M), (0, 0)))

    in_specs = [pl.BlockSpec((tm, K0), lambda i: (i, 0))]
    args = [xp]
    out_shapes, out_specs = [], []
    layer_counts, final_acts = [], []
    for layers, fact in heads:
        layer_counts.append(len(layers))
        final_acts.append(fact)
        for (w, b) in layers:
            kin, kout = w.shape
            in_specs.append(pl.BlockSpec((kin, kout), lambda i: (0, 0)))
            in_specs.append(pl.BlockSpec((1, kout), lambda i: (0, 0)))
            args += [w, b]
        n_out = layers[-1][0].shape[1]
        out_shapes.append(jax.ShapeDtypeStruct((Mp, n_out), jnp.float32))
        out_specs.append(pl.BlockSpec((tm, n_out), lambda i: (i, 0)))

    outs = pl.pallas_call(
        functools.partial(_mlp_heads_kernel, layer_counts=tuple(layer_counts),
                          final_acts=tuple(final_acts)),
        out_shape=tuple(out_shapes),
        grid=(Mp // tm,),
        in_specs=in_specs,
        out_specs=tuple(out_specs),
        compiler_params=_cparams(1),
    )(*args)
    if not isinstance(outs, (tuple, list)):
        outs = (outs,)
    return list(outs)


# ----------------------------- direct 3x3 conv kernel -----------------------------

def _conv3x3_kernel(x_ref, wpos_ref, w_ref, b_ref, o_ref, *, H, W, leaky_in):
    # x_ref : (R, C)   H-zero-padded NHWC rows flattened, R = (H+2)*W + 2
    # w_ref : (9, C, O) bf16, tap index = kh*3 + kw
    # o_ref : (H*W, O) point-major (n = h*W + w)
    HW = H * W
    O = o_ref.shape[-1]
    wpos = wpos_ref[...]                          # (HW, 1) int32 = n % W
    acc = jnp.zeros((HW, O), jnp.float32)
    for kh in range(3):
        for kw in range(3):
            xs = x_ref[pl.ds(kh * W + kw, HW), :]          # shifted view (VMEM)
            if leaky_in:                                    # fused LeakyReLU(0.01)
                xs = jnp.where(xs >= 0, xs, 0.01 * xs)
            if kw == 0:                                     # left W-boundary pad
                xs = jnp.where(wpos == 0, 0.0, xs)
            elif kw == 2:                                   # right W-boundary pad
                xs = jnp.where(wpos == W - 1, 0.0, xs)
            acc = acc + jnp.dot(xs.astype(jnp.bfloat16), w_ref[kh * 3 + kw],
                                preferred_element_type=jnp.float32)
    o_ref[...] = (acc + b_ref[...]).astype(o_ref.dtype)


def conv3x3_pallas(x_nhwc, w9, b, *, leaky_in=False, out_dtype=jnp.bfloat16):
    """3x3 conv, stride 1, pad 1.  x: (B,H,W,C) NHWC; returns (B, H*W, O)."""
    B, H, W, C = x_nhwc.shape
    O = w9.shape[-1]
    HW = H * W
    R = (H + 2) * W + 2
    xp = jnp.pad(x_nhwc, ((0, 0), (1, 1), (0, 0), (0, 0))).reshape(B, (H + 2) * W, C)
    xp = jnp.pad(xp, ((0, 0), (1, 1), (0, 0)))            # (B, R, C)
    wpos = (jnp.arange(HW, dtype=jnp.int32) % W).reshape(HW, 1)
    return pl.pallas_call(
        functools.partial(_conv3x3_kernel, H=H, W=W, leaky_in=leaky_in),
        out_shape=jax.ShapeDtypeStruct((B, HW, O), out_dtype),
        grid=(B,),
        in_specs=[
            pl.BlockSpec((None, R, C), lambda bi: (bi, 0, 0)),
            pl.BlockSpec((HW, 1), lambda bi: (0, 0)),
            pl.BlockSpec((9, C, O), lambda bi: (0, 0, 0)),
            pl.BlockSpec((1, O), lambda bi: (0, 0)),
        ],
        out_specs=pl.BlockSpec((None, HW, O), lambda bi: (bi, 0, 0)),
        compiler_params=_cparams(1),
    )(xp, wpos, w9, b)


# ----------------------------- fused dictionary attention -----------------------------

def _dict_attn_kernel(p_ref, v_ref, g_ref, o_ref, *, d_valid):
    # scores = p @ v^T (contract feature dims) -> softmax over dict dim -> @ gau_dict
    s = jax.lax.dot_general(p_ref[...].astype(jnp.bfloat16), v_ref[...],
                            (((1,), (1,)), ((), ())),
                            preferred_element_type=jnp.float32)
    col = jax.lax.broadcasted_iota(jnp.int32, s.shape, 1)
    s = jnp.where(col < d_valid, s, -1e30)        # mask padded dictionary rows (f32)
    m = jnp.max(s, axis=-1, keepdims=True)
    e = jnp.exp(s - m)
    sm = e * pl.reciprocal(jnp.sum(e, axis=-1, keepdims=True), approx=True)
    o_ref[...] = jnp.dot(sm, g_ref[...], preferred_element_type=jnp.float32)


def pallas_dict_attention(p, v_pad, gau_pad, d_valid, tm=256):
    """p: (M,K) bf16; v_pad: (Dp,K) bf16; gau_pad: (Dp,128) f32. Returns (Mp,128) f32."""
    M, K = p.shape
    Dp = v_pad.shape[0]
    Cp = gau_pad.shape[1]
    tm = min(tm, _round_up(M, 8))
    Mp = _round_up(M, tm)
    pp = jnp.pad(p, ((0, Mp - M), (0, 0)))
    return pl.pallas_call(
        functools.partial(_dict_attn_kernel, d_valid=d_valid),
        out_shape=jax.ShapeDtypeStruct((Mp, Cp), jnp.float32),
        grid=(Mp // tm,),
        in_specs=[
            pl.BlockSpec((tm, K), lambda i: (i, 0)),
            pl.BlockSpec((Dp, K), lambda i: (0, 0)),
            pl.BlockSpec((Dp, Cp), lambda i: (0, 0)),
        ],
        out_specs=pl.BlockSpec((tm, Cp), lambda i: (i, 0)),   # lane-dense (128-wide)
        compiler_params=_cparams(1),
    )(pp, v_pad, gau_pad)


# ----------------------------- parameter construction / prep -----------------------------

def get_coord(width, height):
    x = jnp.arange(width, dtype=jnp.float32)
    y = jnp.arange(height, dtype=jnp.float32)
    xg, yg = jnp.meshgrid(x, y, indexing="ij")
    xg = 2 * (xg / width) - 1
    yg = 2 * (yg / height) - 1
    return jnp.stack((yg, xg), axis=-1).reshape(-1, 2)


def build_gau_dict():
    cho1 = jnp.array([0, 0.41, 0.62, 0.98, 1.13, 1.29, 1.64, 1.85, 2.36], jnp.float32)
    cho2 = jnp.array([-0.86, -0.36, -0.16, 0.19, 0.34, 0.49, 0.84, 1.04, 1.54], jnp.float32)
    cho3 = jnp.array([0, 0.33, 0.53, 0.88, 1.03, 1.18, 1.53, 1.73, 2.23], jnp.float32)
    g = jnp.stack(jnp.meshgrid(cho1, cho2, cho3, indexing="ij"), axis=-1).reshape(-1, 3)
    return jnp.concatenate([g, jnp.zeros((1, 3), jnp.float32)], axis=0)   # (730, 3)


def init_linear(key, in_dim, out_dim):
    k1, k2 = jax.random.split(key)
    bound = 1.0 / math.sqrt(in_dim)
    w = jax.random.uniform(k1, (in_dim, out_dim), jnp.float32, -bound, bound)
    b = jax.random.uniform(k2, (out_dim,), jnp.float32, -bound, bound)
    return w, b


def init_mlp(key, in_dim, out_dim, hidden_list):
    dims = [in_dim] + list(hidden_list) + [out_dim]
    keys = jax.random.split(key, len(dims) - 1)
    return [init_linear(k, dims[i], dims[i + 1]) for i, k in enumerate(keys)]


def init_conv(key, in_c, out_c, k=3):
    k1, k2 = jax.random.split(key)
    bound = 1.0 / math.sqrt(in_c * k * k)
    w = jax.random.uniform(k1, (out_c, in_c, k, k), jnp.float32, -bound, bound)
    b = jax.random.uniform(k2, (out_c,), jnp.float32, -bound, bound)
    return w, b


def _prep_conv(w, b):
    """(O,C,3,3) torch layout -> (9,C,O) bf16 (tap-major), bias (1,O) f32."""
    O, C = w.shape[0], w.shape[1]
    w9 = jnp.transpose(w, (2, 3, 1, 0)).reshape(9, C, O).astype(jnp.bfloat16)
    return w9, b.reshape(1, O).astype(jnp.float32)


def _prep_mlp(layers, pad_out_to=None):
    """bf16 weights, (1,N) f32 biases; optionally zero-pad the last layer's output
    width to a lane-dense multiple of 128 (sliced off in the wrapper)."""
    out = []
    n = len(layers)
    for i, (w, b) in enumerate(layers):
        if i == n - 1 and pad_out_to is not None and w.shape[1] < pad_out_to:
            w = jnp.pad(w, ((0, 0), (0, pad_out_to - w.shape[1])))
            b = jnp.pad(b, (0, pad_out_to - b.shape[0]))
        out.append((w.astype(jnp.bfloat16), b.reshape(1, -1).astype(jnp.float32)))
    return out


def prepare_params(raw):
    """One-time (hoisted) weight padding / bf16 conversion / constant precompute."""
    p = {}
    p["enc_w9"], p["enc_b"] = _prep_conv(raw["enc_w"], raw["enc_b"])
    p["conv1_w9"], p["conv1_b"] = _prep_conv(raw["conv1_w"], raw["conv1_b"])
    p["mlp_color"] = _prep_mlp(raw["mlp_color"], pad_out_to=128)
    p["mlp_offset"] = _prep_mlp(raw["mlp_offset"], pad_out_to=128)
    mlp_vector = _prep_mlp(raw["mlp_vector"])           # out_dim = 512, already dense

    gau = raw["gau_dict"]                               # (730, 3) f32
    p["n_dict"] = gau.shape[0]
    # vector = mlp_vector(gau_dict) depends only on parameters -> compute once here.
    vector, = fused_mlp_heads(gau, [(mlp_vector, "none")])   # (Dp, 512) f32, row-padded
    p["vector_bf16"] = vector.astype(jnp.bfloat16)      # (Dp, 512)
    Dp = vector.shape[0]
    p["gau_dict_pad"] = jnp.pad(gau, ((0, Dp - gau.shape[0]), (0, 128 - gau.shape[1])))
    return p


# ----------------------------- forward pass -----------------------------

def continuous_gaussian_forward(params, inp, scale):
    bs, _, lr_h, lr_w = inp.shape

    # --- gen_feat ---------------------------------------------------------
    # TODO(synk): encoder_spec is an external model; using a synthetic encoder
    # (3->64 conv3x3 + 4x nearest upsample) followed by PixelUnshuffle(2).
    x_nhwc = jnp.transpose(inp, (0, 2, 3, 1))                                 # (bs,lr,lr,3)
    enc = conv3x3_pallas(x_nhwc, params["enc_w9"], params["enc_b"])           # (bs,lr*lr,64)
    enc = enc.reshape(bs, lr_h, lr_w, 64)
    enc = jnp.repeat(jnp.repeat(enc, 4, axis=1), 4, axis=2)                   # (bs,4lr,4lr,64)
    H2, W2 = lr_h * 2, lr_w * 2
    t = enc.reshape(bs, H2, 2, W2, 2, 64).transpose(0, 1, 3, 5, 2, 4)
    feat = t.reshape(bs, H2, W2, 256)          # NHWC; channel = c*4 + dh*2 + dw (PixelUnshuffle order)

    # --- query_output -----------------------------------------------------
    if scale.shape == (1, 2):
        scale1 = float(scale[0, 0]); scale2 = float(scale[0, 1])
    else:
        scale1 = float(scale[0]); scale2 = float(scale[0])
    H = round(int(lr_h) * scale1)
    W = round(int(lr_w) * scale2)
    n_pts = lr_h * lr_w * 4

    # point-major features (row = b*N + h*W2 + w) -- a free reshape in NHWC.
    feat_pts = feat.reshape(bs * n_pts, 256)

    # color + offset branches: two 6-layer MLPs fused into ONE kernel (shared
    # input tile, single launch).  Final tanh of the offset head is fused.
    color_pad, offset_pad = fused_mlp_heads(
        feat_pts,
        [(params["mlp_color"], "none"), (params["mlp_offset"], "tanh")])
    color = color_pad[:bs * n_pts, :3].reshape(bs, n_pts, 3)
    offset = offset_pad[:bs * n_pts, :2].reshape(bs, n_pts, 2)

    # gaussian-parameter branch: LeakyReLU fused into the conv1 kernel.
    para_map = conv3x3_pallas(feat, params["conv1_w9"], params["conv1_b"],
                              leaky_in=True)                                  # (bs, N, 512)
    para_pts = para_map.reshape(bs * n_pts, 512)
    para = pallas_dict_attention(para_pts, params["vector_bf16"],
                                 params["gau_dict_pad"],
                                 d_valid=params["n_dict"])[:bs * n_pts, :3]
    para = para.reshape(bs, n_pts, 3)

    # per-gaussian geometry (tiny elementwise glue; axis order matches the reference).
    window_size = 1
    coord = get_coord(lr_h * 2, lr_w * 2)                                     # (N, 2)
    xyz1 = coord[None, :, 0:1] + 2 * window_size * offset[:, :, 0:1] / lr_w - 1.0 / W
    xyz2 = coord[None, :, 1:2] + 2 * window_size * offset[:, :, 1:2] / lr_h - 1.0 / H
    xyz = jnp.concatenate([xyz1, xyz2], axis=-1)                              # (bs, N, 2)
    cholesky = (para / 4.0) * jnp.array([scale2, scale2, scale1], jnp.float32)[None, None, :]
    opacity = jnp.ones((bs, n_pts, 1), jnp.float32)

    # TODO(synk): project_gaussians_2d / rasterize_gaussians_sum are external CUDA
    # rasterizer ops; returning per-gaussian parameters instead of the rasterized image.
    return xyz, cholesky, color, opacity


if __name__ == "__main__":
    key = jax.random.PRNGKey(0)
    k_inp, k_enc, k_c1, k_mv, k_mc, k_mo = jax.random.split(key, 6)

    bs, lr = 2, 8
    inp = jax.random.normal(k_inp, (bs, 3, lr, lr), jnp.float32)
    scale = jnp.array([[2.0, 2.0]], jnp.float32)

    raw = {"gau_dict": build_gau_dict()}
    raw["enc_w"], raw["enc_b"] = init_conv(k_enc, 3, 64)
    raw["conv1_w"], raw["conv1_b"] = init_conv(k_c1, 256, 512)
    raw["mlp_vector"] = init_mlp(k_mv, 3, 512, [256, 512, 512, 512])
    raw["mlp_color"] = init_mlp(k_mc, 256, 3, [512, 1024, 256, 128, 64])
    raw["mlp_offset"] = init_mlp(k_mo, 256, 2, [512, 1024, 256, 128, 64])

    params = prepare_params(raw)
    outs = continuous_gaussian_forward(params, inp, scale)
    outs = jax.block_until_ready(outs)
    print("KERNEL_OK")
</pallas_src>

<mosaic_0001>
module attributes {stable_mosaic.version = 11 : i64} {
  func.func @_mlp_heads_kernel(%arg0: i32, %arg1: memref<256x3xf32, #tpu.memory_space<vmem>>, %arg2: memref<3x256xbf16, #tpu.memory_space<vmem>>, %arg3: memref<1x256xf32, #tpu.memory_space<vmem>>, %arg4: memref<256x512xbf16, #tpu.memory_space<vmem>>, %arg5: memref<1x512xf32, #tpu.memory_space<vmem>>, %arg6: memref<512x512xbf16, #tpu.memory_space<vmem>>, %arg7: memref<1x512xf32, #tpu.memory_space<vmem>>, %arg8: memref<512x512xbf16, #tpu.memory_space<vmem>>, %arg9: memref<1x512xf32, #tpu.memory_space<vmem>>, %arg10: memref<512x512xbf16, #tpu.memory_space<vmem>>, %arg11: memref<1x512xf32, #tpu.memory_space<vmem>>, %arg12: memref<256x512xf32, #tpu.memory_space<vmem>>) attributes {dimension_semantics = [#tpu.dimension_semantics<parallel>], iteration_bounds = array<i64: 3>, scalar_prefetch = 0 : i64, scratch_operands = 0 : i64, tpu.core_type = #tpu.core_type<tc>, window_params = [{transform_indices = @transform_0, window_bounds = array<i64: 256, 3>}, {pipeline_mode = #tpu.pipeline_mode<synchronous>, transform_indices = @transform_1, window_bounds = array<i64: 3, 256>}, {pipeline_mode = #tpu.pipeline_mode<synchronous>, transform_indices = @transform_2, window_bounds = array<i64: 1, 256>}, {pipeline_mode = #tpu.pipeline_mode<synchronous>, transform_indices = @transform_3, window_bounds = array<i64: 256, 512>}, {pipeline_mode = #tpu.pipeline_mode<synchronous>, transform_indices = @transform_4, window_bounds = array<i64: 1, 512>}, {pipeline_mode = #tpu.pipeline_mode<synchronous>, transform_indices = @transform_5, window_bounds = array<i64: 512, 512>}, {pipeline_mode = #tpu.pipeline_mode<synchronous>, transform_indices = @transform_6, window_bounds = array<i64: 1, 512>}, {pipeline_mode = #tpu.pipeline_mode<synchronous>, transform_indices = @transform_7, window_bounds = array<i64: 512, 512>}, {pipeline_mode = #tpu.pipeline_mode<synchronous>, transform_indices = @transform_8, window_bounds = array<i64: 1, 512>}, {pipeline_mode = #tpu.pipeline_mode<synchronous>, transform_indices = @transform_9, window_bounds = array<i64: 512, 512>}, {pipeline_mode = #tpu.pipeline_mode<synchronous>, transform_indices = @transform_10, window_bounds = array<i64: 1, 512>}, {transform_indices = @transform_11, window_bounds = array<i64: 256, 512>}]} {
    %c0 = arith.constant 0 : index
    %c0_0 = arith.constant 0 : index
    %0 = vector.load %arg1[%c0, %c0_0] : memref<256x3xf32, #tpu.memory_space<vmem>>, vector<256x3xf32>
    %1 = arith.truncf %0 : vector<256x3xf32> to vector<256x3xbf16>
    %c0_1 = arith.constant 0 : index
    %c0_2 = arith.constant 0 : index
    %2 = vector.load %arg2[%c0_1, %c0_2] : memref<3x256xbf16, #tpu.memory_space<vmem>>, vector<3x256xbf16>
    %cst = arith.constant dense<0.000000e+00> : vector<256x256xf32>
    %3 = tpu.matmul %1, %2, %cst {dimension_numbers = #tpu.dot_dimension_numbers<[1], [0], [0], [1], [0, 0, 1, 1], [], []>} : vector<256x3xbf16>, vector<3x256xbf16>, vector<256x256xf32> -> vector<256x256xf32>
    %c0_3 = arith.constant 0 : index
    %c0_4 = arith.constant 0 : index
    %4 = vector.load %arg3[%c0_3, %c0_4] : memref<1x256xf32, #tpu.memory_space<vmem>>, vector<1x256xf32>
    %5 = vector.broadcast %4 : vector<1x256xf32> to vector<256x256xf32>
    %6 = arith.addf %3, %5 : vector<256x256xf32>
    %cst_5 = arith.constant 0.000000e+00 : f32
    %7 = vector.broadcast %cst_5 : f32 to vector<256x256xf32>
    %8 = arith.maximumf %6, %7 : vector<256x256xf32>
    %9 = arith.truncf %8 : vector<256x256xf32> to vector<256x256xbf16>
    %c0_6 = arith.constant 0 : index
    %c0_7 = arith.constant 0 : index
    %10 = vector.load %arg4[%c0_6, %c0_7] : memref<256x512xbf16, #tpu.memory_space<vmem>>, vector<256x512xbf16>
    %cst_8 = arith.constant dense<0.000000e+00> : vector<256x512xf32>
    %11 = tpu.matmul %9, %10, %cst_8 {dimension_numbers = #tpu.dot_dimension_numbers<[1], [0], [0], [1], [0, 0, 1, 1], [], []>} : vector<256x256xbf16>, vector<256x512xbf16>, vector<256x512xf32> -> vector<256x512xf32>
    %c0_9 = arith.constant 0 : index
    %c0_10 = arith.constant 0 : index
    %12 = vector.load %arg5[%c0_9, %c0_10] : memref<1x512xf32, #tpu.memory_space<vmem>>, vector<1x512xf32>
    %13 = vector.broadcast %12 : vector<1x512xf32> to vector<256x512xf32>
    %14 = arith.addf %11, %13 : vector<256x512xf32>
    %cst_11 = arith.constant 0.000000e+00 : f32
    %15 = vector.broadcast %cst_11 : f32 to vector<256x512xf32>
    %16 = arith.maximumf %14, %15 : vector<256x512xf32>
    %17 = arith.truncf %16 : vector<256x512xf32> to vector<256x512xbf16>
    %c0_12 = arith.constant 0 : index
    %c0_13 = arith.constant 0 : index
    %18 = vector.load %arg6[%c0_12, %c0_13] : memref<512x512xbf16, #tpu.memory_space<vmem>>, vector<512x512xbf16>
    %cst_14 = arith.constant dense<0.000000e+00> : vector<256x512xf32>
    %19 = tpu.matmul %17, %18, %cst_14 {dimension_numbers = #tpu.dot_dimension_numbers<[1], [0], [0], [1], [0, 0, 1, 1], [], []>} : vector<256x512xbf16>, vector<512x512xbf16>, vector<256x512xf32> -> vector<256x512xf32>
    %c0_15 = arith.constant 0 : index
    %c0_16 = arith.constant 0 : index
    %20 = vector.load %arg7[%c0_15, %c0_16] : memref<1x512xf32, #tpu.memory_space<vmem>>, vector<1x512xf32>
    %21 = vector.broadcast %20 : vector<1x512xf32> to vector<256x512xf32>
    %22 = arith.addf %19, %21 : vector<256x512xf32>
    %cst_17 = arith.constant 0.000000e+00 : f32
    %23 = vector.broadcast %cst_17 : f32 to vector<256x512xf32>
    %24 = arith.maximumf %22, %23 : vector<256x512xf32>
    %25 = arith.truncf %24 : vector<256x512xf32> to vector<256x512xbf16>
    %c0_18 = arith.constant 0 : index
    %c0_19 = arith.constant 0 : index
    %26 = vector.load %arg8[%c0_18, %c0_19] : memref<512x512xbf16, #tpu.memory_space<vmem>>, vector<512x512xbf16>
    %cst_20 = arith.constant dense<0.000000e+00> : vector<256x512xf32>
    %27 = tpu.matmul %25, %26, %cst_20 {dimension_numbers = #tpu.dot_dimension_numbers<[1], [0], [0], [1], [0, 0, 1, 1], [], []>} : vector<256x512xbf16>, vector<512x512xbf16>, vector<256x512xf32> -> vector<256x512xf32>
    %c0_21 = arith.constant 0 : index
    %c0_22 = arith.constant 0 : index
    %28 = vector.load %arg9[%c0_21, %c0_22] : memref<1x512xf32, #tpu.memory_space<vmem>>, vector<1x512xf32>
    %29 = vector.broadcast %28 : vector<1x512xf32> to vector<256x512xf32>
    %30 = arith.addf %27, %29 : vector<256x512xf32>
    %cst_23 = arith.constant 0.000000e+00 : f32
    %31 = vector.broadcast %cst_23 : f32 to vector<256x512xf32>
    %32 = arith.maximumf %30, %31 : vector<256x512xf32>
    %33 = arith.truncf %32 : vector<256x512xf32> to vector<256x512xbf16>
    %c0_24 = arith.constant 0 : index
    %c0_25 = arith.constant 0 : index
    %34 = vector.load %arg10[%c0_24, %c0_25] : memref<512x512xbf16, #tpu.memory_space<vmem>>, vector<512x512xbf16>
    %cst_26 = arith.constant dense<0.000000e+00> : vector<256x512xf32>
    %35 = tpu.matmul %33, %34, %cst_26 {dimension_numbers = #tpu.dot_dimension_numbers<[1], [0], [0], [1], [0, 0, 1, 1], [], []>} : vector<256x512xbf16>, vector<512x512xbf16>, vector<256x512xf32> -> vector<256x512xf32>
    %c0_27 = arith.constant 0 : index
    %c0_28 = arith.constant 0 : index
    %36 = vector.load %arg11[%c0_27, %c0_28] : memref<1x512xf32, #tpu.memory_space<vmem>>, vector<1x512xf32>
    %37 = vector.broadcast %36 : vector<1x512xf32> to vector<256x512xf32>
    %38 = arith.addf %35, %37 : vector<256x512xf32>
    %c0_29 = arith.constant 0 : index
    %c0_30 = arith.constant 0 : index
    %39 = vector.load %arg12[%c0_29, %c0_30] : memref<256x512xf32, #tpu.memory_space<vmem>>, vector<256x512xf32>
    tpu.vector_store %arg12[%c0_29, %c0_30], %38 {strides = array<i32>} : memref<256x512xf32, #tpu.memory_space<vmem>>, vector<256x512xf32>,
    return
  }
  func.func @transform_0(%arg0: i32) -> (i32, i32) {
    %c0_i32 = arith.constant 0 : i32
    %c0_i32_0 = arith.constant 0 : i32
    return %arg0, %c0_i32 : i32, i32
  }
  func.func @transform_1(%arg0: i32) -> (i32, i32) {
    %c0_i32 = arith.constant 0 : i32
    %c0_i32_0 = arith.constant 0 : i32
    %c0_i32_1 = arith.constant 0 : i32
    return %c0_i32, %c0_i32_0 : i32, i32
  }
  func.func @transform_2(%arg0: i32) -> (i32, i32) {
    %c0_i32 = arith.constant 0 : i32
    %c0_i32_0 = arith.constant 0 : i32
    %c0_i32_1 = arith.constant 0 : i32
    return %c0_i32, %c0_i32_0 : i32, i32
  }
  func.func @transform_3(%arg0: i32) -> (i32, i32) {
    %c0_i32 = arith.constant 0 : i32
    %c0_i32_0 = arith.constant 0 : i32
    %c0_i32_1 = arith.constant 0 : i32
    return %c0_i32, %c0_i32_0 : i32, i32
  }
  func.func @transform_4(%arg0: i32) -> (i32, i32) {
    %c0_i32 = arith.constant 0 : i32
    %c0_i32_0 = arith.constant 0 : i32
    %c0_i32_1 = arith.constant 0 : i32
    return %c0_i32, %c0_i32_0 : i32, i32
  }
  func.func @transform_5(%arg0: i32) -> (i32, i32) {
    %c0_i32 = arith.constant 0 : i32
    %c0_i32_0 = arith.constant 0 : i32
    %c0_i32_1 = arith.constant 0 : i32
    return %c0_i32, %c0_i32_0 : i32, i32
  }
  func.func @transform_6(%arg0: i32) -> (i32, i32) {
    %c0_i32 = arith.constant 0 : i32
    %c0_i32_0 = arith.constant 0 : i32
    %c0_i32_1 = arith.constant 0 : i32
    return %c0_i32, %c0_i32_0 : i32, i32
  }
  func.func @transform_7(%arg0: i32) -> (i32, i32) {
    %c0_i32 = arith.constant 0 : i32
    %c0_i32_0 = arith.constant 0 : i32
    %c0_i32_1 = arith.constant 0 : i32
    return %c0_i32, %c0_i32_0 : i32, i32
  }
  func.func @transform_8(%arg0: i32) -> (i32, i32) {
    %c0_i32 = arith.constant 0 : i32
    %c0_i32_0 = arith.constant 0 : i32
    %c0_i32_1 = arith.constant 0 : i32
    return %c0_i32, %c0_i32_0 : i32, i32
  }
  func.func @transform_9(%arg0: i32) -> (i32, i32) {
    %c0_i32 = arith.constant 0 : i32
    %c0_i32_0 = arith.constant 0 : i32
    %c0_i32_1 = arith.constant 0 : i32
    return %c0_i32, %c0_i32_0 : i32, i32
  }
  func.func @transform_10(%arg0: i32) -> (i32, i32) {
    %c0_i32 = arith.constant 0 : i32
    %c0_i32_0 = arith.constant 0 : i32
    %c0_i32_1 = arith.constant 0 : i32
    return %c0_i32, %c0_i32_0 : i32, i32
  }
  func.func @transform_11(%arg0: i32) -> (i32, i32) {
    %c0_i32 = arith.constant 0 : i32
    %c0_i32_0 = arith.constant 0 : i32
    return %arg0, %c0_i32 : i32, i32
  }
}

</mosaic_0001>

<llo_original>
// kernel: tpu_custom_call.1
$region0: #{tpu_custom_call.1}
  #allocation0 [shape = 'u32[]', space=smem, size = 0x4, offset = 0x4, fixed_abs, tag = 'smem constant byte address 0x4 - core index']
  #allocation1 [shape = 'u32[144,128]{1,0:T(1,128)}', space=vmem, size = 0x12000, scoped, tag = 'internal scratch']
  %s0 = inlined_call_operand.vmem [shape: f32[768,3], index: 0, kind: input, shape index: {}]
  %s1 = inlined_call_operand.hbm [shape: bf16[3,256], index: 1, kind: input, shape index: {}]
  %s2 = inlined_call_operand.hbm [shape: f32[1,256], index: 2, kind: input, shape index: {}]
  %s3 = inlined_call_operand.hbm [shape: bf16[256,512], index: 3, kind: input, shape index: {}]
  %s4 = inlined_call_operand.hbm [shape: f32[1,512], index: 4, kind: input, shape index: {}]
  %s5 = inlined_call_operand.hbm [shape: bf16[512,512], index: 5, kind: input, shape index: {}]
  %s6 = inlined_call_operand.hbm [shape: f32[1,512], index: 6, kind: input, shape index: {}]
  %s7 = inlined_call_operand.hbm [shape: bf16[512,512], index: 7, kind: input, shape index: {}]
  %s8 = inlined_call_operand.hbm [shape: f32[1,512], index: 8, kind: input, shape index: {}]
  %s9 = inlined_call_operand.hbm [shape: bf16[512,512], index: 9, kind: input, shape index: {}]
  %s10 = inlined_call_operand.hbm [shape: f32[1,512], index: 10, kind: input, shape index: {}]
  %s11 = inlined_call_operand.hbm [shape: f32[768,512], index: 11, kind: output, shape index: {}]
  %s12 = sld [smem:[#allocation0]]
  $region117: #{tpu_custom_call.1} parent=0
    _
  %s14 = ssub.s32 1, %s12
  %s15 = scalar_select 0, %s14, %s12
  $region1: #{tpu_custom_call.1} parent=0
    #allocation2 [shape = 'u8[2048]{0}', space=vmem, size = 0x800, scoped, tag = 'input window, operand 1, single buffered']
    #allocation3 [shape = 's32[2]{0}', space=sflag, size = 0x8, scoped, tag = 'scoped memory for tpu_custom_call.1']
    #allocation4 [shape = 's32[2]{0}', space=sflag, size = 0x8, scoped, tag = 'scoped memory for tpu_custom_call.1']
    #allocation5 [shape = 'u8[1024]{0}', space=vmem, size = 0x400, scoped, tag = 'input window, operand 2, single buffered']
    #allocation6 [shape = 's32[1]{0}', space=sflag, size = 0x4, scoped, tag = 'scoped memory for tpu_custom_call.1']
    #allocation7 [shape = 'u8[262144]{0}', space=vmem, size = 0x40000, scoped, tag = 'input window, operand 3, single buffered']
    #allocation8 [shape = 'u8[2048]{0}', space=vmem, size = 0x800, scoped, tag = 'input window, operand 4, single buffered']
    #allocation9 [shape = 's32[1]{0}', space=sflag, size = 0x4, scoped, tag = 'scoped memory for tpu_custom_call.1']
    #allocation10 [shape = 'u8[524288]{0}', space=vmem, size = 0x80000, scoped, tag = 'input window, operand 5, single buffered']
    #allocation11 [shape = 'u8[2048]{0}', space=vmem, size = 0x800, scoped, tag = 'input window, operand 6, single buffered']
    #allocation12 [shape = 's32[1]{0}', space=sflag, size = 0x4, scoped, tag = 'scoped memory for tpu_custom_call.1']
    #allocation13 [shape = 'u8[524288]{0}', space=vmem, size = 0x80000, scoped, tag = 'input window, operand 7, single buffered']
    #allocation14 [shape = 'u8[2048]{0}', space=vmem, size = 0x800, scoped, tag = 'input window, operand 8, single buffered']
    #allocation15 [shape = 's32[1]{0}', space=sflag, size = 0x4, scoped, tag = 'scoped memory for tpu_custom_call.1']
    #allocation16 [shape = 'u8[524288]{0}', space=vmem, size = 0x80000, scoped, tag = 'input window, operand 9, single buffered']
    #allocation17 [shape = 'u8[2048]{0}', space=vmem, size = 0x800, scoped, tag = 'input window, operand 10, single buffered']
    #allocation18 [shape = 's32[1]{0}', space=sflag, size = 0x4, scoped, tag = 'scoped memory for tpu_custom_call.1']
    #allocation19 [shape = 'u8[1048576]{0}', space=vmem, size = 0x100000, scoped, tag = 'output window, operand 0']
    %16 = vsyncpa [#allocation3], 0
    %17 = vsyncpa [#allocation6], 0
    %18 = vsyncpa [#allocation9], 0
    %19 = vsyncpa [#allocation12], 0
    %20 = vsyncpa [#allocation15], 0
    %21 = vsyncpa [#allocation18], 0
    %22 = vsyncpa [#allocation4], 0
    %s23 = scalar_lea.sflag [#allocation4], 1
    %24 = vsyncpa %s23, 0
    loop: start=0, step=1, limit=5
    $region2: #{tpu_custom_call.1} parent=1 // loop_pre_header
      _
    $region3: #{tpu_custom_call.1} parent=1 // loop_header
      %s26 = sphi 0, %s30
      %p27 = scmp.ge.s32.totalorder %s26, 5
      %s36 = sphi 0, %s38
      %s39 = sphi 0, %s36
      %s40 = sphi 0, %s39
      %s56 = sphi 0, %s40
      %s60 = sphi 0, %s60
      %s62 = sphi 0, %s60
      %s63 = sphi 0, %s62
      %s77 = sphi 0, %s63
      %s81 = sphi 0, %s81
      %s83 = sphi 0, %s81
      %s84 = sphi 0, %s83
      %s98 = sphi 0, %s84
      %s102 = sphi 0, %s102
      %s104 = sphi 0, %s102
      %s105 = sphi 0, %s104
      %s119 = sphi 0, %s105
      %s123 = sphi 0, %s123
      %s125 = sphi 0, %s123
      %s126 = sphi 0, %s125
      %s140 = sphi 0, %s126
      %s144 = sphi 0, %s144
      %s146 = sphi 0, %s144
      %s147 = sphi 0, %s146
      %s161 = sphi 0, %s147
      %s165 = sphi 0, %s165
      %s167 = sphi 0, %s165
      %s168 = sphi 0, %s167
      %s182 = sphi 0, %s168
      %s186 = sphi 0, %s186
      %s188 = sphi 0, %s186
      %s189 = sphi 0, %s188
      %s203 = sphi 0, %s189
      %s207 = sphi 0, %s207
      %s209 = sphi 0, %s207
      %s210 = sphi 0, %s209
      %s224 = sphi 0, %s210
      %s228 = sphi 0, %s228
      %s230 = sphi 0, %s228
      %s231 = sphi 0, %s230
      %s245 = sphi 0, %s231
      %s249 = sphi 0, %s249
      %s251 = sphi 0, %s249
      %s252 = sphi 0, %s251
      %s266 = sphi 0, %s252
      %s272 = sphi 0, %s274
      %s275 = sphi 0, %s272
      %s276 = sphi 0, %s275
      %s292 = sphi 0, %s276
    $region4: #{tpu_custom_call.1} parent=1 // loop_header_branch
      %29 = sbr.rel (%p27) target = $region8
    $region5: #{tpu_custom_call.1} parent=1 // loop_body
      %s31 = ssub.s32 %s26, 1
      %s32 = ssub.s32 %s26, 2
      %s33 = sadd.s32 %s26, 1
      %s34 = ssub.s32 %s26, %s33
      %p35 = scmp.eq.s32.totalorder %s34, 0
      %s37 = sadd.s32 %s36, 1
      %s38 = scalar_select %p35, %s36, %s37
      %p41 = pneg %p35
      %p42 = scmp.eq.s32.totalorder %s26, 2
      %p43 = por %p41, %p42
      %p44 = scmp.ne.s32.totalorder %s36, %s39
      %p45 = scmp.eq.s32.totalorder %s26, 0
      %p46 = por %p44, %p45
      %p47 = scmp.ne.s32.totalorder %s36, %s39
      %p48 = scmp.eq.s32.totalorder %s31, 2
      %p49 = por %p47, %p48
      %p50 = scmp.ne.s32.totalorder %s39, %s40
      %p51 = scmp.eq.s32.totalorder %s31, 0
      %p52 = por %p50, %p51
      %p53 = scmp.ne.s32.totalorder %s39, %s40
      %p54 = scmp.eq.s32.totalorder %s32, 2
      %p55 = por %p53, %p54
      %p57 = scmp.ne.s32.totalorder %s40, %s56
      %p58 = scmp.eq.s32.totalorder %s32, 0
      %p59 = por %p57, %p58
      %s61 = sadd.s32 %s60, 1
      %p64 = scmp.eq.s32.totalorder %s26, 2
      %p65 = scmp.ne.s32.totalorder %s60, %s62
      %p66 = scmp.eq.s32.totalorder %s26, 0
      %p67 = por %p65, %p66
      %p68 = scmp.ne.s32.totalorder %s60, %s62
      %p69 = scmp.eq.s32.totalorder %s31, 2
      %p70 = por %p68, %p69
      %p71 = scmp.ne.s32.totalorder %s62, %s63
      %p72 = scmp.eq.s32.totalorder %s31, 0
      %p73 = por %p71, %p72
      %p74 = scmp.ne.s32.totalorder %s62, %s63
      %p75 = scmp.eq.s32.totalorder %s32, 2
      %p76 = por %p74, %p75
      %p78 = scmp.ne.s32.totalorder %s63, %s77
      %p79 = scmp.eq.s32.totalorder %s32, 0
      %p80 = por %p78, %p79
      %s82 = sadd.s32 %s81, 1
      %p85 = scmp.eq.s32.totalorder %s26, 2
      %p86 = scmp.ne.s32.totalorder %s81, %s83
      %p87 = scmp.eq.s32.totalorder %s26, 0
      %p88 = por %p86, %p87
      %p89 = scmp.ne.s32.totalorder %s81, %s83
      %p90 = scmp.eq.s32.totalorder %s31, 2
      %p91 = por %p89, %p90
      %p92 = scmp.ne.s32.totalorder %s83, %s84
      %p93 = scmp.eq.s32.totalorder %s31, 0
      %p94 = por %p92, %p93
      %p95 = scmp.ne.s32.totalorder %s83, %s84
      %p96 = scmp.eq.s32.totalorder %s32, 2
      %p97 = por %p95, %p96
      %p99 = scmp.ne.s32.totalorder %s84, %s98
      %p100 = scmp.eq.s32.totalorder %s32, 0
      %p101 = por %p99, %p100
      %s103 = sadd.s32 %s102, 1
      %p106 = scmp.eq.s32.totalorder %s26, 2
      %p107 = scmp.ne.s32.totalorder %s102, %s104
      %p108 = scmp.eq.s32.totalorder %s26, 0
      %p109 = por %p107, %p108
      %p110 = scmp.ne.s32.totalorder %s102, %s104
      %p111 = scmp.eq.s32.totalorder %s31, 2
      %p112 = por %p110, %p111
      %p113 = scmp.ne.s32.totalorder %s104, %s105
      %p114 = scmp.eq.s32.totalorder %s31, 0
      %p115 = por %p113, %p114
      %p116 = scmp.ne.s32.totalorder %s104, %s105
      %p117 = scmp.eq.s32.totalorder %s32, 2
      %p118 = por %p116, %p117
      %p120 = scmp.ne.s32.totalorder %s105, %s119
      %p121 = scmp.eq.s32.totalorder %s32, 0
      %p122 = por %p120, %p121
      %s124 = sadd.s32 %s123, 1
      %p127 = scmp.eq.s32.totalorder %s26, 2
      %p128 = scmp.ne.s32.totalorder %s123, %s125
      %p129 = scmp.eq.s32.totalorder %s26, 0
      %p130 = por %p128, %p129
      %p131 = scmp.ne.s32.totalorder %s123, %s125
      %p132 = scmp.eq.s32.totalorder %s31, 2
      %p133 = por %p131, %p132
      %p134 = scmp.ne.s32.totalorder %s125, %s126
      %p135 = scmp.eq.s32.totalorder %s31, 0
      %p136 = por %p134, %p135
      %p137 = scmp.ne.s32.totalorder %s125, %s126
      %p138 = scmp.eq.s32.totalorder %s32, 2
      %p139 = por %p137, %p138
      %p141 = scmp.ne.s32.totalorder %s126, %s140
      %p142 = scmp.eq.s32.totalorder %s32, 0
      %p143 = por %p141, %p142
      %s145 = sadd.s32 %s144, 1
      %p148 = scmp.eq.s32.totalorder %s26, 2
      %p149 = scmp.ne.s32.totalorder %s144, %s146
      %p150 = scmp.eq.s32.totalorder %s26, 0
      %p151 = por %p149, %p150
      %p152 = scmp.ne.s32.totalorder %s144, %s146
      %p153 = scmp.eq.s32.totalorder %s31, 2
      %p154 = por %p152, %p153
      %p155 = scmp.ne.s32.totalorder %s146, %s147
      %p156 = scmp.eq.s32.totalorder %s31, 0
      %p157 = por %p155, %p156
      %p158 = scmp.ne.s32.totalorder %s146, %s147
      %p159 = scmp.eq.s32.totalorder %s32, 2
      %p160 = por %p158, %p159
      %p162 = scmp.ne.s32.totalorder %s147, %s161
      %p163 = scmp.eq.s32.totalorder %s32, 0
      %p164 = por %p162, %p163
      %s166 = sadd.s32 %s165, 1
      %p169 = scmp.eq.s32.totalorder %s26, 2
      %p170 = scmp.ne.s32.totalorder %s165, %s167
      %p171 = scmp.eq.s32.totalorder %s26, 0
      %p172 = por %p170, %p171
      %p173 = scmp.ne.s32.totalorder %s165, %s167
      %p174 = scmp.eq.s32.totalorder %s31, 2
      %p175 = por %p173, %p174
      %p176 = scmp.ne.s32.totalorder %s167, %s168
      %p177 = scmp.eq.s32.totalorder %s31, 0
      %p178 = por %p176, %p177
      %p179 = scmp.ne.s32.totalorder %s167, %s168
      %p180 = scmp.eq.s32.totalorder %s32, 2
      %p181 = por %p179, %p180
      %p183 = scmp.ne.s32.totalorder %s168, %s182
      %p184 = scmp.eq.s32.totalorder %s32, 0
      %p185 = por %p183, %p184
      %s187 = sadd.s32 %s186, 1
      %p190 = scmp.eq.s32.totalorder %s26, 2
      %p191 = scmp.ne.s32.totalorder %s186, %s188
      %p192 = scmp.eq.s32.totalorder %s26, 0
      %p193 = por %p191, %p192
      %p194 = scmp.ne.s32.totalorder %s186, %s188
      %p195 = scmp.eq.s32.totalorder %s31, 2
      %p196 = por %p194, %p195
      %p197 = scmp.ne.s32.totalorder %s188, %s189
      %p198 = scmp.eq.s32.totalorder %s31, 0
      %p199 = por %p197, %p198
      %p200 = scmp.ne.s32.totalorder %s188, %s189
      %p201 = scmp.eq.s32.totalorder %s32, 2
      %p202 = por %p200, %p201
      %p204 = scmp.ne.s32.totalorder %s189, %s203
      %p205 = scmp.eq.s32.totalorder %s32, 0
      %p206 = por %p204, %p205
      %s208 = sadd.s32 %s207, 1
      %p211 = scmp.eq.s32.totalorder %s26, 2
      %p212 = scmp.ne.s32.totalorder %s207, %s209
      %p213 = scmp.eq.s32.totalorder %s26, 0
      %p214 = por %p212, %p213
      %p215 = scmp.ne.s32.totalorder %s207, %s209
      %p216 = scmp.eq.s32.totalorder %s31, 2
      %p217 = por %p215, %p216
      %p218 = scmp.ne.s32.totalorder %s209, %s210
      %p219 = scmp.eq.s32.totalorder %s31, 0
      %p220 = por %p218, %p219
      %p221 = scmp.ne.s32.totalorder %s209, %s210
      %p222 = scmp.eq.s32.totalorder %s32, 2
      %p223 = por %p221, %p222
      %p225 = scmp.ne.s32.totalorder %s210, %s224
      %p226 = scmp.eq.s32.totalorder %s32, 0
      %p227 = por %p225, %p226
      %s229 = sadd.s32 %s228, 1
      %p232 = scmp.eq.s32.totalorder %s26, 2
      %p233 = scmp.ne.s32.totalorder %s228, %s230
      %p234 = scmp.eq.s32.totalorder %s26, 0
      %p235 = por %p233, %p234
      %p236 = scmp.ne.s32.totalorder %s228, %s230
      %p237 = scmp.eq.s32.totalorder %s31, 2
      %p238 = por %p236, %p237
      %p239 = scmp.ne.s32.totalorder %s230, %s231
      %p240 = scmp.eq.s32.totalorder %s31, 0
      %p241 = por %p239, %p240
      %p242 = scmp.ne.s32.totalorder %s230, %s231
      %p243 = scmp.eq.s32.totalorder %s32, 2
      %p244 = por %p242, %p243
      %p246 = scmp.ne.s32.totalorder %s231, %s245
      %p247 = scmp.eq.s32.totalorder %s32, 0
      %p248 = por %p246, %p247
      %s250 = sadd.s32 %s249, 1
      %p253 = scmp.eq.s32.totalorder %s26, 2
      %p254 = scmp.ne.s32.totalorder %s249, %s251
      %p255 = scmp.eq.s32.totalorder %s26, 0
      %p256 = por %p254, %p255
      %p257 = scmp.ne.s32.totalorder %s249, %s251
      %p258 = scmp.eq.s32.totalorder %s31, 2
      %p259 = por %p257, %p258
      %p260 = scmp.ne.s32.totalorder %s251, %s252
      %p261 = scmp.eq.s32.totalorder %s31, 0
      %p262 = por %p260, %p261
      %p263 = scmp.ne.s32.totalorder %s251, %s252
      %p264 = scmp.eq.s32.totalorder %s32, 2
      %p265 = por %p263, %p264
      %p267 = scmp.ne.s32.totalorder %s252, %s266
      %p268 = scmp.eq.s32.totalorder %s32, 0
      %p269 = por %p267, %p268
      %s270 = ssub.s32 %s26, %s33
      %p271 = scmp.eq.s32.totalorder %s270, 0
      %s273 = sadd.s32 %s272, 1
      %s274 = scalar_select %p271, %s272, %s273
      %p277 = pneg %p271
      %p278 = scmp.eq.s32.totalorder %s26, 2
      %p279 = por %p277, %p278
      %p280 = scmp.ne.s32.totalorder %s272, %s275
      %p281 = scmp.eq.s32.totalorder %s26, 0
      %p282 = por %p280, %p281
      %p283 = scmp.ne.s32.totalorder %s272, %s275
      %p284 = scmp.eq.s32.totalorder %s31, 2
      %p285 = por %p283, %p284
      %p286 = scmp.ne.s32.totalorder %s275, %s276
      %p287 = scmp.eq.s32.totalorder %s31, 0
      %p288 = por %p286, %p287
      %p289 = scmp.ne.s32.totalorder %s275, %s276
      %p290 = scmp.eq.s32.totalorder %s32, 2
      %p291 = por %p289, %p290
      %p293 = scmp.ne.s32.totalorder %s276, %s292
      %p294 = scmp.eq.s32.totalorder %s32, 0
      %p295 = por %p293, %p294
      %p296 = scmp.le.s32.totalorder 1, %s26
      %p297 = scmp.lt.s32.totalorder %s26, 4
      %p298 = pnand %p296, %p297
      %p299 = pneg %p298
      // Predicated region
      $region9: #{tpu_custom_call.1} parent=5 // pred_check
        _
      $region10: #{tpu_custom_call.1} parent=5 // pred_check_branch
        %301 = sbr.rel (%p298) target = $region12
      $region11: #{tpu_custom_call.1} parent=5 // pred_region
        %s302 = ssub.s32 %s26, 1
        // Predicated region
        $region13: #{tpu_custom_call.1} parent=11 // pred_check
          %p303 = pneg %p73
        $region14: #{tpu_custom_call.1} parent=11 // pred_check_branch
          %305 = sbr.rel (%p303) target = $region16
        $region15: #{tpu_custom_call.1} parent=11 // pred_region
          %s307 = ssub.s32 64, 64
          %308 = vsyncadd [#allocation3], %s307
          %s310 = sshll.u32 [#allocation2], 4
          %s311 = int_to_ptr.vmem [resolvable:$true] %s310
          %313 = dma.hbm_to_vmem [thread:$0]  %s1, 64, %s311, [#allocation3]
        $region16: #{tpu_custom_call.1} parent=11 // pred_fallthru
          _
        // Predicated region
        $region17: #{tpu_custom_call.1} parent=11 // pred_check
          %p314 = pneg %p94
        $region18: #{tpu_custom_call.1} parent=11 // pred_check_branch
          %316 = sbr.rel (%p314) target = $region20
        $region19: #{tpu_custom_call.1} parent=11 // pred_region
          %s318 = ssub.s32 32, 32
          %319 = vsyncadd [#allocation6], %s318
          %s321 = sshll.u32 [#allocation5], 4
          %s322 = int_to_ptr.vmem [resolvable:$true] %s321
          %324 = dma.hbm_to_vmem [thread:$0]  %s2, 32, %s322, [#allocation6]
        $region20: #{tpu_custom_call.1} parent=11 // pred_fallthru
          _
        // Predicated region
        $region21: #{tpu_custom_call.1} parent=11 // pred_check
          %p325 = pneg %p115
        $region22: #{tpu_custom_call.1} parent=11 // pred_check_branch
          %327 = sbr.rel (%p325) target = $region24
        $region23: #{tpu_custom_call.1} parent=11 // pred_region
          %s329 = ssub.s32 8192, 8192
          %330 = vsyncadd [#allocation6], %s329
          %s331 = sshll.u32 [#allocation7], 4
          %s332 = int_to_ptr.vmem [resolvable:$true] %s331
          %337 = dma.hbm_to_vmem [thread:$0]  %s3, 8192, %s332, [#allocation6], 256, 256, 16
        $region24: #{tpu_custom_call.1} parent=11 // pred_fallthru
          _
        // Predicated region
        $region25: #{tpu_custom_call.1} parent=11 // pred_check
          %p338 = pneg %p136
        $region26: #{tpu_custom_call.1} parent=11 // pred_check_branch
          %340 = sbr.rel (%p338) target = $region28
        $region27: #{tpu_custom_call.1} parent=11 // pred_region
          %s342 = ssub.s32 64, 64
          %343 = vsyncadd [#allocation9], %s342
          %s345 = sshll.u32 [#allocation8], 4
          %s346 = int_to_ptr.vmem [resolvable:$true] %s345
          %348 = dma.hbm_to_vmem [thread:$0]  %s4, 64, %s346, [#allocation9]
        $region28: #{tpu_custom_call.1} parent=11 // pred_fallthru
          _
        // Predicated region
        $region29: #{tpu_custom_call.1} parent=11 // pred_check
          %p349 = pneg %p157
        $region30: #{tpu_custom_call.1} parent=11 // pred_check_branch
          %351 = sbr.rel (%p349) target = $region32
        $region31: #{tpu_custom_call.1} parent=11 // pred_region
          %s353 = ssub.s32 16384, 16384
          %354 = vsyncadd [#allocation9], %s353
          %s355 = sshll.u32 [#allocation10], 4
          %s356 = int_to_ptr.vmem [resolvable:$true] %s355
          %361 = dma.hbm_to_vmem [thread:$0]  %s5, 16384, %s356, [#allocation9], 256, 256, 16
        $region32: #{tpu_custom_call.1} parent=11 // pred_fallthru
          _
        // Predicated region
        $region33: #{tpu_custom_call.1} parent=11 // pred_check
          %p362 = pneg %p178
        $region34: #{tpu_custom_call.1} parent=11 // pred_check_branch
          %364 = sbr.rel (%p362) target = $region36
        $region35: #{tpu_custom_call.1} parent=11 // pred_region
          %s366 = ssub.s32 64, 64
          %367 = vsyncadd [#allocation12], %s366
          %s369 = sshll.u32 [#allocation11], 4
          %s370 = int_to_ptr.vmem [resolvable:$true] %s369
          %372 = dma.hbm_to_vmem [thread:$0]  %s6, 64, %s370, [#allocation12]
        $region36: #{tpu_custom_call.1} parent=11 // pred_fallthru
          _
        // Predicated region
        $region37: #{tpu_custom_call.1} parent=11 // pred_check
          %p373 = pneg %p199
        $region38: #{tpu_custom_call.1} parent=11 // pred_check_branch
          %375 = sbr.rel (%p373) target = $region40
        $region39: #{tpu_custom_call.1} parent=11 // pred_region
          %s377 = ssub.s32 16384, 16384
          %378 = vsyncadd [#allocation12], %s377
          %s379 = sshll.u32 [#allocation13], 4
          %s380 = int_to_ptr.vmem [resolvable:$true] %s379
          %385 = dma.hbm_to_vmem [thread:$0]  %s7, 16384, %s380, [#allocation12], 256, 256, 16
        $region40: #{tpu_custom_call.1} parent=11 // pred_fallthru
          _
        // Predicated region
        $region41: #{tpu_custom_call.1} parent=11 // pred_check
          %p386 = pneg %p220
        $region42: #{tpu_custom_call.1} parent=11 // pred_check_branch
          %388 = sbr.rel (%p386) target = $region44
        $region43: #{tpu_custom_call.1} parent=11 // pred_region
          %s390 = ssub.s32 64, 64
          %391 = vsyncadd [#allocation15], %s390
          %s393 = sshll.u32 [#allocation14], 4
          %s394 = int_to_ptr.vmem [resolvable:$true] %s393
          %396 = dma.hbm_to_vmem [thread:$0]  %s8, 64, %s394, [#allocation15]
        $region44: #{tpu_custom_call.1} parent=11 // pred_fallthru
          _
        // Predicated region
        $region45: #{tpu_custom_call.1} parent=11 // pred_check
          %p397 = pneg %p241
        $region46: #{tpu_custom_call.1} parent=11 // pred_check_branch
          %399 = sbr.rel (%p397) target = $region48
        $region47: #{tpu_custom_call.1} parent=11 // pred_region
          %s401 = ssub.s32 16384, 16384
          %402 = vsyncadd [#allocation15], %s401
          %s403 = sshll.u32 [#allocation16], 4
          %s404 = int_to_ptr.vmem [resolvable:$true] %s403
          %409 = dma.hbm_to_vmem [thread:$0]  %s9, 16384, %s404, [#allocation15], 256, 256, 16
        $region48: #{tpu_custom_call.1} parent=11 // pred_fallthru
          _
        // Predicated region
        $region49: #{tpu_custom_call.1} parent=11 // pred_check
          %p410 = pneg %p262
        $region50: #{tpu_custom_call.1} parent=11 // pred_check_branch
          %412 = sbr.rel (%p410) target = $region52
        $region51: #{tpu_custom_call.1} parent=11 // pred_region
          %s414 = ssub.s32 64, 64
          %415 = vsyncadd [#allocation18], %s414
          %s417 = sshll.u32 [#allocation17], 4
          %s418 = int_to_ptr.vmem [resolvable:$true] %s417
          %420 = dma.hbm_to_vmem [thread:$0]  %s10, 64, %s418, [#allocation18]
        $region52: #{tpu_custom_call.1} parent=11 // pred_fallthru
          _
      $region12: #{tpu_custom_call.1} parent=5 // pred_fallthru
        _
      %p421 = scmp.lt.s32.totalorder %s26, 3
      // Predicated region
      $region53: #{tpu_custom_call.1} parent=5 // pred_check
        %p422 = pneg %p421
      $region54: #{tpu_custom_call.1} parent=5 // pred_check_branch
        %424 = sbr.rel (%p422) target = $region56
      $region55: #{tpu_custom_call.1} parent=5 // pred_region
        // Predicated region
        $region57: #{tpu_custom_call.1} parent=55 // pred_check
          %p425 = pneg %p46
        $region58: #{tpu_custom_call.1} parent=55 // pred_check_branch
          %427 = sbr.rel (%p425) target = $region60
        $region59: #{tpu_custom_call.1} parent=55 // pred_region
          %s428 = smul.u32 32, %s26
          %p429 = scmp.lt.s32.totalorder %s428, 95
          %s430 = scalar_select %p429, %s428, 95
          %s431 = smul.addr %s430, 8
          %s432 = scalar_lea.vmem %s0, %s431
          %s433 = smul.u32 32, %s26
        $region60: #{tpu_custom_call.1} parent=55 // pred_fallthru
          _
      $region56: #{tpu_custom_call.1} parent=5 // pred_fallthru
        _
      %p434 = scmp.le.s32.totalorder 1, %s26
      %p435 = scmp.lt.s32.totalorder %s26, 4
      %p436 = pnand %p434, %p435
      %p437 = pneg %p436
      // Predicated region
      $region61: #{tpu_custom_call.1} parent=5 // pred_check
        _
      $region62: #{tpu_custom_call.1} parent=5 // pred_check_branch
        %439 = sbr.rel (%p436) target = $region64
      $region63: #{tpu_custom_call.1} parent=5 // pred_region
        %s440 = ssub.s32 %s26, 1
        // Predicated region
        $region65: #{tpu_custom_call.1} parent=63 // pred_check
          %p441 = pneg %p73
        $region66: #{tpu_custom_call.1} parent=63 // pred_check_branch
          %443 = sbr.rel (%p441) target = $region68
        $region67: #{tpu_custom_call.1} parent=63 // pred_region
          %444 = dma.done [#allocation3], 64
        $region68: #{tpu_custom_call.1} parent=63 // pred_fallthru
          _
        // Predicated region
        $region69: #{tpu_custom_call.1} parent=63 // pred_check
          %p445 = pneg %p94
        $region70: #{tpu_custom_call.1} parent=63 // pred_check_branch
          %447 = sbr.rel (%p445) target = $region72
        $region71: #{tpu_custom_call.1} parent=63 // pred_region
          %448 = dma.done [#allocation6], 32
        $region72: #{tpu_custom_call.1} parent=63 // pred_fallthru
          _
        // Predicated region
        $region73: #{tpu_custom_call.1} parent=63 // pred_check
          %p449 = pneg %p115
        $region74: #{tpu_custom_call.1} parent=63 // pred_check_branch
          %451 = sbr.rel (%p449) target = $region76
        $region75: #{tpu_custom_call.1} parent=63 // pred_region
          %452 = dma.done [#allocation6], 8192
        $region76: #{tpu_custom_call.1} parent=63 // pred_fallthru
          _
        // Predicated region
        $region77: #{tpu_custom_call.1} parent=63 // pred_check
          %p453 = pneg %p136
        $region78: #{tpu_custom_call.1} parent=63 // pred_check_branch
          %455 = sbr.rel (%p453) target = $region80
        $region79: #{tpu_custom_call.1} parent=63 // pred_region
          %456 = dma.done [#allocation9], 64
        $region80: #{tpu_custom_call.1} parent=63 // pred_fallthru
          _
        // Predicated region
        $region81: #{tpu_custom_call.1} parent=63 // pred_check
          %p457 = pneg %p157
        $region82: #{tpu_custom_call.1} parent=63 // pred_check_branch
          %459 = sbr.rel (%p457) target = $region84
        $region83: #{tpu_custom_call.1} parent=63 // pred_region
          %460 = dma.done [#allocation9], 16384
        $region84: #{tpu_custom_call.1} parent=63 // pred_fallthru
          _
        // Predicated region
        $region85: #{tpu_custom_call.1} parent=63 // pred_check
          %p461 = pneg %p178
        $region86: #{tpu_custom_call.1} parent=63 // pred_check_branch
          %463 = sbr.rel (%p461) target = $region88
        $region87: #{tpu_custom_call.1} parent=63 // pred_region
          %464 = dma.done [#allocation12], 64
        $region88: #{tpu_custom_call.1} parent=63 // pred_fallthru
          _
        // Predicated region
        $region89: #{tpu_custom_call.1} parent=63 // pred_check
          %p465 = pneg %p199
        $region90: #{tpu_custom_call.1} parent=63 // pred_check_branch
          %467 = sbr.rel (%p465) target = $region92
        $region91: #{tpu_custom_call.1} parent=63 // pred_region
          %468 = dma.done [#allocation12], 16384
        $region92: #{tpu_custom_call.1} parent=63 // pred_fallthru
          _
        // Predicated region
        $region93: #{tpu_custom_call.1} parent=63 // pred_check
          %p469 = pneg %p220
        $region94: #{tpu_custom_call.1} parent=63 // pred_check_branch
          %471 = sbr.rel (%p469) target = $region96
        $region95: #{tpu_custom_call.1} parent=63 // pred_region
          %472 = dma.done [#allocation15], 64
        $region96: #{tpu_custom_call.1} parent=63 // pred_fallthru
          _
        // Predicated region
        $region97: #{tpu_custom_call.1} parent=63 // pred_check
          %p473 = pneg %p241
        $region98: #{tpu_custom_call.1} parent=63 // pred_check_branch
          %475 = sbr.rel (%p473) target = $region100
        $region99: #{tpu_custom_call.1} parent=63 // pred_region
          %476 = dma.done [#allocation15], 16384
        $region100: #{tpu_custom_call.1} parent=63 // pred_fallthru
          _
        // Predicated region
        $region101: #{tpu_custom_call.1} parent=63 // pred_check
          %p477 = pneg %p262
        $region102: #{tpu_custom_call.1} parent=63 // pred_check_branch
          %479 = sbr.rel (%p477) target = $region104
        $region103: #{tpu_custom_call.1} parent=63 // pred_region
          %480 = dma.done [#allocation18], 64
        $region104: #{tpu_custom_call.1} parent=63 // pred_fallthru
          _
        %s481 = smul.u32 32, %s31
        %p482 = scmp.lt.s32.totalorder %s481, 95
        %s483 = scalar_select %p482, %s481, 95
        %s484 = smul.addr %s483, 8
        %s485 = scalar_lea.vmem %s0, %s484
        %p486 = pneg %p52
        %p487 = pneg %p49
        %p488 = pneg %p73
        %p489 = pneg %p70
        %p490 = pneg %p94
        %p491 = pneg %p91
        %p492 = pneg %p115
        %p493 = pneg %p112
        %p494 = pneg %p136
        %p495 = pneg %p133
        %p496 = pneg %p157
        %p497 = pneg %p154
        %p498 = pneg %p178
        %p499 = pneg %p175
        %p500 = pneg %p199
        %p501 = pneg %p196
        %p502 = pneg %p220
        %p503 = pneg %p217
        %p504 = pneg %p241
        %p505 = pneg %p238
        %p506 = pneg %p262
        %p507 = pneg %p259
        %p508 = pneg %p288
        %p509 = pneg %p285
        %s510 = sand.u32 %s275, 1
        %s511 = scalar_lea.sflag [#allocation4], %s510
        %s512 = sand.u32 %s275, 1
        %s513 = smul.addr %s512, 1024
        %s514 = scalar_lea.vmem [#allocation19], %s513
        %s515 = smul.u32 32, %s31
        %p516 = scmp.lt.s32.totalorder %s515, 95
        %s517 = scalar_select %p516, %s515, 95
        %s518 = smul.addr %s517, 8
        %s519 = scalar_lea.vmem %s0, %s518
        %s520 = smul.u32 32, %s31
        %s521 = smul.u32 32, %s31
        %v523 = vld [vmem:[%s519] sm:$0xff]
        %v524 = vld [vmem:[%s519 + $0x8] sm:$0xff]
        %v525 = vld [vmem:[%s519 + $0x10] sm:$0xff]
        %v526 = vld [vmem:[%s519 + $0x18] sm:$0xff]
        %v527 = vld [vmem:[%s519 + $0x20] sm:$0xff]
        %v528 = vld [vmem:[%s519 + $0x28] sm:$0xff]
        %v529 = vld [vmem:[%s519 + $0x30] sm:$0xff]
        %v530 = vld [vmem:[%s519 + $0x38] sm:$0xff]
        %v531 = vld [vmem:[%s519 + $0x40] sm:$0xff]
        %v532 = vld [vmem:[%s519 + $0x48] sm:$0xff]
        %v533 = vld [vmem:[%s519 + $0x50] sm:$0xff]
        %v534 = vld [vmem:[%s519 + $0x58] sm:$0xff]
        %v535 = vld [vmem:[%s519 + $0x60] sm:$0xff]
        %v536 = vld [vmem:[%s519 + $0x68] sm:$0xff]
        %v537 = vld [vmem:[%s519 + $0x70] sm:$0xff]
        %v538 = vld [vmem:[%s519 + $0x78] sm:$0xff]
        %v539 = vld [vmem:[%s519 + $0x80] sm:$0xff]
        %v540 = vld [vmem:[%s519 + $0x88] sm:$0xff]
        %v541 = vld [vmem:[%s519 + $0x90] sm:$0xff]
        %v542 = vld [vmem:[%s519 + $0x98] sm:$0xff]
        %v543 = vld [vmem:[%s519 + $0xa0] sm:$0xff]
        %v544 = vld [vmem:[%s519 + $0xa8] sm:$0xff]
        %v545 = vld [vmem:[%s519 + $0xb0] sm:$0xff]
        %v546 = vld [vmem:[%s519 + $0xb8] sm:$0xff]
        %v547 = vld [vmem:[%s519 + $0xc0] sm:$0xff]
        %v548 = vld [vmem:[%s519 + $0xc8] sm:$0xff]
        %v549 = vld [vmem:[%s519 + $0xd0] sm:$0xff]
        %v550 = vld [vmem:[%s519 + $0xd8] sm:$0xff]
        %v551 = vld [vmem:[%s519 + $0xe0] sm:$0xff]
        %v552 = vld [vmem:[%s519 + $0xe8] sm:$0xff]
        %v553 = vld [vmem:[%s519 + $0xf0] sm:$0xff]
        %v554 = vld [vmem:[%s519 + $0xf8] sm:$0xff]
        %v555 = vpack.c.bf16 %v524, %v523
        %v556 = vpack.c.bf16 %v526, %v525
        %v557 = vpack.c.bf16 %v528, %v527
        %v558 = vpack.c.bf16 %v530, %v529
        %v559 = vpack.c.bf16 %v532, %v531
        %v560 = vpack.c.bf16 %v534, %v533
        %v561 = vpack.c.bf16 %v536, %v535
        %v562 = vpack.c.bf16 %v538, %v537
        %v563 = vpack.c.bf16 %v540, %v539
        %v564 = vpack.c.bf16 %v542, %v541
        %v565 = vpack.c.bf16 %v544, %v543
        %v566 = vpack.c.bf16 %v546, %v545
        %v567 = vpack.c.bf16 %v548, %v547
        %v568 = vpack.c.bf16 %v550, %v549
        %v569 = vpack.c.bf16 %v552, %v551
        %v570 = vpack.c.bf16 %v554, %v553
        %v571 = vld [vmem:[#allocation2] sm:$0xf]
        %v572 = vld [vmem:[#allocation5] sm:$0x3]
        %v574 = vlaneseq
        %v575 = vshrl.u32 %v574, 7
        %v576 = vsub.s32 0, %v575
        %v577 = vrot.slane %v572, %v576
        %v578 = vlaneseq
        %v579 = vshrl.u32 %v578, 7
        %v580 = vsub.s32 1, %v579
        %v581 = vrot.slane %v572, %v580
        %v586 = vunpack.c.l.s4 1983009808
        %v587 = vunpack.c.0.s8 %v586
        %v588 = vlaneseq
        %v589 = vshrl.u32 %v588, 7
        %v590 = vsub.s32 %v587, %v589
        %v591 = vrot.slane %v571, %v590
        %v592 = vcombine.high %v591, %v591
        %vm593 = vcmask 23552
        %v595 = vsel %vm593, %v555, 0
        %v598 = vsel %vm593, %v556, 0
        %v601 = vsel %vm593, %v557, 0
        %v604 = vsel %vm593, %v558, 0
        %v607 = vsel %vm593, %v559, 0
        %v610 = vsel %vm593, %v560, 0
        %v613 = vsel %vm593, %v561, 0
        %v616 = vsel %vm593, %v562, 0
        %v619 = vsel %vm593, %v563, 0
        %v622 = vsel %vm593, %v564, 0
        %v625 = vsel %vm593, %v565, 0
        %v628 = vsel %vm593, %v566, 0
        %v631 = vsel %vm593, %v567, 0
        %v634 = vsel %vm593, %v568, 0
        %v637 = vsel %vm593, %v569, 0
        %v640 = vsel %vm593, %v570, 0
        %vm642 = vcmask 1040384
        %vm643 = vcmask 1041408
        %v644 = vsel %vm642, 4294967295, 65535
        %v645 = vsel %vm643, %v644, 0
        %v647 = vand.u32 %v591, %v645
        %v650 = vand.u32 %v592, %v645
        %652 = vmatprep.subr.bf16.mxu0 %v650
        %653 = vmatpush1.bf16.msra.mxu0 %v647
        %654 = vmatprep.subr.bf16.mxu0 0
        %655 = vmatpush1.bf16.msra.mxu0 0
        %656 = vmatprep.subr.bf16.mxu0 0
        %657 = vmatpush1.bf16.msra.mxu0 0
        %658 = vmatprep.subr.bf16.mxu0 0
        %659 = vmatpush1.bf16.msra.mxu0 0
        %660 = vmatprep.subr.bf16.mxu0 0
        %661 = vmatpush1.bf16.msra.mxu0 0
        %662 = vmatprep.subr.bf16.mxu0 0
        %663 = vmatpush1.bf16.msra.mxu0 0
        %664 = vmatprep.subr.bf16.mxu0 0
        %665 = vmatpush1.bf16.msra.mxu0 0
        %666 = vmatprep.subr.bf16.mxu0 0
        %667 = vmatpush1.bf16.msra.mxu0 0
        %668 = vmatprep.subr.bf16.mxu0 0
        %669 = vmatpush1.bf16.msra.mxu0 0
        %670 = vmatprep.subr.bf16.mxu0 0
        %671 = vmatpush1.bf16.msra.mxu0 0
        %672 = vmatprep.subr.bf16.mxu0 0
        %673 = vmatpush1.bf16.msra.mxu0 0
        %674 = vmatprep.subr.bf16.mxu0 0
        %675 = vmatpush1.bf16.msra.mxu0 0
        %676 = vmatprep.subr.bf16.mxu0 0
        %677 = vmatpush1.bf16.msra.mxu0 0
        %678 = vmatprep.subr.bf16.mxu0 0
        %679 = vmatpush1.bf16.msra.mxu0 0
        %680 = vmatprep.subr.bf16.mxu0 0
        %681 = vmatpush1.bf16.msra.mxu0 0
        %682 = vmatprep.subr.bf16.mxu0 0
        %683 = vmatpush1.bf16.msra.mxu0 0
        %684 = vmatprep.mubr.bf16.mxu0 0
        %685 = vmatmul.mubr.bf16.gmra.mrb[0].mxu0 %v595
        %v686 = vpop.f32.mrb[0].mxu0
        %v687 = vadd.f32 %v577, %v686
        %v688 = vpop.f32.mrb[0].mxu0
        %v689 = vadd.f32 %v581, %v688
        %v690 = vpop.f32.mrb[0].mxu0
        %v691 = vadd.f32 %v577, %v690
        %v692 = vpop.f32.mrb[0].mxu0
        %v693 = vadd.f32 %v581, %v692
        %694 = vmatprep.mubr.bf16.mxu0 0
        %695 = vmatmul.mubr.bf16.gmra.mrb[0].mxu0 %v598
        %v696 = vpop.f32.mrb[0].mxu0
        %v697 = vadd.f32 %v577, %v696
        %v698 = vpop.f32.mrb[0].mxu0
        %v699 = vadd.f32 %v581, %v698
        %v700 = vpop.f32.mrb[0].mxu0
        %v701 = vadd.f32 %v577, %v700
        %v702 = vpop.f32.mrb[0].mxu0
        %v703 = vadd.f32 %v581, %v702
        %704 = vmatprep.mubr.bf16.mxu0 0
        %705 = vmatmul.mubr.bf16.gmra.mrb[0].mxu0 %v601
        %v706 = vpop.f32.mrb[0].mxu0
        %v707 = vadd.f32 %v577, %v706
        %v708 = vpop.f32.mrb[0].mxu0
        %v709 = vadd.f32 %v581, %v708
        %v710 = vpop.f32.mrb[0].mxu0
        %v711 = vadd.f32 %v577, %v710
        %v712 = vpop.f32.mrb[0].mxu0
        %v713 = vadd.f32 %v581, %v712
        %714 = vmatprep.mubr.bf16.mxu0 0
        %715 = vmatmul.mubr.bf16.gmra.mrb[0].mxu0 %v604
        %v716 = vpop.f32.mrb[0].mxu0
        %v717 = vadd.f32 %v577, %v716
        %v718 = vpop.f32.mrb[0].mxu0
        %v719 = vadd.f32 %v581, %v718
        %v720 = vpop.f32.mrb[0].mxu0
        %v721 = vadd.f32 %v577, %v720
        %v722 = vpop.f32.mrb[0].mxu0
        %v723 = vadd.f32 %v581, %v722
        %724 = vmatprep.mubr.bf16.mxu0 0
        %725 = vmatmul.mubr.bf16.gmra.mrb[0].mxu0 %v607
        %v726 = vpop.f32.mrb[0].mxu0
        %v727 = vadd.f32 %v577, %v726
        %v728 = vpop.f32.mrb[0].mxu0
        %v729 = vadd.f32 %v581, %v728
        %v730 = vpop.f32.mrb[0].mxu0
        %v731 = vadd.f32 %v577, %v730
        %v732 = vpop.f32.mrb[0].mxu0
        %v733 = vadd.f32 %v581, %v732
        %734 = vmatprep.mubr.bf16.mxu0 0
        %735 = vmatmul.mubr.bf16.gmra.mrb[0].mxu0 %v610
        %v736 = vpop.f32.mrb[0].mxu0
        %v737 = vadd.f32 %v577, %v736
        %v738 = vpop.f32.mrb[0].mxu0
        %v739 = vadd.f32 %v581, %v738
        %v740 = vpop.f32.mrb[0].mxu0
        %v741 = vadd.f32 %v577, %v740
        %v742 = vpop.f32.mrb[0].mxu0
        %v743 = vadd.f32 %v581, %v742
        %744 = vmatprep.mubr.bf16.mxu0 0
        %745 = vmatmul.mubr.bf16.gmra.mrb[0].mxu0 %v613
        %v746 = vpop.f32.mrb[0].mxu0
        %v747 = vadd.f32 %v577, %v746
        %v748 = vpop.f32.mrb[0].mxu0
        %v749 = vadd.f32 %v581, %v748
        %v750 = vpop.f32.mrb[0].mxu0
        %v751 = vadd.f32 %v577, %v750
        %v752 = vpop.f32.mrb[0].mxu0
        %v753 = vadd.f32 %v581, %v752
        %754 = vmatprep.mubr.bf16.mxu0 0
        %755 = vmatmul.mubr.bf16.gmra.mrb[0].mxu0 %v616
        %v756 = vpop.f32.mrb[0].mxu0
        %v757 = vadd.f32 %v577, %v756
        %v758 = vpop.f32.mrb[0].mxu0
        %v759 = vadd.f32 %v581, %v758
        %v760 = vpop.f32.mrb[0].mxu0
        %v761 = vadd.f32 %v577, %v760
        %v762 = vpop.f32.mrb[0].mxu0
        %v763 = vadd.f32 %v581, %v762
        %764 = vmatprep.mubr.bf16.mxu0 0
        %765 = vmatmul.mubr.bf16.gmra.mrb[0].mxu0 %v619
        %v766 = vpop.f32.mrb[0].mxu0
        %v767 = vadd.f32 %v577, %v766
        %v768 = vpop.f32.mrb[0].mxu0
        %v769 = vadd.f32 %v581, %v768
        %v770 = vpop.f32.mrb[0].mxu0
        %v771 = vadd.f32 %v577, %v770
        %v772 = vpop.f32.mrb[0].mxu0
        %v773 = vadd.f32 %v581, %v772
        %774 = vmatprep.mubr.bf16.mxu0 0
        %775 = vmatmul.mubr.bf16.gmra.mrb[0].mxu0 %v622
        %v776 = vpop.f32.mrb[0].mxu0
        %v777 = vadd.f32 %v577, %v776
        %v778 = vpop.f32.mrb[0].mxu0
        %v779 = vadd.f32 %v581, %v778
        %v780 = vpop.f32.mrb[0].mxu0
        %v781 = vadd.f32 %v577, %v780
        %v782 = vpop.f32.mrb[0].mxu0
        %v783 = vadd.f32 %v581, %v782
        %784 = vmatprep.mubr.bf16.mxu0 0
        %785 = vmatmul.mubr.bf16.gmra.mrb[0].mxu0 %v625
        %v786 = vpop.f32.mrb[0].mxu0
        %v787 = vadd.f32 %v577, %v786
        %v788 = vpop.f32.mrb[0].mxu0
        %v789 = vadd.f32 %v581, %v788
        %v790 = vpop.f32.mrb[0].mxu0
        %v791 = vadd.f32 %v577, %v790
        %v792 = vpop.f32.mrb[0].mxu0
        %v793 = vadd.f32 %v581, %v792
        %794 = vmatprep.mubr.bf16.mxu0 0
        %795 = vmatmul.mubr.bf16.gmra.mrb[0].mxu0 %v628
        %v796 = vpop.f32.mrb[0].mxu0
        %v797 = vadd.f32 %v577, %v796
        %v798 = vpop.f32.mrb[0].mxu0
        %v799 = vadd.f32 %v581, %v798
        %v800 = vpop.f32.mrb[0].mxu0
        %v801 = vadd.f32 %v577, %v800
        %v802 = vpop.f32.mrb[0].mxu0
        %v803 = vadd.f32 %v581, %v802
        %804 = vmatprep.mubr.bf16.mxu0 0
        %805 = vmatmul.mubr.bf16.gmra.mrb[0].mxu0 %v631
        %v806 = vpop.f32.mrb[0].mxu0
        %v807 = vadd.f32 %v577, %v806
        %v808 = vpop.f32.mrb[0].mxu0
        %v809 = vadd.f32 %v581, %v808
        %v810 = vpop.f32.mrb[0].mxu0
        %v811 = vadd.f32 %v577, %v810
        %v812 = vpop.f32.mrb[0].mxu0
        %v813 = vadd.f32 %v581, %v812
        %814 = vmatprep.mubr.bf16.mxu0 0
        %815 = vmatmul.mubr.bf16.gmra.mrb[0].mxu0 %v634
        %v816 = vpop.f32.mrb[0].mxu0
        %v817 = vadd.f32 %v577, %v816
        %v818 = vpop.f32.mrb[0].mxu0
        %v819 = vadd.f32 %v581, %v818
        %v820 = vpop.f32.mrb[0].mxu0
        %v821 = vadd.f32 %v577, %v820
        %v822 = vpop.f32.mrb[0].mxu0
        %v823 = vadd.f32 %v581, %v822
        %824 = vmatprep.mubr.bf16.mxu0 0
        %825 = vmatmul.mubr.bf16.gmra.mrb[0].mxu0 %v637
        %v826 = vpop.f32.mrb[0].mxu0
        %v827 = vadd.f32 %v577, %v826
        %v828 = vpop.f32.mrb[0].mxu0
        %v829 = vadd.f32 %v581, %v828
        %v830 = vpop.f32.mrb[0].mxu0
        %v831 = vadd.f32 %v577, %v830
        %v832 = vpop.f32.mrb[0].mxu0
        %v833 = vadd.f32 %v581, %v832
        %834 = vmatprep.mubr.bf16.mxu0 0
        %835 = vmatmul.mubr.bf16.gmra.mrb[0].mxu0 %v640
        %v836 = vpop.f32.mrb[0].mxu0
        %v837 = vadd.f32 %v577, %v836
        %v838 = vpop.f32.mrb[0].mxu0
        %v839 = vadd.f32 %v581, %v838
        %v840 = vpop.f32.mrb[0].mxu0
        %v841 = vadd.f32 %v577, %v840
        %v842 = vpop.f32.mrb[0].mxu0
        %v843 = vadd.f32 %v581, %v842
        %844 = vdwg.mxu0
        %v845 = vmax.f32 %v687, 0.0
        %v846 = vmax.f32 %v689, 0.0
        %v847 = vmax.f32 %v691, 0.0
        %v848 = vmax.f32 %v693, 0.0
        %v849 = vmax.f32 %v697, 0.0
        %v850 = vmax.f32 %v699, 0.0
        %v851 = vmax.f32 %v701, 0.0
        %v852 = vmax.f32 %v703, 0.0
        %v853 = vmax.f32 %v707, 0.0
        %v854 = vmax.f32 %v709, 0.0
        %v855 = vmax.f32 %v711, 0.0
        %v856 = vmax.f32 %v713, 0.0
        %v857 = vmax.f32 %v717, 0.0
        %v858 = vmax.f32 %v719, 0.0
        %v859 = vmax.f32 %v721, 0.0
        %v860 = vmax.f32 %v723, 0.0
        %v861 = vmax.f32 %v727, 0.0
        %v862 = vmax.f32 %v729, 0.0
        %v863 = vmax.f32 %v731, 0.0
        %v864 = vmax.f32 %v733, 0.0
        %v865 = vmax.f32 %v737, 0.0
        %v866 = vmax.f32 %v739, 0.0
        %v867 = vmax.f32 %v741, 0.0
        %v868 = vmax.f32 %v743, 0.0
        %v869 = vmax.f32 %v747, 0.0
        %v870 = vmax.f32 %v749, 0.0
        %v871 = vmax.f32 %v751, 0.0
        %v872 = vmax.f32 %v753, 0.0
        %v873 = vmax.f32 %v757, 0.0
        %v874 = vmax.f32 %v759, 0.0
        %v875 = vmax.f32 %v761, 0.0
        %v876 = vmax.f32 %v763, 0.0
        %v877 = vmax.f32 %v767, 0.0
        %v878 = vmax.f32 %v769, 0.0
        %v879 = vmax.f32 %v771, 0.0
        %v880 = vmax.f32 %v773, 0.0
        %v881 = vmax.f32 %v777, 0.0
        %v882 = vmax.f32 %v779, 0.0
        %v883 = vmax.f32 %v781, 0.0
        %v884 = vmax.f32 %v783, 0.0
        %v885 = vmax.f32 %v787, 0.0
        %v886 = vmax.f32 %v789, 0.0
        %v887 = vmax.f32 %v791, 0.0
        %v888 = vmax.f32 %v793, 0.0
        %v889 = vmax.f32 %v797, 0.0
        %v890 = vmax.f32 %v799, 0.0
        %v891 = vmax.f32 %v801, 0.0
        %v892 = vmax.f32 %v803, 0.0
        %v893 = vmax.f32 %v807, 0.0
        %v894 = vmax.f32 %v809, 0.0
        %v895 = vmax.f32 %v811, 0.0
        %v896 = vmax.f32 %v813, 0.0
        %v897 = vmax.f32 %v817, 0.0
        %v898 = vmax.f32 %v819, 0.0
        %v899 = vmax.f32 %v821, 0.0
        %v900 = vmax.f32 %v823, 0.0
        %v901 = vmax.f32 %v827, 0.0
        %v902 = vmax.f32 %v829, 0.0
        %v903 = vmax.f32 %v831, 0.0
        %v904 = vmax.f32 %v833, 0.0
        %v905 = vmax.f32 %v837, 0.0
        %v906 = vmax.f32 %v839, 0.0
        %v907 = vmax.f32 %v841, 0.0
        %v908 = vmax.f32 %v843, 0.0
        %v909 = vpack.c.bf16 %v847, %v845
        %v910 = vpack.c.bf16 %v848, %v846
        %v911 = vpack.c.bf16 %v851, %v849
        %v912 = vpack.c.bf16 %v852, %v850
        %v913 = vpack.c.bf16 %v855, %v853
        %v914 = vpack.c.bf16 %v856, %v854
        %v915 = vpack.c.bf16 %v859, %v857
        %v916 = vpack.c.bf16 %v860, %v858
        %v917 = vpack.c.bf16 %v863, %v861
        %v918 = vpack.c.bf16 %v864, %v862
        %v919 = vpack.c.bf16 %v867, %v865
        %v920 = vpack.c.bf16 %v868, %v866
        %v921 = vpack.c.bf16 %v871, %v869
        %v922 = vpack.c.bf16 %v872, %v870
        %v923 = vpack.c.bf16 %v875, %v873
        %v924 = vpack.c.bf16 %v876, %v874
        %v925 = vpack.c.bf16 %v879, %v877
        %v926 = vpack.c.bf16 %v880, %v878
        %v927 = vpack.c.bf16 %v883, %v881
        %v928 = vpack.c.bf16 %v884, %v882
        %v929 = vpack.c.bf16 %v887, %v885
        %v930 = vpack.c.bf16 %v888, %v886
        %v931 = vpack.c.bf16 %v891, %v889
        %v932 = vpack.c.bf16 %v892, %v890
        %v933 = vpack.c.bf16 %v895, %v893
        %v934 = vpack.c.bf16 %v896, %v894
        %v935 = vpack.c.bf16 %v899, %v897
        %v936 = vpack.c.bf16 %v900, %v898
        %v937 = vpack.c.bf16 %v903, %v901
        %v938 = vpack.c.bf16 %v904, %v902
        %v939 = vpack.c.bf16 %v907, %v905
        %v940 = vpack.c.bf16 %v908, %v906
        %v941 = vld [vmem:[#allocation7] sm:$0xff]
        %v942 = vld [vmem:[#allocation7 + $0x8] sm:$0xff]
        %v943 = vld [vmem:[#allocation7 + $0x10] sm:$0xff]
        %v944 = vld [vmem:[#allocation7 + $0x18] sm:$0xff]
        %v945 = vld [vmem:[#allocation7 + $0x20] sm:$0xff]
        %v946 = vld [vmem:[#allocation7 + $0x28] sm:$0xff]
        %v947 = vld [vmem:[#allocation7 + $0x30] sm:$0xff]
        %v948 = vld [vmem:[#allocation7 + $0x38] sm:$0xff]
        %v949 = vld [vmem:[#allocation7 + $0x40] sm:$0xff]
        %v950 = vld [vmem:[#allocation7 + $0x48] sm:$0xff]
        %v951 = vld [vmem:[#allocation7 + $0x50] sm:$0xff]
        %v952 = vld [vmem:[#allocation7 + $0x58] sm:$0xff]
        %v953 = vld [vmem:[#allocation7 + $0x60] sm:$0xff]
        %v954 = vld [vmem:[#allocation7 + $0x68] sm:$0xff]
        %v955 = vld [vmem:[#allocation7 + $0x70] sm:$0xff]
        %v956 = vld [vmem:[#allocation7 + $0x78] sm:$0xff]
        %v957 = vld [vmem:[#allocation7 + $0x80] sm:$0xff]
        %v958 = vld [vmem:[#allocation7 + $0x88] sm:$0xff]
        %v959 = vld [vmem:[#allocation7 + $0x90] sm:$0xff]
        %v960 = vld [vmem:[#allocation7 + $0x98] sm:$0xff]
        %v961 = vld [vmem:[#allocation7 + $0xa0] sm:$0xff]
        %v962 = vld [vmem:[#allocation7 + $0xa8] sm:$0xff]
        %v963 = vld [vmem:[#allocation7 + $0xb0] sm:$0xff]
        %v964 = vld [vmem:[#allocation7 + $0xb8] sm:$0xff]
        %v965 = vld [vmem:[#allocation7 + $0xc0] sm:$0xff]
        %v966 = vld [vmem:[#allocation7 + $0xc8] sm:$0xff]
        %v967 = vld [vmem:[#allocation7 + $0xd0] sm:$0xff]
        %v968 = vld [vmem:[#allocation7 + $0xd8] sm:$0xff]
        %v969 = vld [vmem:[#allocation7 + $0xe0] sm:$0xff]
        %v970 = vld [vmem:[#allocation7 + $0xe8] sm:$0xff]
        %v971 = vld [vmem:[#allocation7 + $0xf0] sm:$0xff]
        %v972 = vld [vmem:[#allocation7 + $0xf8] sm:$0xff]
        %v973 = vld [vmem:[#allocation7 + $0x100] sm:$0xff]
        %v974 = vld [vmem:[#allocation7 + $0x108] sm:$0xff]
        %v975 = vld [vmem:[#allocation7 + $0x110] sm:$0xff]
        %v976 = vld [vmem:[#allocation7 + $0x118] sm:$0xff]
        %v977 = vld [vmem:[#allocation7 + $0x120] sm:$0xff]
        %v978 = vld [vmem:[#allocation7 + $0x128] sm:$0xff]
        %v979 = vld [vmem:[#allocation7 + $0x130] sm:$0xff]
        %v980 = vld [vmem:[#allocation7 + $0x138] sm:$0xff]
        %v981 = vld [vmem:[#allocation7 + $0x140] sm:$0xff]
        %v982 = vld [vmem:[#allocation7 + $0x148] sm:$0xff]
        %v983 = vld [vmem:[#allocation7 + $0x150] sm:$0xff]
        %v984 = vld [vmem:[#allocation7 + $0x158] sm:$0xff]
        %v985 = vld [vmem:[#allocation7 + $0x160] sm:$0xff]
        %v986 = vld [vmem:[#allocation7 + $0x168] sm:$0xff]
        %v987 = vld [vmem:[#allocation7 + $0x170] sm:$0xff]
        %v988 = vld [vmem:[#allocation7 + $0x178] sm:$0xff]
        %v989 = vld [vmem:[#allocation7 + $0x180] sm:$0xff]
        %v990 = vld [vmem:[#allocation7 + $0x188] sm:$0xff]
        %v991 = vld [vmem:[#allocation7 + $0x190] sm:$0xff]
        %v992 = vld [vmem:[#allocation7 + $0x198] sm:$0xff]
        %v993 = vld [vmem:[#allocation7 + $0x1a0] sm:$0xff]
        %v994 = vld [vmem:[#allocation7 + $0x1a8] sm:$0xff]
        %v995 = vld [vmem:[#allocation7 + $0x1b0] sm:$0xff]
        %v996 = vld [vmem:[#allocation7 + $0x1b8] sm:$0xff]
        %v997 = vld [vmem:[#allocation7 + $0x1c0] sm:$0xff]
        %v998 = vld [vmem:[#allocation7 + $0x1c8] sm:$0xff]
        %v999 = vld [vmem:[#allocation7 + $0x1d0] sm:$0xff]
        %v1000 = vld [vmem:[#allocation7 + $0x1d8] sm:$0xff]
        %v1001 = vld [vmem:[#allocation7 + $0x1e0] sm:$0xff]
        %v1002 = vld [vmem:[#allocation7 + $0x1e8] sm:$0xff]
        %v1003 = vld [vmem:[#allocation7 + $0x1f0] sm:$0xff]
        %v1004 = vld [vmem:[#allocation7 + $0x1f8] sm:$0xff]
        %v1005 = vld [vmem:[#allocation8] sm:$0xf]
        %v1007 = vlaneseq
        %v1008 = vshrl.u32 %v1007, 7
        %v1009 = vsub.s32 0, %v1008
        %v1010 = vrot.slane %v1005, %v1009
        %v1011 = vlaneseq
        %v1012 = vshrl.u32 %v1011, 7
        %v1013 = vsub.s32 1, %v1012
        %v1014 = vrot.slane %v1005, %v1013
        %v1015 = vlaneseq
        %v1016 = vshrl.u32 %v1015, 7
        %v1017 = vsub.s32 2, %v1016
        %v1018 = vrot.slane %v1005, %v1017
        %v1019 = vlaneseq
        %v1020 = vshrl.u32 %v1019, 7
        %v1021 = vsub.s32 3, %v1020
        %v1022 = vrot.slane %v1005, %v1021
        %v1091 = vunpack.c.l.b16 %v941
        %v1092 = vunpack.c.h.b16 %v941
        %v1093 = vunpack.c.l.b16 %v942
        %v1094 = vunpack.c.h.b16 %v942
        %v1095 = vunpack.c.l.b16 %v943
        %v1096 = vunpack.c.h.b16 %v943
        %v1097 = vunpack.c.l.b16 %v944
        %v1098 = vunpack.c.h.b16 %v944
        %v1099 = vunpack.c.l.b16 %v945
        %v1100 = vunpack.c.h.b16 %v945
        %v1101 = vunpack.c.l.b16 %v946
        %v1102 = vunpack.c.h.b16 %v946
        %v1103 = vunpack.c.l.b16 %v947
        %v1104 = vunpack.c.h.b16 %v947
        %v1105 = vunpack.c.l.b16 %v948
        %v1106 = vunpack.c.h.b16 %v948
        %v1107 = vunpack.c.l.b16 %v949
        %v1108 = vunpack.c.h.b16 %v949
        %v1109 = vunpack.c.l.b16 %v950
        %v1110 = vunpack.c.h.b16 %v950
        %v1111 = vunpack.c.l.b16 %v951
        %v1112 = vunpack.c.h.b16 %v951
        %v1113 = vunpack.c.l.b16 %v952
        %v1114 = vunpack.c.h.b16 %v952
        %v1115 = vunpack.c.l.b16 %v953
        %v1116 = vunpack.c.h.b16 %v953
        %v1117 = vunpack.c.l.b16 %v954
        %v1118 = vunpack.c.h.b16 %v954
        %v1119 = vunpack.c.l.b16 %v955
        %v1120 = vunpack.c.h.b16 %v955
        %v1121 = vunpack.c.l.b16 %v956
        %v1122 = vunpack.c.h.b16 %v956
        %v1123 = vunpack.c.l.b16 %v957
        %v1124 = vunpack.c.h.b16 %v957
        %v1125 = vunpack.c.l.b16 %v958
        %v1126 = vunpack.c.h.b16 %v958
        %v1127 = vunpack.c.l.b16 %v959
        %v1128 = vunpack.c.h.b16 %v959
        %v1129 = vunpack.c.l.b16 %v960
        %v1130 = vunpack.c.h.b16 %v960
        %v1131 = vunpack.c.l.b16 %v961
        %v1132 = vunpack.c.h.b16 %v961
        %v1133 = vunpack.c.l.b16 %v962
        %v1134 = vunpack.c.h.b16 %v962
        %v1135 = vunpack.c.l.b16 %v963
        %v1136 = vunpack.c.h.b16 %v963
        %v1137 = vunpack.c.l.b16 %v964
        %v1138 = vunpack.c.h.b16 %v964
        %v1139 = vunpack.c.l.b16 %v965
        %v1140 = vunpack.c.h.b16 %v965
        %v1141 = vunpack.c.l.b16 %v966
        %v1142 = vunpack.c.h.b16 %v966
        %v1143 = vunpack.c.l.b16 %v967
        %v1144 = vunpack.c.h.b16 %v967
        %v1145 = vunpack.c.l.b16 %v968
        %v1146 = vunpack.c.h.b16 %v968
        %v1147 = vunpack.c.l.b16 %v969
        %v1148 = vunpack.c.h.b16 %v969
        %v1149 = vunpack.c.l.b16 %v970
        %v1150 = vunpack.c.h.b16 %v970
        %v1151 = vunpack.c.l.b16 %v971
        %v1152 = vunpack.c.h.b16 %v971
        %v1153 = vunpack.c.l.b16 %v972
        %v1154 = vunpack.c.h.b16 %v972
        %v1155 = vunpack.c.l.b16 %v973
        %v1156 = vunpack.c.h.b16 %v973
        %v1157 = vunpack.c.l.b16 %v974
        %v1158 = vunpack.c.h.b16 %v974
        %v1159 = vunpack.c.l.b16 %v975
        %v1160 = vunpack.c.h.b16 %v975
        %v1161 = vunpack.c.l.b16 %v976
        %v1162 = vunpack.c.h.b16 %v976
        %v1163 = vunpack.c.l.b16 %v977
        %v1164 = vunpack.c.h.b16 %v977
        %v1165 = vunpack.c.l.b16 %v978
        %v1166 = vunpack.c.h.b16 %v978
        %v1167 = vunpack.c.l.b16 %v979
        %v1168 = vunpack.c.h.b16 %v979
        %v1169 = vunpack.c.l.b16 %v980
        %v1170 = vunpack.c.h.b16 %v980
        %v1171 = vunpack.c.l.b16 %v981
        %v1172 = vunpack.c.h.b16 %v981
        %v1173 = vunpack.c.l.b16 %v982
        %v1174 = vunpack.c.h.b16 %v982
        %v1175 = vunpack.c.l.b16 %v983
        %v1176 = vunpack.c.h.b16 %v983
        %v1177 = vunpack.c.l.b16 %v984
        %v1178 = vunpack.c.h.b16 %v984
        %v1179 = vunpack.c.l.b16 %v985
        %v1180 = vunpack.c.h.b16 %v985
        %v1181 = vunpack.c.l.b16 %v986
        %v1182 = vunpack.c.h.b16 %v986
        %v1183 = vunpack.c.l.b16 %v987
        %v1184 = vunpack.c.h.b16 %v987
        %v1185 = vunpack.c.l.b16 %v988
        %v1186 = vunpack.c.h.b16 %v988
        %v1187 = vunpack.c.l.b16 %v989
        %v1188 = vunpack.c.h.b16 %v989
        %v1189 = vunpack.c.l.b16 %v990
        %v1190 = vunpack.c.h.b16 %v990
        %v1191 = vunpack.c.l.b16 %v991
        %v1192 = vunpack.c.h.b16 %v991
        %v1193 = vunpack.c.l.b16 %v992
        %v1194 = vunpack.c.h.b16 %v992
        %v1195 = vunpack.c.l.b16 %v993
        %v1196 = vunpack.c.h.b16 %v993
        %v1197 = vunpack.c.l.b16 %v994
        %v1198 = vunpack.c.h.b16 %v994
        %v1199 = vunpack.c.l.b16 %v995
        %v1200 = vunpack.c.h.b16 %v995
        %v1201 = vunpack.c.l.b16 %v996
        %v1202 = vunpack.c.h.b16 %v996
        %v1203 = vunpack.c.l.b16 %v997
        %v1204 = vunpack.c.h.b16 %v997
        %v1205 = vunpack.c.l.b16 %v998
        %v1206 = vunpack.c.h.b16 %v998
        %v1207 = vunpack.c.l.b16 %v999
        %v1208 = vunpack.c.h.b16 %v999
        %v1209 = vunpack.c.l.b16 %v1000
        %v1210 = vunpack.c.h.b16 %v1000
        %v1211 = vunpack.c.l.b16 %v1001
        %v1212 = vunpack.c.h.b16 %v1001
        %v1213 = vunpack.c.l.b16 %v1002
        %v1214 = vunpack.c.h.b16 %v1002
        %v1215 = vunpack.c.l.b16 %v1003
        %v1216 = vunpack.c.h.b16 %v1003
        %v1217 = vunpack.c.l.b16 %v1004
        %v1218 = vunpack.c.h.b16 %v1004
        %v1219 = vpack.c.b16 %v1095, %v1091
        %v1220 = vpack.c.b16 %v1096, %v1092
        %v1221 = vpack.c.b16 %v1097, %v1093
        %v1222 = vpack.c.b16 %v1098, %v1094
        %v1223 = vpack.c.b16 %v1103, %v1099
        %v1224 = vpack.c.b16 %v1104, %v1100
        %v1225 = vpack.c.b16 %v1105, %v1101
        %v1226 = vpack.c.b16 %v1106, %v1102
        %v1227 = vpack.c.b16 %v1111, %v1107
        %v1228 = vpack.c.b16 %v1112, %v1108
        %v1229 = vpack.c.b16 %v1113, %v1109
        %v1230 = vpack.c.b16 %v1114, %v1110
        %v1231 = vpack.c.b16 %v1119, %v1115
        %v1232 = vpack.c.b16 %v1120, %v1116
        %v1233 = vpack.c.b16 %v1121, %v1117
        %v1234 = vpack.c.b16 %v1122, %v1118
        %v1235 = vpack.c.b16 %v1127, %v1123
        %v1236 = vpack.c.b16 %v1128, %v1124
        %v1237 = vpack.c.b16 %v1129, %v1125
        %v1238 = vpack.c.b16 %v1130, %v1126
        %v1239 = vpack.c.b16 %v1135, %v1131
        %v1240 = vpack.c.b16 %v1136, %v1132
        %v1241 = vpack.c.b16 %v1137, %v1133
        %v1242 = vpack.c.b16 %v1138, %v1134
        %v1243 = vpack.c.b16 %v1143, %v1139
        %v1244 = vpack.c.b16 %v1144, %v1140
        %v1245 = vpack.c.b16 %v1145, %v1141
        %v1246 = vpack.c.b16 %v1146, %v1142
        %v1247 = vpack.c.b16 %v1151, %v1147
        %v1248 = vpack.c.b16 %v1152, %v1148
        %v1249 = vpack.c.b16 %v1153, %v1149
        %v1250 = vpack.c.b16 %v1154, %v1150
        %v1251 = vpack.c.b16 %v1159, %v1155
        %v1252 = vpack.c.b16 %v1160, %v1156
        %v1253 = vpack.c.b16 %v1161, %v1157
        %v1254 = vpack.c.b16 %v1162, %v1158
        %v1255 = vpack.c.b16 %v1167, %v1163
        %v1256 = vpack.c.b16 %v1168, %v1164
        %v1257 = vpack.c.b16 %v1169, %v1165
        %v1258 = vpack.c.b16 %v1170, %v1166
        %v1259 = vpack.c.b16 %v1175, %v1171
        %v1260 = vpack.c.b16 %v1176, %v1172
        %v1261 = vpack.c.b16 %v1177, %v1173
        %v1262 = vpack.c.b16 %v1178, %v1174
        %v1263 = vpack.c.b16 %v1183, %v1179
        %v1264 = vpack.c.b16 %v1184, %v1180
        %v1265 = vpack.c.b16 %v1185, %v1181
        %v1266 = vpack.c.b16 %v1186, %v1182
        %v1267 = vpack.c.b16 %v1191, %v1187
        %v1268 = vpack.c.b16 %v1192, %v1188
        %v1269 = vpack.c.b16 %v1193, %v1189
        %v1270 = vpack.c.b16 %v1194, %v1190
        %v1271 = vpack.c.b16 %v1199, %v1195
        %v1272 = vpack.c.b16 %v1200, %v1196
        %v1273 = vpack.c.b16 %v1201, %v1197
        %v1274 = vpack.c.b16 %v1202, %v1198
        %v1275 = vpack.c.b16 %v1207, %v1203
        %v1276 = vpack.c.b16 %v1208, %v1204
        %v1277 = vpack.c.b16 %v1209, %v1205
        %v1278 = vpack.c.b16 %v1210, %v1206
        %v1279 = vpack.c.b16 %v1215, %v1211
        %v1280 = vpack.c.b16 %v1216, %v1212
        %v1281 = vpack.c.b16 %v1217, %v1213
        %v1282 = vpack.c.b16 %v1218, %v1214
        %1347 = vmatprep.subr.bf16.mxu0 %v1220
        %1348 = vmatpush1.bf16.msra.mxu0 %v1219
        %1349 = vmatprep.subr.bf16.mxu0 %v1224
        %1350 = vmatpush1.bf16.msra.mxu0 %v1223
        %1351 = vmatprep.subr.bf16.mxu0 %v1228
        %1352 = vmatpush1.bf16.msra.mxu0 %v1227
        %1353 = vmatprep.subr.bf16.mxu0 %v1232
        %1354 = vmatpush1.bf16.msra.mxu0 %v1231
        %1355 = vmatprep.subr.bf16.mxu0 %v1236
        %1356 = vmatpush1.bf16.msra.mxu0 %v1235
        %1357 = vmatprep.subr.bf16.mxu0 %v1240
        %1358 = vmatpush1.bf16.msra.mxu0 %v1239
        %1359 = vmatprep.subr.bf16.mxu0 %v1244
        %1360 = vmatpush1.bf16.msra.mxu0 %v1243
        %1361 = vmatprep.subr.bf16.mxu0 %v1248
        %1362 = vmatpush1.bf16.msra.mxu0 %v1247
        %1363 = vmatprep.subr.bf16.mxu0 %v1252
        %1364 = vmatpush1.bf16.msra.mxu0 %v1251
        %1365 = vmatprep.subr.bf16.mxu0 %v1256
        %1366 = vmatpush1.bf16.msra.mxu0 %v1255
        %1367 = vmatprep.subr.bf16.mxu0 %v1260
        %1368 = vmatpush1.bf16.msra.mxu0 %v1259
        %1369 = vmatprep.subr.bf16.mxu0 %v1264
        %1370 = vmatpush1.bf16.msra.mxu0 %v1263
        %1371 = vmatprep.subr.bf16.mxu0 %v1268
        %1372 = vmatpush1.bf16.msra.mxu0 %v1267
        %1373 = vmatprep.subr.bf16.mxu0 %v1272
        %1374 = vmatpush1.bf16.msra.mxu0 %v1271
        %1375 = vmatprep.subr.bf16.mxu0 %v1276
        %1376 = vmatpush1.bf16.msra.mxu0 %v1275
        %1377 = vmatprep.subr.bf16.mxu0 %v1280
        %1378 = vmatpush1.bf16.msra.mxu0 %v1279
        %1379 = vmatprep.mubr.bf16.mxu0 %v910
        %1380 = vmatmul.mubr.bf16.gmra.mrb[0].mxu0 %v909
        %v1381 = vpop.f32.mrb[0].mxu0
        %v1382 = vadd.f32 %v1010, %v1381
        %v1383 = vpop.f32.mrb[0].mxu0
        %v1384 = vadd.f32 %v1014, %v1383
        %v1385 = vpop.f32.mrb[0].mxu0
        %v1386 = vadd.f32 %v1010, %v1385
        %v1387 = vpop.f32.mrb[0].mxu0
        %v1388 = vadd.f32 %v1014, %v1387
        %1389 = vmatprep.mubr.bf16.mxu0 %v912
        %1390 = vmatmul.mubr.bf16.gmra.mrb[0].mxu0 %v911
        %v1391 = vpop.f32.mrb[0].mxu0
        %v1392 = vadd.f32 %v1010, %v1391
        %v1393 = vpop.f32.mrb[0].mxu0
        %v1394 = vadd.f32 %v1014, %v1393
        %v1395 = vpop.f32.mrb[0].mxu0
        %v1396 = vadd.f32 %v1010, %v1395
        %v1397 = vpop.f32.mrb[0].mxu0
        %v1398 = vadd.f32 %v1014, %v1397
        %1399 = vmatprep.mubr.bf16.mxu0 %v914
        %1400 = vmatmul.mubr.bf16.gmra.mrb[0].mxu0 %v913
        %v1401 = vpop.f32.mrb[0].mxu0
        %v1402 = vadd.f32 %v1010, %v1401
        %v1403 = vpop.f32.mrb[0].mxu0
        %v1404 = vadd.f32 %v1014, %v1403
        %v1405 = vpop.f32.mrb[0].mxu0
        %v1406 = vadd.f32 %v1010, %v1405
        %v1407 = vpop.f32.mrb[0].mxu0
        %v1408 = vadd.f32 %v1014, %v1407
        %1409 = vmatprep.mubr.bf16.mxu0 %v916
        %1410 = vmatmul.mubr.bf16.gmra.mrb[0].mxu0 %v915
        %v1411 = vpop.f32.mrb[0].mxu0
        %v1412 = vadd.f32 %v1010, %v1411
        %v1413 = vpop.f32.mrb[0].mxu0
        %v1414 = vadd.f32 %v1014, %v1413
        %v1415 = vpop.f32.mrb[0].mxu0
        %v1416 = vadd.f32 %v1010, %v1415
        %v1417 = vpop.f32.mrb[0].mxu0
        %v1418 = vadd.f32 %v1014, %v1417
        %1419 = vmatprep.mubr.bf16.mxu0 %v918
        %1420 = vmatmul.mubr.bf16.gmra.mrb[0].mxu0 %v917
        %v1421 = vpop.f32.mrb[0].mxu0
        %v1422 = vadd.f32 %v1010, %v1421
        %v1423 = vpop.f32.mrb[0].mxu0
        %v1424 = vadd.f32 %v1014, %v1423
        %v1425 = vpop.f32.mrb[0].mxu0
        %v1426 = vadd.f32 %v1010, %v1425
        %v1427 = vpop.f32.mrb[0].mxu0
        %v1428 = vadd.f32 %v1014, %v1427
        %1429 = vmatprep.mubr.bf16.mxu0 %v920
        %1430 = vmatmul.mubr.bf16.gmra.mrb[0].mxu0 %v919
        %v1431 = vpop.f32.mrb[0].mxu0
        %v1432 = vadd.f32 %v1010, %v1431
        %v1433 = vpop.f32.mrb[0].mxu0
        %v1434 = vadd.f32 %v1014, %v1433
        %v1435 = vpop.f32.mrb[0].mxu0
        %v1436 = vadd.f32 %v1010, %v1435
        %v1437 = vpop.f32.mrb[0].mxu0
        %v1438 = vadd.f32 %v1014, %v1437
        %1439 = vmatprep.mubr.bf16.mxu0 %v922
        %1440 = vmatmul.mubr.bf16.gmra.mrb[0].mxu0 %v921
        %v1441 = vpop.f32.mrb[0].mxu0
        %v1442 = vadd.f32 %v1010, %v1441
        %v1443 = vpop.f32.mrb[0].mxu0
        %v1444 = vadd.f32 %v1014, %v1443
        %v1445 = vpop.f32.mrb[0].mxu0
        %v1446 = vadd.f32 %v1010, %v1445
        %v1447 = vpop.f32.mrb[0].mxu0
        %v1448 = vadd.f32 %v1014, %v1447
        %1449 = vmatprep.mubr.bf16.mxu0 %v924
        %1450 = vmatmul.mubr.bf16.gmra.mrb[0].mxu0 %v923
        %v1451 = vpop.f32.mrb[0].mxu0
        %v1452 = vadd.f32 %v1010, %v1451
        %v1453 = vpop.f32.mrb[0].mxu0
        %v1454 = vadd.f32 %v1014, %v1453
        %v1455 = vpop.f32.mrb[0].mxu0
        %v1456 = vadd.f32 %v1010, %v1455
        %v1457 = vpop.f32.mrb[0].mxu0
        %v1458 = vadd.f32 %v1014, %v1457
        %1459 = vmatprep.mubr.bf16.mxu0 %v926
        %1460 = vmatmul.mubr.bf16.gmra.mrb[0].mxu0 %v925
        %v1461 = vpop.f32.mrb[0].mxu0
        %v1462 = vadd.f32 %v1010, %v1461
        %v1463 = vpop.f32.mrb[0].mxu0
        %v1464 = vadd.f32 %v1014, %v1463
        %v1465 = vpop.f32.mrb[0].mxu0
        %v1466 = vadd.f32 %v1010, %v1465
        %v1467 = vpop.f32.mrb[0].mxu0
        %v1468 = vadd.f32 %v1014, %v1467
        %1469 = vmatprep.mubr.bf16.mxu0 %v928
        %1470 = vmatmul.mubr.bf16.gmra.mrb[0].mxu0 %v927
        %v1471 = vpop.f32.mrb[0].mxu0
        %v1472 = vadd.f32 %v1010, %v1471
        %v1473 = vpop.f32.mrb[0].mxu0
        %v1474 = vadd.f32 %v1014, %v1473
        %v1475 = vpop.f32.mrb[0].mxu0
        %v1476 = vadd.f32 %v1010, %v1475
        %v1477 = vpop.f32.mrb[0].mxu0
        %v1478 = vadd.f32 %v1014, %v1477
        %1479 = vmatprep.mubr.bf16.mxu0 %v930
        %1480 = vmatmul.mubr.bf16.gmra.mrb[0].mxu0 %v929
        %v1481 = vpop.f32.mrb[0].mxu0
        %v1482 = vadd.f32 %v1010, %v1481
        %v1483 = vpop.f32.mrb[0].mxu0
        %v1484 = vadd.f32 %v1014, %v1483
        %v1485 = vpop.f32.mrb[0].mxu0
        %v1486 = vadd.f32 %v1010, %v1485
        %v1487 = vpop.f32.mrb[0].mxu0
        %v1488 = vadd.f32 %v1014, %v1487
        %1489 = vmatprep.mubr.bf16.mxu0 %v932
        %1490 = vmatmul.mubr.bf16.gmra.mrb[0].mxu0 %v931
        %v1491 = vpop.f32.mrb[0].mxu0
        %v1492 = vadd.f32 %v1010, %v1491
        %v1493 = vpop.f32.mrb[0].mxu0
        %v1494 = vadd.f32 %v1014, %v1493
        %v1495 = vpop.f32.mrb[0].mxu0
        %v1496 = vadd.f32 %v1010, %v1495
        %v1497 = vpop.f32.mrb[0].mxu0
        %v1498 = vadd.f32 %v1014, %v1497
        %1499 = vmatprep.mubr.bf16.mxu0 %v934
        %1500 = vmatmul.mubr.bf16.gmra.mrb[0].mxu0 %v933
        %v1501 = vpop.f32.mrb[0].mxu0
        %v1502 = vadd.f32 %v1010, %v1501
        %v1503 = vpop.f32.mrb[0].mxu0
        %v1504 = vadd.f32 %v1014, %v1503
        %v1505 = vpop.f32.mrb[0].mxu0
        %v1506 = vadd.f32 %v1010, %v1505
        %v1507 = vpop.f32.mrb[0].mxu0
        %v1508 = vadd.f32 %v1014, %v1507
        %1509 = vmatprep.mubr.bf16.mxu0 %v936
        %1510 = vmatmul.mubr.bf16.gmra.mrb[0].mxu0 %v935
        %v1511 = vpop.f32.mrb[0].mxu0
        %v1512 = vadd.f32 %v1010, %v1511
        %v1513 = vpop.f32.mrb[0].mxu0
        %v1514 = vadd.f32 %v1014, %v1513
        %v1515 = vpop.f32.mrb[0].mxu0
        %v1516 = vadd.f32 %v1010, %v1515
        %v1517 = vpop.f32.mrb[0].mxu0
        %v1518 = vadd.f32 %v1014, %v1517
        %1519 = vmatprep.mubr.bf16.mxu0 %v938
        %1520 = vmatmul.mubr.bf16.gmra.mrb[0].mxu0 %v937
        %v1521 = vpop.f32.mrb[0].mxu0
        %v1522 = vadd.f32 %v1010, %v1521
        %v1523 = vpop.f32.mrb[0].mxu0
        %v1524 = vadd.f32 %v1014, %v1523
        %v1525 = vpop.f32.mrb[0].mxu0
        %v1526 = vadd.f32 %v1010, %v1525
        %v1527 = vpop.f32.mrb[0].mxu0
        %v1528 = vadd.f32 %v1014, %v1527
        %1529 = vmatprep.mubr.bf16.mxu0 %v940
        %1530 = vmatmul.mubr.bf16.gmra.mrb[0].mxu0 %v939
        %v1531 = vpop.f32.mrb[0].mxu0
        %v1532 = vadd.f32 %v1010, %v1531
        %v1533 = vpop.f32.mrb[0].mxu0
        %v1534 = vadd.f32 %v1014, %v1533
        %v1535 = vpop.f32.mrb[0].mxu0
        %v1536 = vadd.f32 %v1010, %v1535
        %v1537 = vpop.f32.mrb[0].mxu0
        %v1538 = vadd.f32 %v1014, %v1537
        %1539 = vdwg.mxu0
        %1540 = vmatprep.subr.bf16.mxu0 %v1222
        %1541 = vmatpush1.bf16.msra.mxu0 %v1221
        %1542 = vmatprep.subr.bf16.mxu0 %v1226
        %1543 = vmatpush1.bf16.msra.mxu0 %v1225
        %1544 = vmatprep.subr.bf16.mxu0 %v1230
        %1545 = vmatpush1.bf16.msra.mxu0 %v1229
        %1546 = vmatprep.subr.bf16.mxu0 %v1234
        %1547 = vmatpush1.bf16.msra.mxu0 %v1233
        %1548 = vmatprep.subr.bf16.mxu0 %v1238
        %1549 = vmatpush1.bf16.msra.mxu0 %v1237
        %1550 = vmatprep.subr.bf16.mxu0 %v1242
        %1551 = vmatpush1.bf16.msra.mxu0 %v1241
        %1552 = vmatprep.subr.bf16.mxu0 %v1246
        %1553 = vmatpush1.bf16.msra.mxu0 %v1245
        %1554 = vmatprep.subr.bf16.mxu0 %v1250
        %1555 = vmatpush1.bf16.msra.mxu0 %v1249
        %1556 = vmatprep.subr.bf16.mxu0 %v1254
        %1557 = vmatpush1.bf16.msra.mxu0 %v1253
        %1558 = vmatprep.subr.bf16.mxu0 %v1258
        %1559 = vmatpush1.bf16.msra.mxu0 %v1257
        %1560 = vmatprep.subr.bf16.mxu0 %v1262
        %1561 = vmatpush1.bf16.msra.mxu0 %v1261
        %1562 = vmatprep.subr.bf16.mxu0 %v1266
        %1563 = vmatpush1.bf16.msra.mxu0 %v1265
        %1564 = vmatprep.subr.bf16.mxu0 %v1270
        %1565 = vmatpush1.bf16.msra.mxu0 %v1269
        %1566 = vmatprep.subr.bf16.mxu0 %v1274
        %1567 = vmatpush1.bf16.msra.mxu0 %v1273
        %1568 = vmatprep.subr.bf16.mxu0 %v1278
        %1569 = vmatpush1.bf16.msra.mxu0 %v1277
        %1570 = vmatprep.subr.bf16.mxu0 %v1282
        %1571 = vmatpush1.bf16.msra.mxu0 %v1281
        %1572 = vmatprep.mubr.bf16.mxu0 %v910
        %1573 = vmatmul.mubr.bf16.gmra.mrb[0].mxu0 %v909
        %v1574 = vpop.f32.mrb[0].mxu0
        %v1575 = vadd.f32 %v1018, %v1574
        %v1576 = vpop.f32.mrb[0].mxu0
        %v1577 = vadd.f32 %v1022, %v1576
        %v1578 = vpop.f32.mrb[0].mxu0
        %v1579 = vadd.f32 %v1018, %v1578
        %v1580 = vpop.f32.mrb[0].mxu0
        %v1581 = vadd.f32 %v1022, %v1580
        %1582 = vmatprep.mubr.bf16.mxu0 %v912
        %1583 = vmatmul.mubr.bf16.gmra.mrb[0].mxu0 %v911
        %v1584 = vpop.f32.mrb[0].mxu0
        %v1585 = vadd.f32 %v1018, %v1584
        %v1586 = vpop.f32.mrb[0].mxu0
        %v1587 = vadd.f32 %v1022, %v1586
        %v1588 = vpop.f32.mrb[0].mxu0
        %v1589 = vadd.f32 %v1018, %v1588
        %v1590 = vpop.f32.mrb[0].mxu0
        %v1591 = vadd.f32 %v1022, %v1590
        %1592 = vmatprep.mubr.bf16.mxu0 %v914
        %1593 = vmatmul.mubr.bf16.gmra.mrb[0].mxu0 %v913
        %v1594 = vpop.f32.mrb[0].mxu0
        %v1595 = vadd.f32 %v1018, %v1594
        %v1596 = vpop.f32.mrb[0].mxu0
        %v1597 = vadd.f32 %v1022, %v1596
        %v1598 = vpop.f32.mrb[0].mxu0
        %v1599 = vadd.f32 %v1018, %v1598
        %v1600 = vpop.f32.mrb[0].mxu0
        %v1601 = vadd.f32 %v1022, %v1600
        %1602 = vmatprep.mubr.bf16.mxu0 %v916
        %1603 = vmatmul.mubr.bf16.gmra.mrb[0].mxu0 %v915
        %v1604 = vpop.f32.mrb[0].mxu0
        %v1605 = vadd.f32 %v1018, %v1604
        %v1606 = vpop.f32.mrb[0].mxu0
        %v1607 = vadd.f32 %v1022, %v1606
        %v1608 = vpop.f32.mrb[0].mxu0
        %v1609 = vadd.f32 %v1018, %v1608
        %v1610 = vpop.f32.mrb[0].mxu0
        %v1611 = vadd.f32 %v1022, %v1610
        %1612 = vmatprep.mubr.bf16.mxu0 %v918
        %1613 = vmatmul.mubr.bf16.gmra.mrb[0].mxu0 %v917
        %v1614 = vpop.f32.mrb[0].mxu0
        %v1615 = vadd.f32 %v1018, %v1614
        %v1616 = vpop.f32.mrb[0].mxu0
        %v1617 = vadd.f32 %v1022, %v1616
        %v1618 = vpop.f32.mrb[0].mxu0
        %v1619 = vadd.f32 %v1018, %v1618
        %v1620 = vpop.f32.mrb[0].mxu0
        %v1621 = vadd.f32 %v1022, %v1620
        %1622 = vmatprep.mubr.bf16.mxu0 %v920
        %1623 = vmatmul.mubr.bf16.gmra.mrb[0].mxu0 %v919
        %v1624 = vpop.f32.mrb[0].mxu0
        %v1625 = vadd.f32 %v1018, %v1624
        %v1626 = vpop.f32.mrb[0].mxu0
        %v1627 = vadd.f32 %v1022, %v1626
        %v1628 = vpop.f32.mrb[0].mxu0
        %v1629 = vadd.f32 %v1018, %v1628
        %v1630 = vpop.f32.mrb[0].mxu0
        %v1631 = vadd.f32 %v1022, %v1630
        %1632 = vmatprep.mubr.bf16.mxu0 %v922
        %1633 = vmatmul.mubr.bf16.gmra.mrb[0].mxu0 %v921
        %v1634 = vpop.f32.mrb[0].mxu0
        %v1635 = vadd.f32 %v1018, %v1634
        %v1636 = vpop.f32.mrb[0].mxu0
        %v1637 = vadd.f32 %v1022, %v1636
        %v1638 = vpop.f32.mrb[0].mxu0
        %v1639 = vadd.f32 %v1018, %v1638
        %v1640 = vpop.f32.mrb[0].mxu0
        %v1641 = vadd.f32 %v1022, %v1640
        %1642 = vmatprep.mubr.bf16.mxu0 %v924
        %1643 = vmatmul.mubr.bf16.gmra.mrb[0].mxu0 %v923
        %v1644 = vpop.f32.mrb[0].mxu0
        %v1645 = vadd.f32 %v1018, %v1644
        %v1646 = vpop.f32.mrb[0].mxu0
        %v1647 = vadd.f32 %v1022, %v1646
        %v1648 = vpop.f32.mrb[0].mxu0
        %v1649 = vadd.f32 %v1018, %v1648
        %v1650 = vpop.f32.mrb[0].mxu0
        %v1651 = vadd.f32 %v1022, %v1650
        %1652 = vmatprep.mubr.bf16.mxu0 %v926
        %1653 = vmatmul.mubr.bf16.gmra.mrb[0].mxu0 %v925
        %v1654 = vpop.f32.mrb[0].mxu0
        %v1655 = vadd.f32 %v1018, %v1654
        %v1656 = vpop.f32.mrb[0].mxu0
        %v1657 = vadd.f32 %v1022, %v1656
        %v1658 = vpop.f32.mrb[0].mxu0
        %v1659 = vadd.f32 %v1018, %v1658
        %v1660 = vpop.f32.mrb[0].mxu0
        %v1661 = vadd.f32 %v1022, %v1660
        %1662 = vmatprep.mubr.bf16.mxu0 %v928
        %1663 = vmatmul.mubr.bf16.gmra.mrb[0].mxu0 %v927
        %v1664 = vpop.f32.mrb[0].mxu0
        %v1665 = vadd.f32 %v1018, %v1664
        %v1666 = vpop.f32.mrb[0].mxu0
        %v1667 = vadd.f32 %v1022, %v1666
        %v1668 = vpop.f32.mrb[0].mxu0
        %v1669 = vadd.f32 %v1018, %v1668
        %v1670 = vpop.f32.mrb[0].mxu0
        %v1671 = vadd.f32 %v1022, %v1670
        %1672 = vmatprep.mubr.bf16.mxu0 %v930
        %1673 = vmatmul.mubr.bf16.gmra.mrb[0].mxu0 %v929
        %v1674 = vpop.f32.mrb[0].mxu0
        %v1675 = vadd.f32 %v1018, %v1674
        %v1676 = vpop.f32.mrb[0].mxu0
        %v1677 = vadd.f32 %v1022, %v1676
        %v1678 = vpop.f32.mrb[0].mxu0
        %v1679 = vadd.f32 %v1018, %v1678
        %v1680 = vpop.f32.mrb[0].mxu0
        %v1681 = vadd.f32 %v1022, %v1680
        %1682 = vmatprep.mubr.bf16.mxu0 %v932
        %1683 = vmatmul.mubr.bf16.gmra.mrb[0].mxu0 %v931
        %v1684 = vpop.f32.mrb[0].mxu0
        %v1685 = vadd.f32 %v1018, %v1684
        %v1686 = vpop.f32.mrb[0].mxu0
        %v1687 = vadd.f32 %v1022, %v1686
        %v1688 = vpop.f32.mrb[0].mxu0
        %v1689 = vadd.f32 %v1018, %v1688
        %v1690 = vpop.f32.mrb[0].mxu0
        %v1691 = vadd.f32 %v1022, %v1690
        %1692 = vmatprep.mubr.bf16.mxu0 %v934
        %1693 = vmatmul.mubr.bf16.gmra.mrb[0].mxu0 %v933
        %v1694 = vpop.f32.mrb[0].mxu0
        %v1695 = vadd.f32 %v1018, %v1694
        %v1696 = vpop.f32.mrb[0].mxu0
        %v1697 = vadd.f32 %v1022, %v1696
        %v1698 = vpop.f32.mrb[0].mxu0
        %v1699 = vadd.f32 %v1018, %v1698
        %v1700 = vpop.f32.mrb[0].mxu0
        %v1701 = vadd.f32 %v1022, %v1700
        %1702 = vmatprep.mubr.bf16.mxu0 %v936
        %1703 = vmatmul.mubr.bf16.gmra.mrb[0].mxu0 %v935
        %v1704 = vpop.f32.mrb[0].mxu0
        %v1705 = vadd.f32 %v1018, %v1704
        %v1706 = vpop.f32.mrb[0].mxu0
        %v1707 = vadd.f32 %v1022, %v1706
        %v1708 = vpop.f32.mrb[0].mxu0
        %v1709 = vadd.f32 %v1018, %v1708
        %v1710 = vpop.f32.mrb[0].mxu0
        %v1711 = vadd.f32 %v1022, %v1710
        %1712 = vmatprep.mubr.bf16.mxu0 %v938
        %1713 = vmatmul.mubr.bf16.gmra.mrb[0].mxu0 %v937
        %v1714 = vpop.f32.mrb[0].mxu0
        %v1715 = vadd.f32 %v1018, %v1714
        %v1716 = vpop.f32.mrb[0].mxu0
        %v1717 = vadd.f32 %v1022, %v1716
        %v1718 = vpop.f32.mrb[0].mxu0
        %v1719 = vadd.f32 %v1018, %v1718
        %v1720 = vpop.f32.mrb[0].mxu0
        %v1721 = vadd.f32 %v1022, %v1720
        %1722 = vmatprep.mubr.bf16.mxu0 %v940
        %1723 = vmatmul.mubr.bf16.gmra.mrb[0].mxu0 %v939
        %v1724 = vpop.f32.mrb[0].mxu0
        %v1725 = vadd.f32 %v1018, %v1724
        %v1726 = vpop.f32.mrb[0].mxu0
        %v1727 = vadd.f32 %v1022, %v1726
        %v1728 = vpop.f32.mrb[0].mxu0
        %v1729 = vadd.f32 %v1018, %v1728
        %v1730 = vpop.f32.mrb[0].mxu0
        %v1731 = vadd.f32 %v1022, %v1730
        %1732 = vdwg.mxu0
        %v1733 = vmax.f32 %v1382, 0.0
        %v1734 = vmax.f32 %v1384, 0.0
        %v1735 = vmax.f32 %v1575, 0.0
        %v1736 = vmax.f32 %v1577, 0.0
        %v1737 = vmax.f32 %v1386, 0.0
        %v1738 = vmax.f32 %v1388, 0.0
        %v1739 = vmax.f32 %v1579, 0.0
        %v1740 = vmax.f32 %v1581, 0.0
        %v1741 = vmax.f32 %v1392, 0.0
        %v1742 = vmax.f32 %v1394, 0.0
        %v1743 = vmax.f32 %v1585, 0.0
        %v1744 = vmax.f32 %v1587, 0.0
        %v1745 = vmax.f32 %v1396, 0.0
        %v1746 = vmax.f32 %v1398, 0.0
        %v1747 = vmax.f32 %v1589, 0.0
        %v1748 = vmax.f32 %v1591, 0.0
        %v1749 = vmax.f32 %v1402, 0.0
        %v1750 = vmax.f32 %v1404, 0.0
        %v1751 = vmax.f32 %v1595, 0.0
        %v1752 = vmax.f32 %v1597, 0.0
        %v1753 = vmax.f32 %v1406, 0.0
        %v1754 = vmax.f32 %v1408, 0.0
        %v1755 = vmax.f32 %v1599, 0.0
        %v1756 = vmax.f32 %v1601, 0.0
        %v1757 = vmax.f32 %v1412, 0.0
        %v1758 = vmax.f32 %v1414, 0.0
        %v1759 = vmax.f32 %v1605, 0.0
        %v1760 = vmax.f32 %v1607, 0.0
        %v1761 = vmax.f32 %v1416, 0.0
        %v1762 = vmax.f32 %v1418, 0.0
        %v1763 = vmax.f32 %v1609, 0.0
        %v1764 = vmax.f32 %v1611, 0.0
        %v1765 = vmax.f32 %v1422, 0.0
        %v1766 = vmax.f32 %v1424, 0.0
        %v1767 = vmax.f32 %v1615, 0.0
        %v1768 = vmax.f32 %v1617, 0.0
        %v1769 = vmax.f32 %v1426, 0.0
        %v1770 = vmax.f32 %v1428, 0.0
        %v1771 = vmax.f32 %v1619, 0.0
        %v1772 = vmax.f32 %v1621, 0.0
        %v1773 = vmax.f32 %v1432, 0.0
        %v1774 = vmax.f32 %v1434, 0.0
        %v1775 = vmax.f32 %v1625, 0.0
        %v1776 = vmax.f32 %v1627, 0.0
        %v1777 = vmax.f32 %v1436, 0.0
        %v1778 = vmax.f32 %v1438, 0.0
        %v1779 = vmax.f32 %v1629, 0.0
        %v1780 = vmax.f32 %v1631, 0.0
        %v1781 = vmax.f32 %v1442, 0.0
        %v1782 = vmax.f32 %v1444, 0.0
        %v1783 = vmax.f32 %v1635, 0.0
        %v1784 = vmax.f32 %v1637, 0.0
        %v1785 = vmax.f32 %v1446, 0.0
        %v1786 = vmax.f32 %v1448, 0.0
        %v1787 = vmax.f32 %v1639, 0.0
        %v1788 = vmax.f32 %v1641, 0.0
        %v1789 = vmax.f32 %v1452, 0.0
        %v1790 = vmax.f32 %v1454, 0.0
        %v1791 = vmax.f32 %v1645, 0.0
        %v1792 = vmax.f32 %v1647, 0.0
        %v1793 = vmax.f32 %v1456, 0.0
        %v1794 = vmax.f32 %v1458, 0.0
        %v1795 = vmax.f32 %v1649, 0.0
        %v1796 = vmax.f32 %v1651, 0.0
        %v1797 = vmax.f32 %v1462, 0.0
        %v1798 = vmax.f32 %v1464, 0.0
        %v1799 = vmax.f32 %v1655, 0.0
        %v1800 = vmax.f32 %v1657, 0.0
        %v1801 = vmax.f32 %v1466, 0.0
        %v1802 = vmax.f32 %v1468, 0.0
        %v1803 = vmax.f32 %v1659, 0.0
        %v1804 = vmax.f32 %v1661, 0.0
        %v1805 = vmax.f32 %v1472, 0.0
        %v1806 = vmax.f32 %v1474, 0.0
        %v1807 = vmax.f32 %v1665, 0.0
        %v1808 = vmax.f32 %v1667, 0.0
        %v1809 = vmax.f32 %v1476, 0.0
        %v1810 = vmax.f32 %v1478, 0.0
        %v1811 = vmax.f32 %v1669, 0.0
        %v1812 = vmax.f32 %v1671, 0.0
        %v1813 = vmax.f32 %v1482, 0.0
        %v1814 = vmax.f32 %v1484, 0.0
        %v1815 = vmax.f32 %v1675, 0.0
        %v1816 = vmax.f32 %v1677, 0.0
        %v1817 = vmax.f32 %v1486, 0.0
        %v1818 = vmax.f32 %v1488, 0.0
        %v1819 = vmax.f32 %v1679, 0.0
        %v1820 = vmax.f32 %v1681, 0.0
        %v1821 = vmax.f32 %v1492, 0.0
        %v1822 = vmax.f32 %v1494, 0.0
        %v1823 = vmax.f32 %v1685, 0.0
        %v1824 = vmax.f32 %v1687, 0.0
        %v1825 = vmax.f32 %v1496, 0.0
        %v1826 = vmax.f32 %v1498, 0.0
        %v1827 = vmax.f32 %v1689, 0.0
        %v1828 = vmax.f32 %v1691, 0.0
        %v1829 = vmax.f32 %v1502, 0.0
        %v1830 = vmax.f32 %v1504, 0.0
        %v1831 = vmax.f32 %v1695, 0.0
        %v1832 = vmax.f32 %v1697, 0.0
        %v1833 = vmax.f32 %v1506, 0.0
        %v1834 = vmax.f32 %v1508, 0.0
        %v1835 = vmax.f32 %v1699, 0.0
        %v1836 = vmax.f32 %v1701, 0.0
        %v1837 = vmax.f32 %v1512, 0.0
        %v1838 = vmax.f32 %v1514, 0.0
        %v1839 = vmax.f32 %v1705, 0.0
        %v1840 = vmax.f32 %v1707, 0.0
        %v1841 = vmax.f32 %v1516, 0.0
        %v1842 = vmax.f32 %v1518, 0.0
        %v1843 = vmax.f32 %v1709, 0.0
        %v1844 = vmax.f32 %v1711, 0.0
        %v1845 = vmax.f32 %v1522, 0.0
        %v1846 = vmax.f32 %v1524, 0.0
        %v1847 = vmax.f32 %v1715, 0.0
        %v1848 = vmax.f32 %v1717, 0.0
        %v1849 = vmax.f32 %v1526, 0.0
        %v1850 = vmax.f32 %v1528, 0.0
        %v1851 = vmax.f32 %v1719, 0.0
        %v1852 = vmax.f32 %v1721, 0.0
        %v1853 = vmax.f32 %v1532, 0.0
        %v1854 = vmax.f32 %v1534, 0.0
        %v1855 = vmax.f32 %v1725, 0.0
        %v1856 = vmax.f32 %v1727, 0.0
        %v1857 = vmax.f32 %v1536, 0.0
        %v1858 = vmax.f32 %v1538, 0.0
        %v1859 = vmax.f32 %v1729, 0.0
        %v1860 = vmax.f32 %v1731, 0.0
        %v1861 = vpack.c.bf16 %v1737, %v1733
        %v1862 = vpack.c.bf16 %v1738, %v1734
        %v1863 = vpack.c.bf16 %v1739, %v1735
        %v1864 = vpack.c.bf16 %v1740, %v1736
        %v1865 = vpack.c.bf16 %v1745, %v1741
        %v1866 = vpack.c.bf16 %v1746, %v1742
        %v1867 = vpack.c.bf16 %v1747, %v1743
        %v1868 = vpack.c.bf16 %v1748, %v1744
        %v1869 = vpack.c.bf16 %v1753, %v1749
        %v1870 = vpack.c.bf16 %v1754, %v1750
        %v1871 = vpack.c.bf16 %v1755, %v1751
        %v1872 = vpack.c.bf16 %v1756, %v1752
        %v1873 = vpack.c.bf16 %v1761, %v1757
        %v1874 = vpack.c.bf16 %v1762, %v1758
        %v1875 = vpack.c.bf16 %v1763, %v1759
        %v1876 = vpack.c.bf16 %v1764, %v1760
        %v1877 = vpack.c.bf16 %v1769, %v1765
        %v1878 = vpack.c.bf16 %v1770, %v1766
        %v1879 = vpack.c.bf16 %v1771, %v1767
        %v1880 = vpack.c.bf16 %v1772, %v1768
        %v1881 = vpack.c.bf16 %v1777, %v1773
        %v1882 = vpack.c.bf16 %v1778, %v1774
        %v1883 = vpack.c.bf16 %v1779, %v1775
        %v1884 = vpack.c.bf16 %v1780, %v1776
        %v1885 = vpack.c.bf16 %v1785, %v1781
        %v1886 = vpack.c.bf16 %v1786, %v1782
        %v1887 = vpack.c.bf16 %v1787, %v1783
        %v1888 = vpack.c.bf16 %v1788, %v1784
        %v1889 = vpack.c.bf16 %v1793, %v1789
        %v1890 = vpack.c.bf16 %v1794, %v1790
        %v1891 = vpack.c.bf16 %v1795, %v1791
        %v1892 = vpack.c.bf16 %v1796, %v1792
        %v1893 = vpack.c.bf16 %v1801, %v1797
        %v1894 = vpack.c.bf16 %v1802, %v1798
        %v1895 = vpack.c.bf16 %v1803, %v1799
        %v1896 = vpack.c.bf16 %v1804, %v1800
        %v1897 = vpack.c.bf16 %v1809, %v1805
        %v1898 = vpack.c.bf16 %v1810, %v1806
        %v1899 = vpack.c.bf16 %v1811, %v1807
        %v1900 = vpack.c.bf16 %v1812, %v1808
        %v1901 = vpack.c.bf16 %v1817, %v1813
        %v1902 = vpack.c.bf16 %v1818, %v1814
        %v1903 = vpack.c.bf16 %v1819, %v1815
        %v1904 = vpack.c.bf16 %v1820, %v1816
        %v1905 = vpack.c.bf16 %v1825, %v1821
        %v1906 = vpack.c.bf16 %v1826, %v1822
        %v1907 = vpack.c.bf16 %v1827, %v1823
        %v1908 = vpack.c.bf16 %v1828, %v1824
        %v1909 = vpack.c.bf16 %v1833, %v1829
        %v1910 = vpack.c.bf16 %v1834, %v1830
        %v1911 = vpack.c.bf16 %v1835, %v1831
        %v1912 = vpack.c.bf16 %v1836, %v1832
        %v1913 = vpack.c.bf16 %v1841, %v1837
        %v1914 = vpack.c.bf16 %v1842, %v1838
        %v1915 = vpack.c.bf16 %v1843, %v1839
        %v1916 = vpack.c.bf16 %v1844, %v1840
        %v1917 = vpack.c.bf16 %v1849, %v1845
        %v1918 = vpack.c.bf16 %v1850, %v1846
        %v1919 = vpack.c.bf16 %v1851, %v1847
        %v1920 = vpack.c.bf16 %v1852, %v1848
        %v1921 = vpack.c.bf16 %v1857, %v1853
        %v1922 = vpack.c.bf16 %v1858, %v1854
        %v1923 = vpack.c.bf16 %v1859, %v1855
        %v1924 = vpack.c.bf16 %v1860, %v1856
        %v1925 = vld [vmem:[#allocation10] sm:$0xff]
        %v1926 = vld [vmem:[#allocation10 + $0x8] sm:$0xff]
        %v1927 = vld [vmem:[#allocation10 + $0x10] sm:$0xff]
        %v1928 = vld [vmem:[#allocation10 + $0x18] sm:$0xff]
        %v1929 = vld [vmem:[#allocation10 + $0x20] sm:$0xff]
        %v1930 = vld [vmem:[#allocation10 + $0x28] sm:$0xff]
        %v1931 = vld [vmem:[#allocation10 + $0x30] sm:$0xff]
        %v1932 = vld [vmem:[#allocation10 + $0x38] sm:$0xff]
        %v1933 = vld [vmem:[#allocation10 + $0x40] sm:$0xff]
        %v1934 = vld [vmem:[#allocation10 + $0x48] sm:$0xff]
        %v1935 = vld [vmem:[#allocation10 + $0x50] sm:$0xff]
        %v1936 = vld [vmem:[#allocation10 + $0x58] sm:$0xff]
        %v1937 = vld [vmem:[#allocation10 + $0x60] sm:$0xff]
        %v1938 = vld [vmem:[#allocation10 + $0x68] sm:$0xff]
        %v1939 = vld [vmem:[#allocation10 + $0x70] sm:$0xff]
        %v1940 = vld [vmem:[#allocation10 + $0x78] sm:$0xff]
        %v1941 = vld [vmem:[#allocation10 + $0x80] sm:$0xff]
        %v1942 = vld [vmem:[#allocation10 + $0x88] sm:$0xff]
        %v1943 = vld [vmem:[#allocation10 + $0x90] sm:$0xff]
        %v1944 = vld [vmem:[#allocation10 + $0x98] sm:$0xff]
        %v1945 = vld [vmem:[#allocation10 + $0xa0] sm:$0xff]
        %v1946 = vld [vmem:[#allocation10 + $0xa8] sm:$0xff]
        %v1947 = vld [vmem:[#allocation10 + $0xb0] sm:$0xff]
        %v1948 = vld [vmem:[#allocation10 + $0xb8] sm:$0xff]
        %v1949 = vld [vmem:[#allocation10 + $0xc0] sm:$0xff]
        %v1950 = vld [vmem:[#allocation10 + $0xc8] sm:$0xff]
        %v1951 = vld [vmem:[#allocation10 + $0xd0] sm:$0xff]
        %v1952 = vld [vmem:[#allocation10 + $0xd8] sm:$0xff]
        %v1953 = vld [vmem:[#allocation10 + $0xe0] sm:$0xff]
        %v1954 = vld [vmem:[#allocation10 + $0xe8] sm:$0xff]
        %v1955 = vld [vmem:[#allocation10 + $0xf0] sm:$0xff]
        %v1956 = vld [vmem:[#allocation10 + $0xf8] sm:$0xff]
        %v1957 = vld [vmem:[#allocation10 + $0x100] sm:$0xff]
        %v1958 = vld [vmem:[#allocation10 + $0x108] sm:$0xff]
        %v1959 = vld [vmem:[#allocation10 + $0x110] sm:$0xff]
        %v1960 = vld [vmem:[#allocation10 + $0x118] sm:$0xff]
        %v1961 = vld [vmem:[#allocation10 + $0x120] sm:$0xff]
        %v1962 = vld [vmem:[#allocation10 + $0x128] sm:$0xff]
        %v1963 = vld [vmem:[#allocation10 + $0x130] sm:$0xff]
        %v1964 = vld [vmem:[#allocation10 + $0x138] sm:$0xff]
        %v1965 = vld [vmem:[#allocation10 + $0x140] sm:$0xff]
        %v1966 = vld [vmem:[#allocation10 + $0x148] sm:$0xff]
        %v1967 = vld [vmem:[#allocation10 + $0x150] sm:$0xff]
        %v1968 = vld [vmem:[#allocation10 + $0x158] sm:$0xff]
        %v1969 = vld [vmem:[#allocation10 + $0x160] sm:$0xff]
        %v1970 = vld [vmem:[#allocation10 + $0x168] sm:$0xff]
        %v1971 = vld [vmem:[#allocation10 + $0x170] sm:$0xff]
        %v1972 = vld [vmem:[#allocation10 + $0x178] sm:$0xff]
        %v1973 = vld [vmem:[#allocation10 + $0x180] sm:$0xff]
        %v1974 = vld [vmem:[#allocation10 + $0x188] sm:$0xff]
        %v1975 = vld [vmem:[#allocation10 + $0x190] sm:$0xff]
        %v1976 = vld [vmem:[#allocation10 + $0x198] sm:$0xff]
        %v1977 = vld [vmem:[#allocation10 + $0x1a0] sm:$0xff]
        %v1978 = vld [vmem:[#allocation10 + $0x1a8] sm:$0xff]
        %v1979 = vld [vmem:[#allocation10 + $0x1b0] sm:$0xff]
        %v1980 = vld [vmem:[#allocation10 + $0x1b8] sm:$0xff]
        %v1981 = vld [vmem:[#allocation10 + $0x1c0] sm:$0xff]
        %v1982 = vld [vmem:[#allocation10 + $0x1c8] sm:$0xff]
        %v1983 = vld [vmem:[#allocation10 + $0x1d0] sm:$0xff]
        %v1984 = vld [vmem:[#allocation10 + $0x1d8] sm:$0xff]
        %v1985 = vld [vmem:[#allocation10 + $0x1e0] sm:$0xff]
        %v1986 = vld [vmem:[#allocation10 + $0x1e8] sm:$0xff]
        %v1987 = vld [vmem:[#allocation10 + $0x1f0] sm:$0xff]
        %v1988 = vld [vmem:[#allocation10 + $0x1f8] sm:$0xff]
        %v1989 = vld [vmem:[#allocation10 + $0x200] sm:$0xff]
        %v1990 = vld [vmem:[#allocation10 + $0x208] sm:$0xff]
        %v1991 = vld [vmem:[#allocation10 + $0x210] sm:$0xff]
        %v1992 = vld [vmem:[#allocation10 + $0x218] sm:$0xff]
        %v1993 = vld [vmem:[#allocation10 + $0x220] sm:$0xff]
        %v1994 = vld [vmem:[#allocation10 + $0x228] sm:$0xff]
        %v1995 = vld [vmem:[#allocation10 + $0x230] sm:$0xff]
        %v1996 = vld [vmem:[#allocation10 + $0x238] sm:$0xff]
        %v1997 = vld [vmem:[#allocation10 + $0x240] sm:$0xff]
        %v1998 = vld [vmem:[#allocation10 + $0x248] sm:$0xff]
        %v1999 = vld [vmem:[#allocation10 + $0x250] sm:$0xff]
        %v2000 = vld [vmem:[#allocation10 + $0x258] sm:$0xff]
        %v2001 = vld [vmem:[#allocation10 + $0x260] sm:$0xff]
        %v2002 = vld [vmem:[#allocation10 + $0x268] sm:$0xff]
        %v2003 = vld [vmem:[#allocation10 + $0x270] sm:$0xff]
        %v2004 = vld [vmem:[#allocation10 + $0x278] sm:$0xff]
        %v2005 = vld [vmem:[#allocation10 + $0x280] sm:$0xff]
        %v2006 = vld [vmem:[#allocation10 + $0x288] sm:$0xff]
        %v2007 = vld [vmem:[#allocation10 + $0x290] sm:$0xff]
        %v2008 = vld [vmem:[#allocation10 + $0x298] sm:$0xff]
        %v2009 = vld [vmem:[#allocation10 + $0x2a0] sm:$0xff]
        %v2010 = vld [vmem:[#allocation10 + $0x2a8] sm:$0xff]
        %v2011 = vld [vmem:[#allocation10 + $0x2b0] sm:$0xff]
        %v2012 = vld [vmem:[#allocation10 + $0x2b8] sm:$0xff]
        %v2013 = vld [vmem:[#allocation10 + $0x2c0] sm:$0xff]
        %v2014 = vld [vmem:[#allocation10 + $0x2c8] sm:$0xff]
        %v2015 = vld [vmem:[#allocation10 + $0x2d0] sm:$0xff]
        %v2016 = vld [vmem:[#allocation10 + $0x2d8] sm:$0xff]
        %v2017 = vld [vmem:[#allocation10 + $0x2e0] sm:$0xff]
        %v2018 = vld [vmem:[#allocation10 + $0x2e8] sm:$0xff]
        %v2019 = vld [vmem:[#allocation10 + $0x2f0] sm:$0xff]
        %v2020 = vld [vmem:[#allocation10 + $0x2f8] sm:$0xff]
        %v2021 = vld [vmem:[#allocation10 + $0x300] sm:$0xff]
        %v2022 = vld [vmem:[#allocation10 + $0x308] sm:$0xff]
        %v2023 = vld [vmem:[#allocation10 + $0x310] sm:$0xff]
        %v2024 = vld [vmem:[#allocation10 + $0x318] sm:$0xff]
        %v2025 = vld [vmem:[#allocation10 + $0x320] sm:$0xff]
        %v2026 = vld [vmem:[#allocation10 + $0x328] sm:$0xff]
        %v2027 = vld [vmem:[#allocation10 + $0x330] sm:$0xff]
        %v2028 = vld [vmem:[#allocation10 + $0x338] sm:$0xff]
        %v2029 = vld [vmem:[#allocation10 + $0x340] sm:$0xff]
        %v2030 = vld [vmem:[#allocation10 + $0x348] sm:$0xff]
        %v2031 = vld [vmem:[#allocation10 + $0x350] sm:$0xff]
        %v2032 = vld [vmem:[#allocation10 + $0x358] sm:$0xff]
        %v2033 = vld [vmem:[#allocation10 + $0x360] sm:$0xff]
        %v2034 = vld [vmem:[#allocation10 + $0x368] sm:$0xff]
        %v2035 = vld [vmem:[#allocation10 + $0x370] sm:$0xff]
        %v2036 = vld [vmem:[#allocation10 + $0x378] sm:$0xff]
        %v2037 = vld [vmem:[#allocation10 + $0x380] sm:$0xff]
        %v2038 = vld [vmem:[#allocation10 + $0x388] sm:$0xff]
        %v2039 = vld [vmem:[#allocation10 + $0x390] sm:$0xff]
        %v2040 = vld [vmem:[#allocation10 + $0x398] sm:$0xff]
        %v2041 = vld [vmem:[#allocation10 + $0x3a0] sm:$0xff]
        %v2042 = vld [vmem:[#allocation10 + $0x3a8] sm:$0xff]
        %v2043 = vld [vmem:[#allocation10 + $0x3b0] sm:$0xff]
        %v2044 = vld [vmem:[#allocation10 + $0x3b8] sm:$0xff]
        %v2045 = vld [vmem:[#allocation10 + $0x3c0] sm:$0xff]
        %v2046 = vld [vmem:[#allocation10 + $0x3c8] sm:$0xff]
        %v2047 = vld [vmem:[#allocation10 + $0x3d0] sm:$0xff]
        %v2048 = vld [vmem:[#allocation10 + $0x3d8] sm:$0xff]
        %v2049 = vld [vmem:[#allocation10 + $0x3e0] sm:$0xff]
        %v2050 = vld [vmem:[#allocation10 + $0x3e8] sm:$0xff]
        %v2051 = vld [vmem:[#allocation10 + $0x3f0] sm:$0xff]
        %v2052 = vld [vmem:[#allocation10 + $0x3f8] sm:$0xff]
        %v2053 = vld [vmem:[#allocation11] sm:$0xf]
        %v2055 = vlaneseq
        %v2056 = vshrl.u32 %v2055, 7
        %v2057 = vsub.s32 0, %v2056
        %v2058 = vrot.slane %v2053, %v2057
        %v2059 = vlaneseq
        %v2060 = vshrl.u32 %v2059, 7
        %v2061 = vsub.s32 1, %v2060
        %v2062 = vrot.slane %v2053, %v2061
        %v2063 = vlaneseq
        %v2064 = vshrl.u32 %v2063, 7
        %v2065 = vsub.s32 2, %v2064
        %v2066 = vrot.slane %v2053, %v2065
        %v2067 = vlaneseq
        %v2068 = vshrl.u32 %v2067, 7
        %v2069 = vsub.s32 3, %v2068
        %v2070 = vrot.slane %v2053, %v2069
        %v2203 = vunpack.c.l.b16 %v1925
        %v2204 = vunpack.c.h.b16 %v1925
        %v2205 = vunpack.c.l.b16 %v1926
        %v2206 = vunpack.c.h.b16 %v1926
        %v2207 = vunpack.c.l.b16 %v1927
        %v2208 = vunpack.c.h.b16 %v1927
        %v2209 = vunpack.c.l.b16 %v1928
        %v2210 = vunpack.c.h.b16 %v1928
        %v2211 = vunpack.c.l.b16 %v1929
        %v2212 = vunpack.c.h.b16 %v1929
        %v2213 = vunpack.c.l.b16 %v1930
        %v2214 = vunpack.c.h.b16 %v1930
        %v2215 = vunpack.c.l.b16 %v1931
        %v2216 = vunpack.c.h.b16 %v1931
        %v2217 = vunpack.c.l.b16 %v1932
        %v2218 = vunpack.c.h.b16 %v1932
        %v2219 = vunpack.c.l.b16 %v1933
        %v2220 = vunpack.c.h.b16 %v1933
        %v2221 = vunpack.c.l.b16 %v1934
        %v2222 = vunpack.c.h.b16 %v1934
        %v2223 = vunpack.c.l.b16 %v1935
        %v2224 = vunpack.c.h.b16 %v1935
        %v2225 = vunpack.c.l.b16 %v1936
        %v2226 = vunpack.c.h.b16 %v1936
        %v2227 = vunpack.c.l.b16 %v1937
        %v2228 = vunpack.c.h.b16 %v1937
        %v2229 = vunpack.c.l.b16 %v1938
        %v2230 = vunpack.c.h.b16 %v1938
        %v2231 = vunpack.c.l.b16 %v1939
        %v2232 = vunpack.c.h.b16 %v1939
        %v2233 = vunpack.c.l.b16 %v1940
        %v2234 = vunpack.c.h.b16 %v1940
        %v2235 = vunpack.c.l.b16 %v1941
        %v2236 = vunpack.c.h.b16 %v1941
        %v2237 = vunpack.c.l.b16 %v1942
        %v2238 = vunpack.c.h.b16 %v1942
        %v2239 = vunpack.c.l.b16 %v1943
        %v2240 = vunpack.c.h.b16 %v1943
        %v2241 = vunpack.c.l.b16 %v1944
        %v2242 = vunpack.c.h.b16 %v1944
        %v2243 = vunpack.c.l.b16 %v1945
        %v2244 = vunpack.c.h.b16 %v1945
        %v2245 = vunpack.c.l.b16 %v1946
        %v2246 = vunpack.c.h.b16 %v1946
        %v2247 = vunpack.c.l.b16 %v1947
        %v2248 = vunpack.c.h.b16 %v1947
        %v2249 = vunpack.c.l.b16 %v1948
        %v2250 = vunpack.c.h.b16 %v1948
        %v2251 = vunpack.c.l.b16 %v1949
        %v2252 = vunpack.c.h.b16 %v1949
        %v2253 = vunpack.c.l.b16 %v1950
        %v2254 = vunpack.c.h.b16 %v1950
        %v2255 = vunpack.c.l.b16 %v1951
        %v2256 = vunpack.c.h.b16 %v1951
        %v2257 = vunpack.c.l.b16 %v1952
        %v2258 = vunpack.c.h.b16 %v1952
        %v2259 = vunpack.c.l.b16 %v1953
        %v2260 = vunpack.c.h.b16 %v1953
        %v2261 = vunpack.c.l.b16 %v1954
        %v2262 = vunpack.c.h.b16 %v1954
        %v2263 = vunpack.c.l.b16 %v1955
        %v2264 = vunpack.c.h.b16 %v1955
        %v2265 = vunpack.c.l.b16 %v1956
        %v2266 = vunpack.c.h.b16 %v1956
        %v2267 = vunpack.c.l.b16 %v1957
        %v2268 = vunpack.c.h.b16 %v1957
        %v2269 = vunpack.c.l.b16 %v1958
        %v2270 = vunpack.c.h.b16 %v1958
        %v2271 = vunpack.c.l.b16 %v1959
        %v2272 = vunpack.c.h.b16 %v1959
        %v2273 = vunpack.c.l.b16 %v1960
        %v2274 = vunpack.c.h.b16 %v1960
        %v2275 = vunpack.c.l.b16 %v1961
        %v2276 = vunpack.c.h.b16 %v1961
        %v2277 = vunpack.c.l.b16 %v1962
        %v2278 = vunpack.c.h.b16 %v1962
        %v2279 = vunpack.c.l.b16 %v1963
        %v2280 = vunpack.c.h.b16 %v1963
        %v2281 = vunpack.c.l.b16 %v1964
        %v2282 = vunpack.c.h.b16 %v1964
        %v2283 = vunpack.c.l.b16 %v1965
        %v2284 = vunpack.c.h.b16 %v1965
        %v2285 = vunpack.c.l.b16 %v1966
        %v2286 = vunpack.c.h.b16 %v1966
        %v2287 = vunpack.c.l.b16 %v1967
        %v2288 = vunpack.c.h.b16 %v1967
        %v2289 = vunpack.c.l.b16 %v1968
        %v2290 = vunpack.c.h.b16 %v1968
        %v2291 = vunpack.c.l.b16 %v1969
        %v2292 = vunpack.c.h.b16 %v1969
        %v2293 = vunpack.c.l.b16 %v1970
        %v2294 = vunpack.c.h.b16 %v1970
        %v2295 = vunpack.c.l.b16 %v1971
        %v2296 = vunpack.c.h.b16 %v1971
        %v2297 = vunpack.c.l.b16 %v1972
        %v2298 = vunpack.c.h.b16 %v1972
        %v2299 = vunpack.c.l.b16 %v1973
        %v2300 = vunpack.c.h.b16 %v1973
        %v2301 = vunpack.c.l.b16 %v1974
        %v2302 = vunpack.c.h.b16 %v1974
        %v2303 = vunpack.c.l.b16 %v1975
        %v2304 = vunpack.c.h.b16 %v1975
        %v2305 = vunpack.c.l.b16 %v1976
        %v2306 = vunpack.c.h.b16 %v1976
        %v2307 = vunpack.c.l.b16 %v1977
        %v2308 = vunpack.c.h.b16 %v1977
        %v2309 = vunpack.c.l.b16 %v1978
        %v2310 = vunpack.c.h.b16 %v1978
        %v2311 = vunpack.c.l.b16 %v1979
        %v2312 = vunpack.c.h.b16 %v1979
        %v2313 = vunpack.c.l.b16 %v1980
        %v2314 = vunpack.c.h.b16 %v1980
        %v2315 = vunpack.c.l.b16 %v1981
        %v2316 = vunpack.c.h.b16 %v1981
        %v2317 = vunpack.c.l.b16 %v1982
        %v2318 = vunpack.c.h.b16 %v1982
        %v2319 = vunpack.c.l.b16 %v1983
        %v2320 = vunpack.c.h.b16 %v1983
        %v2321 = vunpack.c.l.b16 %v1984
        %v2322 = vunpack.c.h.b16 %v1984
        %v2323 = vunpack.c.l.b16 %v1985
        %v2324 = vunpack.c.h.b16 %v1985
        %v2325 = vunpack.c.l.b16 %v1986
        %v2326 = vunpack.c.h.b16 %v1986
        %v2327 = vunpack.c.l.b16 %v1987
        %v2328 = vunpack.c.h.b16 %v1987
        %v2329 = vunpack.c.l.b16 %v1988
        %v2330 = vunpack.c.h.b16 %v1988
        %v2331 = vunpack.c.l.b16 %v1989
        %v2332 = vunpack.c.h.b16 %v1989
        %v2333 = vunpack.c.l.b16 %v1990
        %v2334 = vunpack.c.h.b16 %v1990
        %v2335 = vunpack.c.l.b16 %v1991
        %v2336 = vunpack.c.h.b16 %v1991
        %v2337 = vunpack.c.l.b16 %v1992
        %v2338 = vunpack.c.h.b16 %v1992
        %v2339 = vunpack.c.l.b16 %v1993
        %v2340 = vunpack.c.h.b16 %v1993
        %v2341 = vunpack.c.l.b16 %v1994
        %v2342 = vunpack.c.h.b16 %v1994
        %v2343 = vunpack.c.l.b16 %v1995
        %v2344 = vunpack.c.h.b16 %v1995
        %v2345 = vunpack.c.l.b16 %v1996
        %v2346 = vunpack.c.h.b16 %v1996
        %v2347 = vunpack.c.l.b16 %v1997
        %v2348 = vunpack.c.h.b16 %v1997
        %v2349 = vunpack.c.l.b16 %v1998
        %v2350 = vunpack.c.h.b16 %v1998
        %v2351 = vunpack.c.l.b16 %v1999
        %v2352 = vunpack.c.h.b16 %v1999
        %v2353 = vunpack.c.l.b16 %v2000
        %v2354 = vunpack.c.h.b16 %v2000
        %v2355 = vunpack.c.l.b16 %v2001
        %v2356 = vunpack.c.h.b16 %v2001
        %v2357 = vunpack.c.l.b16 %v2002
        %v2358 = vunpack.c.h.b16 %v2002
        %v2359 = vunpack.c.l.b16 %v2003
        %v2360 = vunpack.c.h.b16 %v2003
        %v2361 = vunpack.c.l.b16 %v2004
        %v2362 = vunpack.c.h.b16 %v2004
        %v2363 = vunpack.c.l.b16 %v2005
        %v2364 = vunpack.c.h.b16 %v2005
        %v2365 = vunpack.c.l.b16 %v2006
        %v2366 = vunpack.c.h.b16 %v2006
        %v2367 = vunpack.c.l.b16 %v2007
        %v2368 = vunpack.c.h.b16 %v2007
        %v2369 = vunpack.c.l.b16 %v2008
        %v2370 = vunpack.c.h.b16 %v2008
        %v2371 = vunpack.c.l.b16 %v2009
        %v2372 = vunpack.c.h.b16 %v2009
        %v2373 = vunpack.c.l.b16 %v2010
        %v2374 = vunpack.c.h.b16 %v2010
        %v2375 = vunpack.c.l.b16 %v2011
        %v2376 = vunpack.c.h.b16 %v2011
        %v2377 = vunpack.c.l.b16 %v2012
        %v2378 = vunpack.c.h.b16 %v2012
        %v2379 = vunpack.c.l.b16 %v2013
        %v2380 = vunpack.c.h.b16 %v2013
        %v2381 = vunpack.c.l.b16 %v2014
        %v2382 = vunpack.c.h.b16 %v2014
        %v2383 = vunpack.c.l.b16 %v2015
        %v2384 = vunpack.c.h.b16 %v2015
        %v2385 = vunpack.c.l.b16 %v2016
        %v2386 = vunpack.c.h.b16 %v2016
        %v2387 = vunpack.c.l.b16 %v2017
        %v2388 = vunpack.c.h.b16 %v2017
        %v2389 = vunpack.c.l.b16 %v2018
        %v2390 = vunpack.c.h.b16 %v2018
        %v2391 = vunpack.c.l.b16 %v2019
        %v2392 = vunpack.c.h.b16 %v2019
        %v2393 = vunpack.c.l.b16 %v2020
        %v2394 = vunpack.c.h.b16 %v2020
        %v2395 = vunpack.c.l.b16 %v2021
        %v2396 = vunpack.c.h.b16 %v2021
        %v2397 = vunpack.c.l.b16 %v2022
        %v2398 = vunpack.c.h.b16 %v2022
        %v2399 = vunpack.c.l.b16 %v2023
        %v2400 = vunpack.c.h.b16 %v2023
        %v2401 = vunpack.c.l.b16 %v2024
        %v2402 = vunpack.c.h.b16 %v2024
        %v2403 = vunpack.c.l.b16 %v2025
        %v2404 = vunpack.c.h.b16 %v2025
        %v2405 = vunpack.c.l.b16 %v2026
        %v2406 = vunpack.c.h.b16 %v2026
        %v2407 = vunpack.c.l.b16 %v2027
        %v2408 = vunpack.c.h.b16 %v2027
        %v2409 = vunpack.c.l.b16 %v2028
        %v2410 = vunpack.c.h.b16 %v2028
        %v2411 = vunpack.c.l.b16 %v2029
        %v2412 = vunpack.c.h.b16 %v2029
        %v2413 = vunpack.c.l.b16 %v2030
        %v2414 = vunpack.c.h.b16 %v2030
        %v2415 = vunpack.c.l.b16 %v2031
        %v2416 = vunpack.c.h.b16 %v2031
        %v2417 = vunpack.c.l.b16 %v2032
        %v2418 = vunpack.c.h.b16 %v2032
        %v2419 = vunpack.c.l.b16 %v2033
        %v2420 = vunpack.c.h.b16 %v2033
        %v2421 = vunpack.c.l.b16 %v2034
        %v2422 = vunpack.c.h.b16 %v2034
        %v2423 = vunpack.c.l.b16 %v2035
        %v2424 = vunpack.c.h.b16 %v2035
        %v2425 = vunpack.c.l.b16 %v2036
        %v2426 = vunpack.c.h.b16 %v2036
        %v2427 = vunpack.c.l.b16 %v2037
        %v2428 = vunpack.c.h.b16 %v2037
        %v2429 = vunpack.c.l.b16 %v2038
        %v2430 = vunpack.c.h.b16 %v2038
        %v2431 = vunpack.c.l.b16 %v2039
        %v2432 = vunpack.c.h.b16 %v2039
        %v2433 = vunpack.c.l.b16 %v2040
        %v2434 = vunpack.c.h.b16 %v2040
        %v2435 = vunpack.c.l.b16 %v2041
        %v2436 = vunpack.c.h.b16 %v2041
        %v2437 = vunpack.c.l.b16 %v2042
        %v2438 = vunpack.c.h.b16 %v2042
        %v2439 = vunpack.c.l.b16 %v2043
        %v2440 = vunpack.c.h.b16 %v2043
        %v2441 = vunpack.c.l.b16 %v2044
        %v2442 = vunpack.c.h.b16 %v2044
        %v2443 = vunpack.c.l.b16 %v2045
        %v2444 = vunpack.c.h.b16 %v2045
        %v2445 = vunpack.c.l.b16 %v2046
        %v2446 = vunpack.c.h.b16 %v2046
        %v2447 = vunpack.c.l.b16 %v2047
        %v2448 = vunpack.c.h.b16 %v2047
        %v2449 = vunpack.c.l.b16 %v2048
        %v2450 = vunpack.c.h.b16 %v2048
        %v2451 = vunpack.c.l.b16 %v2049
        %v2452 = vunpack.c.h.b16 %v2049
        %v2453 = vunpack.c.l.b16 %v2050
        %v2454 = vunpack.c.h.b16 %v2050
        %v2455 = vunpack.c.l.b16 %v2051
        %v2456 = vunpack.c.h.b16 %v2051
        %v2457 = vunpack.c.l.b16 %v2052
        %v2458 = vunpack.c.h.b16 %v2052
        %v2459 = vpack.c.b16 %v2207, %v2203
        %v2460 = vpack.c.b16 %v2208, %v2204
        %v2461 = vpack.c.b16 %v2209, %v2205
        %v2462 = vpack.c.b16 %v2210, %v2206
        %v2463 = vpack.c.b16 %v2215, %v2211
        %v2464 = vpack.c.b16 %v2216, %v2212
        %v2465 = vpack.c.b16 %v2217, %v2213
        %v2466 = vpack.c.b16 %v2218, %v2214
        %v2467 = vpack.c.b16 %v2223, %v2219
        %v2468 = vpack.c.b16 %v2224, %v2220
        %v2469 = vpack.c.b16 %v2225, %v2221
        %v2470 = vpack.c.b16 %v2226, %v2222
        %v2471 = vpack.c.b16 %v2231, %v2227
        %v2472 = vpack.c.b16 %v2232, %v2228
        %v2473 = vpack.c.b16 %v2233, %v2229
        %v2474 = vpack.c.b16 %v2234, %v2230
        %v2475 = vpack.c.b16 %v2239, %v2235
        %v2476 = vpack.c.b16 %v2240, %v2236
        %v2477 = vpack.c.b16 %v2241, %v2237
        %v2478 = vpack.c.b16 %v2242, %v2238
        %v2479 = vpack.c.b16 %v2247, %v2243
        %v2480 = vpack.c.b16 %v2248, %v2244
        %v2481 = vpack.c.b16 %v2249, %v2245
        %v2482 = vpack.c.b16 %v2250, %v2246
        %v2483 = vpack.c.b16 %v2255, %v2251
        %v2484 = vpack.c.b16 %v2256, %v2252
        %v2485 = vpack.c.b16 %v2257, %v2253
        %v2486 = vpack.c.b16 %v2258, %v2254
        %v2487 = vpack.c.b16 %v2263, %v2259
        %v2488 = vpack.c.b16 %v2264, %v2260
        %v2489 = vpack.c.b16 %v2265, %v2261
        %v2490 = vpack.c.b16 %v2266, %v2262
        %v2491 = vpack.c.b16 %v2271, %v2267
        %v2492 = vpack.c.b16 %v2272, %v2268
        %v2493 = vpack.c.b16 %v2273, %v2269
        %v2494 = vpack.c.b16 %v2274, %v2270
        %v2495 = vpack.c.b16 %v2279, %v2275
        %v2496 = vpack.c.b16 %v2280, %v2276
        %v2497 = vpack.c.b16 %v2281, %v2277
        %v2498 = vpack.c.b16 %v2282, %v2278
        %v2499 = vpack.c.b16 %v2287, %v2283
        %v2500 = vpack.c.b16 %v2288, %v2284
        %v2501 = vpack.c.b16 %v2289, %v2285
        %v2502 = vpack.c.b16 %v2290, %v2286
        %v2503 = vpack.c.b16 %v2295, %v2291
        %v2504 = vpack.c.b16 %v2296, %v2292
        %v2505 = vpack.c.b16 %v2297, %v2293
        %v2506 = vpack.c.b16 %v2298, %v2294
        %v2507 = vpack.c.b16 %v2303, %v2299
        %v2508 = vpack.c.b16 %v2304, %v2300
        %v2509 = vpack.c.b16 %v2305, %v2301
        %v2510 = vpack.c.b16 %v2306, %v2302
        %v2511 = vpack.c.b16 %v2311, %v2307
        %v2512 = vpack.c.b16 %v2312, %v2308
        %v2513 = vpack.c.b16 %v2313, %v2309
        %v2514 = vpack.c.b16 %v2314, %v2310
        %v2515 = vpack.c.b16 %v2319, %v2315
        %v2516 = vpack.c.b16 %v2320, %v2316
        %v2517 = vpack.c.b16 %v2321, %v2317
        %v2518 = vpack.c.b16 %v2322, %v2318
        %v2519 = vpack.c.b16 %v2327, %v2323
        %v2520 = vpack.c.b16 %v2328, %v2324
        %v2521 = vpack.c.b16 %v2329, %v2325
        %v2522 = vpack.c.b16 %v2330, %v2326
        %v2523 = vpack.c.b16 %v2335, %v2331
        %v2524 = vpack.c.b16 %v2336, %v2332
        %v2525 = vpack.c.b16 %v2337, %v2333
        %v2526 = vpack.c.b16 %v2338, %v2334
        %v2527 = vpack.c.b16 %v2343, %v2339
        %v2528 = vpack.c.b16 %v2344, %v2340
        %v2529 = vpack.c.b16 %v2345, %v2341
        %v2530 = vpack.c.b16 %v2346, %v2342
        %v2531 = vpack.c.b16 %v2351, %v2347
        %v2532 = vpack.c.b16 %v2352, %v2348
        %v2533 = vpack.c.b16 %v2353, %v2349
        %v2534 = vpack.c.b16 %v2354, %v2350
        %v2535 = vpack.c.b16 %v2359, %v2355
        %v2536 = vpack.c.b16 %v2360, %v2356
        %v2537 = vpack.c.b16 %v2361, %v2357
        %v2538 = vpack.c.b16 %v2362, %v2358
        %v2539 = vpack.c.b16 %v2367, %v2363
        %v2540 = vpack.c.b16 %v2368, %v2364
        %v2541 = vpack.c.b16 %v2369, %v2365
        %v2542 = vpack.c.b16 %v2370, %v2366
        %v2543 = vpack.c.b16 %v2375, %v2371
        %v2544 = vpack.c.b16 %v2376, %v2372
        %v2545 = vpack.c.b16 %v2377, %v2373
        %v2546 = vpack.c.b16 %v2378, %v2374
        %v2547 = vpack.c.b16 %v2383, %v2379
        %v2548 = vpack.c.b16 %v2384, %v2380
        %v2549 = vpack.c.b16 %v2385, %v2381
        %v2550 = vpack.c.b16 %v2386, %v2382
        %v2551 = vpack.c.b16 %v2391, %v2387
        %v2552 = vpack.c.b16 %v2392, %v2388
        %v2553 = vpack.c.b16 %v2393, %v2389
        %v2554 = vpack.c.b16 %v2394, %v2390
        %v2555 = vpack.c.b16 %v2399, %v2395
        %v2556 = vpack.c.b16 %v2400, %v2396
        %v2557 = vpack.c.b16 %v2401, %v2397
        %v2558 = vpack.c.b16 %v2402, %v2398
        %v2559 = vpack.c.b16 %v2407, %v2403
        %v2560 = vpack.c.b16 %v2408, %v2404
        %v2561 = vpack.c.b16 %v2409, %v2405
        %v2562 = vpack.c.b16 %v2410, %v2406
        %v2563 = vpack.c.b16 %v2415, %v2411
        %v2564 = vpack.c.b16 %v2416, %v2412
        %v2565 = vpack.c.b16 %v2417, %v2413
        %v2566 = vpack.c.b16 %v2418, %v2414
        %v2567 = vpack.c.b16 %v2423, %v2419
        %v2568 = vpack.c.b16 %v2424, %v2420
        %v2569 = vpack.c.b16 %v2425, %v2421
        %v2570 = vpack.c.b16 %v2426, %v2422
        %v2571 = vpack.c.b16 %v2431, %v2427
        %v2572 = vpack.c.b16 %v2432, %v2428
        %v2573 = vpack.c.b16 %v2433, %v2429
        %v2574 = vpack.c.b16 %v2434, %v2430
        %v2575 = vpack.c.b16 %v2439, %v2435
        %v2576 = vpack.c.b16 %v2440, %v2436
        %v2577 = vpack.c.b16 %v2441, %v2437
        %v2578 = vpack.c.b16 %v2442, %v2438
        %v2579 = vpack.c.b16 %v2447, %v2443
        %v2580 = vpack.c.b16 %v2448, %v2444
        %v2581 = vpack.c.b16 %v2449, %v2445
        %v2582 = vpack.c.b16 %v2450, %v2446
        %v2583 = vpack.c.b16 %v2455, %v2451
        %v2584 = vpack.c.b16 %v2456, %v2452
        %v2585 = vpack.c.b16 %v2457, %v2453
        %v2586 = vpack.c.b16 %v2458, %v2454
        %2715 = vmatprep.subr.bf16.mxu0 %v2460
        %2716 = vmatpush1.bf16.msra.mxu0 %v2459
        %2717 = vmatprep.subr.bf16.mxu0 %v2464
        %2718 = vmatpush1.bf16.msra.mxu0 %v2463
        %2719 = vmatprep.subr.bf16.mxu0 %v2468
        %2720 = vmatpush1.bf16.msra.mxu0 %v2467
        %2721 = vmatprep.subr.bf16.mxu0 %v2472
        %2722 = vmatpush1.bf16.msra.mxu0 %v2471
        %2723 = vmatprep.subr.bf16.mxu0 %v2476
        %2724 = vmatpush1.bf16.msra.mxu0 %v2475
        %2725 = vmatprep.subr.bf16.mxu0 %v2480
        %2726 = vmatpush1.bf16.msra.mxu0 %v2479
        %2727 = vmatprep.subr.bf16.mxu0 %v2484
        %2728 = vmatpush1.bf16.msra.mxu0 %v2483
        %2729 = vmatprep.subr.bf16.mxu0 %v2488
        %2730 = vmatpush1.bf16.msra.mxu0 %v2487
        %2731 = vmatprep.subr.bf16.mxu0 %v2492
        %2732 = vmatpush1.bf16.msra.mxu0 %v2491
        %2733 = vmatprep.subr.bf16.mxu0 %v2496
        %2734 = vmatpush1.bf16.msra.mxu0 %v2495
        %2735 = vmatprep.subr.bf16.mxu0 %v2500
        %2736 = vmatpush1.bf16.msra.mxu0 %v2499
        %2737 = vmatprep.subr.bf16.mxu0 %v2504
        %2738 = vmatpush1.bf16.msra.mxu0 %v2503
        %2739 = vmatprep.subr.bf16.mxu0 %v2508
        %2740 = vmatpush1.bf16.msra.mxu0 %v2507
        %2741 = vmatprep.subr.bf16.mxu0 %v2512
        %2742 = vmatpush1.bf16.msra.mxu0 %v2511
        %2743 = vmatprep.subr.bf16.mxu0 %v2516
        %2744 = vmatpush1.bf16.msra.mxu0 %v2515
        %2745 = vmatprep.subr.bf16.mxu0 %v2520
        %2746 = vmatpush1.bf16.msra.mxu0 %v2519
        %2747 = vmatprep.mubr.bf16.mxu0 %v1862
        %2748 = vmatmul.mubr.bf16.gmra.mrb[0].mxu0 %v1861
        %v2749 = vpop.f32.mrb[0].mxu0
        %v2750 = vadd.f32 %v2058, %v2749
        %v2751 = vpop.f32.mrb[0].mxu0
        %v2752 = vadd.f32 %v2062, %v2751
        %v2753 = vpop.f32.mrb[0].mxu0
        %v2754 = vadd.f32 %v2058, %v2753
        %v2755 = vpop.f32.mrb[0].mxu0
        %v2756 = vadd.f32 %v2062, %v2755
        %2757 = vmatprep.mubr.bf16.mxu0 %v1866
        %2758 = vmatmul.mubr.bf16.gmra.mrb[0].mxu0 %v1865
        %v2759 = vpop.f32.mrb[0].mxu0
        %v2760 = vadd.f32 %v2058, %v2759
        %v2761 = vpop.f32.mrb[0].mxu0
        %v2762 = vadd.f32 %v2062, %v2761
        %v2763 = vpop.f32.mrb[0].mxu0
        %v2764 = vadd.f32 %v2058, %v2763
        %v2765 = vpop.f32.mrb[0].mxu0
        %v2766 = vadd.f32 %v2062, %v2765
        %2767 = vmatprep.mubr.bf16.mxu0 %v1870
        %2768 = vmatmul.mubr.bf16.gmra.mrb[0].mxu0 %v1869
        %v2769 = vpop.f32.mrb[0].mxu0
        %v2770 = vadd.f32 %v2058, %v2769
        %v2771 = vpop.f32.mrb[0].mxu0
        %v2772 = vadd.f32 %v2062, %v2771
        %v2773 = vpop.f32.mrb[0].mxu0
        %v2774 = vadd.f32 %v2058, %v2773
        %v2775 = vpop.f32.mrb[0].mxu0
        %v2776 = vadd.f32 %v2062, %v2775
        %2777 = vmatprep.mubr.bf16.mxu0 %v1874
        %2778 = vmatmul.mubr.bf16.gmra.mrb[0].mxu0 %v1873
        %v2779 = vpop.f32.mrb[0].mxu0
        %v2780 = vadd.f32 %v2058, %v2779
        %v2781 = vpop.f32.mrb[0].mxu0
        %v2782 = vadd.f32 %v2062, %v2781
        %v2783 = vpop.f32.mrb[0].mxu0
        %v2784 = vadd.f32 %v2058, %v2783
        %v2785 = vpop.f32.mrb[0].mxu0
        %v2786 = vadd.f32 %v2062, %v2785
        %2787 = vmatprep.mubr.bf16.mxu0 %v1878
        %2788 = vmatmul.mubr.bf16.gmra.mrb[0].mxu0 %v1877
        %v2789 = vpop.f32.mrb[0].mxu0
        %v2790 = vadd.f32 %v2058, %v2789
        %v2791 = vpop.f32.mrb[0].mxu0
        %v2792 = vadd.f32 %v2062, %v2791
        %v2793 = vpop.f32.mrb[0].mxu0
        %v2794 = vadd.f32 %v2058, %v2793
        %v2795 = vpop.f32.mrb[0].mxu0
        %v2796 = vadd.f32 %v2062, %v2795
        %2797 = vmatprep.mubr.bf16.mxu0 %v1882
        %2798 = vmatmul.mubr.bf16.gmra.mrb[0].mxu0 %v1881
        %v2799 = vpop.f32.mrb[0].mxu0
        %v2800 = vadd.f32 %v2058, %v2799
        %v2801 = vpop.f32.mrb[0].mxu0
        %v2802 = vadd.f32 %v2062, %v2801
        %v2803 = vpop.f32.mrb[0].mxu0
        %v2804 = vadd.f32 %v2058, %v2803
        %v2805 = vpop.f32.mrb[0].mxu0
        %v2806 = vadd.f32 %v2062, %v2805
        %2807 = vmatprep.mubr.bf16.mxu0 %v1886
        %2808 = vmatmul.mubr.bf16.gmra.mrb[0].mxu0 %v1885
        %v2809 = vpop.f32.mrb[0].mxu0
        %v2810 = vadd.f32 %v2058, %v2809
        %v2811 = vpop.f32.mrb[0].mxu0
        %v2812 = vadd.f32 %v2062, %v2811
        %v2813 = vpop.f32.mrb[0].mxu0
        %v2814 = vadd.f32 %v2058, %v2813
        %v2815 = vpop.f32.mrb[0].mxu0
        %v2816 = vadd.f32 %v2062, %v2815
        %2817 = vmatprep.mubr.bf16.mxu0 %v1890
        %2818 = vmatmul.mubr.bf16.gmra.mrb[0].mxu0 %v1889
        %v2819 = vpop.f32.mrb[0].mxu0
        %v2820 = vadd.f32 %v2058, %v2819
        %v2821 = vpop.f32.mrb[0].mxu0
        %v2822 = vadd.f32 %v2062, %v2821
        %v2823 = vpop.f32.mrb[0].mxu0
        %v2824 = vadd.f32 %v2058, %v2823
        %v2825 = vpop.f32.mrb[0].mxu0
        %v2826 = vadd.f32 %v2062, %v2825
        %2827 = vmatprep.mubr.bf16.mxu0 %v1894
        %2828 = vmatmul.mubr.bf16.gmra.mrb[0].mxu0 %v1893
        %v2829 = vpop.f32.mrb[0].mxu0
        %v2830 = vadd.f32 %v2058, %v2829
        %v2831 = vpop.f32.mrb[0].mxu0
        %v2832 = vadd.f32 %v2062, %v2831
        %v2833 = vpop.f32.mrb[0].mxu0
        %v2834 = vadd.f32 %v2058, %v2833
        %v2835 = vpop.f32.mrb[0].mxu0
        %v2836 = vadd.f32 %v2062, %v2835
        %2837 = vmatprep.mubr.bf16.mxu0 %v1898
        %2838 = vmatmul.mubr.bf16.gmra.mrb[0].mxu0 %v1897
        %v2839 = vpop.f32.mrb[0].mxu0
        %v2840 = vadd.f32 %v2058, %v2839
        %v2841 = vpop.f32.mrb[0].mxu0
        %v2842 = vadd.f32 %v2062, %v2841
        %v2843 = vpop.f32.mrb[0].mxu0
        %v2844 = vadd.f32 %v2058, %v2843
        %v2845 = vpop.f32.mrb[0].mxu0
        %v2846 = vadd.f32 %v2062, %v2845
        %2847 = vmatprep.mubr.bf16.mxu0 %v1902
        %2848 = vmatmul.mubr.bf16.gmra.mrb[0].mxu0 %v1901
        %v2849 = vpop.f32.mrb[0].mxu0
        %v2850 = vadd.f32 %v2058, %v2849
        %v2851 = vpop.f32.mrb[0].mxu0
        %v2852 = vadd.f32 %v2062, %v2851
        %v2853 = vpop.f32.mrb[0].mxu0
        %v2854 = vadd.f32 %v2058, %v2853
        %v2855 = vpop.f32.mrb[0].mxu0
        %v2856 = vadd.f32 %v2062, %v2855
        %2857 = vmatprep.mubr.bf16.mxu0 %v1906
        %2858 = vmatmul.mubr.bf16.gmra.mrb[0].mxu0 %v1905
        %v2859 = vpop.f32.mrb[0].mxu0
        %v2860 = vadd.f32 %v2058, %v2859
        %v2861 = vpop.f32.mrb[0].mxu0
        %v2862 = vadd.f32 %v2062, %v2861
        %v2863 = vpop.f32.mrb[0].mxu0
        %v2864 = vadd.f32 %v2058, %v2863
        %v2865 = vpop.f32.mrb[0].mxu0
        %v2866 = vadd.f32 %v2062, %v2865
        %2867 = vmatprep.mubr.bf16.mxu0 %v1910
        %2868 = vmatmul.mubr.bf16.gmra.mrb[0].mxu0 %v1909
        %v2869 = vpop.f32.mrb[0].mxu0
        %v2870 = vadd.f32 %v2058, %v2869
        %v2871 = vpop.f32.mrb[0].mxu0
        %v2872 = vadd.f32 %v2062, %v2871
        %v2873 = vpop.f32.mrb[0].mxu0
        %v2874 = vadd.f32 %v2058, %v2873
        %v2875 = vpop.f32.mrb[0].mxu0
        %v2876 = vadd.f32 %v2062, %v2875
        %2877 = vmatprep.mubr.bf16.mxu0 %v1914
        %2878 = vmatmul.mubr.bf16.gmra.mrb[0].mxu0 %v1913
        %v2879 = vpop.f32.mrb[0].mxu0
        %v2880 = vadd.f32 %v2058, %v2879
        %v2881 = vpop.f32.mrb[0].mxu0
        %v2882 = vadd.f32 %v2062, %v2881
        %v2883 = vpop.f32.mrb[0].mxu0
        %v2884 = vadd.f32 %v2058, %v2883
        %v2885 = vpop.f32.mrb[0].mxu0
        %v2886 = vadd.f32 %v2062, %v2885
        %2887 = vmatprep.mubr.bf16.mxu0 %v1918
        %2888 = vmatmul.mubr.bf16.gmra.mrb[0].mxu0 %v1917
        %v2889 = vpop.f32.mrb[0].mxu0
        %v2890 = vadd.f32 %v2058, %v2889
        %v2891 = vpop.f32.mrb[0].mxu0
        %v2892 = vadd.f32 %v2062, %v2891
        %v2893 = vpop.f32.mrb[0].mxu0
        %v2894 = vadd.f32 %v2058, %v2893
        %v2895 = vpop.f32.mrb[0].mxu0
        %v2896 = vadd.f32 %v2062, %v2895
        %2897 = vmatprep.mubr.bf16.mxu0 %v1922
        %2898 = vmatmul.mubr.bf16.gmra.mrb[0].mxu0 %v1921
        %v2899 = vpop.f32.mrb[0].mxu0
        %v2900 = vadd.f32 %v2058, %v2899
        %v2901 = vpop.f32.mrb[0].mxu0
        %v2902 = vadd.f32 %v2062, %v2901
        %v2903 = vpop.f32.mrb[0].mxu0
        %v2904 = vadd.f32 %v2058, %v2903
        %v2905 = vpop.f32.mrb[0].mxu0
        %v2906 = vadd.f32 %v2062, %v2905
        %2907 = vdwg.mxu0
        %2908 = vmatprep.subr.bf16.mxu0 %v2524
        %2909 = vmatpush1.bf16.msra.mxu0 %v2523
        %2910 = vmatprep.subr.bf16.mxu0 %v2528
        %2911 = vmatpush1.bf16.msra.mxu0 %v2527
        %2912 = vmatprep.subr.bf16.mxu0 %v2532
        %2913 = vmatpush1.bf16.msra.mxu0 %v2531
        %2914 = vmatprep.subr.bf16.mxu0 %v2536
        %2915 = vmatpush1.bf16.msra.mxu0 %v2535
        %2916 = vmatprep.subr.bf16.mxu0 %v2540
        %2917 = vmatpush1.bf16.msra.mxu0 %v2539
        %2918 = vmatprep.subr.bf16.mxu0 %v2544
        %2919 = vmatpush1.bf16.msra.mxu0 %v2543
        %2920 = vmatprep.subr.bf16.mxu0 %v2548
        %2921 = vmatpush1.bf16.msra.mxu0 %v2547
        %2922 = vmatprep.subr.bf16.mxu0 %v2552
        %2923 = vmatpush1.bf16.msra.mxu0 %v2551
        %2924 = vmatprep.subr.bf16.mxu0 %v2556
        %2925 = vmatpush1.bf16.msra.mxu0 %v2555
        %2926 = vmatprep.subr.bf16.mxu0 %v2560
        %2927 = vmatpush1.bf16.msra.mxu0 %v2559
        %2928 = vmatprep.subr.bf16.mxu0 %v2564
        %2929 = vmatpush1.bf16.msra.mxu0 %v2563
        %2930 = vmatprep.subr.bf16.mxu0 %v2568
        %2931 = vmatpush1.bf16.msra.mxu0 %v2567
        %2932 = vmatprep.subr.bf16.mxu0 %v2572
        %2933 = vmatpush1.bf16.msra.mxu0 %v2571
        %2934 = vmatprep.subr.bf16.mxu0 %v2576
        %2935 = vmatpush1.bf16.msra.mxu0 %v2575
        %2936 = vmatprep.subr.bf16.mxu0 %v2580
        %2937 = vmatpush1.bf16.msra.mxu0 %v2579
        %2938 = vmatprep.subr.bf16.mxu0 %v2584
        %2939 = vmatpush1.bf16.msra.mxu0 %v2583
        %2940 = vmatprep.mubr.bf16.mxu0 %v1864
        %2941 = vmatmul.mubr.bf16.gmra.mrb[0].mxu0 %v1863
        %v2942 = vpop.f32.mrb[0].mxu0
        %v2943 = vadd.f32 %v2750, %v2942
        %v2944 = vpop.f32.mrb[0].mxu0
        %v2945 = vadd.f32 %v2752, %v2944
        %v2946 = vpop.f32.mrb[0].mxu0
        %v2947 = vadd.f32 %v2754, %v2946
        %v2948 = vpop.f32.mrb[0].mxu0
        %v2949 = vadd.f32 %v2756, %v2948
        %2950 = vmatprep.mubr.bf16.mxu0 %v1868
        %2951 = vmatmul.mubr.bf16.gmra.mrb[0].mxu0 %v1867
        %v2952 = vpop.f32.mrb[0].mxu0
        %v2953 = vadd.f32 %v2760, %v2952
        %v2954 = vpop.f32.mrb[0].mxu0
        %v2955 = vadd.f32 %v2762, %v2954
        %v2956 = vpop.f32.mrb[0].mxu0
        %v2957 = vadd.f32 %v2764, %v2956
        %v2958 = vpop.f32.mrb[0].mxu0
        %v2959 = vadd.f32 %v2766, %v2958
        %2960 = vmatprep.mubr.bf16.mxu0 %v1872
        %2961 = vmatmul.mubr.bf16.gmra.mrb[0].mxu0 %v1871
        %v2962 = vpop.f32.mrb[0].mxu0
        %v2963 = vadd.f32 %v2770, %v2962
        %v2964 = vpop.f32.mrb[0].mxu0
        %v2965 = vadd.f32 %v2772, %v2964
        %v2966 = vpop.f32.mrb[0].mxu0
        %v2967 = vadd.f32 %v2774, %v2966
        %v2968 = vpop.f32.mrb[0].mxu0
        %v2969 = vadd.f32 %v2776, %v2968
        %2970 = vmatprep.mubr.bf16.mxu0 %v1876
        %2971 = vmatmul.mubr.bf16.gmra.mrb[0].mxu0 %v1875
        %v2972 = vpop.f32.mrb[0].mxu0
        %v2973 = vadd.f32 %v2780, %v2972
        %v2974 = vpop.f32.mrb[0].mxu0
        %v2975 = vadd.f32 %v2782, %v2974
        %v2976 = vpop.f32.mrb[0].mxu0
        %v2977 = vadd.f32 %v2784, %v2976
        %v2978 = vpop.f32.mrb[0].mxu0
        %v2979 = vadd.f32 %v2786, %v2978
        %2980 = vmatprep.mubr.bf16.mxu0 %v1880
        %2981 = vmatmul.mubr.bf16.gmra.mrb[0].mxu0 %v1879
        %v2982 = vpop.f32.mrb[0].mxu0
        %v2983 = vadd.f32 %v2790, %v2982
        %v2984 = vpop.f32.mrb[0].mxu0
        %v2985 = vadd.f32 %v2792, %v2984
        %v2986 = vpop.f32.mrb[0].mxu0
        %v2987 = vadd.f32 %v2794, %v2986
        %v2988 = vpop.f32.mrb[0].mxu0
        %v2989 = vadd.f32 %v2796, %v2988
        %2990 = vmatprep.mubr.bf16.mxu0 %v1884
        %2991 = vmatmul.mubr.bf16.gmra.mrb[0].mxu0 %v1883
        %v2992 = vpop.f32.mrb[0].mxu0
        %v2993 = vadd.f32 %v2800, %v2992
        %v2994 = vpop.f32.mrb[0].mxu0
        %v2995 = vadd.f32 %v2802, %v2994
        %v2996 = vpop.f32.mrb[0].mxu0
        %v2997 = vadd.f32 %v2804, %v2996
        %v2998 = vpop.f32.mrb[0].mxu0
        %v2999 = vadd.f32 %v2806, %v2998
        %3000 = vmatprep.mubr.bf16.mxu0 %v1888
        %3001 = vmatmul.mubr.bf16.gmra.mrb[0].mxu0 %v1887
        %v3002 = vpop.f32.mrb[0].mxu0
        %v3003 = vadd.f32 %v2810, %v3002
        %v3004 = vpop.f32.mrb[0].mxu0
        %v3005 = vadd.f32 %v2812, %v3004
        %v3006 = vpop.f32.mrb[0].mxu0
        %v3007 = vadd.f32 %v2814, %v3006
        %v3008 = vpop.f32.mrb[0].mxu0
        %v3009 = vadd.f32 %v2816, %v3008
        %3010 = vmatprep.mubr.bf16.mxu0 %v1892
        %3011 = vmatmul.mubr.bf16.gmra.mrb[0].mxu0 %v1891
        %v3012 = vpop.f32.mrb[0].mxu0
        %v3013 = vadd.f32 %v2820, %v3012
        %v3014 = vpop.f32.mrb[0].mxu0
        %v3015 = vadd.f32 %v2822, %v3014
        %v3016 = vpop.f32.mrb[0].mxu0
        %v3017 = vadd.f32 %v2824, %v3016
        %v3018 = vpop.f32.mrb[0].mxu0
        %v3019 = vadd.f32 %v2826, %v3018
        %3020 = vmatprep.mubr.bf16.mxu0 %v1896
        %3021 = vmatmul.mubr.bf16.gmra.mrb[0].mxu0 %v1895
        %v3022 = vpop.f32.mrb[0].mxu0
        %v3023 = vadd.f32 %v2830, %v3022
        %v3024 = vpop.f32.mrb[0].mxu0
        %v3025 = vadd.f32 %v2832, %v3024
        %v3026 = vpop.f32.mrb[0].mxu0
        %v3027 = vadd.f32 %v2834, %v3026
        %v3028 = vpop.f32.mrb[0].mxu0
        %v3029 = vadd.f32 %v2836, %v3028
        %3030 = vmatprep.mubr.bf16.mxu0 %v1900
        %3031 = vmatmul.mubr.bf16.gmra.mrb[0].mxu0 %v1899
        %v3032 = vpop.f32.mrb[0].mxu0
        %v3033 = vadd.f32 %v2840, %v3032
        %v3034 = vpop.f32.mrb[0].mxu0
        %v3035 = vadd.f32 %v2842, %v3034
        %v3036 = vpop.f32.mrb[0].mxu0
        %v3037 = vadd.f32 %v2844, %v3036
        %v3038 = vpop.f32.mrb[0].mxu0
        %v3039 = vadd.f32 %v2846, %v3038
        %3040 = vmatprep.mubr.bf16.mxu0 %v1904
        %3041 = vmatmul.mubr.bf16.gmra.mrb[0].mxu0 %v1903
        %v3042 = vpop.f32.mrb[0].mxu0
        %v3043 = vadd.f32 %v2850, %v3042
        %v3044 = vpop.f32.mrb[0].mxu0
        %v3045 = vadd.f32 %v2852, %v3044
        %v3046 = vpop.f32.mrb[0].mxu0
        %v3047 = vadd.f32 %v2854, %v3046
        %v3048 = vpop.f32.mrb[0].mxu0
        %v3049 = vadd.f32 %v2856, %v3048
        %3050 = vmatprep.mubr.bf16.mxu0 %v1908
        %3051 = vmatmul.mubr.bf16.gmra.mrb[0].mxu0 %v1907
        %v3052 = vpop.f32.mrb[0].mxu0
        %v3053 = vadd.f32 %v2860, %v3052
        %v3054 = vpop.f32.mrb[0].mxu0
        %v3055 = vadd.f32 %v2862, %v3054
        %v3056 = vpop.f32.mrb[0].mxu0
        %v3057 = vadd.f32 %v2864, %v3056
        %v3058 = vpop.f32.mrb[0].mxu0
        %v3059 = vadd.f32 %v2866, %v3058
        %3060 = vmatprep.mubr.bf16.mxu0 %v1912
        %3061 = vmatmul.mubr.bf16.gmra.mrb[0].mxu0 %v1911
        %v3062 = vpop.f32.mrb[0].mxu0
        %v3063 = vadd.f32 %v2870, %v3062
        %v3064 = vpop.f32.mrb[0].mxu0
        %v3065 = vadd.f32 %v2872, %v3064
        %v3066 = vpop.f32.mrb[0].mxu0
        %v3067 = vadd.f32 %v2874, %v3066
        %v3068 = vpop.f32.mrb[0].mxu0
        %v3069 = vadd.f32 %v2876, %v3068
        %3070 = vmatprep.mubr.bf16.mxu0 %v1916
        %3071 = vmatmul.mubr.bf16.gmra.mrb[0].mxu0 %v1915
        %v3072 = vpop.f32.mrb[0].mxu0
        %v3073 = vadd.f32 %v2880, %v3072
        %v3074 = vpop.f32.mrb[0].mxu0
        %v3075 = vadd.f32 %v2882, %v3074
        %v3076 = vpop.f32.mrb[0].mxu0
        %v3077 = vadd.f32 %v2884, %v3076
        %v3078 = vpop.f32.mrb[0].mxu0
        %v3079 = vadd.f32 %v2886, %v3078
        %3080 = vmatprep.mubr.bf16.mxu0 %v1920
        %3081 = vmatmul.mubr.bf16.gmra.mrb[0].mxu0 %v1919
        %v3082 = vpop.f32.mrb[0].mxu0
        %v3083 = vadd.f32 %v2890, %v3082
        %v3084 = vpop.f32.mrb[0].mxu0
        %v3085 = vadd.f32 %v2892, %v3084
        %v3086 = vpop.f32.mrb[0].mxu0
        %v3087 = vadd.f32 %v2894, %v3086
        %v3088 = vpop.f32.mrb[0].mxu0
        %v3089 = vadd.f32 %v2896, %v3088
        %3090 = vmatprep.mubr.bf16.mxu0 %v1924
        %3091 = vmatmul.mubr.bf16.gmra.mrb[0].mxu0 %v1923
        %v3092 = vpop.f32.mrb[0].mxu0
        %v3093 = vadd.f32 %v2900, %v3092
        %v3094 = vpop.f32.mrb[0].mxu0
        %v3095 = vadd.f32 %v2902, %v3094
        %v3096 = vpop.f32.mrb[0].mxu0
        %v3097 = vadd.f32 %v2904, %v3096
        %v3098 = vpop.f32.mrb[0].mxu0
        %v3099 = vadd.f32 %v2906, %v3098
        %3100 = vdwg.mxu0
        %3101 = vmatprep.subr.bf16.mxu0 %v2462
        %3102 = vmatpush1.bf16.msra.mxu0 %v2461
        %3103 = vmatprep.subr.bf16.mxu0 %v2466
        %3104 = vmatpush1.bf16.msra.mxu0 %v2465
        %3105 = vmatprep.subr.bf16.mxu0 %v2470
        %3106 = vmatpush1.bf16.msra.mxu0 %v2469
        %3107 = vmatprep.subr.bf16.mxu0 %v2474
        %3108 = vmatpush1.bf16.msra.mxu0 %v2473
        %3109 = vmatprep.subr.bf16.mxu0 %v2478
        %3110 = vmatpush1.bf16.msra.mxu0 %v2477
        %3111 = vmatprep.subr.bf16.mxu0 %v2482
        %3112 = vmatpush1.bf16.msra.mxu0 %v2481
        %3113 = vmatprep.subr.bf16.mxu0 %v2486
        %3114 = vmatpush1.bf16.msra.mxu0 %v2485
        %3115 = vmatprep.subr.bf16.mxu0 %v2490
        %3116 = vmatpush1.bf16.msra.mxu0 %v2489
        %3117 = vmatprep.subr.bf16.mxu0 %v2494
        %3118 = vmatpush1.bf16.msra.mxu0 %v2493
        %3119 = vmatprep.subr.bf16.mxu0 %v2498
        %3120 = vmatpush1.bf16.msra.mxu0 %v2497
        %3121 = vmatprep.subr.bf16.mxu0 %v2502
        %3122 = vmatpush1.bf16.msra.mxu0 %v2501
        %3123 = vmatprep.subr.bf16.mxu0 %v2506
        %3124 = vmatpush1.bf16.msra.mxu0 %v2505
        %3125 = vmatprep.subr.bf16.mxu0 %v2510
        %3126 = vmatpush1.bf16.msra.mxu0 %v2509
        %3127 = vmatprep.subr.bf16.mxu0 %v2514
        %3128 = vmatpush1.bf16.msra.mxu0 %v2513
        %3129 = vmatprep.subr.bf16.mxu0 %v2518
        %3130 = vmatpush1.bf16.msra.mxu0 %v2517
        %3131 = vmatprep.subr.bf16.mxu0 %v2522
        %3132 = vmatpush1.bf16.msra.mxu0 %v2521
        %3133 = vmatprep.mubr.bf16.mxu0 %v1862
        %3134 = vmatmul.mubr.bf16.gmra.mrb[0].mxu0 %v1861
        %v3135 = vpop.f32.mrb[0].mxu0
        %v3136 = vadd.f32 %v2066, %v3135
        %v3137 = vpop.f32.mrb[0].mxu0
        %v3138 = vadd.f32 %v2070, %v3137
        %v3139 = vpop.f32.mrb[0].mxu0
        %v3140 = vadd.f32 %v2066, %v3139
        %v3141 = vpop.f32.mrb[0].mxu0
        %v3142 = vadd.f32 %v2070, %v3141
        %3143 = vmatprep.mubr.bf16.mxu0 %v1866
        %3144 = vmatmul.mubr.bf16.gmra.mrb[0].mxu0 %v1865
        %v3145 = vpop.f32.mrb[0].mxu0
        %v3146 = vadd.f32 %v2066, %v3145
        %v3147 = vpop.f32.mrb[0].mxu0
        %v3148 = vadd.f32 %v2070, %v3147
        %v3149 = vpop.f32.mrb[0].mxu0
        %v3150 = vadd.f32 %v2066, %v3149
        %v3151 = vpop.f32.mrb[0].mxu0
        %v3152 = vadd.f32 %v2070, %v3151
        %3153 = vmatprep.mubr.bf16.mxu0 %v1870
        %3154 = vmatmul.mubr.bf16.gmra.mrb[0].mxu0 %v1869
        %v3155 = vpop.f32.mrb[0].mxu0
        %v3156 = vadd.f32 %v2066, %v3155
        %v3157 = vpop.f32.mrb[0].mxu0
        %v3158 = vadd.f32 %v2070, %v3157
        %v3159 = vpop.f32.mrb[0].mxu0
        %v3160 = vadd.f32 %v2066, %v3159
        %v3161 = vpop.f32.mrb[0].mxu0
        %v3162 = vadd.f32 %v2070, %v3161
        %3163 = vmatprep.mubr.bf16.mxu0 %v1874
        %3164 = vmatmul.mubr.bf16.gmra.mrb[0].mxu0 %v1873
        %v3165 = vpop.f32.mrb[0].mxu0
        %v3166 = vadd.f32 %v2066, %v3165
        %v3167 = vpop.f32.mrb[0].mxu0
        %v3168 = vadd.f32 %v2070, %v3167
        %v3169 = vpop.f32.mrb[0].mxu0
        %v3170 = vadd.f32 %v2066, %v3169
        %v3171 = vpop.f32.mrb[0].mxu0
        %v3172 = vadd.f32 %v2070, %v3171
        %3173 = vmatprep.mubr.bf16.mxu0 %v1878
        %3174 = vmatmul.mubr.bf16.gmra.mrb[0].mxu0 %v1877
        %v3175 = vpop.f32.mrb[0].mxu0
        %v3176 = vadd.f32 %v2066, %v3175
        %v3177 = vpop.f32.mrb[0].mxu0
        %v3178 = vadd.f32 %v2070, %v3177
        %v3179 = vpop.f32.mrb[0].mxu0
        %v3180 = vadd.f32 %v2066, %v3179
        %v3181 = vpop.f32.mrb[0].mxu0
        %v3182 = vadd.f32 %v2070, %v3181
        %3183 = vmatprep.mubr.bf16.mxu0 %v1882
        %3184 = vmatmul.mubr.bf16.gmra.mrb[0].mxu0 %v1881
        %v3185 = vpop.f32.mrb[0].mxu0
        %v3186 = vadd.f32 %v2066, %v3185
        %v3187 = vpop.f32.mrb[0].mxu0
        %v3188 = vadd.f32 %v2070, %v3187
        %v3189 = vpop.f32.mrb[0].mxu0
        %v3190 = vadd.f32 %v2066, %v3189
        %v3191 = vpop.f32.mrb[0].mxu0
        %v3192 = vadd.f32 %v2070, %v3191
        %3193 = vmatprep.mubr.bf16.mxu0 %v1886
        %3194 = vmatmul.mubr.bf16.gmra.mrb[0].mxu0 %v1885
        %v3195 = vpop.f32.mrb[0].mxu0
        %v3196 = vadd.f32 %v2066, %v3195
        %v3197 = vpop.f32.mrb[0].mxu0
        %v3198 = vadd.f32 %v2070, %v3197
        %v3199 = vpop.f32.mrb[0].mxu0
        %v3200 = vadd.f32 %v2066, %v3199
        %v3201 = vpop.f32.mrb[0].mxu0
        %v3202 = vadd.f32 %v2070, %v3201
        %3203 = vmatprep.mubr.bf16.mxu0 %v1890
        %3204 = vmatmul.mubr.bf16.gmra.mrb[0].mxu0 %v1889
        %v3205 = vpop.f32.mrb[0].mxu0
        %v3206 = vadd.f32 %v2066, %v3205
        %v3207 = vpop.f32.mrb[0].mxu0
        %v3208 = vadd.f32 %v2070, %v3207
        %v3209 = vpop.f32.mrb[0].mxu0
        %v3210 = vadd.f32 %v2066, %v3209
        %v3211 = vpop.f32.mrb[0].mxu0
        %v3212 = vadd.f32 %v2070, %v3211
        %3213 = vmatprep.mubr.bf16.mxu0 %v1894
        %3214 = vmatmul.mubr.bf16.gmra.mrb[0].mxu0 %v1893
        %v3215 = vpop.f32.mrb[0].mxu0
        %v3216 = vadd.f32 %v2066, %v3215
        %v3217 = vpop.f32.mrb[0].mxu0
        %v3218 = vadd.f32 %v2070, %v3217
        %v3219 = vpop.f32.mrb[0].mxu0
        %v3220 = vadd.f32 %v2066, %v3219
        %v3221 = vpop.f32.mrb[0].mxu0
        %v3222 = vadd.f32 %v2070, %v3221
        %3223 = vmatprep.mubr.bf16.mxu0 %v1898
        %3224 = vmatmul.mubr.bf16.gmra.mrb[0].mxu0 %v1897
        %v3225 = vpop.f32.mrb[0].mxu0
        %v3226 = vadd.f32 %v2066, %v3225
        %v3227 = vpop.f32.mrb[0].mxu0
        %v3228 = vadd.f32 %v2070, %v3227
        %v3229 = vpop.f32.mrb[0].mxu0
        %v3230 = vadd.f32 %v2066, %v3229
        %v3231 = vpop.f32.mrb[0].mxu0
        %v3232 = vadd.f32 %v2070, %v3231
        %3233 = vmatprep.mubr.bf16.mxu0 %v1902
        %3234 = vmatmul.mubr.bf16.gmra.mrb[0].mxu0 %v1901
        %v3235 = vpop.f32.mrb[0].mxu0
        %v3236 = vadd.f32 %v2066, %v3235
        %v3237 = vpop.f32.mrb[0].mxu0
        %v3238 = vadd.f32 %v2070, %v3237
        %v3239 = vpop.f32.mrb[0].mxu0
        %v3240 = vadd.f32 %v2066, %v3239
        %v3241 = vpop.f32.mrb[0].mxu0
        %v3242 = vadd.f32 %v2070, %v3241
        %3243 = vmatprep.mubr.bf16.mxu0 %v1906
        %3244 = vmatmul.mubr.bf16.gmra.mrb[0].mxu0 %v1905
        %v3245 = vpop.f32.mrb[0].mxu0
        %v3246 = vadd.f32 %v2066, %v3245
        %v3247 = vpop.f32.mrb[0].mxu0
        %v3248 = vadd.f32 %v2070, %v3247
        %v3249 = vpop.f32.mrb[0].mxu0
        %v3250 = vadd.f32 %v2066, %v3249
        %v3251 = vpop.f32.mrb[0].mxu0
        %v3252 = vadd.f32 %v2070, %v3251
        %3253 = vmatprep.mubr.bf16.mxu0 %v1910
        %3254 = vmatmul.mubr.bf16.gmra.mrb[0].mxu0 %v1909
        %v3255 = vpop.f32.mrb[0].mxu0
        %v3256 = vadd.f32 %v2066, %v3255
        %v3257 = vpop.f32.mrb[0].mxu0
        %v3258 = vadd.f32 %v2070, %v3257
        %v3259 = vpop.f32.mrb[0].mxu0
        %v3260 = vadd.f32 %v2066, %v3259
        %v3261 = vpop.f32.mrb[0].mxu0
        %v3262 = vadd.f32 %v2070, %v3261
        %3263 = vmatprep.mubr.bf16.mxu0 %v1914
        %3264 = vmatmul.mubr.bf16.gmra.mrb[0].mxu0 %v1913
        %v3265 = vpop.f32.mrb[0].mxu0
        %v3266 = vadd.f32 %v2066, %v3265
        %v3267 = vpop.f32.mrb[0].mxu0
        %v3268 = vadd.f32 %v2070, %v3267
        %v3269 = vpop.f32.mrb[0].mxu0
        %v3270 = vadd.f32 %v2066, %v3269
        %v3271 = vpop.f32.mrb[0].mxu0
        %v3272 = vadd.f32 %v2070, %v3271
        %3273 = vmatprep.mubr.bf16.mxu0 %v1918
        %3274 = vmatmul.mubr.bf16.gmra.mrb[0].mxu0 %v1917
        %v3275 = vpop.f32.mrb[0].mxu0
        %v3276 = vadd.f32 %v2066, %v3275
        %v3277 = vpop.f32.mrb[0].mxu0
        %v3278 = vadd.f32 %v2070, %v3277
        %v3279 = vpop.f32.mrb[0].mxu0
        %v3280 = vadd.f32 %v2066, %v3279
        %v3281 = vpop.f32.mrb[0].mxu0
        %v3282 = vadd.f32 %v2070, %v3281
        %3283 = vmatprep.mubr.bf16.mxu0 %v1922
        %3284 = vmatmul.mubr.bf16.gmra.mrb[0].mxu0 %v1921
        %v3285 = vpop.f32.mrb[0].mxu0
        %v3286 = vadd.f32 %v2066, %v3285
        %v3287 = vpop.f32.mrb[0].mxu0
        %v3288 = vadd.f32 %v2070, %v3287
        %v3289 = vpop.f32.mrb[0].mxu0
        %v3290 = vadd.f32 %v2066, %v3289
        %v3291 = vpop.f32.mrb[0].mxu0
        %v3292 = vadd.f32 %v2070, %v3291
        %3293 = vdwg.mxu0
        %3294 = vmatprep.subr.bf16.mxu0 %v2526
        %3295 = vmatpush1.bf16.msra.mxu0 %v2525
        %3296 = vmatprep.subr.bf16.mxu0 %v2530
        %3297 = vmatpush1.bf16.msra.mxu0 %v2529
        %3298 = vmatprep.subr.bf16.mxu0 %v2534
        %3299 = vmatpush1.bf16.msra.mxu0 %v2533
        %3300 = vmatprep.subr.bf16.mxu0 %v2538
        %3301 = vmatpush1.bf16.msra.mxu0 %v2537
        %3302 = vmatprep.subr.bf16.mxu0 %v2542
        %3303 = vmatpush1.bf16.msra.mxu0 %v2541
        %3304 = vmatprep.subr.bf16.mxu0 %v2546
        %3305 = vmatpush1.bf16.msra.mxu0 %v2545
        %3306 = vmatprep.subr.bf16.mxu0 %v2550
        %3307 = vmatpush1.bf16.msra.mxu0 %v2549
        %3308 = vmatprep.subr.bf16.mxu0 %v2554
        %3309 = vmatpush1.bf16.msra.mxu0 %v2553
        %3310 = vmatprep.subr.bf16.mxu0 %v2558
        %3311 = vmatpush1.bf16.msra.mxu0 %v2557
        %3312 = vmatprep.subr.bf16.mxu0 %v2562
        %3313 = vmatpush1.bf16.msra.mxu0 %v2561
        %3314 = vmatprep.subr.bf16.mxu0 %v2566
        %3315 = vmatpush1.bf16.msra.mxu0 %v2565
        %3316 = vmatprep.subr.bf16.mxu0 %v2570
        %3317 = vmatpush1.bf16.msra.mxu0 %v2569
        %3318 = vmatprep.subr.bf16.mxu0 %v2574
        %3319 = vmatpush1.bf16.msra.mxu0 %v2573
        %3320 = vmatprep.subr.bf16.mxu0 %v2578
        %3321 = vmatpush1.bf16.msra.mxu0 %v2577
        %3322 = vmatprep.subr.bf16.mxu0 %v2582
        %3323 = vmatpush1.bf16.msra.mxu0 %v2581
        %3324 = vmatprep.subr.bf16.mxu0 %v2586
        %3325 = vmatpush1.bf16.msra.mxu0 %v2585
        %3326 = vmatprep.mubr.bf16.mxu0 %v1864
        %3327 = vmatmul.mubr.bf16.gmra.mrb[0].mxu0 %v1863
        %v3328 = vpop.f32.mrb[0].mxu0
        %v3329 = vadd.f32 %v3136, %v3328
        %v3330 = vpop.f32.mrb[0].mxu0
        %v3331 = vadd.f32 %v3138, %v3330
        %v3332 = vpop.f32.mrb[0].mxu0
        %v3333 = vadd.f32 %v3140, %v3332
        %v3334 = vpop.f32.mrb[0].mxu0
        %v3335 = vadd.f32 %v3142, %v3334
        %3336 = vmatprep.mubr.bf16.mxu0 %v1868
        %3337 = vmatmul.mubr.bf16.gmra.mrb[0].mxu0 %v1867
        %v3338 = vpop.f32.mrb[0].mxu0
        %v3339 = vadd.f32 %v3146, %v3338
        %v3340 = vpop.f32.mrb[0].mxu0
        %v3341 = vadd.f32 %v3148, %v3340
        %v3342 = vpop.f32.mrb[0].mxu0
        %v3343 = vadd.f32 %v3150, %v3342
        %v3344 = vpop.f32.mrb[0].mxu0
        %v3345 = vadd.f32 %v3152, %v3344
        %3346 = vmatprep.mubr.bf16.mxu0 %v1872
        %3347 = vmatmul.mubr.bf16.gmra.mrb[0].mxu0 %v1871
        %v3348 = vpop.f32.mrb[0].mxu0
        %v3349 = vadd.f32 %v3156, %v3348
        %v3350 = vpop.f32.mrb[0].mxu0
        %v3351 = vadd.f32 %v3158, %v3350
        %v3352 = vpop.f32.mrb[0].mxu0
        %v3353 = vadd.f32 %v3160, %v3352
        %v3354 = vpop.f32.mrb[0].mxu0
        %v3355 = vadd.f32 %v3162, %v3354
        %3356 = vmatprep.mubr.bf16.mxu0 %v1876
        %3357 = vmatmul.mubr.bf16.gmra.mrb[0].mxu0 %v1875
        %v3358 = vpop.f32.mrb[0].mxu0
        %v3359 = vadd.f32 %v3166, %v3358
        %v3360 = vpop.f32.mrb[0].mxu0
        %v3361 = vadd.f32 %v3168, %v3360
        %v3362 = vpop.f32.mrb[0].mxu0
        %v3363 = vadd.f32 %v3170, %v3362
        %v3364 = vpop.f32.mrb[0].mxu0
        %v3365 = vadd.f32 %v3172, %v3364
        %3366 = vmatprep.mubr.bf16.mxu0 %v1880
        %3367 = vmatmul.mubr.bf16.gmra.mrb[0].mxu0 %v1879
        %v3368 = vpop.f32.mrb[0].mxu0
        %v3369 = vadd.f32 %v3176, %v3368
        %v3370 = vpop.f32.mrb[0].mxu0
        %v3371 = vadd.f32 %v3178, %v3370
        %v3372 = vpop.f32.mrb[0].mxu0
        %v3373 = vadd.f32 %v3180, %v3372
        %v3374 = vpop.f32.mrb[0].mxu0
        %v3375 = vadd.f32 %v3182, %v3374
        %3376 = vmatprep.mubr.bf16.mxu0 %v1884
        %3377 = vmatmul.mubr.bf16.gmra.mrb[0].mxu0 %v1883
        %v3378 = vpop.f32.mrb[0].mxu0
        %v3379 = vadd.f32 %v3186, %v3378
        %v3380 = vpop.f32.mrb[0].mxu0
        %v3381 = vadd.f32 %v3188, %v3380
        %v3382 = vpop.f32.mrb[0].mxu0
        %v3383 = vadd.f32 %v3190, %v3382
        %v3384 = vpop.f32.mrb[0].mxu0
        %v3385 = vadd.f32 %v3192, %v3384
        %3386 = vmatprep.mubr.bf16.mxu0 %v1888
        %3387 = vmatmul.mubr.bf16.gmra.mrb[0].mxu0 %v1887
        %v3388 = vpop.f32.mrb[0].mxu0
        %v3389 = vadd.f32 %v3196, %v3388
        %v3390 = vpop.f32.mrb[0].mxu0
        %v3391 = vadd.f32 %v3198, %v3390
        %v3392 = vpop.f32.mrb[0].mxu0
        %v3393 = vadd.f32 %v3200, %v3392
        %v3394 = vpop.f32.mrb[0].mxu0
        %v3395 = vadd.f32 %v3202, %v3394
        %3396 = vmatprep.mubr.bf16.mxu0 %v1892
        %3397 = vmatmul.mubr.bf16.gmra.mrb[0].mxu0 %v1891
        %v3398 = vpop.f32.mrb[0].mxu0
        %v3399 = vadd.f32 %v3206, %v3398
        %v3400 = vpop.f32.mrb[0].mxu0
        %v3401 = vadd.f32 %v3208, %v3400
        %v3402 = vpop.f32.mrb[0].mxu0
        %v3403 = vadd.f32 %v3210, %v3402
        %v3404 = vpop.f32.mrb[0].mxu0
        %v3405 = vadd.f32 %v3212, %v3404
        %3406 = vmatprep.mubr.bf16.mxu0 %v1896
        %3407 = vmatmul.mubr.bf16.gmra.mrb[0].mxu0 %v1895
        %v3408 = vpop.f32.mrb[0].mxu0
        %v3409 = vadd.f32 %v3216, %v3408
        %v3410 = vpop.f32.mrb[0].mxu0
        %v3411 = vadd.f32 %v3218, %v3410
        %v3412 = vpop.f32.mrb[0].mxu0
        %v3413 = vadd.f32 %v3220, %v3412
        %v3414 = vpop.f32.mrb[0].mxu0
        %v3415 = vadd.f32 %v3222, %v3414
        %3416 = vmatprep.mubr.bf16.mxu0 %v1900
        %3417 = vmatmul.mubr.bf16.gmra.mrb[0].mxu0 %v1899
        %v3418 = vpop.f32.mrb[0].mxu0
        %v3419 = vadd.f32 %v3226, %v3418
        %v3420 = vpop.f32.mrb[0].mxu0
        %v3421 = vadd.f32 %v3228, %v3420
        %v3422 = vpop.f32.mrb[0].mxu0
        %v3423 = vadd.f32 %v3230, %v3422
        %v3424 = vpop.f32.mrb[0].mxu0
        %v3425 = vadd.f32 %v3232, %v3424
        %3426 = vmatprep.mubr.bf16.mxu0 %v1904
        %3427 = vmatmul.mubr.bf16.gmra.mrb[0].mxu0 %v1903
        %v3428 = vpop.f32.mrb[0].mxu0
        %v3429 = vadd.f32 %v3236, %v3428
        %v3430 = vpop.f32.mrb[0].mxu0
        %v3431 = vadd.f32 %v3238, %v3430
        %v3432 = vpop.f32.mrb[0].mxu0
        %v3433 = vadd.f32 %v3240, %v3432
        %v3434 = vpop.f32.mrb[0].mxu0
        %v3435 = vadd.f32 %v3242, %v3434
        %3436 = vmatprep.mubr.bf16.mxu0 %v1908
        %3437 = vmatmul.mubr.bf16.gmra.mrb[0].mxu0 %v1907
        %v3438 = vpop.f32.mrb[0].mxu0
        %v3439 = vadd.f32 %v3246, %v3438
        %v3440 = vpop.f32.mrb[0].mxu0
        %v3441 = vadd.f32 %v3248, %v3440
        %v3442 = vpop.f32.mrb[0].mxu0
        %v3443 = vadd.f32 %v3250, %v3442
        %v3444 = vpop.f32.mrb[0].mxu0
        %v3445 = vadd.f32 %v3252, %v3444
        %3446 = vmatprep.mubr.bf16.mxu0 %v1912
        %3447 = vmatmul.mubr.bf16.gmra.mrb[0].mxu0 %v1911
        %v3448 = vpop.f32.mrb[0].mxu0
        %v3449 = vadd.f32 %v3256, %v3448
        %v3450 = vpop.f32.mrb[0].mxu0
        %v3451 = vadd.f32 %v3258, %v3450
        %v3452 = vpop.f32.mrb[0].mxu0
        %v3453 = vadd.f32 %v3260, %v3452
        %v3454 = vpop.f32.mrb[0].mxu0
        %v3455 = vadd.f32 %v3262, %v3454
        %3456 = vmatprep.mubr.bf16.mxu0 %v1916
        %3457 = vmatmul.mubr.bf16.gmra.mrb[0].mxu0 %v1915
        %v3458 = vpop.f32.mrb[0].mxu0
        %v3459 = vadd.f32 %v3266, %v3458
        %v3460 = vpop.f32.mrb[0].mxu0
        %v3461 = vadd.f32 %v3268, %v3460
        %v3462 = vpop.f32.mrb[0].mxu0
        %v3463 = vadd.f32 %v3270, %v3462
        %v3464 = vpop.f32.mrb[0].mxu0
        %v3465 = vadd.f32 %v3272, %v3464
        %3466 = vmatprep.mubr.bf16.mxu0 %v1920
        %3467 = vmatmul.mubr.bf16.gmra.mrb[0].mxu0 %v1919
        %v3468 = vpop.f32.mrb[0].mxu0
        %v3469 = vadd.f32 %v3276, %v3468
        %v3470 = vpop.f32.mrb[0].mxu0
        %v3471 = vadd.f32 %v3278, %v3470
        %v3472 = vpop.f32.mrb[0].mxu0
        %v3473 = vadd.f32 %v3280, %v3472
        %v3474 = vpop.f32.mrb[0].mxu0
        %v3475 = vadd.f32 %v3282, %v3474
        %3476 = vmatprep.mubr.bf16.mxu0 %v1924
        %3477 = vmatmul.mubr.bf16.gmra.mrb[0].mxu0 %v1923
        %v3478 = vpop.f32.mrb[0].mxu0
        %v3479 = vadd.f32 %v3286, %v3478
        %v3480 = vpop.f32.mrb[0].mxu0
        %v3481 = vadd.f32 %v3288, %v3480
        %v3482 = vpop.f32.mrb[0].mxu0
        %v3483 = vadd.f32 %v3290, %v3482
        %v3484 = vpop.f32.mrb[0].mxu0
        %v3485 = vadd.f32 %v3292, %v3484
        %3486 = vdwg.mxu0
        %v3487 = vmax.f32 %v2943, 0.0
        %v3488 = vmax.f32 %v2945, 0.0
        %v3489 = vmax.f32 %v3329, 0.0
        %v3490 = vmax.f32 %v3331, 0.0
        %v3491 = vmax.f32 %v2947, 0.0
        %v3492 = vmax.f32 %v2949, 0.0
        %v3493 = vmax.f32 %v3333, 0.0
        %v3494 = vmax.f32 %v3335, 0.0
        %v3495 = vmax.f32 %v2953, 0.0
        %v3496 = vmax.f32 %v2955, 0.0
        %v3497 = vmax.f32 %v3339, 0.0
        %v3498 = vmax.f32 %v3341, 0.0
        %v3499 = vmax.f32 %v2957, 0.0
        %v3500 = vmax.f32 %v2959, 0.0
        %v3501 = vmax.f32 %v3343, 0.0
        %v3502 = vmax.f32 %v3345, 0.0
        %v3503 = vmax.f32 %v2963, 0.0
        %v3504 = vmax.f32 %v2965, 0.0
        %v3505 = vmax.f32 %v3349, 0.0
        %v3506 = vmax.f32 %v3351, 0.0
        %v3507 = vmax.f32 %v2967, 0.0
        %v3508 = vmax.f32 %v2969, 0.0
        %v3509 = vmax.f32 %v3353, 0.0
        %v3510 = vmax.f32 %v3355, 0.0
        %v3511 = vmax.f32 %v2973, 0.0
        %v3512 = vmax.f32 %v2975, 0.0
        %v3513 = vmax.f32 %v3359, 0.0
        %v3514 = vmax.f32 %v3361, 0.0
        %v3515 = vmax.f32 %v2977, 0.0
        %v3516 = vmax.f32 %v2979, 0.0
        %v3517 = vmax.f32 %v3363, 0.0
        %v3518 = vmax.f32 %v3365, 0.0
        %v3519 = vmax.f32 %v2983, 0.0
        %v3520 = vmax.f32 %v2985, 0.0
        %v3521 = vmax.f32 %v3369, 0.0
        %v3522 = vmax.f32 %v3371, 0.0
        %v3523 = vmax.f32 %v2987, 0.0
        %v3524 = vmax.f32 %v2989, 0.0
        %v3525 = vmax.f32 %v3373, 0.0
        %v3526 = vmax.f32 %v3375, 0.0
        %v3527 = vmax.f32 %v2993, 0.0
        %v3528 = vmax.f32 %v2995, 0.0
        %v3529 = vmax.f32 %v3379, 0.0
        %v3530 = vmax.f32 %v3381, 0.0
        %v3531 = vmax.f32 %v2997, 0.0
        %v3532 = vmax.f32 %v2999, 0.0
        %v3533 = vmax.f32 %v3383, 0.0
        %v3534 = vmax.f32 %v3385, 0.0
        %v3535 = vmax.f32 %v3003, 0.0
        %v3536 = vmax.f32 %v3005, 0.0
        %v3537 = vmax.f32 %v3389, 0.0
        %v3538 = vmax.f32 %v3391, 0.0
        %v3539 = vmax.f32 %v3007, 0.0
        %v3540 = vmax.f32 %v3009, 0.0
        %v3541 = vmax.f32 %v3393, 0.0
        %v3542 = vmax.f32 %v3395, 0.0
        %v3543 = vmax.f32 %v3013, 0.0
        %v3544 = vmax.f32 %v3015, 0.0
        %v3545 = vmax.f32 %v3399, 0.0
        %v3546 = vmax.f32 %v3401, 0.0
        %v3547 = vmax.f32 %v3017, 0.0
        %v3548 = vmax.f32 %v3019, 0.0
        %v3549 = vmax.f32 %v3403, 0.0
        %v3550 = vmax.f32 %v3405, 0.0
        %v3551 = vmax.f32 %v3023, 0.0
        %v3552 = vmax.f32 %v3025, 0.0
        %v3553 = vmax.f32 %v3409, 0.0
        %v3554 = vmax.f32 %v3411, 0.0
        %v3555 = vmax.f32 %v3027, 0.0
        %v3556 = vmax.f32 %v3029, 0.0
        %v3557 = vmax.f32 %v3413, 0.0
        %v3558 = vmax.f32 %v3415, 0.0
        %v3559 = vmax.f32 %v3033, 0.0
        %v3560 = vmax.f32 %v3035, 0.0
        %v3561 = vmax.f32 %v3419, 0.0
        %v3562 = vmax.f32 %v3421, 0.0
        %v3563 = vmax.f32 %v3037, 0.0
        %v3564 = vmax.f32 %v3039, 0.0
        %v3565 = vmax.f32 %v3423, 0.0
        %v3566 = vmax.f32 %v3425, 0.0
        %v3567 = vmax.f32 %v3043, 0.0
        %v3568 = vmax.f32 %v3045, 0.0
        %v3569 = vmax.f32 %v3429, 0.0
        %v3570 = vmax.f32 %v3431, 0.0
        %v3571 = vmax.f32 %v3047, 0.0
        %v3572 = vmax.f32 %v3049, 0.0
        %v3573 = vmax.f32 %v3433, 0.0
        %v3574 = vmax.f32 %v3435, 0.0
        %v3575 = vmax.f32 %v3053, 0.0
        %v3576 = vmax.f32 %v3055, 0.0
        %v3577 = vmax.f32 %v3439, 0.0
        %v3578 = vmax.f32 %v3441, 0.0
        %v3579 = vmax.f32 %v3057, 0.0
        %v3580 = vmax.f32 %v3059, 0.0
        %v3581 = vmax.f32 %v3443, 0.0
        %v3582 = vmax.f32 %v3445, 0.0
        %v3583 = vmax.f32 %v3063, 0.0
        %v3584 = vmax.f32 %v3065, 0.0
        %v3585 = vmax.f32 %v3449, 0.0
        %v3586 = vmax.f32 %v3451, 0.0
        %v3587 = vmax.f32 %v3067, 0.0
        %v3588 = vmax.f32 %v3069, 0.0
        %v3589 = vmax.f32 %v3453, 0.0
        %v3590 = vmax.f32 %v3455, 0.0
        %v3591 = vmax.f32 %v3073, 0.0
        %v3592 = vmax.f32 %v3075, 0.0
        %v3593 = vmax.f32 %v3459, 0.0
        %v3594 = vmax.f32 %v3461, 0.0
        %v3595 = vmax.f32 %v3077, 0.0
        %v3596 = vmax.f32 %v3079, 0.0
        %v3597 = vmax.f32 %v3463, 0.0
        %v3598 = vmax.f32 %v3465, 0.0
        %v3599 = vmax.f32 %v3083, 0.0
        %v3600 = vmax.f32 %v3085, 0.0
        %v3601 = vmax.f32 %v3469, 0.0
        %v3602 = vmax.f32 %v3471, 0.0
        %v3603 = vmax.f32 %v3087, 0.0
        %v3604 = vmax.f32 %v3089, 0.0
        %v3605 = vmax.f32 %v3473, 0.0
        %v3606 = vmax.f32 %v3475, 0.0
        %v3607 = vmax.f32 %v3093, 0.0
        %v3608 = vmax.f32 %v3095, 0.0
        %v3609 = vmax.f32 %v3479, 0.0
        %v3610 = vmax.f32 %v3481, 0.0
        %v3611 = vmax.f32 %v3097, 0.0
        %v3612 = vmax.f32 %v3099, 0.0
        %v3613 = vmax.f32 %v3483, 0.0
        %v3614 = vmax.f32 %v3485, 0.0
        %v3615 = vpack.c.bf16 %v3491, %v3487
        %v3616 = vpack.c.bf16 %v3492, %v3488
        %v3617 = vpack.c.bf16 %v3493, %v3489
        %v3618 = vpack.c.bf16 %v3494, %v3490
        %v3619 = vpack.c.bf16 %v3499, %v3495
        %v3620 = vpack.c.bf16 %v3500, %v3496
        %v3621 = vpack.c.bf16 %v3501, %v3497
        %v3622 = vpack.c.bf16 %v3502, %v3498
        %v3623 = vpack.c.bf16 %v3507, %v3503
        %v3624 = vpack.c.bf16 %v3508, %v3504
        %v3625 = vpack.c.bf16 %v3509, %v3505
        %v3626 = vpack.c.bf16 %v3510, %v3506
        %v3627 = vpack.c.bf16 %v3515, %v3511
        %v3628 = vpack.c.bf16 %v3516, %v3512
        %v3629 = vpack.c.bf16 %v3517, %v3513
        %v3630 = vpack.c.bf16 %v3518, %v3514
        %v3631 = vpack.c.bf16 %v3523, %v3519
        %v3632 = vpack.c.bf16 %v3524, %v3520
        %v3633 = vpack.c.bf16 %v3525, %v3521
        %v3634 = vpack.c.bf16 %v3526, %v3522
        %v3635 = vpack.c.bf16 %v3531, %v3527
        %v3636 = vpack.c.bf16 %v3532, %v3528
        %v3637 = vpack.c.bf16 %v3533, %v3529
        %v3638 = vpack.c.bf16 %v3534, %v3530
        %v3639 = vpack.c.bf16 %v3539, %v3535
        %v3640 = vpack.c.bf16 %v3540, %v3536
        %v3641 = vpack.c.bf16 %v3541, %v3537
        %v3642 = vpack.c.bf16 %v3542, %v3538
        %v3643 = vpack.c.bf16 %v3547, %v3543
        %v3644 = vpack.c.bf16 %v3548, %v3544
        %v3645 = vpack.c.bf16 %v3549, %v3545
        %v3646 = vpack.c.bf16 %v3550, %v3546
        %v3647 = vpack.c.bf16 %v3555, %v3551
        %v3648 = vpack.c.bf16 %v3556, %v3552
        %v3649 = vpack.c.bf16 %v3557, %v3553
        %v3650 = vpack.c.bf16 %v3558, %v3554
        %v3651 = vpack.c.bf16 %v3563, %v3559
        %v3652 = vpack.c.bf16 %v3564, %v3560
        %v3653 = vpack.c.bf16 %v3565, %v3561
        %v3654 = vpack.c.bf16 %v3566, %v3562
        %v3655 = vpack.c.bf16 %v3571, %v3567
        %v3656 = vpack.c.bf16 %v3572, %v3568
        %v3657 = vpack.c.bf16 %v3573, %v3569
        %v3658 = vpack.c.bf16 %v3574, %v3570
        %v3659 = vpack.c.bf16 %v3579, %v3575
        %v3660 = vpack.c.bf16 %v3580, %v3576
        %v3661 = vpack.c.bf16 %v3581, %v3577
        %v3662 = vpack.c.bf16 %v3582, %v3578
        %v3663 = vpack.c.bf16 %v3587, %v3583
        %v3664 = vpack.c.bf16 %v3588, %v3584
        %v3665 = vpack.c.bf16 %v3589, %v3585
        %v3666 = vpack.c.bf16 %v3590, %v3586
        %v3667 = vpack.c.bf16 %v3595, %v3591
        %v3668 = vpack.c.bf16 %v3596, %v3592
        %v3669 = vpack.c.bf16 %v3597, %v3593
        %v3670 = vpack.c.bf16 %v3598, %v3594
        %v3671 = vpack.c.bf16 %v3603, %v3599
        %v3672 = vpack.c.bf16 %v3604, %v3600
        %v3673 = vpack.c.bf16 %v3605, %v3601
        %v3674 = vpack.c.bf16 %v3606, %v3602
        %v3675 = vpack.c.bf16 %v3611, %v3607
        %v3676 = vpack.c.bf16 %v3612, %v3608
        %v3677 = vpack.c.bf16 %v3613, %v3609
        %v3678 = vpack.c.bf16 %v3614, %v3610
        %v3679 = vld [vmem:[#allocation13] sm:$0xff]
        %v3680 = vld [vmem:[#allocation13 + $0x8] sm:$0xff]
        %v3681 = vld [vmem:[#allocation13 + $0x10] sm:$0xff]
        %v3682 = vld [vmem:[#allocation13 + $0x18] sm:$0xff]
        %v3683 = vld [vmem:[#allocation13 + $0x20] sm:$0xff]
        %v3684 = vld [vmem:[#allocation13 + $0x28] sm:$0xff]
        %v3685 = vld [vmem:[#allocation13 + $0x30] sm:$0xff]
        %v3686 = vld [vmem:[#allocation13 + $0x38] sm:$0xff]
        %v3687 = vld [vmem:[#allocation13 + $0x40] sm:$0xff]
        %v3688 = vld [vmem:[#allocation13 + $0x48] sm:$0xff]
        %v3689 = vld [vmem:[#allocation13 + $0x50] sm:$0xff]
        %v3690 = vld [vmem:[#allocation13 + $0x58] sm:$0xff]
        %v3691 = vld [vmem:[#allocation13 + $0x60] sm:$0xff]
        %v3692 = vld [vmem:[#allocation13 + $0x68] sm:$0xff]
        %v3693 = vld [vmem:[#allocation13 + $0x70] sm:$0xff]
        %v3694 = vld [vmem:[#allocation13 + $0x78] sm:$0xff]
        %v3695 = vld [vmem:[#allocation13 + $0x80] sm:$0xff]
        %v3696 = vld [vmem:[#allocation13 + $0x88] sm:$0xff]
        %v3697 = vld [vmem:[#allocation13 + $0x90] sm:$0xff]
        %v3698 = vld [vmem:[#allocation13 + $0x98] sm:$0xff]
        %v3699 = vld [vmem:[#allocation13 + $0xa0] sm:$0xff]
        %v3700 = vld [vmem:[#allocation13 + $0xa8] sm:$0xff]
        %v3701 = vld [vmem:[#allocation13 + $0xb0] sm:$0xff]
        %v3702 = vld [vmem:[#allocation13 + $0xb8] sm:$0xff]
        %v3703 = vld [vmem:[#allocation13 + $0xc0] sm:$0xff]
        %v3704 = vld [vmem:[#allocation13 + $0xc8] sm:$0xff]
        %v3705 = vld [vmem:[#allocation13 + $0xd0] sm:$0xff]
        %v3706 = vld [vmem:[#allocation13 + $0xd8] sm:$0xff]
        %v3707 = vld [vmem:[#allocation13 + $0xe0] sm:$0xff]
        %v3708 = vld [vmem:[#allocation13 + $0xe8] sm:$0xff]
        %v3709 = vld [vmem:[#allocation13 + $0xf0] sm:$0xff]
        %v3710 = vld [vmem:[#allocation13 + $0xf8] sm:$0xff]
        %v3711 = vld [vmem:[#allocation13 + $0x100] sm:$0xff]
        %v3712 = vld [vmem:[#allocation13 + $0x108] sm:$0xff]
        %v3713 = vld [vmem:[#allocation13 + $0x110] sm:$0xff]
        %v3714 = vld [vmem:[#allocation13 + $0x118] sm:$0xff]
        %v3715 = vld [vmem:[#allocation13 + $0x120] sm:$0xff]
        %v3716 = vld [vmem:[#allocation13 + $0x128] sm:$0xff]
        %v3717 = vld [vmem:[#allocation13 + $0x130] sm:$0xff]
        %v3718 = vld [vmem:[#allocation13 + $0x138] sm:$0xff]
        %v3719 = vld [vmem:[#allocation13 + $0x140] sm:$0xff]
        %v3720 = vld [vmem:[#allocation13 + $0x148] sm:$0xff]
        %v3721 = vld [vmem:[#allocation13 + $0x150] sm:$0xff]
        %v3722 = vld [vmem:[#allocation13 + $0x158] sm:$0xff]
        %v3723 = vld [vmem:[#allocation13 + $0x160] sm:$0xff]
        %v3724 = vld [vmem:[#allocation13 + $0x168] sm:$0xff]
        %v3725 = vld [vmem:[#allocation13 + $0x170] sm:$0xff]
        %v3726 = vld [vmem:[#allocation13 + $0x178] sm:$0xff]
        %v3727 = vld [vmem:[#allocation13 + $0x180] sm:$0xff]
        %v3728 = vld [vmem:[#allocation13 + $0x188] sm:$0xff]
        %v3729 = vld [vmem:[#allocation13 + $0x190] sm:$0xff]
        %v3730 = vld [vmem:[#allocation13 + $0x198] sm:$0xff]
        %v3731 = vld [vmem:[#allocation13 + $0x1a0] sm:$0xff]
        %v3732 = vld [vmem:[#allocation13 + $0x1a8] sm:$0xff]
        %v3733 = vld [vmem:[#allocation13 + $0x1b0] sm:$0xff]
        %v3734 = vld [vmem:[#allocation13 + $0x1b8] sm:$0xff]
        %v3735 = vld [vmem:[#allocation13 + $0x1c0] sm:$0xff]
        %v3736 = vld [vmem:[#allocation13 + $0x1c8] sm:$0xff]
        %v3737 = vld [vmem:[#allocation13 + $0x1d0] sm:$0xff]
        %v3738 = vld [vmem:[#allocation13 + $0x1d8] sm:$0xff]
        %v3739 = vld [vmem:[#allocation13 + $0x1e0] sm:$0xff]
        %v3740 = vld [vmem:[#allocation13 + $0x1e8] sm:$0xff]
        %v3741 = vld [vmem:[#allocation13 + $0x1f0] sm:$0xff]
        %v3742 = vld [vmem:[#allocation13 + $0x1f8] sm:$0xff]
        %v3743 = vld [vmem:[#allocation13 + $0x200] sm:$0xff]
        %v3744 = vld [vmem:[#allocation13 + $0x208] sm:$0xff]
        %v3745 = vld [vmem:[#allocation13 + $0x210] sm:$0xff]
        %v3746 = vld [vmem:[#allocation13 + $0x218] sm:$0xff]
        %v3747 = vld [vmem:[#allocation13 + $0x220] sm:$0xff]
        %v3748 = vld [vmem:[#allocation13 + $0x228] sm:$0xff]
        %v3749 = vld [vmem:[#allocation13 + $0x230] sm:$0xff]
        %v3750 = vld [vmem:[#allocation13 + $0x238] sm:$0xff]
        %v3751 = vld [vmem:[#allocation13 + $0x240] sm:$0xff]
        %v3752 = vld [vmem:[#allocation13 + $0x248] sm:$0xff]
        %v3753 = vld [vmem:[#allocation13 + $0x250] sm:$0xff]
        %v3754 = vld [vmem:[#allocation13 + $0x258] sm:$0xff]
        %v3755 = vld [vmem:[#allocation13 + $0x260] sm:$0xff]
        %v3756 = vld [vmem:[#allocation13 + $0x268] sm:$0xff]
        %v3757 = vld [vmem:[#allocation13 + $0x270] sm:$0xff]
        %v3758 = vld [vmem:[#allocation13 + $0x278] sm:$0xff]
        %v3759 = vld [vmem:[#allocation13 + $0x280] sm:$0xff]
        %v3760 = vld [vmem:[#allocation13 + $0x288] sm:$0xff]
        %v3761 = vld [vmem:[#allocation13 + $0x290] sm:$0xff]
        %v3762 = vld [vmem:[#allocation13 + $0x298] sm:$0xff]
        %v3763 = vld [vmem:[#allocation13 + $0x2a0] sm:$0xff]
        %v3764 = vld [vmem:[#allocation13 + $0x2a8] sm:$0xff]
        %v3765 = vld [vmem:[#allocation13 + $0x2b0] sm:$0xff]
        %v3766 = vld [vmem:[#allocation13 + $0x2b8] sm:$0xff]
        %v3767 = vld [vmem:[#allocation13 + $0x2c0] sm:$0xff]
        %v3768 = vld [vmem:[#allocation13 + $0x2c8] sm:$0xff]
        %v3769 = vld [vmem:[#allocation13 + $0x2d0] sm:$0xff]
        %v3770 = vld [vmem:[#allocation13 + $0x2d8] sm:$0xff]
        %v3771 = vld [vmem:[#allocation13 + $0x2e0] sm:$0xff]
        %v3772 = vld [vmem:[#allocation13 + $0x2e8] sm:$0xff]
        %v3773 = vld [vmem:[#allocation13 + $0x2f0] sm:$0xff]
        %v3774 = vld [vmem:[#allocation13 + $0x2f8] sm:$0xff]
        %v3775 = vld [vmem:[#allocation13 + $0x300] sm:$0xff]
        %v3776 = vld [vmem:[#allocation13 + $0x308] sm:$0xff]
        %v3777 = vld [vmem:[#allocation13 + $0x310] sm:$0xff]
        %v3778 = vld [vmem:[#allocation13 + $0x318] sm:$0xff]
        %v3779 = vld [vmem:[#allocation13 + $0x320] sm:$0xff]
        %v3780 = vld [vmem:[#allocation13 + $0x328] sm:$0xff]
        %v3781 = vld [vmem:[#allocation13 + $0x330] sm:$0xff]
        %v3782 = vld [vmem:[#allocation13 + $0x338] sm:$0xff]
        %v3783 = vld [vmem:[#allocation13 + $0x340] sm:$0xff]
        %v3784 = vld [vmem:[#allocation13 + $0x348] sm:$0xff]
        %v3785 = vld [vmem:[#allocation13 + $0x350] sm:$0xff]
        %v3786 = vld [vmem:[#allocation13 + $0x358] sm:$0xff]
        %v3787 = vld [vmem:[#allocation13 + $0x360] sm:$0xff]
        %v3788 = vld [vmem:[#allocation13 + $0x368] sm:$0xff]
        %v3789 = vld [vmem:[#allocation13 + $0x370] sm:$0xff]
        %v3790 = vld [vmem:[#allocation13 + $0x378] sm:$0xff]
        %v3791 = vld [vmem:[#allocation13 + $0x380] sm:$0xff]
        %v3792 = vld [vmem:[#allocation13 + $0x388] sm:$0xff]
        %v3793 = vld [vmem:[#allocation13 + $0x390] sm:$0xff]
        %v3794 = vld [vmem:[#allocation13 + $0x398] sm:$0xff]
        %v3795 = vld [vmem:[#allocation13 + $0x3a0] sm:$0xff]
        %v3796 = vld [vmem:[#allocation13 + $0x3a8] sm:$0xff]
        %v3797 = vld [vmem:[#allocation13 + $0x3b0] sm:$0xff]
        %v3798 = vld [vmem:[#allocation13 + $0x3b8] sm:$0xff]
        %v3799 = vld [vmem:[#allocation13 + $0x3c0] sm:$0xff]
        %v3800 = vld [vmem:[#allocation13 + $0x3c8] sm:$0xff]
        %v3801 = vld [vmem:[#allocation13 + $0x3d0] sm:$0xff]
        %v3802 = vld [vmem:[#allocation13 + $0x3d8] sm:$0xff]
        %v3803 = vld [vmem:[#allocation13 + $0x3e0] sm:$0xff]
        %v3804 = vld [vmem:[#allocation13 + $0x3e8] sm:$0xff]
        %v3805 = vld [vmem:[#allocation13 + $0x3f0] sm:$0xff]
        %v3806 = vld [vmem:[#allocation13 + $0x3f8] sm:$0xff]
        %v3807 = vld [vmem:[#allocation14] sm:$0xf]
        %v3809 = vlaneseq
        %v3810 = vshrl.u32 %v3809, 7
        %v3811 = vsub.s32 0, %v3810
        %v3812 = vrot.slane %v3807, %v3811
        %v3813 = vlaneseq
        %v3814 = vshrl.u32 %v3813, 7
        %v3815 = vsub.s32 1, %v3814
        %v3816 = vrot.slane %v3807, %v3815
        %v3817 = vlaneseq
        %v3818 = vshrl.u32 %v3817, 7
        %v3819 = vsub.s32 2, %v3818
        %v3820 = vrot.slane %v3807, %v3819
        %v3821 = vlaneseq
        %v3822 = vshrl.u32 %v3821, 7
        %v3823 = vsub.s32 3, %v3822
        %v3824 = vrot.slane %v3807, %v3823
        %v3957 = vunpack.c.l.b16 %v3679
        %v3958 = vunpack.c.h.b16 %v3679
        %v3959 = vunpack.c.l.b16 %v3680
        %v3960 = vunpack.c.h.b16 %v3680
        %v3961 = vunpack.c.l.b16 %v3681
        %v3962 = vunpack.c.h.b16 %v3681
        %v3963 = vunpack.c.l.b16 %v3682
        %v3964 = vunpack.c.h.b16 %v3682
        %v3965 = vunpack.c.l.b16 %v3683
        %v3966 = vunpack.c.h.b16 %v3683
        %v3967 = vunpack.c.l.b16 %v3684
        %v3968 = vunpack.c.h.b16 %v3684
        %v3969 = vunpack.c.l.b16 %v3685
        %v3970 = vunpack.c.h.b16 %v3685
        %v3971 = vunpack.c.l.b16 %v3686
        %v3972 = vunpack.c.h.b16 %v3686
        %v3973 = vunpack.c.l.b16 %v3687
        %v3974 = vunpack.c.h.b16 %v3687
        %v3975 = vunpack.c.l.b16 %v3688
        %v3976 = vunpack.c.h.b16 %v3688
        %v3977 = vunpack.c.l.b16 %v3689
        %v3978 = vunpack.c.h.b16 %v3689
        %v3979 = vunpack.c.l.b16 %v3690
        %v3980 = vunpack.c.h.b16 %v3690
        %v3981 = vunpack.c.l.b16 %v3691
        %v3982 = vunpack.c.h.b16 %v3691
        %v3983 = vunpack.c.l.b16 %v3692
        %v3984 = vunpack.c.h.b16 %v3692
        %v3985 = vunpack.c.l.b16 %v3693
        %v3986 = vunpack.c.h.b16 %v3693
        %v3987 = vunpack.c.l.b16 %v3694
        %v3988 = vunpack.c.h.b16 %v3694
        %v3989 = vunpack.c.l.b16 %v3695
        %v3990 = vunpack.c.h.b16 %v3695
        %v3991 = vunpack.c.l.b16 %v3696
        %v3992 = vunpack.c.h.b16 %v3696
        %v3993 = vunpack.c.l.b16 %v3697
        %v3994 = vunpack.c.h.b16 %v3697
        %v3995 = vunpack.c.l.b16 %v3698
        %v3996 = vunpack.c.h.b16 %v3698
        %v3997 = vunpack.c.l.b16 %v3699
        %v3998 = vunpack.c.h.b16 %v3699
        %v3999 = vunpack.c.l.b16 %v3700
        %v4000 = vunpack.c.h.b16 %v3700
        %v4001 = vunpack.c.l.b16 %v3701
        %v4002 = vunpack.c.h.b16 %v3701
        %v4003 = vunpack.c.l.b16 %v3702
        %v4004 = vunpack.c.h.b16 %v3702
        %v4005 = vunpack.c.l.b16 %v3703
        %v4006 = vunpack.c.h.b16 %v3703
        %v4007 = vunpack.c.l.b16 %v3704
        %v4008 = vunpack.c.h.b16 %v3704
        %v4009 = vunpack.c.l.b16 %v3705
        %v4010 = vunpack.c.h.b16 %v3705
        %v4011 = vunpack.c.l.b16 %v3706
        %v4012 = vunpack.c.h.b16 %v3706
        %v4013 = vunpack.c.l.b16 %v3707
        %v4014 = vunpack.c.h.b16 %v3707
        %v4015 = vunpack.c.l.b16 %v3708
        %v4016 = vunpack.c.h.b16 %v3708
        %v4017 = vunpack.c.l.b16 %v3709
        %v4018 = vunpack.c.h.b16 %v3709
        %v4019 = vunpack.c.l.b16 %v3710
        %v4020 = vunpack.c.h.b16 %v3710
        %v4021 = vunpack.c.l.b16 %v3711
        %v4022 = vunpack.c.h.b16 %v3711
        %v4023 = vunpack.c.l.b16 %v3712
        %v4024 = vunpack.c.h.b16 %v3712
        %v4025 = vunpack.c.l.b16 %v3713
        %v4026 = vunpack.c.h.b16 %v3713
        %v4027 = vunpack.c.l.b16 %v3714
        %v4028 = vunpack.c.h.b16 %v3714
        %v4029 = vunpack.c.l.b16 %v3715
        %v4030 = vunpack.c.h.b16 %v3715
        %v4031 = vunpack.c.l.b16 %v3716
        %v4032 = vunpack.c.h.b16 %v3716
        %v4033 = vunpack.c.l.b16 %v3717
        %v4034 = vunpack.c.h.b16 %v3717
        %v4035 = vunpack.c.l.b16 %v3718
        %v4036 = vunpack.c.h.b16 %v3718
        %v4037 = vunpack.c.l.b16 %v3719
        %v4038 = vunpack.c.h.b16 %v3719
        %v4039 = vunpack.c.l.b16 %v3720
        %v4040 = vunpack.c.h.b16 %v3720
        %v4041 = vunpack.c.l.b16 %v3721
        %v4042 = vunpack.c.h.b16 %v3721
        %v4043 = vunpack.c.l.b16 %v3722
        %v4044 = vunpack.c.h.b16 %v3722
        %v4045 = vunpack.c.l.b16 %v3723
        %v4046 = vunpack.c.h.b16 %v3723
        %v4047 = vunpack.c.l.b16 %v3724
        %v4048 = vunpack.c.h.b16 %v3724
        %v4049 = vunpack.c.l.b16 %v3725
        %v4050 = vunpack.c.h.b16 %v3725
        %v4051 = vunpack.c.l.b16 %v3726
        %v4052 = vunpack.c.h.b16 %v3726
        %v4053 = vunpack.c.l.b16 %v3727
        %v4054 = vunpack.c.h.b16 %v3727
        %v4055 = vunpack.c.l.b16 %v3728
        %v4056 = vunpack.c.h.b16 %v3728
        %v4057 = vunpack.c.l.b16 %v3729
        %v4058 = vunpack.c.h.b16 %v3729
        %v4059 = vunpack.c.l.b16 %v3730
        %v4060 = vunpack.c.h.b16 %v3730
        %v4061 = vunpack.c.l.b16 %v3731
        %v4062 = vunpack.c.h.b16 %v3731
        %v4063 = vunpack.c.l.b16 %v3732
        %v4064 = vunpack.c.h.b16 %v3732
        %v4065 = vunpack.c.l.b16 %v3733
        %v4066 = vunpack.c.h.b16 %v3733
        %v4067 = vunpack.c.l.b16 %v3734
        %v4068 = vunpack.c.h.b16 %v3734
        %v4069 = vunpack.c.l.b16 %v3735
        %v4070 = vunpack.c.h.b16 %v3735
        %v4071 = vunpack.c.l.b16 %v3736
        %v4072 = vunpack.c.h.b16 %v3736
        %v4073 = vunpack.c.l.b16 %v3737
        %v4074 = vunpack.c.h.b16 %v3737
        %v4075 = vunpack.c.l.b16 %v3738
        %v4076 = vunpack.c.h.b16 %v3738
        %v4077 = vunpack.c.l.b16 %v3739
        %v4078 = vunpack.c.h.b16 %v3739
        %v4079 = vunpack.c.l.b16 %v3740
        %v4080 = vunpack.c.h.b16 %v3740
        %v4081 = vunpack.c.l.b16 %v3741
        %v4082 = vunpack.c.h.b16 %v3741
        %v4083 = vunpack.c.l.b16 %v3742
        %v4084 = vunpack.c.h.b16 %v3742
        %v4085 = vunpack.c.l.b16 %v3743
        %v4086 = vunpack.c.h.b16 %v3743
        %v4087 = vunpack.c.l.b16 %v3744
        %v4088 = vunpack.c.h.b16 %v3744
        %v4089 = vunpack.c.l.b16 %v3745
        %v4090 = vunpack.c.h.b16 %v3745
        %v4091 = vunpack.c.l.b16 %v3746
        %v4092 = vunpack.c.h.b16 %v3746
        %v4093 = vunpack.c.l.b16 %v3747
        %v4094 = vunpack.c.h.b16 %v3747
        %v4095 = vunpack.c.l.b16 %v3748
        %v4096 = vunpack.c.h.b16 %v3748
        %v4097 = vunpack.c.l.b16 %v3749
        %v4098 = vunpack.c.h.b16 %v3749
        %v4099 = vunpack.c.l.b16 %v3750
        %v4100 = vunpack.c.h.b16 %v3750
        %v4101 = vunpack.c.l.b16 %v3751
        %v4102 = vunpack.c.h.b16 %v3751
        %v4103 = vunpack.c.l.b16 %v3752
        %v4104 = vunpack.c.h.b16 %v3752
        %v4105 = vunpack.c.l.b16 %v3753
        %v4106 = vunpack.c.h.b16 %v3753
        %v4107 = vunpack.c.l.b16 %v3754
        %v4108 = vunpack.c.h.b16 %v3754
        %v4109 = vunpack.c.l.b16 %v3755
        %v4110 = vunpack.c.h.b16 %v3755
        %v4111 = vunpack.c.l.b16 %v3756
        %v4112 = vunpack.c.h.b16 %v3756
        %v4113 = vunpack.c.l.b16 %v3757
        %v4114 = vunpack.c.h.b16 %v3757
        %v4115 = vunpack.c.l.b16 %v3758
        %v4116 = vunpack.c.h.b16 %v3758
        %v4117 = vunpack.c.l.b16 %v3759
        %v4118 = vunpack.c.h.b16 %v3759
        %v4119 = vunpack.c.l.b16 %v3760
        %v4120 = vunpack.c.h.b16 %v3760
        %v4121 = vunpack.c.l.b16 %v3761
        %v4122 = vunpack.c.h.b16 %v3761
        %v4123 = vunpack.c.l.b16 %v3762
        %v4124 = vunpack.c.h.b16 %v3762
        %v4125 = vunpack.c.l.b16 %v3763
        %v4126 = vunpack.c.h.b16 %v3763
        %v4127 = vunpack.c.l.b16 %v3764
        %v4128 = vunpack.c.h.b16 %v3764
        %v4129 = vunpack.c.l.b16 %v3765
        %v4130 = vunpack.c.h.b16 %v3765
        %v4131 = vunpack.c.l.b16 %v3766
        %v4132 = vunpack.c.h.b16 %v3766
        %v4133 = vunpack.c.l.b16 %v3767
        %v4134 = vunpack.c.h.b16 %v3767
        %v4135 = vunpack.c.l.b16 %v3768
        %v4136 = vunpack.c.h.b16 %v3768
        %v4137 = vunpack.c.l.b16 %v3769
        %v4138 = vunpack.c.h.b16 %v3769
        %v4139 = vunpack.c.l.b16 %v3770
        %v4140 = vunpack.c.h.b16 %v3770
        %v4141 = vunpack.c.l.b16 %v3771
        %v4142 = vunpack.c.h.b16 %v3771
        %v4143 = vunpack.c.l.b16 %v3772
        %v4144 = vunpack.c.h.b16 %v3772
        %v4145 = vunpack.c.l.b16 %v3773
        %v4146 = vunpack.c.h.b16 %v3773
        %v4147 = vunpack.c.l.b16 %v3774
        %v4148 = vunpack.c.h.b16 %v3774
        %v4149 = vunpack.c.l.b16 %v3775
        %v4150 = vunpack.c.h.b16 %v3775
        %v4151 = vunpack.c.l.b16 %v3776
        %v4152 = vunpack.c.h.b16 %v3776
        %v4153 = vunpack.c.l.b16 %v3777
        %v4154 = vunpack.c.h.b16 %v3777
        %v4155 = vunpack.c.l.b16 %v3778
        %v4156 = vunpack.c.h.b16 %v3778
        %v4157 = vunpack.c.l.b16 %v3779
        %v4158 = vunpack.c.h.b16 %v3779
        %v4159 = vunpack.c.l.b16 %v3780
        %v4160 = vunpack.c.h.b16 %v3780
        %v4161 = vunpack.c.l.b16 %v3781
        %v4162 = vunpack.c.h.b16 %v3781
        %v4163 = vunpack.c.l.b16 %v3782
        %v4164 = vunpack.c.h.b16 %v3782
        %v4165 = vunpack.c.l.b16 %v3783
        %v4166 = vunpack.c.h.b16 %v3783
        %v4167 = vunpack.c.l.b16 %v3784
        %v4168 = vunpack.c.h.b16 %v3784
        %v4169 = vunpack.c.l.b16 %v3785
        %v4170 = vunpack.c.h.b16 %v3785
        %v4171 = vunpack.c.l.b16 %v3786
        %v4172 = vunpack.c.h.b16 %v3786
        %v4173 = vunpack.c.l.b16 %v3787
        %v4174 = vunpack.c.h.b16 %v3787
        %v4175 = vunpack.c.l.b16 %v3788
        %v4176 = vunpack.c.h.b16 %v3788
        %v4177 = vunpack.c.l.b16 %v3789
        %v4178 = vunpack.c.h.b16 %v3789
        %v4179 = vunpack.c.l.b16 %v3790
        %v4180 = vunpack.c.h.b16 %v3790
        %v4181 = vunpack.c.l.b16 %v3791
        %v4182 = vunpack.c.h.b16 %v3791
        %v4183 = vunpack.c.l.b16 %v3792
        %v4184 = vunpack.c.h.b16 %v3792
        %v4185 = vunpack.c.l.b16 %v3793
        %v4186 = vunpack.c.h.b16 %v3793
        %v4187 = vunpack.c.l.b16 %v3794
        %v4188 = vunpack.c.h.b16 %v3794
        %v4189 = vunpack.c.l.b16 %v3795
        %v4190 = vunpack.c.h.b16 %v3795
        %v4191 = vunpack.c.l.b16 %v3796
        %v4192 = vunpack.c.h.b16 %v3796
        %v4193 = vunpack.c.l.b16 %v3797
        %v4194 = vunpack.c.h.b16 %v3797
        %v4195 = vunpack.c.l.b16 %v3798
        %v4196 = vunpack.c.h.b16 %v3798
        %v4197 = vunpack.c.l.b16 %v3799
        %v4198 = vunpack.c.h.b16 %v3799
        %v4199 = vunpack.c.l.b16 %v3800
        %v4200 = vunpack.c.h.b16 %v3800
        %v4201 = vunpack.c.l.b16 %v3801
        %v4202 = vunpack.c.h.b16 %v3801
        %v4203 = vunpack.c.l.b16 %v3802
        %v4204 = vunpack.c.h.b16 %v3802
        %v4205 = vunpack.c.l.b16 %v3803
        %v4206 = vunpack.c.h.b16 %v3803
        %v4207 = vunpack.c.l.b16 %v3804
        %v4208 = vunpack.c.h.b16 %v3804
        %v4209 = vunpack.c.l.b16 %v3805
        %v4210 = vunpack.c.h.b16 %v3805
        %v4211 = vunpack.c.l.b16 %v3806
        %v4212 = vunpack.c.h.b16 %v3806
        %v4213 = vpack.c.b16 %v3961, %v3957
        %v4214 = vpack.c.b16 %v3962, %v3958
        %v4215 = vpack.c.b16 %v3963, %v3959
        %v4216 = vpack.c.b16 %v3964, %v3960
        %v4217 = vpack.c.b16 %v3969, %v3965
        %v4218 = vpack.c.b16 %v3970, %v3966
        %v4219 = vpack.c.b16 %v3971, %v3967
        %v4220 = vpack.c.b16 %v3972, %v3968
        %v4221 = vpack.c.b16 %v3977, %v3973
        %v4222 = vpack.c.b16 %v3978, %v3974
        %v4223 = vpack.c.b16 %v3979, %v3975
        %v4224 = vpack.c.b16 %v3980, %v3976
        %v4225 = vpack.c.b16 %v3985, %v3981
        %v4226 = vpack.c.b16 %v3986, %v3982
        %v4227 = vpack.c.b16 %v3987, %v3983
        %v4228 = vpack.c.b16 %v3988, %v3984
        %v4229 = vpack.c.b16 %v3993, %v3989
        %v4230 = vpack.c.b16 %v3994, %v3990
        %v4231 = vpack.c.b16 %v3995, %v3991
        %v4232 = vpack.c.b16 %v3996, %v3992
        %v4233 = vpack.c.b16 %v4001, %v3997
        %v4234 = vpack.c.b16 %v4002, %v3998
        %v4235 = vpack.c.b16 %v4003, %v3999
        %v4236 = vpack.c.b16 %v4004, %v4000
        %v4237 = vpack.c.b16 %v4009, %v4005
        %v4238 = vpack.c.b16 %v4010, %v4006
        %v4239 = vpack.c.b16 %v4011, %v4007
        %v4240 = vpack.c.b16 %v4012, %v4008
        %v4241 = vpack.c.b16 %v4017, %v4013
        %v4242 = vpack.c.b16 %v4018, %v4014
        %v4243 = vpack.c.b16 %v4019, %v4015
        %v4244 = vpack.c.b16 %v4020, %v4016
        %v4245 = vpack.c.b16 %v4025, %v4021
        %v4246 = vpack.c.b16 %v4026, %v4022
        %v4247 = vpack.c.b16 %v4027, %v4023
        %v4248 = vpack.c.b16 %v4028, %v4024
        %v4249 = vpack.c.b16 %v4033, %v4029
        %v4250 = vpack.c.b16 %v4034, %v4030
        %v4251 = vpack.c.b16 %v4035, %v4031
        %v4252 = vpack.c.b16 %v4036, %v4032
        %v4253 = vpack.c.b16 %v4041, %v4037
        %v4254 = vpack.c.b16 %v4042, %v4038
        %v4255 = vpack.c.b16 %v4043, %v4039
        %v4256 = vpack.c.b16 %v4044, %v4040
        %v4257 = vpack.c.b16 %v4049, %v4045
        %v4258 = vpack.c.b16 %v4050, %v4046
        %v4259 = vpack.c.b16 %v4051, %v4047
        %v4260 = vpack.c.b16 %v4052, %v4048
        %v4261 = vpack.c.b16 %v4057, %v4053
        %v4262 = vpack.c.b16 %v4058, %v4054
        %v4263 = vpack.c.b16 %v4059, %v4055
        %v4264 = vpack.c.b16 %v4060, %v4056
        %v4265 = vpack.c.b16 %v4065, %v4061
        %v4266 = vpack.c.b16 %v4066, %v4062
        %v4267 = vpack.c.b16 %v4067, %v4063
        %v4268 = vpack.c.b16 %v4068, %v4064
        %v4269 = vpack.c.b16 %v4073, %v4069
        %v4270 = vpack.c.b16 %v4074, %v4070
        %v4271 = vpack.c.b16 %v4075, %v4071
        %v4272 = vpack.c.b16 %v4076, %v4072
        %v4273 = vpack.c.b16 %v4081, %v4077
        %v4274 = vpack.c.b16 %v4082, %v4078
        %v4275 = vpack.c.b16 %v4083, %v4079
        %v4276 = vpack.c.b16 %v4084, %v4080
        %v4277 = vpack.c.b16 %v4089, %v4085
        %v4278 = vpack.c.b16 %v4090, %v4086
        %v4279 = vpack.c.b16 %v4091, %v4087
        %v4280 = vpack.c.b16 %v4092, %v4088
        %v4281 = vpack.c.b16 %v4097, %v4093
        %v4282 = vpack.c.b16 %v4098, %v4094
        %v4283 = vpack.c.b16 %v4099, %v4095
        %v4284 = vpack.c.b16 %v4100, %v4096
        %v4285 = vpack.c.b16 %v4105, %v4101
        %v4286 = vpack.c.b16 %v4106, %v4102
        %v4287 = vpack.c.b16 %v4107, %v4103
        %v4288 = vpack.c.b16 %v4108, %v4104
        %v4289 = vpack.c.b16 %v4113, %v4109
        %v4290 = vpack.c.b16 %v4114, %v4110
        %v4291 = vpack.c.b16 %v4115, %v4111
        %v4292 = vpack.c.b16 %v4116, %v4112
        %v4293 = vpack.c.b16 %v4121, %v4117
        %v4294 = vpack.c.b16 %v4122, %v4118
        %v4295 = vpack.c.b16 %v4123, %v4119
        %v4296 = vpack.c.b16 %v4124, %v4120
        %v4297 = vpack.c.b16 %v4129, %v4125
        %v4298 = vpack.c.b16 %v4130, %v4126
        %v4299 = vpack.c.b16 %v4131, %v4127
        %v4300 = vpack.c.b16 %v4132, %v4128
        %v4301 = vpack.c.b16 %v4137, %v4133
        %v4302 = vpack.c.b16 %v4138, %v4134
        %v4303 = vpack.c.b16 %v4139, %v4135
        %v4304 = vpack.c.b16 %v4140, %v4136
        %v4305 = vpack.c.b16 %v4145, %v4141
        %v4306 = vpack.c.b16 %v4146, %v4142
        %v4307 = vpack.c.b16 %v4147, %v4143
        %v4308 = vpack.c.b16 %v4148, %v4144
        %v4309 = vpack.c.b16 %v4153, %v4149
        %v4310 = vpack.c.b16 %v4154, %v4150
        %v4311 = vpack.c.b16 %v4155, %v4151
        %v4312 = vpack.c.b16 %v4156, %v4152
        %v4313 = vpack.c.b16 %v4161, %v4157
        %v4314 = vpack.c.b16 %v4162, %v4158
        %v4315 = vpack.c.b16 %v4163, %v4159
        %v4316 = vpack.c.b16 %v4164, %v4160
        %v4317 = vpack.c.b16 %v4169, %v4165
        %v4318 = vpack.c.b16 %v4170, %v4166
        %v4319 = vpack.c.b16 %v4171, %v4167
        %v4320 = vpack.c.b16 %v4172, %v4168
        %v4321 = vpack.c.b16 %v4177, %v4173
        %v4322 = vpack.c.b16 %v4178, %v4174
        %v4323 = vpack.c.b16 %v4179, %v4175
        %v4324 = vpack.c.b16 %v4180, %v4176
        %v4325 = vpack.c.b16 %v4185, %v4181
        %v4326 = vpack.c.b16 %v4186, %v4182
        %v4327 = vpack.c.b16 %v4187, %v4183
        %v4328 = vpack.c.b16 %v4188, %v4184
        %v4329 = vpack.c.b16 %v4193, %v4189
        %v4330 = vpack.c.b16 %v4194, %v4190
        %v4331 = vpack.c.b16 %v4195, %v4191
        %v4332 = vpack.c.b16 %v4196, %v4192
        %v4333 = vpack.c.b16 %v4201, %v4197
        %v4334 = vpack.c.b16 %v4202, %v4198
        %v4335 = vpack.c.b16 %v4203, %v4199
        %v4336 = vpack.c.b16 %v4204, %v4200
        %v4337 = vpack.c.b16 %v4209, %v4205
        %v4338 = vpack.c.b16 %v4210, %v4206
        %v4339 = vpack.c.b16 %v4211, %v4207
        %v4340 = vpack.c.b16 %v4212, %v4208
        %4469 = vmatprep.subr.bf16.mxu0 %v4214
        %4470 = vmatpush1.bf16.msra.mxu0 %v4213
        %4471 = vmatprep.subr.bf16.mxu0 %v4218
        %4472 = vmatpush1.bf16.msra.mxu0 %v4217
        %4473 = vmatprep.subr.bf16.mxu0 %v4222
        %4474 = vmatpush1.bf16.msra.mxu0 %v4221
        %4475 = vmatprep.subr.bf16.mxu0 %v4226
        %4476 = vmatpush1.bf16.msra.mxu0 %v4225
        %4477 = vmatprep.subr.bf16.mxu0 %v4230
        %4478 = vmatpush1.bf16.msra.mxu0 %v4229
        %4479 = vmatprep.subr.bf16.mxu0 %v4234
        %4480 = vmatpush1.bf16.msra.mxu0 %v4233
        %4481 = vmatprep.subr.bf16.mxu0 %v4238
        %4482 = vmatpush1.bf16.msra.mxu0 %v4237
        %4483 = vmatprep.subr.bf16.mxu0 %v4242
        %4484 = vmatpush1.bf16.msra.mxu0 %v4241
        %4485 = vmatprep.subr.bf16.mxu0 %v4246
        %4486 = vmatpush1.bf16.msra.mxu0 %v4245
        %4487 = vmatprep.subr.bf16.mxu0 %v4250
        %4488 = vmatpush1.bf16.msra.mxu0 %v4249
        %4489 = vmatprep.subr.bf16.mxu0 %v4254
        %4490 = vmatpush1.bf16.msra.mxu0 %v4253
        %4491 = vmatprep.subr.bf16.mxu0 %v4258
        %4492 = vmatpush1.bf16.msra.mxu0 %v4257
        %4493 = vmatprep.subr.bf16.mxu0 %v4262
        %4494 = vmatpush1.bf16.msra.mxu0 %v4261
        %4495 = vmatprep.subr.bf16.mxu0 %v4266
        %4496 = vmatpush1.bf16.msra.mxu0 %v4265
        %4497 = vmatprep.subr.bf16.mxu0 %v4270
        %4498 = vmatpush1.bf16.msra.mxu0 %v4269
        %4499 = vmatprep.subr.bf16.mxu0 %v4274
        %4500 = vmatpush1.bf16.msra.mxu0 %v4273
        %4501 = vmatprep.mubr.bf16.mxu0 %v3616
        %4502 = vmatmul.mubr.bf16.gmra.mrb[0].mxu0 %v3615
        %v4503 = vpop.f32.mrb[0].mxu0
        %v4504 = vadd.f32 %v3812, %v4503
        %v4505 = vpop.f32.mrb[0].mxu0
        %v4506 = vadd.f32 %v3816, %v4505
        %v4507 = vpop.f32.mrb[0].mxu0
        %v4508 = vadd.f32 %v3812, %v4507
        %v4509 = vpop.f32.mrb[0].mxu0
        %v4510 = vadd.f32 %v3816, %v4509
        %4511 = vmatprep.mubr.bf16.mxu0 %v3620
        %4512 = vmatmul.mubr.bf16.gmra.mrb[0].mxu0 %v3619
        %v4513 = vpop.f32.mrb[0].mxu0
        %v4514 = vadd.f32 %v3812, %v4513
        %v4515 = vpop.f32.mrb[0].mxu0
        %v4516 = vadd.f32 %v3816, %v4515
        %v4517 = vpop.f32.mrb[0].mxu0
        %v4518 = vadd.f32 %v3812, %v4517
        %v4519 = vpop.f32.mrb[0].mxu0
        %v4520 = vadd.f32 %v3816, %v4519
        %4521 = vmatprep.mubr.bf16.mxu0 %v3624
        %4522 = vmatmul.mubr.bf16.gmra.mrb[0].mxu0 %v3623
        %v4523 = vpop.f32.mrb[0].mxu0
        %v4524 = vadd.f32 %v3812, %v4523
        %v4525 = vpop.f32.mrb[0].mxu0
        %v4526 = vadd.f32 %v3816, %v4525
        %v4527 = vpop.f32.mrb[0].mxu0
        %v4528 = vadd.f32 %v3812, %v4527
        %v4529 = vpop.f32.mrb[0].mxu0
        %v4530 = vadd.f32 %v3816, %v4529
        %4531 = vmatprep.mubr.bf16.mxu0 %v3628
        %4532 = vmatmul.mubr.bf16.gmra.mrb[0].mxu0 %v3627
        %v4533 = vpop.f32.mrb[0].mxu0
        %v4534 = vadd.f32 %v3812, %v4533
        %v4535 = vpop.f32.mrb[0].mxu0
        %v4536 = vadd.f32 %v3816, %v4535
        %v4537 = vpop.f32.mrb[0].mxu0
        %v4538 = vadd.f32 %v3812, %v4537
        %v4539 = vpop.f32.mrb[0].mxu0
        %v4540 = vadd.f32 %v3816, %v4539
        %4541 = vmatprep.mubr.bf16.mxu0 %v3632
        %4542 = vmatmul.mubr.bf16.gmra.mrb[0].mxu0 %v3631
        %v4543 = vpop.f32.mrb[0].mxu0
        %v4544 = vadd.f32 %v3812, %v4543
        %v4545 = vpop.f32.mrb[0].mxu0
        %v4546 = vadd.f32 %v3816, %v4545
        %v4547 = vpop.f32.mrb[0].mxu0
        %v4548 = vadd.f32 %v3812, %v4547
        %v4549 = vpop.f32.mrb[0].mxu0
        %v4550 = vadd.f32 %v3816, %v4549
        %4551 = vmatprep.mubr.bf16.mxu0 %v3636
        %4552 = vmatmul.mubr.bf16.gmra.mrb[0].mxu0 %v3635
        %v4553 = vpop.f32.mrb[0].mxu0
        %v4554 = vadd.f32 %v3812, %v4553
        %v4555 = vpop.f32.mrb[0].mxu0
        %v4556 = vadd.f32 %v3816, %v4555
        %v4557 = vpop.f32.mrb[0].mxu0
        %v4558 = vadd.f32 %v3812, %v4557
        %v4559 = vpop.f32.mrb[0].mxu0
        %v4560 = vadd.f32 %v3816, %v4559
        %4561 = vmatprep.mubr.bf16.mxu0 %v3640
        %4562 = vmatmul.mubr.bf16.gmra.mrb[0].mxu0 %v3639
        %v4563 = vpop.f32.mrb[0].mxu0
        %v4564 = vadd.f32 %v3812, %v4563
        %v4565 = vpop.f32.mrb[0].mxu0
        %v4566 = vadd.f32 %v3816, %v4565
        %v4567 = vpop.f32.mrb[0].mxu0
        %v4568 = vadd.f32 %v3812, %v4567
        %v4569 = vpop.f32.mrb[0].mxu0
        %v4570 = vadd.f32 %v3816, %v4569
        %4571 = vmatprep.mubr.bf16.mxu0 %v3644
        %4572 = vmatmul.mubr.bf16.gmra.mrb[0].mxu0 %v3643
        %v4573 = vpop.f32.mrb[0].mxu0
        %v4574 = vadd.f32 %v3812, %v4573
        %v4575 = vpop.f32.mrb[0].mxu0
        %v4576 = vadd.f32 %v3816, %v4575
        %v4577 = vpop.f32.mrb[0].mxu0
        %v4578 = vadd.f32 %v3812, %v4577
        %v4579 = vpop.f32.mrb[0].mxu0
        %v4580 = vadd.f32 %v3816, %v4579
        %4581 = vmatprep.mubr.bf16.mxu0 %v3648
        %4582 = vmatmul.mubr.bf16.gmra.mrb[0].mxu0 %v3647
        %v4583 = vpop.f32.mrb[0].mxu0
        %v4584 = vadd.f32 %v3812, %v4583
        %v4585 = vpop.f32.mrb[0].mxu0
        %v4586 = vadd.f32 %v3816, %v4585
        %v4587 = vpop.f32.mrb[0].mxu0
        %v4588 = vadd.f32 %v3812, %v4587
        %v4589 = vpop.f32.mrb[0].mxu0
        %v4590 = vadd.f32 %v3816, %v4589
        %4591 = vmatprep.mubr.bf16.mxu0 %v3652
        %4592 = vmatmul.mubr.bf16.gmra.mrb[0].mxu0 %v3651
        %v4593 = vpop.f32.mrb[0].mxu0
        %v4594 = vadd.f32 %v3812, %v4593
        %v4595 = vpop.f32.mrb[0].mxu0
        %v4596 = vadd.f32 %v3816, %v4595
        %v4597 = vpop.f32.mrb[0].mxu0
        %v4598 = vadd.f32 %v3812, %v4597
        %v4599 = vpop.f32.mrb[0].mxu0
        %v4600 = vadd.f32 %v3816, %v4599
        %4601 = vmatprep.mubr.bf16.mxu0 %v3656
        %4602 = vmatmul.mubr.bf16.gmra.mrb[0].mxu0 %v3655
        %v4603 = vpop.f32.mrb[0].mxu0
        %v4604 = vadd.f32 %v3812, %v4603
        %v4605 = vpop.f32.mrb[0].mxu0
        %v4606 = vadd.f32 %v3816, %v4605
        %v4607 = vpop.f32.mrb[0].mxu0
        %v4608 = vadd.f32 %v3812, %v4607
        %v4609 = vpop.f32.mrb[0].mxu0
        %v4610 = vadd.f32 %v3816, %v4609
        %4611 = vmatprep.mubr.bf16.mxu0 %v3660
        %4612 = vmatmul.mubr.bf16.gmra.mrb[0].mxu0 %v3659
        %v4613 = vpop.f32.mrb[0].mxu0
        %v4614 = vadd.f32 %v3812, %v4613
        %v4615 = vpop.f32.mrb[0].mxu0
        %v4616 = vadd.f32 %v3816, %v4615
        %v4617 = vpop.f32.mrb[0].mxu0
        %v4618 = vadd.f32 %v3812, %v4617
        %v4619 = vpop.f32.mrb[0].mxu0
        %v4620 = vadd.f32 %v3816, %v4619
        %4621 = vmatprep.mubr.bf16.mxu0 %v3664
        %4622 = vmatmul.mubr.bf16.gmra.mrb[0].mxu0 %v3663
        %v4623 = vpop.f32.mrb[0].mxu0
        %v4624 = vadd.f32 %v3812, %v4623
        %v4625 = vpop.f32.mrb[0].mxu0
        %v4626 = vadd.f32 %v3816, %v4625
        %v4627 = vpop.f32.mrb[0].mxu0
        %v4628 = vadd.f32 %v3812, %v4627
        %v4629 = vpop.f32.mrb[0].mxu0
        %v4630 = vadd.f32 %v3816, %v4629
        %4631 = vmatprep.mubr.bf16.mxu0 %v3668
        %4632 = vmatmul.mubr.bf16.gmra.mrb[0].mxu0 %v3667
        %v4633 = vpop.f32.mrb[0].mxu0
        %v4634 = vadd.f32 %v3812, %v4633
        %v4635 = vpop.f32.mrb[0].mxu0
        %v4636 = vadd.f32 %v3816, %v4635
        %v4637 = vpop.f32.mrb[0].mxu0
        %v4638 = vadd.f32 %v3812, %v4637
        %v4639 = vpop.f32.mrb[0].mxu0
        %v4640 = vadd.f32 %v3816, %v4639
        %4641 = vmatprep.mubr.bf16.mxu0 %v3672
        %4642 = vmatmul.mubr.bf16.gmra.mrb[0].mxu0 %v3671
        %v4643 = vpop.f32.mrb[0].mxu0
        %v4644 = vadd.f32 %v3812, %v4643
        %v4645 = vpop.f32.mrb[0].mxu0
        %v4646 = vadd.f32 %v3816, %v4645
        %v4647 = vpop.f32.mrb[0].mxu0
        %v4648 = vadd.f32 %v3812, %v4647
        %v4649 = vpop.f32.mrb[0].mxu0
        %v4650 = vadd.f32 %v3816, %v4649
        %4651 = vmatprep.mubr.bf16.mxu0 %v3676
        %4652 = vmatmul.mubr.bf16.gmra.mrb[0].mxu0 %v3675
        %v4653 = vpop.f32.mrb[0].mxu0
        %v4654 = vadd.f32 %v3812, %v4653
        %v4655 = vpop.f32.mrb[0].mxu0
        %v4656 = vadd.f32 %v3816, %v4655
        %v4657 = vpop.f32.mrb[0].mxu0
        %v4658 = vadd.f32 %v3812, %v4657
        %v4659 = vpop.f32.mrb[0].mxu0
        %v4660 = vadd.f32 %v3816, %v4659
        %4661 = vdwg.mxu0
        %4662 = vmatprep.subr.bf16.mxu0 %v4278
        %4663 = vmatpush1.bf16.msra.mxu0 %v4277
        %4664 = vmatprep.subr.bf16.mxu0 %v4282
        %4665 = vmatpush1.bf16.msra.mxu0 %v4281
        %4666 = vmatprep.subr.bf16.mxu0 %v4286
        %4667 = vmatpush1.bf16.msra.mxu0 %v4285
        %4668 = vmatprep.subr.bf16.mxu0 %v4290
        %4669 = vmatpush1.bf16.msra.mxu0 %v4289
        %4670 = vmatprep.subr.bf16.mxu0 %v4294
        %4671 = vmatpush1.bf16.msra.mxu0 %v4293
        %4672 = vmatprep.subr.bf16.mxu0 %v4298
        %4673 = vmatpush1.bf16.msra.mxu0 %v4297
        %4674 = vmatprep.subr.bf16.mxu0 %v4302
        %4675 = vmatpush1.bf16.msra.mxu0 %v4301
        %4676 = vmatprep.subr.bf16.mxu0 %v4306
        %4677 = vmatpush1.bf16.msra.mxu0 %v4305
        %4678 = vmatprep.subr.bf16.mxu0 %v4310
        %4679 = vmatpush1.bf16.msra.mxu0 %v4309
        %4680 = vmatprep.subr.bf16.mxu0 %v4314
        %4681 = vmatpush1.bf16.msra.mxu0 %v4313
        %4682 = vmatprep.subr.bf16.mxu0 %v4318
        %4683 = vmatpush1.bf16.msra.mxu0 %v4317
        %4684 = vmatprep.subr.bf16.mxu0 %v4322
        %4685 = vmatpush1.bf16.msra.mxu0 %v4321
        %4686 = vmatprep.subr.bf16.mxu0 %v4326
        %4687 = vmatpush1.bf16.msra.mxu0 %v4325
        %4688 = vmatprep.subr.bf16.mxu0 %v4330
        %4689 = vmatpush1.bf16.msra.mxu0 %v4329
        %4690 = vmatprep.subr.bf16.mxu0 %v4334
        %4691 = vmatpush1.bf16.msra.mxu0 %v4333
        %4692 = vmatprep.subr.bf16.mxu0 %v4338
        %4693 = vmatpush1.bf16.msra.mxu0 %v4337
        %4694 = vmatprep.mubr.bf16.mxu0 %v3618
        %4695 = vmatmul.mubr.bf16.gmra.mrb[0].mxu0 %v3617
        %v4696 = vpop.f32.mrb[0].mxu0
        %v4697 = vadd.f32 %v4504, %v4696
        %v4698 = vpop.f32.mrb[0].mxu0
        %v4699 = vadd.f32 %v4506, %v4698
        %v4700 = vpop.f32.mrb[0].mxu0
        %v4701 = vadd.f32 %v4508, %v4700
        %v4702 = vpop.f32.mrb[0].mxu0
        %v4703 = vadd.f32 %v4510, %v4702
        %4704 = vmatprep.mubr.bf16.mxu0 %v3622
        %4705 = vmatmul.mubr.bf16.gmra.mrb[0].mxu0 %v3621
        %v4706 = vpop.f32.mrb[0].mxu0
        %v4707 = vadd.f32 %v4514, %v4706
        %v4708 = vpop.f32.mrb[0].mxu0
        %v4709 = vadd.f32 %v4516, %v4708
        %v4710 = vpop.f32.mrb[0].mxu0
        %v4711 = vadd.f32 %v4518, %v4710
        %v4712 = vpop.f32.mrb[0].mxu0
        %v4713 = vadd.f32 %v4520, %v4712
        %4714 = vmatprep.mubr.bf16.mxu0 %v3626
        %4715 = vmatmul.mubr.bf16.gmra.mrb[0].mxu0 %v3625
        %v4716 = vpop.f32.mrb[0].mxu0
        %v4717 = vadd.f32 %v4524, %v4716
        %v4718 = vpop.f32.mrb[0].mxu0
        %v4719 = vadd.f32 %v4526, %v4718
        %v4720 = vpop.f32.mrb[0].mxu0
        %v4721 = vadd.f32 %v4528, %v4720
        %v4722 = vpop.f32.mrb[0].mxu0
        %v4723 = vadd.f32 %v4530, %v4722
        %4724 = vmatprep.mubr.bf16.mxu0 %v3630
        %4725 = vmatmul.mubr.bf16.gmra.mrb[0].mxu0 %v3629
        %v4726 = vpop.f32.mrb[0].mxu0
        %v4727 = vadd.f32 %v4534, %v4726
        %v4728 = vpop.f32.mrb[0].mxu0
        %v4729 = vadd.f32 %v4536, %v4728
        %v4730 = vpop.f32.mrb[0].mxu0
        %v4731 = vadd.f32 %v4538, %v4730
        %v4732 = vpop.f32.mrb[0].mxu0
        %v4733 = vadd.f32 %v4540, %v4732
        %4734 = vmatprep.mubr.bf16.mxu0 %v3634
        %4735 = vmatmul.mubr.bf16.gmra.mrb[0].mxu0 %v3633
        %v4736 = vpop.f32.mrb[0].mxu0
        %v4737 = vadd.f32 %v4544, %v4736
        %v4738 = vpop.f32.mrb[0].mxu0
        %v4739 = vadd.f32 %v4546, %v4738
        %v4740 = vpop.f32.mrb[0].mxu0
        %v4741 = vadd.f32 %v4548, %v4740
        %v4742 = vpop.f32.mrb[0].mxu0
        %v4743 = vadd.f32 %v4550, %v4742
        %4744 = vmatprep.mubr.bf16.mxu0 %v3638
        %4745 = vmatmul.mubr.bf16.gmra.mrb[0].mxu0 %v3637
        %v4746 = vpop.f32.mrb[0].mxu0
        %v4747 = vadd.f32 %v4554, %v4746
        %v4748 = vpop.f32.mrb[0].mxu0
        %v4749 = vadd.f32 %v4556, %v4748
        %v4750 = vpop.f32.mrb[0].mxu0
        %v4751 = vadd.f32 %v4558, %v4750
        %v4752 = vpop.f32.mrb[0].mxu0
        %v4753 = vadd.f32 %v4560, %v4752
        %4754 = vmatprep.mubr.bf16.mxu0 %v3642
        %4755 = vmatmul.mubr.bf16.gmra.mrb[0].mxu0 %v3641
        %v4756 = vpop.f32.mrb[0].mxu0
        %v4757 = vadd.f32 %v4564, %v4756
        %v4758 = vpop.f32.mrb[0].mxu0
        %v4759 = vadd.f32 %v4566, %v4758
        %v4760 = vpop.f32.mrb[0].mxu0
        %v4761 = vadd.f32 %v4568, %v4760
        %v4762 = vpop.f32.mrb[0].mxu0
        %v4763 = vadd.f32 %v4570, %v4762
        %4764 = vmatprep.mubr.bf16.mxu0 %v3646
        %4765 = vmatmul.mubr.bf16.gmra.mrb[0].mxu0 %v3645
        %v4766 = vpop.f32.mrb[0].mxu0
        %v4767 = vadd.f32 %v4574, %v4766
        %v4768 = vpop.f32.mrb[0].mxu0
        %v4769 = vadd.f32 %v4576, %v4768
        %v4770 = vpop.f32.mrb[0].mxu0
        %v4771 = vadd.f32 %v4578, %v4770
        %v4772 = vpop.f32.mrb[0].mxu0
        %v4773 = vadd.f32 %v4580, %v4772
        %4774 = vmatprep.mubr.bf16.mxu0 %v3650
        %4775 = vmatmul.mubr.bf16.gmra.mrb[0].mxu0 %v3649
        %v4776 = vpop.f32.mrb[0].mxu0
        %v4777 = vadd.f32 %v4584, %v4776
        %v4778 = vpop.f32.mrb[0].mxu0
        %v4779 = vadd.f32 %v4586, %v4778
        %v4780 = vpop.f32.mrb[0].mxu0
        %v4781 = vadd.f32 %v4588, %v4780
        %v4782 = vpop.f32.mrb[0].mxu0
        %v4783 = vadd.f32 %v4590, %v4782
        %4784 = vmatprep.mubr.bf16.mxu0 %v3654
        %4785 = vmatmul.mubr.bf16.gmra.mrb[0].mxu0 %v3653
        %v4786 = vpop.f32.mrb[0].mxu0
        %v4787 = vadd.f32 %v4594, %v4786
        %v4788 = vpop.f32.mrb[0].mxu0
        %v4789 = vadd.f32 %v4596, %v4788
        %v4790 = vpop.f32.mrb[0].mxu0
        %v4791 = vadd.f32 %v4598, %v4790
        %v4792 = vpop.f32.mrb[0].mxu0
        %v4793 = vadd.f32 %v4600, %v4792
        %4794 = vmatprep.mubr.bf16.mxu0 %v3658
        %4795 = vmatmul.mubr.bf16.gmra.mrb[0].mxu0 %v3657
        %v4796 = vpop.f32.mrb[0].mxu0
        %v4797 = vadd.f32 %v4604, %v4796
        %v4798 = vpop.f32.mrb[0].mxu0
        %v4799 = vadd.f32 %v4606, %v4798
        %v4800 = vpop.f32.mrb[0].mxu0
        %v4801 = vadd.f32 %v4608, %v4800
        %v4802 = vpop.f32.mrb[0].mxu0
        %v4803 = vadd.f32 %v4610, %v4802
        %4804 = vmatprep.mubr.bf16.mxu0 %v3662
        %4805 = vmatmul.mubr.bf16.gmra.mrb[0].mxu0 %v3661
        %v4806 = vpop.f32.mrb[0].mxu0
        %v4807 = vadd.f32 %v4614, %v4806
        %v4808 = vpop.f32.mrb[0].mxu0
        %v4809 = vadd.f32 %v4616, %v4808
        %v4810 = vpop.f32.mrb[0].mxu0
        %v4811 = vadd.f32 %v4618, %v4810
        %v4812 = vpop.f32.mrb[0].mxu0
        %v4813 = vadd.f32 %v4620, %v4812
        %4814 = vmatprep.mubr.bf16.mxu0 %v3666
        %4815 = vmatmul.mubr.bf16.gmra.mrb[0].mxu0 %v3665
        %v4816 = vpop.f32.mrb[0].mxu0
        %v4817 = vadd.f32 %v4624, %v4816
        %v4818 = vpop.f32.mrb[0].mxu0
        %v4819 = vadd.f32 %v4626, %v4818
        %v4820 = vpop.f32.mrb[0].mxu0
        %v4821 = vadd.f32 %v4628, %v4820
        %v4822 = vpop.f32.mrb[0].mxu0
        %v4823 = vadd.f32 %v4630, %v4822
        %4824 = vmatprep.mubr.bf16.mxu0 %v3670
        %4825 = vmatmul.mubr.bf16.gmra.mrb[0].mxu0 %v3669
        %v4826 = vpop.f32.mrb[0].mxu0
        %v4827 = vadd.f32 %v4634, %v4826
        %v4828 = vpop.f32.mrb[0].mxu0
        %v4829 = vadd.f32 %v4636, %v4828
        %v4830 = vpop.f32.mrb[0].mxu0
        %v4831 = vadd.f32 %v4638, %v4830
        %v4832 = vpop.f32.mrb[0].mxu0
        %v4833 = vadd.f32 %v4640, %v4832
        %4834 = vmatprep.mubr.bf16.mxu0 %v3674
        %4835 = vmatmul.mubr.bf16.gmra.mrb[0].mxu0 %v3673
        %v4836 = vpop.f32.mrb[0].mxu0
        %v4837 = vadd.f32 %v4644, %v4836
        %v4838 = vpop.f32.mrb[0].mxu0
        %v4839 = vadd.f32 %v4646, %v4838
        %v4840 = vpop.f32.mrb[0].mxu0
        %v4841 = vadd.f32 %v4648, %v4840
        %v4842 = vpop.f32.mrb[0].mxu0
        %v4843 = vadd.f32 %v4650, %v4842
        %4844 = vmatprep.mubr.bf16.mxu0 %v3678
        %4845 = vmatmul.mubr.bf16.gmra.mrb[0].mxu0 %v3677
        %v4846 = vpop.f32.mrb[0].mxu0
        %v4847 = vadd.f32 %v4654, %v4846
        %v4848 = vpop.f32.mrb[0].mxu0
        %v4849 = vadd.f32 %v4656, %v4848
        %v4850 = vpop.f32.mrb[0].mxu0
        %v4851 = vadd.f32 %v4658, %v4850
        %v4852 = vpop.f32.mrb[0].mxu0
        %v4853 = vadd.f32 %v4660, %v4852
        %4854 = vdwg.mxu0
        %4855 = vmatprep.subr.bf16.mxu0 %v4216
        %4856 = vmatpush1.bf16.msra.mxu0 %v4215
        %4857 = vmatprep.subr.bf16.mxu0 %v4220
        %4858 = vmatpush1.bf16.msra.mxu0 %v4219
        %4859 = vmatprep.subr.bf16.mxu0 %v4224
        %4860 = vmatpush1.bf16.msra.mxu0 %v4223
        %4861 = vmatprep.subr.bf16.mxu0 %v4228
        %4862 = vmatpush1.bf16.msra.mxu0 %v4227
        %4863 = vmatprep.subr.bf16.mxu0 %v4232
        %4864 = vmatpush1.bf16.msra.mxu0 %v4231
        %4865 = vmatprep.subr.bf16.mxu0 %v4236
        %4866 = vmatpush1.bf16.msra.mxu0 %v4235
        %4867 = vmatprep.subr.bf16.mxu0 %v4240
        %4868 = vmatpush1.bf16.msra.mxu0 %v4239
        %4869 = vmatprep.subr.bf16.mxu0 %v4244
        %4870 = vmatpush1.bf16.msra.mxu0 %v4243
        %4871 = vmatprep.subr.bf16.mxu0 %v4248
        %4872 = vmatpush1.bf16.msra.mxu0 %v4247
        %4873 = vmatprep.subr.bf16.mxu0 %v4252
        %4874 = vmatpush1.bf16.msra.mxu0 %v4251
        %4875 = vmatprep.subr.bf16.mxu0 %v4256
        %4876 = vmatpush1.bf16.msra.mxu0 %v4255
        %4877 = vmatprep.subr.bf16.mxu0 %v4260
        %4878 = vmatpush1.bf16.msra.mxu0 %v4259
        %4879 = vmatprep.subr.bf16.mxu0 %v4264
        %4880 = vmatpush1.bf16.msra.mxu0 %v4263
        %4881 = vmatprep.subr.bf16.mxu0 %v4268
        %4882 = vmatpush1.bf16.msra.mxu0 %v4267
        %4883 = vmatprep.subr.bf16.mxu0 %v4272
        %4884 = vmatpush1.bf16.msra.mxu0 %v4271
        %4885 = vmatprep.subr.bf16.mxu0 %v4276
        %4886 = vmatpush1.bf16.msra.mxu0 %v4275
        %4887 = vmatprep.mubr.bf16.mxu0 %v3616
        %4888 = vmatmul.mubr.bf16.gmra.mrb[0].mxu0 %v3615
        %v4889 = vpop.f32.mrb[0].mxu0
        %v4890 = vadd.f32 %v3820, %v4889
        %v4891 = vpop.f32.mrb[0].mxu0
        %v4892 = vadd.f32 %v3824, %v4891
        %v4893 = vpop.f32.mrb[0].mxu0
        %v4894 = vadd.f32 %v3820, %v4893
        %v4895 = vpop.f32.mrb[0].mxu0
        %v4896 = vadd.f32 %v3824, %v4895
        %4897 = vmatprep.mubr.bf16.mxu0 %v3620
        %4898 = vmatmul.mubr.bf16.gmra.mrb[0].mxu0 %v3619
        %v4899 = vpop.f32.mrb[0].mxu0
        %v4900 = vadd.f32 %v3820, %v4899
        %v4901 = vpop.f32.mrb[0].mxu0
        %v4902 = vadd.f32 %v3824, %v4901
        %v4903 = vpop.f32.mrb[0].mxu0
        %v4904 = vadd.f32 %v3820, %v4903
        %v4905 = vpop.f32.mrb[0].mxu0
        %v4906 = vadd.f32 %v3824, %v4905
        %4907 = vmatprep.mubr.bf16.mxu0 %v3624
        %4908 = vmatmul.mubr.bf16.gmra.mrb[0].mxu0 %v3623
        %v4909 = vpop.f32.mrb[0].mxu0
        %v4910 = vadd.f32 %v3820, %v4909
        %v4911 = vpop.f32.mrb[0].mxu0
        %v4912 = vadd.f32 %v3824, %v4911
        %v4913 = vpop.f32.mrb[0].mxu0
        %v4914 = vadd.f32 %v3820, %v4913
        %v4915 = vpop.f32.mrb[0].mxu0
        %v4916 = vadd.f32 %v3824, %v4915
        %4917 = vmatprep.mubr.bf16.mxu0 %v3628
        %4918 = vmatmul.mubr.bf16.gmra.mrb[0].mxu0 %v3627
        %v4919 = vpop.f32.mrb[0].mxu0
        %v4920 = vadd.f32 %v3820, %v4919
        %v4921 = vpop.f32.mrb[0].mxu0
        %v4922 = vadd.f32 %v3824, %v4921
        %v4923 = vpop.f32.mrb[0].mxu0
        %v4924 = vadd.f32 %v3820, %v4923
        %v4925 = vpop.f32.mrb[0].mxu0
        %v4926 = vadd.f32 %v3824, %v4925
        %4927 = vmatprep.mubr.bf16.mxu0 %v3632
        %4928 = vmatmul.mubr.bf16.gmra.mrb[0].mxu0 %v3631
        %v4929 = vpop.f32.mrb[0].mxu0
        %v4930 = vadd.f32 %v3820, %v4929
        %v4931 = vpop.f32.mrb[0].mxu0
        %v4932 = vadd.f32 %v3824, %v4931
        %v4933 = vpop.f32.mrb[0].mxu0
        %v4934 = vadd.f32 %v3820, %v4933
        %v4935 = vpop.f32.mrb[0].mxu0
        %v4936 = vadd.f32 %v3824, %v4935
        %4937 = vmatprep.mubr.bf16.mxu0 %v3636
        %4938 = vmatmul.mubr.bf16.gmra.mrb[0].mxu0 %v3635
        %v4939 = vpop.f32.mrb[0].mxu0
        %v4940 = vadd.f32 %v3820, %v4939
        %v4941 = vpop.f32.mrb[0].mxu0
        %v4942 = vadd.f32 %v3824, %v4941
        %v4943 = vpop.f32.mrb[0].mxu0
        %v4944 = vadd.f32 %v3820, %v4943
        %v4945 = vpop.f32.mrb[0].mxu0
        %v4946 = vadd.f32 %v3824, %v4945
        %4947 = vmatprep.mubr.bf16.mxu0 %v3640
        %4948 = vmatmul.mubr.bf16.gmra.mrb[0].mxu0 %v3639
        %v4949 = vpop.f32.mrb[0].mxu0
        %v4950 = vadd.f32 %v3820, %v4949
        %v4951 = vpop.f32.mrb[0].mxu0
        %v4952 = vadd.f32 %v3824, %v4951
        %v4953 = vpop.f32.mrb[0].mxu0
        %v4954 = vadd.f32 %v3820, %v4953
        %v4955 = vpop.f32.mrb[0].mxu0
        %v4956 = vadd.f32 %v3824, %v4955
        %4957 = vmatprep.mubr.bf16.mxu0 %v3644
        %4958 = vmatmul.mubr.bf16.gmra.mrb[0].mxu0 %v3643
        %v4959 = vpop.f32.mrb[0].mxu0
        %v4960 = vadd.f32 %v3820, %v4959
        %v4961 = vpop.f32.mrb[0].mxu0
        %v4962 = vadd.f32 %v3824, %v4961
        %v4963 = vpop.f32.mrb[0].mxu0
        %v4964 = vadd.f32 %v3820, %v4963
        %v4965 = vpop.f32.mrb[0].mxu0
        %v4966 = vadd.f32 %v3824, %v4965
        %4967 = vmatprep.mubr.bf16.mxu0 %v3648
        %4968 = vmatmul.mubr.bf16.gmra.mrb[0].mxu0 %v3647
        %v4969 = vpop.f32.mrb[0].mxu0
        %v4970 = vadd.f32 %v3820, %v4969
        %v4971 = vpop.f32.mrb[0].mxu0
        %v4972 = vadd.f32 %v3824, %v4971
        %v4973 = vpop.f32.mrb[0].mxu0
        %v4974 = vadd.f32 %v3820, %v4973
        %v4975 = vpop.f32.mrb[0].mxu0
        %v4976 = vadd.f32 %v3824, %v4975
        %4977 = vmatprep.mubr.bf16.mxu0 %v3652
        %4978 = vmatmul.mubr.bf16.gmra.mrb[0].mxu0 %v3651
        %v4979 = vpop.f32.mrb[0].mxu0
        %v4980 = vadd.f32 %v3820, %v4979
        %v4981 = vpop.f32.mrb[0].mxu0
        %v4982 = vadd.f32 %v3824, %v4981
        %v4983 = vpop.f32.mrb[0].mxu0
        %v4984 = vadd.f32 %v3820, %v4983
        %v4985 = vpop.f32.mrb[0].mxu0
        %v4986 = vadd.f32 %v3824, %v4985
        %4987 = vmatprep.mubr.bf16.mxu0 %v3656
        %4988 = vmatmul.mubr.bf16.gmra.mrb[0].mxu0 %v3655
        %v4989 = vpop.f32.mrb[0].mxu0
        %v4990 = vadd.f32 %v3820, %v4989
        %v4991 = vpop.f32.mrb[0].mxu0
        %v4992 = vadd.f32 %v3824, %v4991
        %v4993 = vpop.f32.mrb[0].mxu0
        %v4994 = vadd.f32 %v3820, %v4993
        %v4995 = vpop.f32.mrb[0].mxu0
        %v4996 = vadd.f32 %v3824, %v4995
        %4997 = vmatprep.mubr.bf16.mxu0 %v3660
        %4998 = vmatmul.mubr.bf16.gmra.mrb[0].mxu0 %v3659
        %v4999 = vpop.f32.mrb[0].mxu0
        %v5000 = vadd.f32 %v3820, %v4999
        %v5001 = vpop.f32.mrb[0].mxu0
        %v5002 = vadd.f32 %v3824, %v5001
        %v5003 = vpop.f32.mrb[0].mxu0
        %v5004 = vadd.f32 %v3820, %v5003
        %v5005 = vpop.f32.mrb[0].mxu0
        %v5006 = vadd.f32 %v3824, %v5005
        %5007 = vmatprep.mubr.bf16.mxu0 %v3664
        %5008 = vmatmul.mubr.bf16.gmra.mrb[0].mxu0 %v3663
        %v5009 = vpop.f32.mrb[0].mxu0
        %v5010 = vadd.f32 %v3820, %v5009
        %v5011 = vpop.f32.mrb[0].mxu0
        %v5012 = vadd.f32 %v3824, %v5011
        %v5013 = vpop.f32.mrb[0].mxu0
        %v5014 = vadd.f32 %v3820, %v5013
        %v5015 = vpop.f32.mrb[0].mxu0
        %v5016 = vadd.f32 %v3824, %v5015
        %5017 = vmatprep.mubr.bf16.mxu0 %v3668
        %5018 = vmatmul.mubr.bf16.gmra.mrb[0].mxu0 %v3667
        %v5019 = vpop.f32.mrb[0].mxu0
        %v5020 = vadd.f32 %v3820, %v5019
        %v5021 = vpop.f32.mrb[0].mxu0
        %v5022 = vadd.f32 %v3824, %v5021
        %v5023 = vpop.f32.mrb[0].mxu0
        %v5024 = vadd.f32 %v3820, %v5023
        %v5025 = vpop.f32.mrb[0].mxu0
        %v5026 = vadd.f32 %v3824, %v5025
        %5027 = vmatprep.mubr.bf16.mxu0 %v3672
        %5028 = vmatmul.mubr.bf16.gmra.mrb[0].mxu0 %v3671
        %v5029 = vpop.f32.mrb[0].mxu0
        %v5030 = vadd.f32 %v3820, %v5029
        %v5031 = vpop.f32.mrb[0].mxu0
        %v5032 = vadd.f32 %v3824, %v5031
        %v5033 = vpop.f32.mrb[0].mxu0
        %v5034 = vadd.f32 %v3820, %v5033
        %v5035 = vpop.f32.mrb[0].mxu0
        %v5036 = vadd.f32 %v3824, %v5035
        %5037 = vmatprep.mubr.bf16.mxu0 %v3676
        %5038 = vmatmul.mubr.bf16.gmra.mrb[0].mxu0 %v3675
        %v5039 = vpop.f32.mrb[0].mxu0
        %v5040 = vadd.f32 %v3820, %v5039
        %v5041 = vpop.f32.mrb[0].mxu0
        %v5042 = vadd.f32 %v3824, %v5041
        %v5043 = vpop.f32.mrb[0].mxu0
        %v5044 = vadd.f32 %v3820, %v5043
        %v5045 = vpop.f32.mrb[0].mxu0
        %v5046 = vadd.f32 %v3824, %v5045
        %5047 = vdwg.mxu0
        %5048 = vmatprep.subr.bf16.mxu0 %v4280
        %5049 = vmatpush1.bf16.msra.mxu0 %v4279
        %5050 = vmatprep.subr.bf16.mxu0 %v4284
        %5051 = vmatpush1.bf16.msra.mxu0 %v4283
        %5052 = vmatprep.subr.bf16.mxu0 %v4288
        %5053 = vmatpush1.bf16.msra.mxu0 %v4287
        %5054 = vmatprep.subr.bf16.mxu0 %v4292
        %5055 = vmatpush1.bf16.msra.mxu0 %v4291
        %5056 = vmatprep.subr.bf16.mxu0 %v4296
        %5057 = vmatpush1.bf16.msra.mxu0 %v4295
        %5058 = vmatprep.subr.bf16.mxu0 %v4300
        %5059 = vmatpush1.bf16.msra.mxu0 %v4299
        %5060 = vmatprep.subr.bf16.mxu0 %v4304
        %5061 = vmatpush1.bf16.msra.mxu0 %v4303
        %5062 = vmatprep.subr.bf16.mxu0 %v4308
        %5063 = vmatpush1.bf16.msra.mxu0 %v4307
        %5064 = vmatprep.subr.bf16.mxu0 %v4312
        %5065 = vmatpush1.bf16.msra.mxu0 %v4311
        %5066 = vmatprep.subr.bf16.mxu0 %v4316
        %5067 = vmatpush1.bf16.msra.mxu0 %v4315
        %5068 = vmatprep.subr.bf16.mxu0 %v4320
        %5069 = vmatpush1.bf16.msra.mxu0 %v4319
        %5070 = vmatprep.subr.bf16.mxu0 %v4324
        %5071 = vmatpush1.bf16.msra.mxu0 %v4323
        %5072 = vmatprep.subr.bf16.mxu0 %v4328
        %5073 = vmatpush1.bf16.msra.mxu0 %v4327
        %5074 = vmatprep.subr.bf16.mxu0 %v4332
        %5075 = vmatpush1.bf16.msra.mxu0 %v4331
        %5076 = vmatprep.subr.bf16.mxu0 %v4336
        %5077 = vmatpush1.bf16.msra.mxu0 %v4335
        %5078 = vmatprep.subr.bf16.mxu0 %v4340
        %5079 = vmatpush1.bf16.msra.mxu0 %v4339
        %5080 = vmatprep.mubr.bf16.mxu0 %v3618
        %5081 = vmatmul.mubr.bf16.gmra.mrb[0].mxu0 %v3617
        %v5082 = vpop.f32.mrb[0].mxu0
        %v5083 = vadd.f32 %v4890, %v5082
        %v5084 = vpop.f32.mrb[0].mxu0
        %v5085 = vadd.f32 %v4892, %v5084
        %v5086 = vpop.f32.mrb[0].mxu0
        %v5087 = vadd.f32 %v4894, %v5086
        %v5088 = vpop.f32.mrb[0].mxu0
        %v5089 = vadd.f32 %v4896, %v5088
        %5090 = vmatprep.mubr.bf16.mxu0 %v3622
        %5091 = vmatmul.mubr.bf16.gmra.mrb[0].mxu0 %v3621
        %v5092 = vpop.f32.mrb[0].mxu0
        %v5093 = vadd.f32 %v4900, %v5092
        %v5094 = vpop.f32.mrb[0].mxu0
        %v5095 = vadd.f32 %v4902, %v5094
        %v5096 = vpop.f32.mrb[0].mxu0
        %v5097 = vadd.f32 %v4904, %v5096
        %v5098 = vpop.f32.mrb[0].mxu0
        %v5099 = vadd.f32 %v4906, %v5098
        %5100 = vmatprep.mubr.bf16.mxu0 %v3626
        %5101 = vmatmul.mubr.bf16.gmra.mrb[0].mxu0 %v3625
        %v5102 = vpop.f32.mrb[0].mxu0
        %v5103 = vadd.f32 %v4910, %v5102
        %v5104 = vpop.f32.mrb[0].mxu0
        %v5105 = vadd.f32 %v4912, %v5104
        %v5106 = vpop.f32.mrb[0].mxu0
        %v5107 = vadd.f32 %v4914, %v5106
        %v5108 = vpop.f32.mrb[0].mxu0
        %v5109 = vadd.f32 %v4916, %v5108
        %5110 = vmatprep.mubr.bf16.mxu0 %v3630
        %5111 = vmatmul.mubr.bf16.gmra.mrb[0].mxu0 %v3629
        %v5112 = vpop.f32.mrb[0].mxu0
        %v5113 = vadd.f32 %v4920, %v5112
        %v5114 = vpop.f32.mrb[0].mxu0
        %v5115 = vadd.f32 %v4922, %v5114
        %v5116 = vpop.f32.mrb[0].mxu0
        %v5117 = vadd.f32 %v4924, %v5116
        %v5118 = vpop.f32.mrb[0].mxu0
        %v5119 = vadd.f32 %v4926, %v5118
        %5120 = vmatprep.mubr.bf16.mxu0 %v3634
        %5121 = vmatmul.mubr.bf16.gmra.mrb[0].mxu0 %v3633
        %v5122 = vpop.f32.mrb[0].mxu0
        %v5123 = vadd.f32 %v4930, %v5122
        %v5124 = vpop.f32.mrb[0].mxu0
        %v5125 = vadd.f32 %v4932, %v5124
        %v5126 = vpop.f32.mrb[0].mxu0
        %v5127 = vadd.f32 %v4934, %v5126
        %v5128 = vpop.f32.mrb[0].mxu0
        %v5129 = vadd.f32 %v4936, %v5128
        %5130 = vmatprep.mubr.bf16.mxu0 %v3638
        %5131 = vmatmul.mubr.bf16.gmra.mrb[0].mxu0 %v3637
        %v5132 = vpop.f32.mrb[0].mxu0
        %v5133 = vadd.f32 %v4940, %v5132
        %v5134 = vpop.f32.mrb[0].mxu0
        %v5135 = vadd.f32 %v4942, %v5134
        %v5136 = vpop.f32.mrb[0].mxu0
        %v5137 = vadd.f32 %v4944, %v5136
        %v5138 = vpop.f32.mrb[0].mxu0
        %v5139 = vadd.f32 %v4946, %v5138
        %5140 = vmatprep.mubr.bf16.mxu0 %v3642
        %5141 = vmatmul.mubr.bf16.gmra.mrb[0].mxu0 %v3641
        %v5142 = vpop.f32.mrb[0].mxu0
        %v5143 = vadd.f32 %v4950, %v5142
        %v5144 = vpop.f32.mrb[0].mxu0
        %v5145 = vadd.f32 %v4952, %v5144
        %v5146 = vpop.f32.mrb[0].mxu0
        %v5147 = vadd.f32 %v4954, %v5146
        %v5148 = vpop.f32.mrb[0].mxu0
        %v5149 = vadd.f32 %v4956, %v5148
        %5150 = vmatprep.mubr.bf16.mxu0 %v3646
        %5151 = vmatmul.mubr.bf16.gmra.mrb[0].mxu0 %v3645
        %v5152 = vpop.f32.mrb[0].mxu0
        %v5153 = vadd.f32 %v4960, %v5152
        %v5154 = vpop.f32.mrb[0].mxu0
        %v5155 = vadd.f32 %v4962, %v5154
        %v5156 = vpop.f32.mrb[0].mxu0
        %v5157 = vadd.f32 %v4964, %v5156
        %v5158 = vpop.f32.mrb[0].mxu0
        %v5159 = vadd.f32 %v4966, %v5158
        %5160 = vmatprep.mubr.bf16.mxu0 %v3650
        %5161 = vmatmul.mubr.bf16.gmra.mrb[0].mxu0 %v3649
        %v5162 = vpop.f32.mrb[0].mxu0
        %v5163 = vadd.f32 %v4970, %v5162
        %v5164 = vpop.f32.mrb[0].mxu0
        %v5165 = vadd.f32 %v4972, %v5164
        %v5166 = vpop.f32.mrb[0].mxu0
        %v5167 = vadd.f32 %v4974, %v5166
        %v5168 = vpop.f32.mrb[0].mxu0
        %v5169 = vadd.f32 %v4976, %v5168
        %5170 = vmatprep.mubr.bf16.mxu0 %v3654
        %5171 = vmatmul.mubr.bf16.gmra.mrb[0].mxu0 %v3653
        %v5172 = vpop.f32.mrb[0].mxu0
        %v5173 = vadd.f32 %v4980, %v5172
        %v5174 = vpop.f32.mrb[0].mxu0
        %v5175 = vadd.f32 %v4982, %v5174
        %v5176 = vpop.f32.mrb[0].mxu0
        %v5177 = vadd.f32 %v4984, %v5176
        %v5178 = vpop.f32.mrb[0].mxu0
        %v5179 = vadd.f32 %v4986, %v5178
        %5180 = vmatprep.mubr.bf16.mxu0 %v3658
        %5181 = vmatmul.mubr.bf16.gmra.mrb[0].mxu0 %v3657
        %v5182 = vpop.f32.mrb[0].mxu0
        %v5183 = vadd.f32 %v4990, %v5182
        %v5184 = vpop.f32.mrb[0].mxu0
        %v5185 = vadd.f32 %v4992, %v5184
        %v5186 = vpop.f32.mrb[0].mxu0
        %v5187 = vadd.f32 %v4994, %v5186
        %v5188 = vpop.f32.mrb[0].mxu0
        %v5189 = vadd.f32 %v4996, %v5188
        %5190 = vmatprep.mubr.bf16.mxu0 %v3662
        %5191 = vmatmul.mubr.bf16.gmra.mrb[0].mxu0 %v3661
        %v5192 = vpop.f32.mrb[0].mxu0
        %v5193 = vadd.f32 %v5000, %v5192
        %v5194 = vpop.f32.mrb[0].mxu0
        %v5195 = vadd.f32 %v5002, %v5194
        %v5196 = vpop.f32.mrb[0].mxu0
        %v5197 = vadd.f32 %v5004, %v5196
        %v5198 = vpop.f32.mrb[0].mxu0
        %v5199 = vadd.f32 %v5006, %v5198
        %5200 = vmatprep.mubr.bf16.mxu0 %v3666
        %5201 = vmatmul.mubr.bf16.gmra.mrb[0].mxu0 %v3665
        %v5202 = vpop.f32.mrb[0].mxu0
        %v5203 = vadd.f32 %v5010, %v5202
        %v5204 = vpop.f32.mrb[0].mxu0
        %v5205 = vadd.f32 %v5012, %v5204
        %v5206 = vpop.f32.mrb[0].mxu0
        %v5207 = vadd.f32 %v5014, %v5206
        %v5208 = vpop.f32.mrb[0].mxu0
        %v5209 = vadd.f32 %v5016, %v5208
        %5210 = vmatprep.mubr.bf16.mxu0 %v3670
        %5211 = vmatmul.mubr.bf16.gmra.mrb[0].mxu0 %v3669
        %v5212 = vpop.f32.mrb[0].mxu0
        %v5213 = vadd.f32 %v5020, %v5212
        %v5214 = vpop.f32.mrb[0].mxu0
        %v5215 = vadd.f32 %v5022, %v5214
        %v5216 = vpop.f32.mrb[0].mxu0
        %v5217 = vadd.f32 %v5024, %v5216
        %v5218 = vpop.f32.mrb[0].mxu0
        %v5219 = vadd.f32 %v5026, %v5218
        %5220 = vmatprep.mubr.bf16.mxu0 %v3674
        %5221 = vmatmul.mubr.bf16.gmra.mrb[0].mxu0 %v3673
        %v5222 = vpop.f32.mrb[0].mxu0
        %v5223 = vadd.f32 %v5030, %v5222
        %v5224 = vpop.f32.mrb[0].mxu0
        %v5225 = vadd.f32 %v5032, %v5224
        %v5226 = vpop.f32.mrb[0].mxu0
        %v5227 = vadd.f32 %v5034, %v5226
        %v5228 = vpop.f32.mrb[0].mxu0
        %v5229 = vadd.f32 %v5036, %v5228
        %5230 = vmatprep.mubr.bf16.mxu0 %v3678
        %5231 = vmatmul.mubr.bf16.gmra.mrb[0].mxu0 %v3677
        %v5232 = vpop.f32.mrb[0].mxu0
        %v5233 = vadd.f32 %v5040, %v5232
        %v5234 = vpop.f32.mrb[0].mxu0
        %v5235 = vadd.f32 %v5042, %v5234
        %v5236 = vpop.f32.mrb[0].mxu0
        %v5237 = vadd.f32 %v5044, %v5236
        %v5238 = vpop.f32.mrb[0].mxu0
        %v5239 = vadd.f32 %v5046, %v5238
        %5240 = vdwg.mxu0
        %v5241 = vmax.f32 %v4697, 0.0
        %v5242 = vmax.f32 %v4699, 0.0
        %v5243 = vmax.f32 %v5083, 0.0
        %v5244 = vmax.f32 %v5085, 0.0
        %v5245 = vmax.f32 %v4701, 0.0
        %v5246 = vmax.f32 %v4703, 0.0
        %v5247 = vmax.f32 %v5087, 0.0
        %v5248 = vmax.f32 %v5089, 0.0
        %v5249 = vmax.f32 %v4707, 0.0
        %v5250 = vmax.f32 %v4709, 0.0
        %v5251 = vmax.f32 %v5093, 0.0
        %v5252 = vmax.f32 %v5095, 0.0
        %v5253 = vmax.f32 %v4711, 0.0
        %v5254 = vmax.f32 %v4713, 0.0
        %v5255 = vmax.f32 %v5097, 0.0
        %v5256 = vmax.f32 %v5099, 0.0
        %v5257 = vmax.f32 %v4717, 0.0
        %v5258 = vmax.f32 %v4719, 0.0
        %v5259 = vmax.f32 %v5103, 0.0
        %v5260 = vmax.f32 %v5105, 0.0
        %v5261 = vmax.f32 %v4721, 0.0
        %v5262 = vmax.f32 %v4723, 0.0
        %v5263 = vmax.f32 %v5107, 0.0
        %v5264 = vmax.f32 %v5109, 0.0
        %v5265 = vmax.f32 %v4727, 0.0
        %v5266 = vmax.f32 %v4729, 0.0
        %v5267 = vmax.f32 %v5113, 0.0
        %v5268 = vmax.f32 %v5115, 0.0
        %v5269 = vmax.f32 %v4731, 0.0
        %v5270 = vmax.f32 %v4733, 0.0
        %v5271 = vmax.f32 %v5117, 0.0
        %v5272 = vmax.f32 %v5119, 0.0
        %v5273 = vmax.f32 %v4737, 0.0
        %v5274 = vmax.f32 %v4739, 0.0
        %v5275 = vmax.f32 %v5123, 0.0
        %v5276 = vmax.f32 %v5125, 0.0
        %v5277 = vmax.f32 %v4741, 0.0
        %v5278 = vmax.f32 %v4743, 0.0
        %v5279 = vmax.f32 %v5127, 0.0
        %v5280 = vmax.f32 %v5129, 0.0
        %v5281 = vmax.f32 %v4747, 0.0
        %v5282 = vmax.f32 %v4749, 0.0
        %v5283 = vmax.f32 %v5133, 0.0
        %v5284 = vmax.f32 %v5135, 0.0
        %v5285 = vmax.f32 %v4751, 0.0
        %v5286 = vmax.f32 %v4753, 0.0
        %v5287 = vmax.f32 %v5137, 0.0
        %v5288 = vmax.f32 %v5139, 0.0
        %v5289 = vmax.f32 %v4757, 0.0
        %v5290 = vmax.f32 %v4759, 0.0
        %v5291 = vmax.f32 %v5143, 0.0
        %v5292 = vmax.f32 %v5145, 0.0
        %v5293 = vmax.f32 %v4761, 0.0
        %v5294 = vmax.f32 %v4763, 0.0
        %v5295 = vmax.f32 %v5147, 0.0
        %v5296 = vmax.f32 %v5149, 0.0
        %v5297 = vmax.f32 %v4767, 0.0
        %v5298 = vmax.f32 %v4769, 0.0
        %v5299 = vmax.f32 %v5153, 0.0
        %v5300 = vmax.f32 %v5155, 0.0
        %v5301 = vmax.f32 %v4771, 0.0
        %v5302 = vmax.f32 %v4773, 0.0
        %v5303 = vmax.f32 %v5157, 0.0
        %v5304 = vmax.f32 %v5159, 0.0
        %v5305 = vmax.f32 %v4777, 0.0
        %v5306 = vmax.f32 %v4779, 0.0
        %v5307 = vmax.f32 %v5163, 0.0
        %v5308 = vmax.f32 %v5165, 0.0
        %v5309 = vmax.f32 %v4781, 0.0
        %v5310 = vmax.f32 %v4783, 0.0
        %v5311 = vmax.f32 %v5167, 0.0
        %v5312 = vmax.f32 %v5169, 0.0
        %v5313 = vmax.f32 %v4787, 0.0
        %v5314 = vmax.f32 %v4789, 0.0
        %v5315 = vmax.f32 %v5173, 0.0
        %v5316 = vmax.f32 %v5175, 0.0
        %v5317 = vmax.f32 %v4791, 0.0
        %v5318 = vmax.f32 %v4793, 0.0
        %v5319 = vmax.f32 %v5177, 0.0
        %v5320 = vmax.f32 %v5179, 0.0
        %v5321 = vmax.f32 %v4797, 0.0
        %v5322 = vmax.f32 %v4799, 0.0
        %v5323 = vmax.f32 %v5183, 0.0
        %v5324 = vmax.f32 %v5185, 0.0
        %v5325 = vmax.f32 %v4801, 0.0
        %v5326 = vmax.f32 %v4803, 0.0
        %v5327 = vmax.f32 %v5187, 0.0
        %v5328 = vmax.f32 %v5189, 0.0
        %v5329 = vmax.f32 %v4807, 0.0
        %v5330 = vmax.f32 %v4809, 0.0
        %v5331 = vmax.f32 %v5193, 0.0
        %v5332 = vmax.f32 %v5195, 0.0
        %v5333 = vmax.f32 %v4811, 0.0
        %v5334 = vmax.f32 %v4813, 0.0
        %v5335 = vmax.f32 %v5197, 0.0
        %v5336 = vmax.f32 %v5199, 0.0
        %v5337 = vmax.f32 %v4817, 0.0
        %v5338 = vmax.f32 %v4819, 0.0
        %v5339 = vmax.f32 %v5203, 0.0
        %v5340 = vmax.f32 %v5205, 0.0
        %v5341 = vmax.f32 %v4821, 0.0
        %v5342 = vmax.f32 %v4823, 0.0
        %v5343 = vmax.f32 %v5207, 0.0
        %v5344 = vmax.f32 %v5209, 0.0
        %v5345 = vmax.f32 %v4827, 0.0
        %v5346 = vmax.f32 %v4829, 0.0
        %v5347 = vmax.f32 %v5213, 0.0
        %v5348 = vmax.f32 %v5215, 0.0
        %v5349 = vmax.f32 %v4831, 0.0
        %v5350 = vmax.f32 %v4833, 0.0
        %v5351 = vmax.f32 %v5217, 0.0
        %v5352 = vmax.f32 %v5219, 0.0
        %v5353 = vmax.f32 %v4837, 0.0
        %v5354 = vmax.f32 %v4839, 0.0
        %v5355 = vmax.f32 %v5223, 0.0
        %v5356 = vmax.f32 %v5225, 0.0
        %v5357 = vmax.f32 %v4841, 0.0
        %v5358 = vmax.f32 %v4843, 0.0
        %v5359 = vmax.f32 %v5227, 0.0
        %v5360 = vmax.f32 %v5229, 0.0
        %v5361 = vmax.f32 %v4847, 0.0
        %v5362 = vmax.f32 %v4849, 0.0
        %v5363 = vmax.f32 %v5233, 0.0
        %v5364 = vmax.f32 %v5235, 0.0
        %v5365 = vmax.f32 %v4851, 0.0
        %v5366 = vmax.f32 %v4853, 0.0
        %v5367 = vmax.f32 %v5237, 0.0
        %v5368 = vmax.f32 %v5239, 0.0
        %v5369 = vpack.c.bf16 %v5245, %v5241
        %v5370 = vpack.c.bf16 %v5246, %v5242
        %v5371 = vpack.c.bf16 %v5247, %v5243
        %v5372 = vpack.c.bf16 %v5248, %v5244
        %v5373 = vpack.c.bf16 %v5253, %v5249
        %v5374 = vpack.c.bf16 %v5254, %v5250
        %v5375 = vpack.c.bf16 %v5255, %v5251
        %v5376 = vpack.c.bf16 %v5256, %v5252
        %v5377 = vpack.c.bf16 %v5261, %v5257
        %v5378 = vpack.c.bf16 %v5262, %v5258
        %v5379 = vpack.c.bf16 %v5263, %v5259
        %v5380 = vpack.c.bf16 %v5264, %v5260
        %v5381 = vpack.c.bf16 %v5269, %v5265
        %v5382 = vpack.c.bf16 %v5270, %v5266
        %v5383 = vpack.c.bf16 %v5271, %v5267
        %v5384 = vpack.c.bf16 %v5272, %v5268
        %v5385 = vpack.c.bf16 %v5277, %v5273
        %v5386 = vpack.c.bf16 %v5278, %v5274
        %v5387 = vpack.c.bf16 %v5279, %v5275
        %v5388 = vpack.c.bf16 %v5280, %v5276
        %v5389 = vpack.c.bf16 %v5285, %v5281
        %v5390 = vpack.c.bf16 %v5286, %v5282
        %v5391 = vpack.c.bf16 %v5287, %v5283
        %v5392 = vpack.c.bf16 %v5288, %v5284
        %v5393 = vpack.c.bf16 %v5293, %v5289
        %v5394 = vpack.c.bf16 %v5294, %v5290
        %v5395 = vpack.c.bf16 %v5295, %v5291
        %v5396 = vpack.c.bf16 %v5296, %v5292
        %v5397 = vpack.c.bf16 %v5301, %v5297
        %v5398 = vpack.c.bf16 %v5302, %v5298
        %v5399 = vpack.c.bf16 %v5303, %v5299
        %v5400 = vpack.c.bf16 %v5304, %v5300
        %v5401 = vpack.c.bf16 %v5309, %v5305
        %v5402 = vpack.c.bf16 %v5310, %v5306
        %v5403 = vpack.c.bf16 %v5311, %v5307
        %v5404 = vpack.c.bf16 %v5312, %v5308
        %v5405 = vpack.c.bf16 %v5317, %v5313
        %v5406 = vpack.c.bf16 %v5318, %v5314
        %v5407 = vpack.c.bf16 %v5319, %v5315
        %v5408 = vpack.c.bf16 %v5320, %v5316
        %v5409 = vpack.c.bf16 %v5325, %v5321
        %v5410 = vpack.c.bf16 %v5326, %v5322
        %v5411 = vpack.c.bf16 %v5327, %v5323
        %v5412 = vpack.c.bf16 %v5328, %v5324
        %v5413 = vpack.c.bf16 %v5333, %v5329
        %v5414 = vpack.c.bf16 %v5334, %v5330
        %v5415 = vpack.c.bf16 %v5335, %v5331
        %v5416 = vpack.c.bf16 %v5336, %v5332
        %v5417 = vpack.c.bf16 %v5341, %v5337
        %v5418 = vpack.c.bf16 %v5342, %v5338
        %v5419 = vpack.c.bf16 %v5343, %v5339
        %v5420 = vpack.c.bf16 %v5344, %v5340
        %v5421 = vpack.c.bf16 %v5349, %v5345
        %v5422 = vpack.c.bf16 %v5350, %v5346
        %v5423 = vpack.c.bf16 %v5351, %v5347
        %v5424 = vpack.c.bf16 %v5352, %v5348
        %v5425 = vpack.c.bf16 %v5357, %v5353
        %v5426 = vpack.c.bf16 %v5358, %v5354
        %v5427 = vpack.c.bf16 %v5359, %v5355
        %v5428 = vpack.c.bf16 %v5360, %v5356
        %v5429 = vpack.c.bf16 %v5365, %v5361
        %v5430 = vpack.c.bf16 %v5366, %v5362
        %v5431 = vpack.c.bf16 %v5367, %v5363
        %v5432 = vpack.c.bf16 %v5368, %v5364
        %v5433 = vld [vmem:[#allocation16] sm:$0xff]
        %v5434 = vld [vmem:[#allocation16 + $0x8] sm:$0xff]
        %v5435 = vld [vmem:[#allocation16 + $0x10] sm:$0xff]
        %v5436 = vld [vmem:[#allocation16 + $0x18] sm:$0xff]
        %v5437 = vld [vmem:[#allocation16 + $0x20] sm:$0xff]
        %v5438 = vld [vmem:[#allocation16 + $0x28] sm:$0xff]
        %v5439 = vld [vmem:[#allocation16 + $0x30] sm:$0xff]
        %v5440 = vld [vmem:[#allocation16 + $0x38] sm:$0xff]
        %v5441 = vld [vmem:[#allocation16 + $0x40] sm:$0xff]
        %v5442 = vld [vmem:[#allocation16 + $0x48] sm:$0xff]
        %v5443 = vld [vmem:[#allocation16 + $0x50] sm:$0xff]
        %v5444 = vld [vmem:[#allocation16 + $0x58] sm:$0xff]
        %v5445 = vld [vmem:[#allocation16 + $0x60] sm:$0xff]
        %v5446 = vld [vmem:[#allocation16 + $0x68] sm:$0xff]
        %v5447 = vld [vmem:[#allocation16 + $0x70] sm:$0xff]
        %v5448 = vld [vmem:[#allocation16 + $0x78] sm:$0xff]
        %v5449 = vld [vmem:[#allocation16 + $0x80] sm:$0xff]
        %v5450 = vld [vmem:[#allocation16 + $0x88] sm:$0xff]
        %v5451 = vld [vmem:[#allocation16 + $0x90] sm:$0xff]
        %v5452 = vld [vmem:[#allocation16 + $0x98] sm:$0xff]
        %v5453 = vld [vmem:[#allocation16 + $0xa0] sm:$0xff]
        %v5454 = vld [vmem:[#allocation16 + $0xa8] sm:$0xff]
        %v5455 = vld [vmem:[#allocation16 + $0xb0] sm:$0xff]
        %v5456 = vld [vmem:[#allocation16 + $0xb8] sm:$0xff]
        %v5457 = vld [vmem:[#allocation16 + $0xc0] sm:$0xff]
        %v5458 = vld [vmem:[#allocation16 + $0xc8] sm:$0xff]
        %v5459 = vld [vmem:[#allocation16 + $0xd0] sm:$0xff]
        %v5460 = vld [vmem:[#allocation16 + $0xd8] sm:$0xff]
        %v5461 = vld [vmem:[#allocation16 + $0xe0] sm:$0xff]
        %v5462 = vld [vmem:[#allocation16 + $0xe8] sm:$0xff]
        %v5463 = vld [vmem:[#allocation16 + $0xf0] sm:$0xff]
        %v5464 = vld [vmem:[#allocation16 + $0xf8] sm:$0xff]
        %v5465 = vld [vmem:[#allocation16 + $0x100] sm:$0xff]
        %v5466 = vld [vmem:[#allocation16 + $0x108] sm:$0xff]
        %v5467 = vld [vmem:[#allocation16 + $0x110] sm:$0xff]
        %v5468 = vld [vmem:[#allocation16 + $0x118] sm:$0xff]
        %v5469 = vld [vmem:[#allocation16 + $0x120] sm:$0xff]
        %v5470 = vld [vmem:[#allocation16 + $0x128] sm:$0xff]
        %v5471 = vld [vmem:[#allocation16 + $0x130] sm:$0xff]
        %v5472 = vld [vmem:[#allocation16 + $0x138] sm:$0xff]
        %v5473 = vld [vmem:[#allocation16 + $0x140] sm:$0xff]
        %v5474 = vld [vmem:[#allocation16 + $0x148] sm:$0xff]
        %v5475 = vld [vmem:[#allocation16 + $0x150] sm:$0xff]
        %v5476 = vld [vmem:[#allocation16 + $0x158] sm:$0xff]
        %v5477 = vld [vmem:[#allocation16 + $0x160] sm:$0xff]
        %v5478 = vld [vmem:[#allocation16 + $0x168] sm:$0xff]
        %v5479 = vld [vmem:[#allocation16 + $0x170] sm:$0xff]
        %v5480 = vld [vmem:[#allocation16 + $0x178] sm:$0xff]
        %v5481 = vld [vmem:[#allocation16 + $0x180] sm:$0xff]
        %v5482 = vld [vmem:[#allocation16 + $0x188] sm:$0xff]
        %v5483 = vld [vmem:[#allocation16 + $0x190] sm:$0xff]
        %v5484 = vld [vmem:[#allocation16 + $0x198] sm:$0xff]
        %v5485 = vld [vmem:[#allocation16 + $0x1a0] sm:$0xff]
        %v5486 = vld [vmem:[#allocation16 + $0x1a8] sm:$0xff]
        %v5487 = vld [vmem:[#allocation16 + $0x1b0] sm:$0xff]
        %v5488 = vld [vmem:[#allocation16 + $0x1b8] sm:$0xff]
        %v5489 = vld [vmem:[#allocation16 + $0x1c0] sm:$0xff]
        %v5490 = vld [vmem:[#allocation16 + $0x1c8] sm:$0xff]
        %v5491 = vld [vmem:[#allocation16 + $0x1d0] sm:$0xff]
        %v5492 = vld [vmem:[#allocation16 + $0x1d8] sm:$0xff]
        %v5493 = vld [vmem:[#allocation16 + $0x1e0] sm:$0xff]
        %v5494 = vld [vmem:[#allocation16 + $0x1e8] sm:$0xff]
        %v5495 = vld [vmem:[#allocation16 + $0x1f0] sm:$0xff]
        %v5496 = vld [vmem:[#allocation16 + $0x1f8] sm:$0xff]
        %v5497 = vld [vmem:[#allocation16 + $0x200] sm:$0xff]
        %v5498 = vld [vmem:[#allocation16 + $0x208] sm:$0xff]
        %v5499 = vld [vmem:[#allocation16 + $0x210] sm:$0xff]
        %v5500 = vld [vmem:[#allocation16 + $0x218] sm:$0xff]
        %v5501 = vld [vmem:[#allocation16 + $0x220] sm:$0xff]
        %v5502 = vld [vmem:[#allocation16 + $0x228] sm:$0xff]
        %v5503 = vld [vmem:[#allocation16 + $0x230] sm:$0xff]
        %v5504 = vld [vmem:[#allocation16 + $0x238] sm:$0xff]
        %v5505 = vld [vmem:[#allocation16 + $0x240] sm:$0xff]
        %v5506 = vld [vmem:[#allocation16 + $0x248] sm:$0xff]
        %v5507 = vld [vmem:[#allocation16 + $0x250] sm:$0xff]
        %v5508 = vld [vmem:[#allocation16 + $0x258] sm:$0xff]
        %v5509 = vld [vmem:[#allocation16 + $0x260] sm:$0xff]
        %v5510 = vld [vmem:[#allocation16 + $0x268] sm:$0xff]
        %v5511 = vld [vmem:[#allocation16 + $0x270] sm:$0xff]
        %v5512 = vld [vmem:[#allocation16 + $0x278] sm:$0xff]
        %v5513 = vld [vmem:[#allocation16 + $0x280] sm:$0xff]
        %v5514 = vld [vmem:[#allocation16 + $0x288] sm:$0xff]
        %v5515 = vld [vmem:[#allocation16 + $0x290] sm:$0xff]
        %v5516 = vld [vmem:[#allocation16 + $0x298] sm:$0xff]
        %v5517 = vld [vmem:[#allocation16 + $0x2a0] sm:$0xff]
        %v5518 = vld [vmem:[#allocation16 + $0x2a8] sm:$0xff]
        %v5519 = vld [vmem:[#allocation16 + $0x2b0] sm:$0xff]
        %v5520 = vld [vmem:[#allocation16 + $0x2b8] sm:$0xff]
        %v5521 = vld [vmem:[#allocation16 + $0x2c0] sm:$0xff]
        %v5522 = vld [vmem:[#allocation16 + $0x2c8] sm:$0xff]
        %v5523 = vld [vmem:[#allocation16 + $0x2d0] sm:$0xff]
        %v5524 = vld [vmem:[#allocation16 + $0x2d8] sm:$0xff]
        %v5525 = vld [vmem:[#allocation16 + $0x2e0] sm:$0xff]
        %v5526 = vld [vmem:[#allocation16 + $0x2e8] sm:$0xff]
        %v5527 = vld [vmem:[#allocation16 + $0x2f0] sm:$0xff]
        %v5528 = vld [vmem:[#allocation16 + $0x2f8] sm:$0xff]
        %v5529 = vld [vmem:[#allocation16 + $0x300] sm:$0xff]
        %v5530 = vld [vmem:[#allocation16 + $0x308] sm:$0xff]
        %v5531 = vld [vmem:[#allocation16 + $0x310] sm:$0xff]
        %v5532 = vld [vmem:[#allocation16 + $0x318] sm:$0xff]
        %v5533 = vld [vmem:[#allocation16 + $0x320] sm:$0xff]
        %v5534 = vld [vmem:[#allocation16 + $0x328] sm:$0xff]
        %v5535 = vld [vmem:[#allocation16 + $0x330] sm:$0xff]
        %v5536 = vld [vmem:[#allocation16 + $0x338] sm:$0xff]
        %v5537 = vld [vmem:[#allocation16 + $0x340] sm:$0xff]
        %v5538 = vld [vmem:[#allocation16 + $0x348] sm:$0xff]
        %v5539 = vld [vmem:[#allocation16 + $0x350] sm:$0xff]
        %v5540 = vld [vmem:[#allocation16 + $0x358] sm:$0xff]
        %v5541 = vld [vmem:[#allocation16 + $0x360] sm:$0xff]
        %v5542 = vld [vmem:[#allocation16 + $0x368] sm:$0xff]
        %v5543 = vld [vmem:[#allocation16 + $0x370] sm:$0xff]
        %v5544 = vld [vmem:[#allocation16 + $0x378] sm:$0xff]
        %v5545 = vld [vmem:[#allocation16 + $0x380] sm:$0xff]
        %v5546 = vld [vmem:[#allocation16 + $0x388] sm:$0xff]
        %v5547 = vld [vmem:[#allocation16 + $0x390] sm:$0xff]
        %v5548 = vld [vmem:[#allocation16 + $0x398] sm:$0xff]
        %v5549 = vld [vmem:[#allocation16 + $0x3a0] sm:$0xff]
        %v5550 = vld [vmem:[#allocation16 + $0x3a8] sm:$0xff]
        %v5551 = vld [vmem:[#allocation16 + $0x3b0] sm:$0xff]
        %v5552 = vld [vmem:[#allocation16 + $0x3b8] sm:$0xff]
        %v5553 = vld [vmem:[#allocation16 + $0x3c0] sm:$0xff]
        %v5554 = vld [vmem:[#allocation16 + $0x3c8] sm:$0xff]
        %v5555 = vld [vmem:[#allocation16 + $0x3d0] sm:$0xff]
        %v5556 = vld [vmem:[#allocation16 + $0x3d8] sm:$0xff]
        %v5557 = vld [vmem:[#allocation16 + $0x3e0] sm:$0xff]
        %v5558 = vld [vmem:[#allocation16 + $0x3e8] sm:$0xff]
        %v5559 = vld [vmem:[#allocation16 + $0x3f0] sm:$0xff]
        %v5560 = vld [vmem:[#allocation16 + $0x3f8] sm:$0xff]
        %v5561 = vld [vmem:[#allocation17] sm:$0xf]
        %v5563 = vlaneseq
        %v5564 = vshrl.u32 %v5563, 7
        %v5565 = vsub.s32 0, %v5564
        %v5566 = vrot.slane %v5561, %v5565
        %v5567 = vlaneseq
        %v5568 = vshrl.u32 %v5567, 7
        %v5569 = vsub.s32 1, %v5568
        %v5570 = vrot.slane %v5561, %v5569
        %v5571 = vlaneseq
        %v5572 = vshrl.u32 %v5571, 7
        %v5573 = vsub.s32 2, %v5572
        %v5574 = vrot.slane %v5561, %v5573
        %v5575 = vlaneseq
        %v5576 = vshrl.u32 %v5575, 7
        %v5577 = vsub.s32 3, %v5576
        %v5578 = vrot.slane %v5561, %v5577
        %v5711 = vunpack.c.l.b16 %v5433
        %v5712 = vunpack.c.h.b16 %v5433
        %v5713 = vunpack.c.l.b16 %v5434
        %v5714 = vunpack.c.h.b16 %v5434
        %v5715 = vunpack.c.l.b16 %v5435
        %v5716 = vunpack.c.h.b16 %v5435
        %v5717 = vunpack.c.l.b16 %v5436
        %v5718 = vunpack.c.h.b16 %v5436
        %v5719 = vunpack.c.l.b16 %v5437
        %v5720 = vunpack.c.h.b16 %v5437
        %v5721 = vunpack.c.l.b16 %v5438
        %v5722 = vunpack.c.h.b16 %v5438
        %v5723 = vunpack.c.l.b16 %v5439
        %v5724 = vunpack.c.h.b16 %v5439
        %v5725 = vunpack.c.l.b16 %v5440
        %v5726 = vunpack.c.h.b16 %v5440
        %v5727 = vunpack.c.l.b16 %v5441
        %v5728 = vunpack.c.h.b16 %v5441
        %v5729 = vunpack.c.l.b16 %v5442
        %v5730 = vunpack.c.h.b16 %v5442
        %v5731 = vunpack.c.l.b16 %v5443
        %v5732 = vunpack.c.h.b16 %v5443
        %v5733 = vunpack.c.l.b16 %v5444
        %v5734 = vunpack.c.h.b16 %v5444
        %v5735 = vunpack.c.l.b16 %v5445
        %v5736 = vunpack.c.h.b16 %v5445
        %v5737 = vunpack.c.l.b16 %v5446
        %v5738 = vunpack.c.h.b16 %v5446
        %v5739 = vunpack.c.l.b16 %v5447
        %v5740 = vunpack.c.h.b16 %v5447
        %v5741 = vunpack.c.l.b16 %v5448
        %v5742 = vunpack.c.h.b16 %v5448
        %v5743 = vunpack.c.l.b16 %v5449
        %v5744 = vunpack.c.h.b16 %v5449
        %v5745 = vunpack.c.l.b16 %v5450
        %v5746 = vunpack.c.h.b16 %v5450
        %v5747 = vunpack.c.l.b16 %v5451
        %v5748 = vunpack.c.h.b16 %v5451
        %v5749 = vunpack.c.l.b16 %v5452
        %v5750 = vunpack.c.h.b16 %v5452
        %v5751 = vunpack.c.l.b16 %v5453
        %v5752 = vunpack.c.h.b16 %v5453
        %v5753 = vunpack.c.l.b16 %v5454
        %v5754 = vunpack.c.h.b16 %v5454
        %v5755 = vunpack.c.l.b16 %v5455
        %v5756 = vunpack.c.h.b16 %v5455
        %v5757 = vunpack.c.l.b16 %v5456
        %v5758 = vunpack.c.h.b16 %v5456
        %v5759 = vunpack.c.l.b16 %v5457
        %v5760 = vunpack.c.h.b16 %v5457
        %v5761 = vunpack.c.l.b16 %v5458
        %v5762 = vunpack.c.h.b16 %v5458
        %v5763 = vunpack.c.l.b16 %v5459
        %v5764 = vunpack.c.h.b16 %v5459
        %v5765 = vunpack.c.l.b16 %v5460
        %v5766 = vunpack.c.h.b16 %v5460
        %v5767 = vunpack.c.l.b16 %v5461
        %v5768 = vunpack.c.h.b16 %v5461
        %v5769 = vunpack.c.l.b16 %v5462
        %v5770 = vunpack.c.h.b16 %v5462
        %v5771 = vunpack.c.l.b16 %v5463
        %v5772 = vunpack.c.h.b16 %v5463
        %v5773 = vunpack.c.l.b16 %v5464
        %v5774 = vunpack.c.h.b16 %v5464
        %v5775 = vunpack.c.l.b16 %v5465
        %v5776 = vunpack.c.h.b16 %v5465
        %v5777 = vunpack.c.l.b16 %v5466
        %v5778 = vunpack.c.h.b16 %v5466
        %v5779 = vunpack.c.l.b16 %v5467
        %v5780 = vunpack.c.h.b16 %v5467
        %v5781 = vunpack.c.l.b16 %v5468
        %v5782 = vunpack.c.h.b16 %v5468
        %v5783 = vunpack.c.l.b16 %v5469
        %v5784 = vunpack.c.h.b16 %v5469
        %v5785 = vunpack.c.l.b16 %v5470
        %v5786 = vunpack.c.h.b16 %v5470
        %v5787 = vunpack.c.l.b16 %v5471
        %v5788 = vunpack.c.h.b16 %v5471
        %v5789 = vunpack.c.l.b16 %v5472
        %v5790 = vunpack.c.h.b16 %v5472
        %v5791 = vunpack.c.l.b16 %v5473
        %v5792 = vunpack.c.h.b16 %v5473
        %v5793 = vunpack.c.l.b16 %v5474
        %v5794 = vunpack.c.h.b16 %v5474
        %v5795 = vunpack.c.l.b16 %v5475
        %v5796 = vunpack.c.h.b16 %v5475
        %v5797 = vunpack.c.l.b16 %v5476
        %v5798 = vunpack.c.h.b16 %v5476
        %v5799 = vunpack.c.l.b16 %v5477
        %v5800 = vunpack.c.h.b16 %v5477
        %v5801 = vunpack.c.l.b16 %v5478
        %v5802 = vunpack.c.h.b16 %v5478
        %v5803 = vunpack.c.l.b16 %v5479
        %v5804 = vunpack.c.h.b16 %v5479
        %v5805 = vunpack.c.l.b16 %v5480
        %v5806 = vunpack.c.h.b16 %v5480
        %v5807 = vunpack.c.l.b16 %v5481
        %v5808 = vunpack.c.h.b16 %v5481
        %v5809 = vunpack.c.l.b16 %v5482
        %v5810 = vunpack.c.h.b16 %v5482
        %v5811 = vunpack.c.l.b16 %v5483
        %v5812 = vunpack.c.h.b16 %v5483
        %v5813 = vunpack.c.l.b16 %v5484
        %v5814 = vunpack.c.h.b16 %v5484
        %v5815 = vunpack.c.l.b16 %v5485
        %v5816 = vunpack.c.h.b16 %v5485
        %v5817 = vunpack.c.l.b16 %v5486
        %v5818 = vunpack.c.h.b16 %v5486
        %v5819 = vunpack.c.l.b16 %v5487
        %v5820 = vunpack.c.h.b16 %v5487
        %v5821 = vunpack.c.l.b16 %v5488
        %v5822 = vunpack.c.h.b16 %v5488
        %v5823 = vunpack.c.l.b16 %v5489
        %v5824 = vunpack.c.h.b16 %v5489
        %v5825 = vunpack.c.l.b16 %v5490
        %v5826 = vunpack.c.h.b16 %v5490
        %v5827 = vunpack.c.l.b16 %v5491
        %v5828 = vunpack.c.h.b16 %v5491
        %v5829 = vunpack.c.l.b16 %v5492
        %v5830 = vunpack.c.h.b16 %v5492
        %v5831 = vunpack.c.l.b16 %v5493
        %v5832 = vunpack.c.h.b16 %v5493
        %v5833 = vunpack.c.l.b16 %v5494
        %v5834 = vunpack.c.h.b16 %v5494
        %v5835 = vunpack.c.l.b16 %v5495
        %v5836 = vunpack.c.h.b16 %v5495
        %v5837 = vunpack.c.l.b16 %v5496
        %v5838 = vunpack.c.h.b16 %v5496
        %v5839 = vunpack.c.l.b16 %v5497
        %v5840 = vunpack.c.h.b16 %v5497
        %v5841 = vunpack.c.l.b16 %v5498
        %v5842 = vunpack.c.h.b16 %v5498
        %v5843 = vunpack.c.l.b16 %v5499
        %v5844 = vunpack.c.h.b16 %v5499
        %v5845 = vunpack.c.l.b16 %v5500
        %v5846 = vunpack.c.h.b16 %v5500
        %v5847 = vunpack.c.l.b16 %v5501
        %v5848 = vunpack.c.h.b16 %v5501
        %v5849 = vunpack.c.l.b16 %v5502
        %v5850 = vunpack.c.h.b16 %v5502
        %v5851 = vunpack.c.l.b16 %v5503
        %v5852 = vunpack.c.h.b16 %v5503
        %v5853 = vunpack.c.l.b16 %v5504
        %v5854 = vunpack.c.h.b16 %v5504
        %v5855 = vunpack.c.l.b16 %v5505
        %v5856 = vunpack.c.h.b16 %v5505
        %v5857 = vunpack.c.l.b16 %v5506
        %v5858 = vunpack.c.h.b16 %v5506
        %v5859 = vunpack.c.l.b16 %v5507
        %v5860 = vunpack.c.h.b16 %v5507
        %v5861 = vunpack.c.l.b16 %v5508
        %v5862 = vunpack.c.h.b16 %v5508
        %v5863 = vunpack.c.l.b16 %v5509
        %v5864 = vunpack.c.h.b16 %v5509
        %v5865 = vunpack.c.l.b16 %v5510
        %v5866 = vunpack.c.h.b16 %v5510
        %v5867 = vunpack.c.l.b16 %v5511
        %v5868 = vunpack.c.h.b16 %v5511
        %v5869 = vunpack.c.l.b16 %v5512
        %v5870 = vunpack.c.h.b16 %v5512
        %v5871 = vunpack.c.l.b16 %v5513
        %v5872 = vunpack.c.h.b16 %v5513
        %v5873 = vunpack.c.l.b16 %v5514
        %v5874 = vunpack.c.h.b16 %v5514
        %v5875 = vunpack.c.l.b16 %v5515
        %v5876 = vunpack.c.h.b16 %v5515
        %v5877 = vunpack.c.l.b16 %v5516
        %v5878 = vunpack.c.h.b16 %v5516
        %v5879 = vunpack.c.l.b16 %v5517
        %v5880 = vunpack.c.h.b16 %v5517
        %v5881 = vunpack.c.l.b16 %v5518
        %v5882 = vunpack.c.h.b16 %v5518
        %v5883 = vunpack.c.l.b16 %v5519
        %v5884 = vunpack.c.h.b16 %v5519
        %v5885 = vunpack.c.l.b16 %v5520
        %v5886 = vunpack.c.h.b16 %v5520
        %v5887 = vunpack.c.l.b16 %v5521
        %v5888 = vunpack.c.h.b16 %v5521
        %v5889 = vunpack.c.l.b16 %v5522
        %v5890 = vunpack.c.h.b16 %v5522
        %v5891 = vunpack.c.l.b16 %v5523
        %v5892 = vunpack.c.h.b16 %v5523
        %v5893 = vunpack.c.l.b16 %v5524
        %v5894 = vunpack.c.h.b16 %v5524
        %v5895 = vunpack.c.l.b16 %v5525
        %v5896 = vunpack.c.h.b16 %v5525
        %v5897 = vunpack.c.l.b16 %v5526
        %v5898 = vunpack.c.h.b16 %v5526
        %v5899 = vunpack.c.l.b16 %v5527
        %v5900 = vunpack.c.h.b16 %v5527
        %v5901 = vunpack.c.l.b16 %v5528
        %v5902 = vunpack.c.h.b16 %v5528
        %v5903 = vunpack.c.l.b16 %v5529
        %v5904 = vunpack.c.h.b16 %v5529
        %v5905 = vunpack.c.l.b16 %v5530
        %v5906 = vunpack.c.h.b16 %v5530
        %v5907 = vunpack.c.l.b16 %v5531
        %v5908 = vunpack.c.h.b16 %v5531
        %v5909 = vunpack.c.l.b16 %v5532
        %v5910 = vunpack.c.h.b16 %v5532
        %v5911 = vunpack.c.l.b16 %v5533
        %v5912 = vunpack.c.h.b16 %v5533
        %v5913 = vunpack.c.l.b16 %v5534
        %v5914 = vunpack.c.h.b16 %v5534
        %v5915 = vunpack.c.l.b16 %v5535
        %v5916 = vunpack.c.h.b16 %v5535
        %v5917 = vunpack.c.l.b16 %v5536
        %v5918 = vunpack.c.h.b16 %v5536
        %v5919 = vunpack.c.l.b16 %v5537
        %v5920 = vunpack.c.h.b16 %v5537
        %v5921 = vunpack.c.l.b16 %v5538
        %v5922 = vunpack.c.h.b16 %v5538
        %v5923 = vunpack.c.l.b16 %v5539
        %v5924 = vunpack.c.h.b16 %v5539
        %v5925 = vunpack.c.l.b16 %v5540
        %v5926 = vunpack.c.h.b16 %v5540
        %v5927 = vunpack.c.l.b16 %v5541
        %v5928 = vunpack.c.h.b16 %v5541
        %v5929 = vunpack.c.l.b16 %v5542
        %v5930 = vunpack.c.h.b16 %v5542
        %v5931 = vunpack.c.l.b16 %v5543
        %v5932 = vunpack.c.h.b16 %v5543
        %v5933 = vunpack.c.l.b16 %v5544
        %v5934 = vunpack.c.h.b16 %v5544
        %v5935 = vunpack.c.l.b16 %v5545
        %v5936 = vunpack.c.h.b16 %v5545
        %v5937 = vunpack.c.l.b16 %v5546
        %v5938 = vunpack.c.h.b16 %v5546
        %v5939 = vunpack.c.l.b16 %v5547
        %v5940 = vunpack.c.h.b16 %v5547
        %v5941 = vunpack.c.l.b16 %v5548
        %v5942 = vunpack.c.h.b16 %v5548
        %v5943 = vunpack.c.l.b16 %v5549
        %v5944 = vunpack.c.h.b16 %v5549
        %v5945 = vunpack.c.l.b16 %v5550
        %v5946 = vunpack.c.h.b16 %v5550
        %v5947 = vunpack.c.l.b16 %v5551
        %v5948 = vunpack.c.h.b16 %v5551
        %v5949 = vunpack.c.l.b16 %v5552
        %v5950 = vunpack.c.h.b16 %v5552
        %v5951 = vunpack.c.l.b16 %v5553
        %v5952 = vunpack.c.h.b16 %v5553
        %v5953 = vunpack.c.l.b16 %v5554
        %v5954 = vunpack.c.h.b16 %v5554
        %v5955 = vunpack.c.l.b16 %v5555
        %v5956 = vunpack.c.h.b16 %v5555
        %v5957 = vunpack.c.l.b16 %v5556
        %v5958 = vunpack.c.h.b16 %v5556
        %v5959 = vunpack.c.l.b16 %v5557
        %v5960 = vunpack.c.h.b16 %v5557
        %v5961 = vunpack.c.l.b16 %v5558
        %v5962 = vunpack.c.h.b16 %v5558
        %v5963 = vunpack.c.l.b16 %v5559
        %v5964 = vunpack.c.h.b16 %v5559
        %v5965 = vunpack.c.l.b16 %v5560
        %v5966 = vunpack.c.h.b16 %v5560
        %v5967 = vpack.c.b16 %v5715, %v5711
        %v5968 = vpack.c.b16 %v5716, %v5712
        %v5969 = vpack.c.b16 %v5717, %v5713
        %v5970 = vpack.c.b16 %v5718, %v5714
        %v5971 = vpack.c.b16 %v5723, %v5719
        %v5972 = vpack.c.b16 %v5724, %v5720
        %v5973 = vpack.c.b16 %v5725, %v5721
        %v5974 = vpack.c.b16 %v5726, %v5722
        %v5975 = vpack.c.b16 %v5731, %v5727
        %v5976 = vpack.c.b16 %v5732, %v5728
        %v5977 = vpack.c.b16 %v5733, %v5729
        %v5978 = vpack.c.b16 %v5734, %v5730
        %v5979 = vpack.c.b16 %v5739, %v5735
        %v5980 = vpack.c.b16 %v5740, %v5736
        %v5981 = vpack.c.b16 %v5741, %v5737
        %v5982 = vpack.c.b16 %v5742, %v5738
        %v5983 = vpack.c.b16 %v5747, %v5743
        %v5984 = vpack.c.b16 %v5748, %v5744
        %v5985 = vpack.c.b16 %v5749, %v5745
        %v5986 = vpack.c.b16 %v5750, %v5746
        %v5987 = vpack.c.b16 %v5755, %v5751
        %v5988 = vpack.c.b16 %v5756, %v5752
        %v5989 = vpack.c.b16 %v5757, %v5753
        %v5990 = vpack.c.b16 %v5758, %v5754
        %v5991 = vpack.c.b16 %v5763, %v5759
        %v5992 = vpack.c.b16 %v5764, %v5760
        %v5993 = vpack.c.b16 %v5765, %v5761
        %v5994 = vpack.c.b16 %v5766, %v5762
        %v5995 = vpack.c.b16 %v5771, %v5767
        %v5996 = vpack.c.b16 %v5772, %v5768
        %v5997 = vpack.c.b16 %v5773, %v5769
        %v5998 = vpack.c.b16 %v5774, %v5770
        %v5999 = vpack.c.b16 %v5779, %v5775
        %v6000 = vpack.c.b16 %v5780, %v5776
        %v6001 = vpack.c.b16 %v5781, %v5777
        %v6002 = vpack.c.b16 %v5782, %v5778
        %v6003 = vpack.c.b16 %v5787, %v5783
        %v6004 = vpack.c.b16 %v5788, %v5784
        %v6005 = vpack.c.b16 %v5789, %v5785
        %v6006 = vpack.c.b16 %v5790, %v5786
        %v6007 = vpack.c.b16 %v5795, %v5791
        %v6008 = vpack.c.b16 %v5796, %v5792
        %v6009 = vpack.c.b16 %v5797, %v5793
        %v6010 = vpack.c.b16 %v5798, %v5794
        %v6011 = vpack.c.b16 %v5803, %v5799
        %v6012 = vpack.c.b16 %v5804, %v5800
        %v6013 = vpack.c.b16 %v5805, %v5801
        %v6014 = vpack.c.b16 %v5806, %v5802
        %v6015 = vpack.c.b16 %v5811, %v5807
        %v6016 = vpack.c.b16 %v5812, %v5808
        %v6017 = vpack.c.b16 %v5813, %v5809
        %v6018 = vpack.c.b16 %v5814, %v5810
        %v6019 = vpack.c.b16 %v5819, %v5815
        %v6020 = vpack.c.b16 %v5820, %v5816
        %v6021 = vpack.c.b16 %v5821, %v5817
        %v6022 = vpack.c.b16 %v5822, %v5818
        %v6023 = vpack.c.b16 %v5827, %v5823
        %v6024 = vpack.c.b16 %v5828, %v5824
        %v6025 = vpack.c.b16 %v5829, %v5825
        %v6026 = vpack.c.b16 %v5830, %v5826
        %v6027 = vpack.c.b16 %v5835, %v5831
        %v6028 = vpack.c.b16 %v5836, %v5832
        %v6029 = vpack.c.b16 %v5837, %v5833
        %v6030 = vpack.c.b16 %v5838, %v5834
        %v6031 = vpack.c.b16 %v5843, %v5839
        %v6032 = vpack.c.b16 %v5844, %v5840
        %v6033 = vpack.c.b16 %v5845, %v5841
        %v6034 = vpack.c.b16 %v5846, %v5842
        %v6035 = vpack.c.b16 %v5851, %v5847
        %v6036 = vpack.c.b16 %v5852, %v5848
        %v6037 = vpack.c.b16 %v5853, %v5849
        %v6038 = vpack.c.b16 %v5854, %v5850
        %v6039 = vpack.c.b16 %v5859, %v5855
        %v6040 = vpack.c.b16 %v5860, %v5856
        %v6041 = vpack.c.b16 %v5861, %v5857
        %v6042 = vpack.c.b16 %v5862, %v5858
        %v6043 = vpack.c.b16 %v5867, %v5863
        %v6044 = vpack.c.b16 %v5868, %v5864
        %v6045 = vpack.c.b16 %v5869, %v5865
        %v6046 = vpack.c.b16 %v5870, %v5866
        %v6047 = vpack.c.b16 %v5875, %v5871
        %v6048 = vpack.c.b16 %v5876, %v5872
        %v6049 = vpack.c.b16 %v5877, %v5873
        %v6050 = vpack.c.b16 %v5878, %v5874
        %v6051 = vpack.c.b16 %v5883, %v5879
        %v6052 = vpack.c.b16 %v5884, %v5880
        %v6053 = vpack.c.b16 %v5885, %v5881
        %v6054 = vpack.c.b16 %v5886, %v5882
        %v6055 = vpack.c.b16 %v5891, %v5887
        %v6056 = vpack.c.b16 %v5892, %v5888
        %v6057 = vpack.c.b16 %v5893, %v5889
        %v6058 = vpack.c.b16 %v5894, %v5890
        %v6059 = vpack.c.b16 %v5899, %v5895
        %v6060 = vpack.c.b16 %v5900, %v5896
        %v6061 = vpack.c.b16 %v5901, %v5897
        %v6062 = vpack.c.b16 %v5902, %v5898
        %v6063 = vpack.c.b16 %v5907, %v5903
        %v6064 = vpack.c.b16 %v5908, %v5904
        %v6065 = vpack.c.b16 %v5909, %v5905
        %v6066 = vpack.c.b16 %v5910, %v5906
        %v6067 = vpack.c.b16 %v5915, %v5911
        %v6068 = vpack.c.b16 %v5916, %v5912
        %v6069 = vpack.c.b16 %v5917, %v5913
        %v6070 = vpack.c.b16 %v5918, %v5914
        %v6071 = vpack.c.b16 %v5923, %v5919
        %v6072 = vpack.c.b16 %v5924, %v5920
        %v6073 = vpack.c.b16 %v5925, %v5921
        %v6074 = vpack.c.b16 %v5926, %v5922
        %v6075 = vpack.c.b16 %v5931, %v5927
        %v6076 = vpack.c.b16 %v5932, %v5928
        %v6077 = vpack.c.b16 %v5933, %v5929
        %v6078 = vpack.c.b16 %v5934, %v5930
        %v6079 = vpack.c.b16 %v5939, %v5935
        %v6080 = vpack.c.b16 %v5940, %v5936
        %v6081 = vpack.c.b16 %v5941, %v5937
        %v6082 = vpack.c.b16 %v5942, %v5938
        %v6083 = vpack.c.b16 %v5947, %v5943
        %v6084 = vpack.c.b16 %v5948, %v5944
        %v6085 = vpack.c.b16 %v5949, %v5945
        %v6086 = vpack.c.b16 %v5950, %v5946
        %v6087 = vpack.c.b16 %v5955, %v5951
        %v6088 = vpack.c.b16 %v5956, %v5952
        %v6089 = vpack.c.b16 %v5957, %v5953
        %v6090 = vpack.c.b16 %v5958, %v5954
        %v6091 = vpack.c.b16 %v5963, %v5959
        %v6092 = vpack.c.b16 %v5964, %v5960
        %v6093 = vpack.c.b16 %v5965, %v5961
        %v6094 = vpack.c.b16 %v5966, %v5962
        %6223 = vmatprep.subr.bf16.mxu0 %v5968
        %6224 = vmatpush1.bf16.msra.mxu0 %v5967
        %6225 = vmatprep.subr.bf16.mxu0 %v5972
        %6226 = vmatpush1.bf16.msra.mxu0 %v5971
        %6227 = vmatprep.subr.bf16.mxu0 %v5976
        %6228 = vmatpush1.bf16.msra.mxu0 %v5975
        %6229 = vmatprep.subr.bf16.mxu0 %v5980
        %6230 = vmatpush1.bf16.msra.mxu0 %v5979
        %6231 = vmatprep.subr.bf16.mxu0 %v5984
        %6232 = vmatpush1.bf16.msra.mxu0 %v5983
        %6233 = vmatprep.subr.bf16.mxu0 %v5988
        %6234 = vmatpush1.bf16.msra.mxu0 %v5987
        %6235 = vmatprep.subr.bf16.mxu0 %v5992
        %6236 = vmatpush1.bf16.msra.mxu0 %v5991
        %6237 = vmatprep.subr.bf16.mxu0 %v5996
        %6238 = vmatpush1.bf16.msra.mxu0 %v5995
        %6239 = vmatprep.subr.bf16.mxu0 %v6000
        %6240 = vmatpush1.bf16.msra.mxu0 %v5999
        %6241 = vmatprep.subr.bf16.mxu0 %v6004
        %6242 = vmatpush1.bf16.msra.mxu0 %v6003
        %6243 = vmatprep.subr.bf16.mxu0 %v6008
        %6244 = vmatpush1.bf16.msra.mxu0 %v6007
        %6245 = vmatprep.subr.bf16.mxu0 %v6012
        %6246 = vmatpush1.bf16.msra.mxu0 %v6011
        %6247 = vmatprep.subr.bf16.mxu0 %v6016
        %6248 = vmatpush1.bf16.msra.mxu0 %v6015
        %6249 = vmatprep.subr.bf16.mxu0 %v6020
        %6250 = vmatpush1.bf16.msra.mxu0 %v6019
        %6251 = vmatprep.subr.bf16.mxu0 %v6024
        %6252 = vmatpush1.bf16.msra.mxu0 %v6023
        %6253 = vmatprep.subr.bf16.mxu0 %v6028
        %6254 = vmatpush1.bf16.msra.mxu0 %v6027
        %6255 = vmatprep.mubr.bf16.mxu0 %v5370
        %6256 = vmatmul.mubr.bf16.gmra.mrb[0].mxu0 %v5369
        %v6257 = vpop.f32.mrb[0].mxu0
        %v6258 = vadd.f32 %v5566, %v6257
        %v6259 = vpop.f32.mrb[0].mxu0
        %v6260 = vadd.f32 %v5570, %v6259
        %v6261 = vpop.f32.mrb[0].mxu0
        %v6262 = vadd.f32 %v5566, %v6261
        %v6263 = vpop.f32.mrb[0].mxu0
        %v6264 = vadd.f32 %v5570, %v6263
        %6265 = vmatprep.mubr.bf16.mxu0 %v5374
        %6266 = vmatmul.mubr.bf16.gmra.mrb[0].mxu0 %v5373
        %v6267 = vpop.f32.mrb[0].mxu0
        %v6268 = vadd.f32 %v5566, %v6267
        %v6269 = vpop.f32.mrb[0].mxu0
        %v6270 = vadd.f32 %v5570, %v6269
        %v6271 = vpop.f32.mrb[0].mxu0
        %v6272 = vadd.f32 %v5566, %v6271
        %v6273 = vpop.f32.mrb[0].mxu0
        %v6274 = vadd.f32 %v5570, %v6273
        %6275 = vmatprep.mubr.bf16.mxu0 %v5378
        %6276 = vmatmul.mubr.bf16.gmra.mrb[0].mxu0 %v5377
        %v6277 = vpop.f32.mrb[0].mxu0
        %v6278 = vadd.f32 %v5566, %v6277
        %v6279 = vpop.f32.mrb[0].mxu0
        %v6280 = vadd.f32 %v5570, %v6279
        %v6281 = vpop.f32.mrb[0].mxu0
        %v6282 = vadd.f32 %v5566, %v6281
        %v6283 = vpop.f32.mrb[0].mxu0
        %v6284 = vadd.f32 %v5570, %v6283
        %6285 = vmatprep.mubr.bf16.mxu0 %v5382
        %6286 = vmatmul.mubr.bf16.gmra.mrb[0].mxu0 %v5381
        %v6287 = vpop.f32.mrb[0].mxu0
        %v6288 = vadd.f32 %v5566, %v6287
        %v6289 = vpop.f32.mrb[0].mxu0
        %v6290 = vadd.f32 %v5570, %v6289
        %v6291 = vpop.f32.mrb[0].mxu0
        %v6292 = vadd.f32 %v5566, %v6291
        %v6293 = vpop.f32.mrb[0].mxu0
        %v6294 = vadd.f32 %v5570, %v6293
        %6295 = vmatprep.mubr.bf16.mxu0 %v5386
        %6296 = vmatmul.mubr.bf16.gmra.mrb[0].mxu0 %v5385
        %v6297 = vpop.f32.mrb[0].mxu0
        %v6298 = vadd.f32 %v5566, %v6297
        %v6299 = vpop.f32.mrb[0].mxu0
        %v6300 = vadd.f32 %v5570, %v6299
        %v6301 = vpop.f32.mrb[0].mxu0
        %v6302 = vadd.f32 %v5566, %v6301
        %v6303 = vpop.f32.mrb[0].mxu0
        %v6304 = vadd.f32 %v5570, %v6303
        %6305 = vmatprep.mubr.bf16.mxu0 %v5390
        %6306 = vmatmul.mubr.bf16.gmra.mrb[0].mxu0 %v5389
        %v6307 = vpop.f32.mrb[0].mxu0
        %v6308 = vadd.f32 %v5566, %v6307
        %v6309 = vpop.f32.mrb[0].mxu0
        %v6310 = vadd.f32 %v5570, %v6309
        %v6311 = vpop.f32.mrb[0].mxu0
        %v6312 = vadd.f32 %v5566, %v6311
        %v6313 = vpop.f32.mrb[0].mxu0
        %v6314 = vadd.f32 %v5570, %v6313
        %6315 = vmatprep.mubr.bf16.mxu0 %v5394
        %6316 = vmatmul.mubr.bf16.gmra.mrb[0].mxu0 %v5393
        %v6317 = vpop.f32.mrb[0].mxu0
        %v6318 = vadd.f32 %v5566, %v6317
        %v6319 = vpop.f32.mrb[0].mxu0
        %v6320 = vadd.f32 %v5570, %v6319
        %v6321 = vpop.f32.mrb[0].mxu0
        %v6322 = vadd.f32 %v5566, %v6321
        %v6323 = vpop.f32.mrb[0].mxu0
        %v6324 = vadd.f32 %v5570, %v6323
        %6325 = vmatprep.mubr.bf16.mxu0 %v5398
        %6326 = vmatmul.mubr.bf16.gmra.mrb[0].mxu0 %v5397
        %v6327 = vpop.f32.mrb[0].mxu0
        %v6328 = vadd.f32 %v5566, %v6327
        %v6329 = vpop.f32.mrb[0].mxu0
        %v6330 = vadd.f32 %v5570, %v6329
        %v6331 = vpop.f32.mrb[0].mxu0
        %v6332 = vadd.f32 %v5566, %v6331
        %v6333 = vpop.f32.mrb[0].mxu0
        %v6334 = vadd.f32 %v5570, %v6333
        %6335 = vmatprep.mubr.bf16.mxu0 %v5402
        %6336 = vmatmul.mubr.bf16.gmra.mrb[0].mxu0 %v5401
        %v6337 = vpop.f32.mrb[0].mxu0
        %v6338 = vadd.f32 %v5566, %v6337
        %v6339 = vpop.f32.mrb[0].mxu0
        %v6340 = vadd.f32 %v5570, %v6339
        %v6341 = vpop.f32.mrb[0].mxu0
        %v6342 = vadd.f32 %v5566, %v6341
        %v6343 = vpop.f32.mrb[0].mxu0
        %v6344 = vadd.f32 %v5570, %v6343
        %6345 = vmatprep.mubr.bf16.mxu0 %v5406
        %6346 = vmatmul.mubr.bf16.gmra.mrb[0].mxu0 %v5405
        %v6347 = vpop.f32.mrb[0].mxu0
        %v6348 = vadd.f32 %v5566, %v6347
        %v6349 = vpop.f32.mrb[0].mxu0
        %v6350 = vadd.f32 %v5570, %v6349
        %v6351 = vpop.f32.mrb[0].mxu0
        %v6352 = vadd.f32 %v5566, %v6351
        %v6353 = vpop.f32.mrb[0].mxu0
        %v6354 = vadd.f32 %v5570, %v6353
        %6355 = vmatprep.mubr.bf16.mxu0 %v5410
        %6356 = vmatmul.mubr.bf16.gmra.mrb[0].mxu0 %v5409
        %v6357 = vpop.f32.mrb[0].mxu0
        %v6358 = vadd.f32 %v5566, %v6357
        %v6359 = vpop.f32.mrb[0].mxu0
        %v6360 = vadd.f32 %v5570, %v6359
        %v6361 = vpop.f32.mrb[0].mxu0
        %v6362 = vadd.f32 %v5566, %v6361
        %v6363 = vpop.f32.mrb[0].mxu0
        %v6364 = vadd.f32 %v5570, %v6363
        %6365 = vmatprep.mubr.bf16.mxu0 %v5414
        %6366 = vmatmul.mubr.bf16.gmra.mrb[0].mxu0 %v5413
        %v6367 = vpop.f32.mrb[0].mxu0
        %v6368 = vadd.f32 %v5566, %v6367
        %v6369 = vpop.f32.mrb[0].mxu0
        %v6370 = vadd.f32 %v5570, %v6369
        %v6371 = vpop.f32.mrb[0].mxu0
        %v6372 = vadd.f32 %v5566, %v6371
        %v6373 = vpop.f32.mrb[0].mxu0
        %v6374 = vadd.f32 %v5570, %v6373
        %6375 = vmatprep.mubr.bf16.mxu0 %v5418
        %6376 = vmatmul.mubr.bf16.gmra.mrb[0].mxu0 %v5417
        %v6377 = vpop.f32.mrb[0].mxu0
        %v6378 = vadd.f32 %v5566, %v6377
        %v6379 = vpop.f32.mrb[0].mxu0
        %v6380 = vadd.f32 %v5570, %v6379
        %v6381 = vpop.f32.mrb[0].mxu0
        %v6382 = vadd.f32 %v5566, %v6381
        %v6383 = vpop.f32.mrb[0].mxu0
        %v6384 = vadd.f32 %v5570, %v6383
        %6385 = vmatprep.mubr.bf16.mxu0 %v5422
        %6386 = vmatmul.mubr.bf16.gmra.mrb[0].mxu0 %v5421
        %v6387 = vpop.f32.mrb[0].mxu0
        %v6388 = vadd.f32 %v5566, %v6387
        %v6389 = vpop.f32.mrb[0].mxu0
        %v6390 = vadd.f32 %v5570, %v6389
        %v6391 = vpop.f32.mrb[0].mxu0
        %v6392 = vadd.f32 %v5566, %v6391
        %v6393 = vpop.f32.mrb[0].mxu0
        %v6394 = vadd.f32 %v5570, %v6393
        %6395 = vmatprep.mubr.bf16.mxu0 %v5426
        %6396 = vmatmul.mubr.bf16.gmra.mrb[0].mxu0 %v5425
        %v6397 = vpop.f32.mrb[0].mxu0
        %v6398 = vadd.f32 %v5566, %v6397
        %v6399 = vpop.f32.mrb[0].mxu0
        %v6400 = vadd.f32 %v5570, %v6399
        %v6401 = vpop.f32.mrb[0].mxu0
        %v6402 = vadd.f32 %v5566, %v6401
        %v6403 = vpop.f32.mrb[0].mxu0
        %v6404 = vadd.f32 %v5570, %v6403
        %6405 = vmatprep.mubr.bf16.mxu0 %v5430
        %6406 = vmatmul.mubr.bf16.gmra.mrb[0].mxu0 %v5429
        %v6407 = vpop.f32.mrb[0].mxu0
        %v6408 = vadd.f32 %v5566, %v6407
        %v6409 = vpop.f32.mrb[0].mxu0
        %v6410 = vadd.f32 %v5570, %v6409
        %v6411 = vpop.f32.mrb[0].mxu0
        %v6412 = vadd.f32 %v5566, %v6411
        %v6413 = vpop.f32.mrb[0].mxu0
        %v6414 = vadd.f32 %v5570, %v6413
        %6415 = vdwg.mxu0
        %6416 = vmatprep.subr.bf16.mxu0 %v6032
        %6417 = vmatpush1.bf16.msra.mxu0 %v6031
        %6418 = vmatprep.subr.bf16.mxu0 %v6036
        %6419 = vmatpush1.bf16.msra.mxu0 %v6035
        %6420 = vmatprep.subr.bf16.mxu0 %v6040
        %6421 = vmatpush1.bf16.msra.mxu0 %v6039
        %6422 = vmatprep.subr.bf16.mxu0 %v6044
        %6423 = vmatpush1.bf16.msra.mxu0 %v6043
        %6424 = vmatprep.subr.bf16.mxu0 %v6048
        %6425 = vmatpush1.bf16.msra.mxu0 %v6047
        %6426 = vmatprep.subr.bf16.mxu0 %v6052
        %6427 = vmatpush1.bf16.msra.mxu0 %v6051
        %6428 = vmatprep.subr.bf16.mxu0 %v6056
        %6429 = vmatpush1.bf16.msra.mxu0 %v6055
        %6430 = vmatprep.subr.bf16.mxu0 %v6060
        %6431 = vmatpush1.bf16.msra.mxu0 %v6059
        %6432 = vmatprep.subr.bf16.mxu0 %v6064
        %6433 = vmatpush1.bf16.msra.mxu0 %v6063
        %6434 = vmatprep.subr.bf16.mxu0 %v6068
        %6435 = vmatpush1.bf16.msra.mxu0 %v6067
        %6436 = vmatprep.subr.bf16.mxu0 %v6072
        %6437 = vmatpush1.bf16.msra.mxu0 %v6071
        %6438 = vmatprep.subr.bf16.mxu0 %v6076
        %6439 = vmatpush1.bf16.msra.mxu0 %v6075
        %6440 = vmatprep.subr.bf16.mxu0 %v6080
        %6441 = vmatpush1.bf16.msra.mxu0 %v6079
        %6442 = vmatprep.subr.bf16.mxu0 %v6084
        %6443 = vmatpush1.bf16.msra.mxu0 %v6083
        %6444 = vmatprep.subr.bf16.mxu0 %v6088
        %6445 = vmatpush1.bf16.msra.mxu0 %v6087
        %6446 = vmatprep.subr.bf16.mxu0 %v6092
        %6447 = vmatpush1.bf16.msra.mxu0 %v6091
        %6448 = vmatprep.mubr.bf16.mxu0 %v5372
        %6449 = vmatmul.mubr.bf16.gmra.mrb[0].mxu0 %v5371
        %v6450 = vpop.f32.mrb[0].mxu0
        %v6451 = vadd.f32 %v6258, %v6450
        %v6452 = vpop.f32.mrb[0].mxu0
        %v6453 = vadd.f32 %v6260, %v6452
        %v6454 = vpop.f32.mrb[0].mxu0
        %v6455 = vadd.f32 %v6262, %v6454
        %v6456 = vpop.f32.mrb[0].mxu0
        %v6457 = vadd.f32 %v6264, %v6456
        %6458 = vmatprep.mubr.bf16.mxu0 %v5376
        %6459 = vmatmul.mubr.bf16.gmra.mrb[0].mxu0 %v5375
        %v6460 = vpop.f32.mrb[0].mxu0
        %v6461 = vadd.f32 %v6268, %v6460
        %v6462 = vpop.f32.mrb[0].mxu0
        %v6463 = vadd.f32 %v6270, %v6462
        %v6464 = vpop.f32.mrb[0].mxu0
        %v6465 = vadd.f32 %v6272, %v6464
        %v6466 = vpop.f32.mrb[0].mxu0
        %v6467 = vadd.f32 %v6274, %v6466
        %6468 = vmatprep.mubr.bf16.mxu0 %v5380
        %6469 = vmatmul.mubr.bf16.gmra.mrb[0].mxu0 %v5379
        %v6470 = vpop.f32.mrb[0].mxu0
        %v6471 = vadd.f32 %v6278, %v6470
        %v6472 = vpop.f32.mrb[0].mxu0
        %v6473 = vadd.f32 %v6280, %v6472
        %v6474 = vpop.f32.mrb[0].mxu0
        %v6475 = vadd.f32 %v6282, %v6474
        %v6476 = vpop.f32.mrb[0].mxu0
        %v6477 = vadd.f32 %v6284, %v6476
        %6478 = vmatprep.mubr.bf16.mxu0 %v5384
        %6479 = vmatmul.mubr.bf16.gmra.mrb[0].mxu0 %v5383
        %v6480 = vpop.f32.mrb[0].mxu0
        %v6481 = vadd.f32 %v6288, %v6480
        %v6482 = vpop.f32.mrb[0].mxu0
        %v6483 = vadd.f32 %v6290, %v6482
        %v6484 = vpop.f32.mrb[0].mxu0
        %v6485 = vadd.f32 %v6292, %v6484
        %v6486 = vpop.f32.mrb[0].mxu0
        %v6487 = vadd.f32 %v6294, %v6486
        %6488 = vmatprep.mubr.bf16.mxu0 %v5388
        %6489 = vmatmul.mubr.bf16.gmra.mrb[0].mxu0 %v5387
        %v6490 = vpop.f32.mrb[0].mxu0
        %v6491 = vadd.f32 %v6298, %v6490
        %v6492 = vpop.f32.mrb[0].mxu0
        %v6493 = vadd.f32 %v6300, %v6492
        %v6494 = vpop.f32.mrb[0].mxu0
        %v6495 = vadd.f32 %v6302, %v6494
        %v6496 = vpop.f32.mrb[0].mxu0
        %v6497 = vadd.f32 %v6304, %v6496
        %6498 = vmatprep.mubr.bf16.mxu0 %v5392
        %6499 = vmatmul.mubr.bf16.gmra.mrb[0].mxu0 %v5391
        %v6500 = vpop.f32.mrb[0].mxu0
        %v6501 = vadd.f32 %v6308, %v6500
        %v6502 = vpop.f32.mrb[0].mxu0
        %v6503 = vadd.f32 %v6310, %v6502
        %v6504 = vpop.f32.mrb[0].mxu0
        %v6505 = vadd.f32 %v6312, %v6504
        %v6506 = vpop.f32.mrb[0].mxu0
        %v6507 = vadd.f32 %v6314, %v6506
        %6508 = vmatprep.mubr.bf16.mxu0 %v5396
        %6509 = vmatmul.mubr.bf16.gmra.mrb[0].mxu0 %v5395
        %v6510 = vpop.f32.mrb[0].mxu0
        %v6511 = vadd.f32 %v6318, %v6510
        %v6512 = vpop.f32.mrb[0].mxu0
        %v6513 = vadd.f32 %v6320, %v6512
        %v6514 = vpop.f32.mrb[0].mxu0
        %v6515 = vadd.f32 %v6322, %v6514
        %v6516 = vpop.f32.mrb[0].mxu0
        %v6517 = vadd.f32 %v6324, %v6516
        %6518 = vmatprep.mubr.bf16.mxu0 %v5400
        %6519 = vmatmul.mubr.bf16.gmra.mrb[0].mxu0 %v5399
        %v6520 = vpop.f32.mrb[0].mxu0
        %v6521 = vadd.f32 %v6328, %v6520
        %v6522 = vpop.f32.mrb[0].mxu0
        %v6523 = vadd.f32 %v6330, %v6522
        %v6524 = vpop.f32.mrb[0].mxu0
        %v6525 = vadd.f32 %v6332, %v6524
        %v6526 = vpop.f32.mrb[0].mxu0
        %v6527 = vadd.f32 %v6334, %v6526
        %6528 = vmatprep.mubr.bf16.mxu0 %v5404
        %6529 = vmatmul.mubr.bf16.gmra.mrb[0].mxu0 %v5403
        %v6530 = vpop.f32.mrb[0].mxu0
        %v6531 = vadd.f32 %v6338, %v6530
        %v6532 = vpop.f32.mrb[0].mxu0
        %v6533 = vadd.f32 %v6340, %v6532
        %v6534 = vpop.f32.mrb[0].mxu0
        %v6535 = vadd.f32 %v6342, %v6534
        %v6536 = vpop.f32.mrb[0].mxu0
        %v6537 = vadd.f32 %v6344, %v6536
        %6538 = vmatprep.mubr.bf16.mxu0 %v5408
        %6539 = vmatmul.mubr.bf16.gmra.mrb[0].mxu0 %v5407
        %v6540 = vpop.f32.mrb[0].mxu0
        %v6541 = vadd.f32 %v6348, %v6540
        %v6542 = vpop.f32.mrb[0].mxu0
        %v6543 = vadd.f32 %v6350, %v6542
        %v6544 = vpop.f32.mrb[0].mxu0
        %v6545 = vadd.f32 %v6352, %v6544
        %v6546 = vpop.f32.mrb[0].mxu0
        %v6547 = vadd.f32 %v6354, %v6546
        %6548 = vmatprep.mubr.bf16.mxu0 %v5412
        %6549 = vmatmul.mubr.bf16.gmra.mrb[0].mxu0 %v5411
        %v6550 = vpop.f32.mrb[0].mxu0
        %v6551 = vadd.f32 %v6358, %v6550
        %v6552 = vpop.f32.mrb[0].mxu0
        %v6553 = vadd.f32 %v6360, %v6552
        %v6554 = vpop.f32.mrb[0].mxu0
        %v6555 = vadd.f32 %v6362, %v6554
        %v6556 = vpop.f32.mrb[0].mxu0
        %v6557 = vadd.f32 %v6364, %v6556
        %6558 = vmatprep.mubr.bf16.mxu0 %v5416
        %6559 = vmatmul.mubr.bf16.gmra.mrb[0].mxu0 %v5415
        %v6560 = vpop.f32.mrb[0].mxu0
        %v6561 = vadd.f32 %v6368, %v6560
        %v6562 = vpop.f32.mrb[0].mxu0
        %v6563 = vadd.f32 %v6370, %v6562
        %v6564 = vpop.f32.mrb[0].mxu0
        %v6565 = vadd.f32 %v6372, %v6564
        %v6566 = vpop.f32.mrb[0].mxu0
        %v6567 = vadd.f32 %v6374, %v6566
        %6568 = vmatprep.mubr.bf16.mxu0 %v5420
        %6569 = vmatmul.mubr.bf16.gmra.mrb[0].mxu0 %v5419
        %v6570 = vpop.f32.mrb[0].mxu0
        %v6571 = vadd.f32 %v6378, %v6570
        %v6572 = vpop.f32.mrb[0].mxu0
        %v6573 = vadd.f32 %v6380, %v6572
        %v6574 = vpop.f32.mrb[0].mxu0
        %v6575 = vadd.f32 %v6382, %v6574
        %v6576 = vpop.f32.mrb[0].mxu0
        %v6577 = vadd.f32 %v6384, %v6576
        %6578 = vmatprep.mubr.bf16.mxu0 %v5424
        %6579 = vmatmul.mubr.bf16.gmra.mrb[0].mxu0 %v5423
        %v6580 = vpop.f32.mrb[0].mxu0
        %v6581 = vadd.f32 %v6388, %v6580
        %v6582 = vpop.f32.mrb[0].mxu0
        %v6583 = vadd.f32 %v6390, %v6582
        %v6584 = vpop.f32.mrb[0].mxu0
        %v6585 = vadd.f32 %v6392, %v6584
        %v6586 = vpop.f32.mrb[0].mxu0
        %v6587 = vadd.f32 %v6394, %v6586
        %6588 = vmatprep.mubr.bf16.mxu0 %v5428
        %6589 = vmatmul.mubr.bf16.gmra.mrb[0].mxu0 %v5427
        %v6590 = vpop.f32.mrb[0].mxu0
        %v6591 = vadd.f32 %v6398, %v6590
        %v6592 = vpop.f32.mrb[0].mxu0
        %v6593 = vadd.f32 %v6400, %v6592
        %v6594 = vpop.f32.mrb[0].mxu0
        %v6595 = vadd.f32 %v6402, %v6594
        %v6596 = vpop.f32.mrb[0].mxu0
        %v6597 = vadd.f32 %v6404, %v6596
        %6598 = vmatprep.mubr.bf16.mxu0 %v5432
        %6599 = vmatmul.mubr.bf16.gmra.mrb[0].mxu0 %v5431
        %v6600 = vpop.f32.mrb[0].mxu0
        %v6601 = vadd.f32 %v6408, %v6600
        %v6602 = vpop.f32.mrb[0].mxu0
        %v6603 = vadd.f32 %v6410, %v6602
        %v6604 = vpop.f32.mrb[0].mxu0
        %v6605 = vadd.f32 %v6412, %v6604
        %v6606 = vpop.f32.mrb[0].mxu0
        %v6607 = vadd.f32 %v6414, %v6606
        %6608 = vdwg.mxu0
        %6609 = vmatprep.subr.bf16.mxu0 %v5970
        %6610 = vmatpush1.bf16.msra.mxu0 %v5969
        %6611 = vmatprep.subr.bf16.mxu0 %v5974
        %6612 = vmatpush1.bf16.msra.mxu0 %v5973
        %6613 = vmatprep.subr.bf16.mxu0 %v5978
        %6614 = vmatpush1.bf16.msra.mxu0 %v5977
        %6615 = vmatprep.subr.bf16.mxu0 %v5982
        %6616 = vmatpush1.bf16.msra.mxu0 %v5981
        %6617 = vmatprep.subr.bf16.mxu0 %v5986
        %6618 = vmatpush1.bf16.msra.mxu0 %v5985
        %6619 = vmatprep.subr.bf16.mxu0 %v5990
        %6620 = vmatpush1.bf16.msra.mxu0 %v5989
        %6621 = vmatprep.subr.bf16.mxu0 %v5994
        %6622 = vmatpush1.bf16.msra.mxu0 %v5993
        %6623 = vmatprep.subr.bf16.mxu0 %v5998
        %6624 = vmatpush1.bf16.msra.mxu0 %v5997
        %6625 = vmatprep.subr.bf16.mxu0 %v6002
        %6626 = vmatpush1.bf16.msra.mxu0 %v6001
        %6627 = vmatprep.subr.bf16.mxu0 %v6006
        %6628 = vmatpush1.bf16.msra.mxu0 %v6005
        %6629 = vmatprep.subr.bf16.mxu0 %v6010
        %6630 = vmatpush1.bf16.msra.mxu0 %v6009
        %6631 = vmatprep.subr.bf16.mxu0 %v6014
        %6632 = vmatpush1.bf16.msra.mxu0 %v6013
        %6633 = vmatprep.subr.bf16.mxu0 %v6018
        %6634 = vmatpush1.bf16.msra.mxu0 %v6017
        %6635 = vmatprep.subr.bf16.mxu0 %v6022
        %6636 = vmatpush1.bf16.msra.mxu0 %v6021
        %6637 = vmatprep.subr.bf16.mxu0 %v6026
        %6638 = vmatpush1.bf16.msra.mxu0 %v6025
        %6639 = vmatprep.subr.bf16.mxu0 %v6030
        %6640 = vmatpush1.bf16.msra.mxu0 %v6029
        %6641 = vmatprep.mubr.bf16.mxu0 %v5370
        %6642 = vmatmul.mubr.bf16.gmra.mrb[0].mxu0 %v5369
        %v6643 = vpop.f32.mrb[0].mxu0
        %v6644 = vadd.f32 %v5574, %v6643
        %v6645 = vpop.f32.mrb[0].mxu0
        %v6646 = vadd.f32 %v5578, %v6645
        %v6647 = vpop.f32.mrb[0].mxu0
        %v6648 = vadd.f32 %v5574, %v6647
        %v6649 = vpop.f32.mrb[0].mxu0
        %v6650 = vadd.f32 %v5578, %v6649
        %6651 = vmatprep.mubr.bf16.mxu0 %v5374
        %6652 = vmatmul.mubr.bf16.gmra.mrb[0].mxu0 %v5373
        %v6653 = vpop.f32.mrb[0].mxu0
        %v6654 = vadd.f32 %v5574, %v6653
        %v6655 = vpop.f32.mrb[0].mxu0
        %v6656 = vadd.f32 %v5578, %v6655
        %v6657 = vpop.f32.mrb[0].mxu0
        %v6658 = vadd.f32 %v5574, %v6657
        %v6659 = vpop.f32.mrb[0].mxu0
        %v6660 = vadd.f32 %v5578, %v6659
        %6661 = vmatprep.mubr.bf16.mxu0 %v5378
        %6662 = vmatmul.mubr.bf16.gmra.mrb[0].mxu0 %v5377
        %v6663 = vpop.f32.mrb[0].mxu0
        %v6664 = vadd.f32 %v5574, %v6663
        %v6665 = vpop.f32.mrb[0].mxu0
        %v6666 = vadd.f32 %v5578, %v6665
        %v6667 = vpop.f32.mrb[0].mxu0
        %v6668 = vadd.f32 %v5574, %v6667
        %v6669 = vpop.f32.mrb[0].mxu0
        %v6670 = vadd.f32 %v5578, %v6669
        %6671 = vmatprep.mubr.bf16.mxu0 %v5382
        %6672 = vmatmul.mubr.bf16.gmra.mrb[0].mxu0 %v5381
        %v6673 = vpop.f32.mrb[0].mxu0
        %v6674 = vadd.f32 %v5574, %v6673
        %v6675 = vpop.f32.mrb[0].mxu0
        %v6676 = vadd.f32 %v5578, %v6675
        %v6677 = vpop.f32.mrb[0].mxu0
        %v6678 = vadd.f32 %v5574, %v6677
        %v6679 = vpop.f32.mrb[0].mxu0
        %v6680 = vadd.f32 %v5578, %v6679
        %6681 = vmatprep.mubr.bf16.mxu0 %v5386
        %6682 = vmatmul.mubr.bf16.gmra.mrb[0].mxu0 %v5385
        %v6683 = vpop.f32.mrb[0].mxu0
        %v6684 = vadd.f32 %v5574, %v6683
        %v6685 = vpop.f32.mrb[0].mxu0
        %v6686 = vadd.f32 %v5578, %v6685
        %v6687 = vpop.f32.mrb[0].mxu0
        %v6688 = vadd.f32 %v5574, %v6687
        %v6689 = vpop.f32.mrb[0].mxu0
        %v6690 = vadd.f32 %v5578, %v6689
        %6691 = vmatprep.mubr.bf16.mxu0 %v5390
        %6692 = vmatmul.mubr.bf16.gmra.mrb[0].mxu0 %v5389
        %v6693 = vpop.f32.mrb[0].mxu0
        %v6694 = vadd.f32 %v5574, %v6693
        %v6695 = vpop.f32.mrb[0].mxu0
        %v6696 = vadd.f32 %v5578, %v6695
        %v6697 = vpop.f32.mrb[0].mxu0
        %v6698 = vadd.f32 %v5574, %v6697
        %v6699 = vpop.f32.mrb[0].mxu0
        %v6700 = vadd.f32 %v5578, %v6699
        %6701 = vmatprep.mubr.bf16.mxu0 %v5394
        %6702 = vmatmul.mubr.bf16.gmra.mrb[0].mxu0 %v5393
        %v6703 = vpop.f32.mrb[0].mxu0
        %v6704 = vadd.f32 %v5574, %v6703
        %v6705 = vpop.f32.mrb[0].mxu0
        %v6706 = vadd.f32 %v5578, %v6705
        %v6707 = vpop.f32.mrb[0].mxu0
        %v6708 = vadd.f32 %v5574, %v6707
        %v6709 = vpop.f32.mrb[0].mxu0
        %v6710 = vadd.f32 %v5578, %v6709
        %6711 = vmatprep.mubr.bf16.mxu0 %v5398
        %6712 = vmatmul.mubr.bf16.gmra.mrb[0].mxu0 %v5397
        %v6713 = vpop.f32.mrb[0].mxu0
        %v6714 = vadd.f32 %v5574, %v6713
        %v6715 = vpop.f32.mrb[0].mxu0
        %v6716 = vadd.f32 %v5578, %v6715
        %v6717 = vpop.f32.mrb[0].mxu0
        %v6718 = vadd.f32 %v5574, %v6717
        %v6719 = vpop.f32.mrb[0].mxu0
        %v6720 = vadd.f32 %v5578, %v6719
        %6721 = vmatprep.mubr.bf16.mxu0 %v5402
        %6722 = vmatmul.mubr.bf16.gmra.mrb[0].mxu0 %v5401
        %v6723 = vpop.f32.mrb[0].mxu0
        %v6724 = vadd.f32 %v5574, %v6723
        %v6725 = vpop.f32.mrb[0].mxu0
        %v6726 = vadd.f32 %v5578, %v6725
        %v6727 = vpop.f32.mrb[0].mxu0
        %v6728 = vadd.f32 %v5574, %v6727
        %v6729 = vpop.f32.mrb[0].mxu0
        %v6730 = vadd.f32 %v5578, %v6729
        %6731 = vmatprep.mubr.bf16.mxu0 %v5406
        %6732 = vmatmul.mubr.bf16.gmra.mrb[0].mxu0 %v5405
        %v6733 = vpop.f32.mrb[0].mxu0
        %v6734 = vadd.f32 %v5574, %v6733
        %v6735 = vpop.f32.mrb[0].mxu0
        %v6736 = vadd.f32 %v5578, %v6735
        %v6737 = vpop.f32.mrb[0].mxu0
        %v6738 = vadd.f32 %v5574, %v6737
        %v6739 = vpop.f32.mrb[0].mxu0
        %v6740 = vadd.f32 %v5578, %v6739
        %6741 = vmatprep.mubr.bf16.mxu0 %v5410
        %6742 = vmatmul.mubr.bf16.gmra.mrb[0].mxu0 %v5409
        %v6743 = vpop.f32.mrb[0].mxu0
        %v6744 = vadd.f32 %v5574, %v6743
        %v6745 = vpop.f32.mrb[0].mxu0
        %v6746 = vadd.f32 %v5578, %v6745
        %v6747 = vpop.f32.mrb[0].mxu0
        %v6748 = vadd.f32 %v5574, %v6747
        %v6749 = vpop.f32.mrb[0].mxu0
        %v6750 = vadd.f32 %v5578, %v6749
        %6751 = vmatprep.mubr.bf16.mxu0 %v5414
        %6752 = vmatmul.mubr.bf16.gmra.mrb[0].mxu0 %v5413
        %v6753 = vpop.f32.mrb[0].mxu0
        %v6754 = vadd.f32 %v5574, %v6753
        %v6755 = vpop.f32.mrb[0].mxu0
        %v6756 = vadd.f32 %v5578, %v6755
        %v6757 = vpop.f32.mrb[0].mxu0
        %v6758 = vadd.f32 %v5574, %v6757
        %v6759 = vpop.f32.mrb[0].mxu0
        %v6760 = vadd.f32 %v5578, %v6759
        %6761 = vmatprep.mubr.bf16.mxu0 %v5418
        %6762 = vmatmul.mubr.bf16.gmra.mrb[0].mxu0 %v5417
        %v6763 = vpop.f32.mrb[0].mxu0
        %v6764 = vadd.f32 %v5574, %v6763
        %v6765 = vpop.f32.mrb[0].mxu0
        %v6766 = vadd.f32 %v5578, %v6765
        %v6767 = vpop.f32.mrb[0].mxu0
        %v6768 = vadd.f32 %v5574, %v6767
        %v6769 = vpop.f32.mrb[0].mxu0
        %v6770 = vadd.f32 %v5578, %v6769
        %6771 = vmatprep.mubr.bf16.mxu0 %v5422
        %6772 = vmatmul.mubr.bf16.gmra.mrb[0].mxu0 %v5421
        %v6773 = vpop.f32.mrb[0].mxu0
        %v6774 = vadd.f32 %v5574, %v6773
        %v6775 = vpop.f32.mrb[0].mxu0
        %v6776 = vadd.f32 %v5578, %v6775
        %v6777 = vpop.f32.mrb[0].mxu0
        %v6778 = vadd.f32 %v5574, %v6777
        %v6779 = vpop.f32.mrb[0].mxu0
        %v6780 = vadd.f32 %v5578, %v6779
        %6781 = vmatprep.mubr.bf16.mxu0 %v5426
        %6782 = vmatmul.mubr.bf16.gmra.mrb[0].mxu0 %v5425
        %v6783 = vpop.f32.mrb[0].mxu0
        %v6784 = vadd.f32 %v5574, %v6783
        %v6785 = vpop.f32.mrb[0].mxu0
        %v6786 = vadd.f32 %v5578, %v6785
        %v6787 = vpop.f32.mrb[0].mxu0
        %v6788 = vadd.f32 %v5574, %v6787
        %v6789 = vpop.f32.mrb[0].mxu0
        %v6790 = vadd.f32 %v5578, %v6789
        %6791 = vmatprep.mubr.bf16.mxu0 %v5430
        %6792 = vmatmul.mubr.bf16.gmra.mrb[0].mxu0 %v5429
        %v6793 = vpop.f32.mrb[0].mxu0
        %v6794 = vadd.f32 %v5574, %v6793
        %v6795 = vpop.f32.mrb[0].mxu0
        %v6796 = vadd.f32 %v5578, %v6795
        %v6797 = vpop.f32.mrb[0].mxu0
        %v6798 = vadd.f32 %v5574, %v6797
        %v6799 = vpop.f32.mrb[0].mxu0
        %v6800 = vadd.f32 %v5578, %v6799
        %6801 = vdwg.mxu0
        %6802 = vmatprep.subr.bf16.mxu0 %v6034
        %6803 = vmatpush1.bf16.msra.mxu0 %v6033
        %6804 = vmatprep.subr.bf16.mxu0 %v6038
        %6805 = vmatpush1.bf16.msra.mxu0 %v6037
        %6806 = vmatprep.subr.bf16.mxu0 %v6042
        %6807 = vmatpush1.bf16.msra.mxu0 %v6041
        %6808 = vmatprep.subr.bf16.mxu0 %v6046
        %6809 = vmatpush1.bf16.msra.mxu0 %v6045
        %6810 = vmatprep.subr.bf16.mxu0 %v6050
        %6811 = vmatpush1.bf16.msra.mxu0 %v6049
        %6812 = vmatprep.subr.bf16.mxu0 %v6054
        %6813 = vmatpush1.bf16.msra.mxu0 %v6053
        %6814 = vmatprep.subr.bf16.mxu0 %v6058
        %6815 = vmatpush1.bf16.msra.mxu0 %v6057
        %6816 = vmatprep.subr.bf16.mxu0 %v6062
        %6817 = vmatpush1.bf16.msra.mxu0 %v6061
        %6818 = vmatprep.subr.bf16.mxu0 %v6066
        %6819 = vmatpush1.bf16.msra.mxu0 %v6065
        %6820 = vmatprep.subr.bf16.mxu0 %v6070
        %6821 = vmatpush1.bf16.msra.mxu0 %v6069
        %6822 = vmatprep.subr.bf16.mxu0 %v6074
        %6823 = vmatpush1.bf16.msra.mxu0 %v6073
        %6824 = vmatprep.subr.bf16.mxu0 %v6078
        %6825 = vmatpush1.bf16.msra.mxu0 %v6077
        %6826 = vmatprep.subr.bf16.mxu0 %v6082
        %6827 = vmatpush1.bf16.msra.mxu0 %v6081
        %6828 = vmatprep.subr.bf16.mxu0 %v6086
        %6829 = vmatpush1.bf16.msra.mxu0 %v6085
        %6830 = vmatprep.subr.bf16.mxu0 %v6090
        %6831 = vmatpush1.bf16.msra.mxu0 %v6089
        %6832 = vmatprep.subr.bf16.mxu0 %v6094
        %6833 = vmatpush1.bf16.msra.mxu0 %v6093
        %6834 = vmatprep.mubr.bf16.mxu0 %v5372
        %6835 = vmatmul.mubr.bf16.gmra.mrb[0].mxu0 %v5371
        %v6836 = vpop.f32.mrb[0].mxu0
        %v6837 = vadd.f32 %v6644, %v6836
        %v6838 = vpop.f32.mrb[0].mxu0
        %v6839 = vadd.f32 %v6646, %v6838
        %v6840 = vpop.f32.mrb[0].mxu0
        %v6841 = vadd.f32 %v6648, %v6840
        %v6842 = vpop.f32.mrb[0].mxu0
        %v6843 = vadd.f32 %v6650, %v6842
        %6844 = vmatprep.mubr.bf16.mxu0 %v5376
        %6845 = vmatmul.mubr.bf16.gmra.mrb[0].mxu0 %v5375
        %v6846 = vpop.f32.mrb[0].mxu0
        %v6847 = vadd.f32 %v6654, %v6846
        %v6848 = vpop.f32.mrb[0].mxu0
        %v6849 = vadd.f32 %v6656, %v6848
        %v6850 = vpop.f32.mrb[0].mxu0
        %v6851 = vadd.f32 %v6658, %v6850
        %v6852 = vpop.f32.mrb[0].mxu0
        %v6853 = vadd.f32 %v6660, %v6852
        %6854 = vmatprep.mubr.bf16.mxu0 %v5380
        %6855 = vmatmul.mubr.bf16.gmra.mrb[0].mxu0 %v5379
        %v6856 = vpop.f32.mrb[0].mxu0
        %v6857 = vadd.f32 %v6664, %v6856
        %v6858 = vpop.f32.mrb[0].mxu0
        %v6859 = vadd.f32 %v6666, %v6858
        %v6860 = vpop.f32.mrb[0].mxu0
        %v6861 = vadd.f32 %v6668, %v6860
        %v6862 = vpop.f32.mrb[0].mxu0
        %v6863 = vadd.f32 %v6670, %v6862
        %6864 = vmatprep.mubr.bf16.mxu0 %v5384
        %6865 = vmatmul.mubr.bf16.gmra.mrb[0].mxu0 %v5383
        %v6866 = vpop.f32.mrb[0].mxu0
        %v6867 = vadd.f32 %v6674, %v6866
        %v6868 = vpop.f32.mrb[0].mxu0
        %v6869 = vadd.f32 %v6676, %v6868
        %v6870 = vpop.f32.mrb[0].mxu0
        %v6871 = vadd.f32 %v6678, %v6870
        %v6872 = vpop.f32.mrb[0].mxu0
        %v6873 = vadd.f32 %v6680, %v6872
        %6874 = vmatprep.mubr.bf16.mxu0 %v5388
        %6875 = vmatmul.mubr.bf16.gmra.mrb[0].mxu0 %v5387
        %v6876 = vpop.f32.mrb[0].mxu0
        %v6877 = vadd.f32 %v6684, %v6876
        %v6878 = vpop.f32.mrb[0].mxu0
        %v6879 = vadd.f32 %v6686, %v6878
        %v6880 = vpop.f32.mrb[0].mxu0
        %v6881 = vadd.f32 %v6688, %v6880
        %v6882 = vpop.f32.mrb[0].mxu0
        %v6883 = vadd.f32 %v6690, %v6882
        %6884 = vmatprep.mubr.bf16.mxu0 %v5392
        %6885 = vmatmul.mubr.bf16.gmra.mrb[0].mxu0 %v5391
        %v6886 = vpop.f32.mrb[0].mxu0
        %v6887 = vadd.f32 %v6694, %v6886
        %v6888 = vpop.f32.mrb[0].mxu0
        %v6889 = vadd.f32 %v6696, %v6888
        %v6890 = vpop.f32.mrb[0].mxu0
        %v6891 = vadd.f32 %v6698, %v6890
        %v6892 = vpop.f32.mrb[0].mxu0
        %v6893 = vadd.f32 %v6700, %v6892
        %6894 = vmatprep.mubr.bf16.mxu0 %v5396
        %6895 = vmatmul.mubr.bf16.gmra.mrb[0].mxu0 %v5395
        %v6896 = vpop.f32.mrb[0].mxu0
        %v6897 = vadd.f32 %v6704, %v6896
        %v6898 = vpop.f32.mrb[0].mxu0
        %v6899 = vadd.f32 %v6706, %v6898
        %v6900 = vpop.f32.mrb[0].mxu0
        %v6901 = vadd.f32 %v6708, %v6900
        %v6902 = vpop.f32.mrb[0].mxu0
        %v6903 = vadd.f32 %v6710, %v6902
        %6904 = vmatprep.mubr.bf16.mxu0 %v5400
        %6905 = vmatmul.mubr.bf16.gmra.mrb[0].mxu0 %v5399
        %v6906 = vpop.f32.mrb[0].mxu0
        %v6907 = vadd.f32 %v6714, %v6906
        %v6908 = vpop.f32.mrb[0].mxu0
        %v6909 = vadd.f32 %v6716, %v6908
        %v6910 = vpop.f32.mrb[0].mxu0
        %v6911 = vadd.f32 %v6718, %v6910
        %v6912 = vpop.f32.mrb[0].mxu0
        %v6913 = vadd.f32 %v6720, %v6912
        %6914 = vmatprep.mubr.bf16.mxu0 %v5404
        %6915 = vmatmul.mubr.bf16.gmra.mrb[0].mxu0 %v5403
        %v6916 = vpop.f32.mrb[0].mxu0
        %v6917 = vadd.f32 %v6724, %v6916
        %v6918 = vpop.f32.mrb[0].mxu0
        %v6919 = vadd.f32 %v6726, %v6918
        %v6920 = vpop.f32.mrb[0].mxu0
        %v6921 = vadd.f32 %v6728, %v6920
        %v6922 = vpop.f32.mrb[0].mxu0
        %v6923 = vadd.f32 %v6730, %v6922
        %6924 = vmatprep.mubr.bf16.mxu0 %v5408
        %6925 = vmatmul.mubr.bf16.gmra.mrb[0].mxu0 %v5407
        %v6926 = vpop.f32.mrb[0].mxu0
        %v6927 = vadd.f32 %v6734, %v6926
        %v6928 = vpop.f32.mrb[0].mxu0
        %v6929 = vadd.f32 %v6736, %v6928
        %v6930 = vpop.f32.mrb[0].mxu0
        %v6931 = vadd.f32 %v6738, %v6930
        %v6932 = vpop.f32.mrb[0].mxu0
        %v6933 = vadd.f32 %v6740, %v6932
        %6934 = vmatprep.mubr.bf16.mxu0 %v5412
        %6935 = vmatmul.mubr.bf16.gmra.mrb[0].mxu0 %v5411
        %v6936 = vpop.f32.mrb[0].mxu0
        %v6937 = vadd.f32 %v6744, %v6936
        %v6938 = vpop.f32.mrb[0].mxu0
        %v6939 = vadd.f32 %v6746, %v6938
        %v6940 = vpop.f32.mrb[0].mxu0
        %v6941 = vadd.f32 %v6748, %v6940
        %v6942 = vpop.f32.mrb[0].mxu0
        %v6943 = vadd.f32 %v6750, %v6942
        %6944 = vmatprep.mubr.bf16.mxu0 %v5416
        %6945 = vmatmul.mubr.bf16.gmra.mrb[0].mxu0 %v5415
        %v6946 = vpop.f32.mrb[0].mxu0
        %v6947 = vadd.f32 %v6754, %v6946
        %v6948 = vpop.f32.mrb[0].mxu0
        %v6949 = vadd.f32 %v6756, %v6948
        %v6950 = vpop.f32.mrb[0].mxu0
        %v6951 = vadd.f32 %v6758, %v6950
        %v6952 = vpop.f32.mrb[0].mxu0
        %v6953 = vadd.f32 %v6760, %v6952
        %6954 = vmatprep.mubr.bf16.mxu0 %v5420
        %6955 = vmatmul.mubr.bf16.gmra.mrb[0].mxu0 %v5419
        %v6956 = vpop.f32.mrb[0].mxu0
        %v6957 = vadd.f32 %v6764, %v6956
        %v6958 = vpop.f32.mrb[0].mxu0
        %v6959 = vadd.f32 %v6766, %v6958
        %v6960 = vpop.f32.mrb[0].mxu0
        %v6961 = vadd.f32 %v6768, %v6960
        %v6962 = vpop.f32.mrb[0].mxu0
        %v6963 = vadd.f32 %v6770, %v6962
        %6964 = vmatprep.mubr.bf16.mxu0 %v5424
        %6965 = vmatmul.mubr.bf16.gmra.mrb[0].mxu0 %v5423
        %v6966 = vpop.f32.mrb[0].mxu0
        %v6967 = vadd.f32 %v6774, %v6966
        %v6968 = vpop.f32.mrb[0].mxu0
        %v6969 = vadd.f32 %v6776, %v6968
        %v6970 = vpop.f32.mrb[0].mxu0
        %v6971 = vadd.f32 %v6778, %v6970
        %v6972 = vpop.f32.mrb[0].mxu0
        %v6973 = vadd.f32 %v6780, %v6972
        %6974 = vmatprep.mubr.bf16.mxu0 %v5428
        %6975 = vmatmul.mubr.bf16.gmra.mrb[0].mxu0 %v5427
        %v6976 = vpop.f32.mrb[0].mxu0
        %v6977 = vadd.f32 %v6784, %v6976
        %v6978 = vpop.f32.mrb[0].mxu0
        %v6979 = vadd.f32 %v6786, %v6978
        %v6980 = vpop.f32.mrb[0].mxu0
        %v6981 = vadd.f32 %v6788, %v6980
        %v6982 = vpop.f32.mrb[0].mxu0
        %v6983 = vadd.f32 %v6790, %v6982
        %6984 = vmatprep.mubr.bf16.mxu0 %v5432
        %6985 = vmatmul.mubr.bf16.gmra.mrb[0].mxu0 %v5431
        %v6986 = vpop.f32.mrb[0].mxu0
        %v6987 = vadd.f32 %v6794, %v6986
        %v6988 = vpop.f32.mrb[0].mxu0
        %v6989 = vadd.f32 %v6796, %v6988
        %v6990 = vpop.f32.mrb[0].mxu0
        %v6991 = vadd.f32 %v6798, %v6990
        %v6992 = vpop.f32.mrb[0].mxu0
        %v6993 = vadd.f32 %v6800, %v6992
        %6994 = vdwg.mxu0
        %6995 = vst [vmem:[%s514] sm:$0xff] %v6451
        %6996 = vst [vmem:[%s514 + $0x8] sm:$0xff] %v6453
        %6997 = vst [vmem:[%s514 + $0x10] sm:$0xff] %v6837
        %6998 = vst [vmem:[%s514 + $0x18] sm:$0xff] %v6839
        %6999 = vst [vmem:[%s514 + $0x20] sm:$0xff] %v6455
        %7000 = vst [vmem:[%s514 + $0x28] sm:$0xff] %v6457
        %7001 = vst [vmem:[%s514 + $0x30] sm:$0xff] %v6841
        %7002 = vst [vmem:[%s514 + $0x38] sm:$0xff] %v6843
        %7003 = vst [vmem:[%s514 + $0x40] sm:$0xff] %v6461
        %7004 = vst [vmem:[%s514 + $0x48] sm:$0xff] %v6463
        %7005 = vst [vmem:[%s514 + $0x50] sm:$0xff] %v6847
        %7006 = vst [vmem:[%s514 + $0x58] sm:$0xff] %v6849
        %7007 = vst [vmem:[%s514 + $0x60] sm:$0xff] %v6465
        %7008 = vst [vmem:[%s514 + $0x68] sm:$0xff] %v6467
        %7009 = vst [vmem:[%s514 + $0x70] sm:$0xff] %v6851
        %7010 = vst [vmem:[%s514 + $0x78] sm:$0xff] %v6853
        %7011 = vst [vmem:[%s514 + $0x80] sm:$0xff] %v6471
        %7012 = vst [vmem:[%s514 + $0x88] sm:$0xff] %v6473
        %7013 = vst [vmem:[%s514 + $0x90] sm:$0xff] %v6857
        %7014 = vst [vmem:[%s514 + $0x98] sm:$0xff] %v6859
        %7015 = vst [vmem:[%s514 + $0xa0] sm:$0xff] %v6475
        %7016 = vst [vmem:[%s514 + $0xa8] sm:$0xff] %v6477
        %7017 = vst [vmem:[%s514 + $0xb0] sm:$0xff] %v6861
        %7018 = vst [vmem:[%s514 + $0xb8] sm:$0xff] %v6863
        %7019 = vst [vmem:[%s514 + $0xc0] sm:$0xff] %v6481
        %7020 = vst [vmem:[%s514 + $0xc8] sm:$0xff] %v6483
        %7021 = vst [vmem:[%s514 + $0xd0] sm:$0xff] %v6867
        %7022 = vst [vmem:[%s514 + $0xd8] sm:$0xff] %v6869
        %7023 = vst [vmem:[%s514 + $0xe0] sm:$0xff] %v6485
        %7024 = vst [vmem:[%s514 + $0xe8] sm:$0xff] %v6487
        %7025 = vst [vmem:[%s514 + $0xf0] sm:$0xff] %v6871
        %7026 = vst [vmem:[%s514 + $0xf8] sm:$0xff] %v6873
        %7027 = vst [vmem:[%s514 + $0x100] sm:$0xff] %v6491
        %7028 = vst [vmem:[%s514 + $0x108] sm:$0xff] %v6493
        %7029 = vst [vmem:[%s514 + $0x110] sm:$0xff] %v6877
        %7030 = vst [vmem:[%s514 + $0x118] sm:$0xff] %v6879
        %7031 = vst [vmem:[%s514 + $0x120] sm:$0xff] %v6495
        %7032 = vst [vmem:[%s514 + $0x128] sm:$0xff] %v6497
        %7033 = vst [vmem:[%s514 + $0x130] sm:$0xff] %v6881
        %7034 = vst [vmem:[%s514 + $0x138] sm:$0xff] %v6883
        %7035 = vst [vmem:[%s514 + $0x140] sm:$0xff] %v6501
        %7036 = vst [vmem:[%s514 + $0x148] sm:$0xff] %v6503
        %7037 = vst [vmem:[%s514 + $0x150] sm:$0xff] %v6887
        %7038 = vst [vmem:[%s514 + $0x158] sm:$0xff] %v6889
        %7039 = vst [vmem:[%s514 + $0x160] sm:$0xff] %v6505
        %7040 = vst [vmem:[%s514 + $0x168] sm:$0xff] %v6507
        %7041 = vst [vmem:[%s514 + $0x170] sm:$0xff] %v6891
        %7042 = vst [vmem:[%s514 + $0x178] sm:$0xff] %v6893
        %7043 = vst [vmem:[%s514 + $0x180] sm:$0xff] %v6511
        %7044 = vst [vmem:[%s514 + $0x188] sm:$0xff] %v6513
        %7045 = vst [vmem:[%s514 + $0x190] sm:$0xff] %v6897
        %7046 = vst [vmem:[%s514 + $0x198] sm:$0xff] %v6899
        %7047 = vst [vmem:[%s514 + $0x1a0] sm:$0xff] %v6515
        %7048 = vst [vmem:[%s514 + $0x1a8] sm:$0xff] %v6517
        %7049 = vst [vmem:[%s514 + $0x1b0] sm:$0xff] %v6901
        %7050 = vst [vmem:[%s514 + $0x1b8] sm:$0xff] %v6903
        %7051 = vst [vmem:[%s514 + $0x1c0] sm:$0xff] %v6521
        %7052 = vst [vmem:[%s514 + $0x1c8] sm:$0xff] %v6523
        %7053 = vst [vmem:[%s514 + $0x1d0] sm:$0xff] %v6907
        %7054 = vst [vmem:[%s514 + $0x1d8] sm:$0xff] %v6909
        %7055 = vst [vmem:[%s514 + $0x1e0] sm:$0xff] %v6525
        %7056 = vst [vmem:[%s514 + $0x1e8] sm:$0xff] %v6527
        %7057 = vst [vmem:[%s514 + $0x1f0] sm:$0xff] %v6911
        %7058 = vst [vmem:[%s514 + $0x1f8] sm:$0xff] %v6913
        %7059 = vst [vmem:[%s514 + $0x200] sm:$0xff] %v6531
        %7060 = vst [vmem:[%s514 + $0x208] sm:$0xff] %v6533
        %7061 = vst [vmem:[%s514 + $0x210] sm:$0xff] %v6917
        %7062 = vst [vmem:[%s514 + $0x218] sm:$0xff] %v6919
        %7063 = vst [vmem:[%s514 + $0x220] sm:$0xff] %v6535
        %7064 = vst [vmem:[%s514 + $0x228] sm:$0xff] %v6537
        %7065 = vst [vmem:[%s514 + $0x230] sm:$0xff] %v6921
        %7066 = vst [vmem:[%s514 + $0x238] sm:$0xff] %v6923
        %7067 = vst [vmem:[%s514 + $0x240] sm:$0xff] %v6541
        %7068 = vst [vmem:[%s514 + $0x248] sm:$0xff] %v6543
        %7069 = vst [vmem:[%s514 + $0x250] sm:$0xff] %v6927
        %7070 = vst [vmem:[%s514 + $0x258] sm:$0xff] %v6929
        %7071 = vst [vmem:[%s514 + $0x260] sm:$0xff] %v6545
        %7072 = vst [vmem:[%s514 + $0x268] sm:$0xff] %v6547
        %7073 = vst [vmem:[%s514 + $0x270] sm:$0xff] %v6931
        %7074 = vst [vmem:[%s514 + $0x278] sm:$0xff] %v6933
        %7075 = vst [vmem:[%s514 + $0x280] sm:$0xff] %v6551
        %7076 = vst [vmem:[%s514 + $0x288] sm:$0xff] %v6553
        %7077 = vst [vmem:[%s514 + $0x290] sm:$0xff] %v6937
        %7078 = vst [vmem:[%s514 + $0x298] sm:$0xff] %v6939
        %7079 = vst [vmem:[%s514 + $0x2a0] sm:$0xff] %v6555
        %7080 = vst [vmem:[%s514 + $0x2a8] sm:$0xff] %v6557
        %7081 = vst [vmem:[%s514 + $0x2b0] sm:$0xff] %v6941
        %7082 = vst [vmem:[%s514 + $0x2b8] sm:$0xff] %v6943
        %7083 = vst [vmem:[%s514 + $0x2c0] sm:$0xff] %v6561
        %7084 = vst [vmem:[%s514 + $0x2c8] sm:$0xff] %v6563
        %7085 = vst [vmem:[%s514 + $0x2d0] sm:$0xff] %v6947
        %7086 = vst [vmem:[%s514 + $0x2d8] sm:$0xff] %v6949
        %7087 = vst [vmem:[%s514 + $0x2e0] sm:$0xff] %v6565
        %7088 = vst [vmem:[%s514 + $0x2e8] sm:$0xff] %v6567
        %7089 = vst [vmem:[%s514 + $0x2f0] sm:$0xff] %v6951
        %7090 = vst [vmem:[%s514 + $0x2f8] sm:$0xff] %v6953
        %7091 = vst [vmem:[%s514 + $0x300] sm:$0xff] %v6571
        %7092 = vst [vmem:[%s514 + $0x308] sm:$0xff] %v6573
        %7093 = vst [vmem:[%s514 + $0x310] sm:$0xff] %v6957
        %7094 = vst [vmem:[%s514 + $0x318] sm:$0xff] %v6959
        %7095 = vst [vmem:[%s514 + $0x320] sm:$0xff] %v6575
        %7096 = vst [vmem:[%s514 + $0x328] sm:$0xff] %v6577
        %7097 = vst [vmem:[%s514 + $0x330] sm:$0xff] %v6961
        %7098 = vst [vmem:[%s514 + $0x338] sm:$0xff] %v6963
        %7099 = vst [vmem:[%s514 + $0x340] sm:$0xff] %v6581
        %7100 = vst [vmem:[%s514 + $0x348] sm:$0xff] %v6583
        %7101 = vst [vmem:[%s514 + $0x350] sm:$0xff] %v6967
        %7102 = vst [vmem:[%s514 + $0x358] sm:$0xff] %v6969
        %7103 = vst [vmem:[%s514 + $0x360] sm:$0xff] %v6585
        %7104 = vst [vmem:[%s514 + $0x368] sm:$0xff] %v6587
        %7105 = vst [vmem:[%s514 + $0x370] sm:$0xff] %v6971
        %7106 = vst [vmem:[%s514 + $0x378] sm:$0xff] %v6973
        %7107 = vst [vmem:[%s514 + $0x380] sm:$0xff] %v6591
        %7108 = vst [vmem:[%s514 + $0x388] sm:$0xff] %v6593
        %7109 = vst [vmem:[%s514 + $0x390] sm:$0xff] %v6977
        %7110 = vst [vmem:[%s514 + $0x398] sm:$0xff] %v6979
        %7111 = vst [vmem:[%s514 + $0x3a0] sm:$0xff] %v6595
        %7112 = vst [vmem:[%s514 + $0x3a8] sm:$0xff] %v6597
        %7113 = vst [vmem:[%s514 + $0x3b0] sm:$0xff] %v6981
        %7114 = vst [vmem:[%s514 + $0x3b8] sm:$0xff] %v6983
        %7115 = vst [vmem:[%s514 + $0x3c0] sm:$0xff] %v6601
        %7116 = vst [vmem:[%s514 + $0x3c8] sm:$0xff] %v6603
        %7117 = vst [vmem:[%s514 + $0x3d0] sm:$0xff] %v6987
        %7118 = vst [vmem:[%s514 + $0x3d8] sm:$0xff] %v6989
        %7119 = vst [vmem:[%s514 + $0x3e0] sm:$0xff] %v6605
        %7120 = vst [vmem:[%s514 + $0x3e8] sm:$0xff] %v6607
        %7121 = vst [vmem:[%s514 + $0x3f0] sm:$0xff] %v6991
        %7122 = vst [vmem:[%s514 + $0x3f8] sm:$0xff] %v6993
        %s7123 = sand.u32 %s275, 1
        %s7124 = scalar_lea.sflag [#allocation4], %s7123
        %s7125 = sand.u32 %s275, 1
        %s7126 = smul.addr %s7125, 1024
        %s7127 = scalar_lea.vmem [#allocation19], %s7126
        // Predicated region
        $region105: #{tpu_custom_call.1} parent=63 // pred_check
          %p7128 = pneg %p285
        $region106: #{tpu_custom_call.1} parent=63 // pred_check_branch
          %7130 = sbr.rel (%p7128) target = $region108
        $region107: #{tpu_custom_call.1} parent=63 // pred_region
          %s7131 = smul.u32 32, %s31
          %s7133 = ssub.s32 16384, 16384
          %7134 = vsyncadd %s7124, %s7133
          %s7135 = smul.addr %s7131, 4
          %s7136 = smul.addr %s7135, 128
          %s7137 = scalar_lea.hbm %s11, %s7136
          %s7138 = sshll.u32 %s7127, 4
          %s7139 = int_to_ptr.vmem [resolvable:$true] %s7138
          %7144 = dma.vmem_to_hbm [thread:$0]  %s7139, 16384, %s7137, %s7124, 512, 512, 32
        $region108: #{tpu_custom_call.1} parent=63 // pred_fallthru
          _
      $region64: #{tpu_custom_call.1} parent=5 // pred_fallthru
        _
      %p7145 = scmp.le.s32.totalorder 2, %s26
      // Predicated region
      $region109: #{tpu_custom_call.1} parent=5 // pred_check
        %p7146 = pneg %p7145
      $region110: #{tpu_custom_call.1} parent=5 // pred_check_branch
        %7148 = sbr.rel (%p7146) target = $region112
      $region111: #{tpu_custom_call.1} parent=5 // pred_region
        %s7149 = ssub.s32 %s26, 2
        // Predicated region
        $region113: #{tpu_custom_call.1} parent=111 // pred_check
          %p7150 = pneg %p291
        $region114: #{tpu_custom_call.1} parent=111 // pred_check_branch
          %7152 = sbr.rel (%p7150) target = $region116
        $region115: #{tpu_custom_call.1} parent=111 // pred_region
          %s7153 = sand.u32 %s276, 1
          %s7154 = scalar_lea.sflag [#allocation4], %s7153
          %s7155 = sand.u32 %s276, 1
          %s7156 = smul.addr %s7155, 1024
          %s7157 = scalar_lea.vmem [#allocation19], %s7156
          %7158 = dma.done %s7154, 16384
        $region116: #{tpu_custom_call.1} parent=111 // pred_fallthru
          _
      $region112: #{tpu_custom_call.1} parent=5 // pred_fallthru
        _
    $region6: #{tpu_custom_call.1} parent=1 // loop_footer
      %s30 = sadd.s32 1, %s26
    $region7: #{tpu_custom_call.1} parent=1 // loop_footer_branch
      %25 = sbr.rel target = $region3
    $region8: #{tpu_custom_call.1} parent=1 // loop_exit
      _
    %7159 = vsyncpa [#allocation3], 1
    %s7160 = scalar_lea.sflag [#allocation3], 1
    %7161 = vsyncpa %s7160, 1
    %7162 = vsyncpa [#allocation6], 1
    %7163 = vsyncpa [#allocation9], 1
    %7164 = vsyncpa [#allocation12], 1
    %7165 = vsyncpa [#allocation15], 1
    %7166 = vsyncpa [#allocation18], 1
    %7167 = vsyncpa [#allocation4], 1
    %s7168 = scalar_lea.sflag [#allocation4], 1
    %7169 = vsyncpa %s7168, 1

</llo_original>
